<compile_context>
chip_gen: v7x
topology: tpu7x:2x2x1
jax: 0.10.0
libtpu: 0.0.40
codegen_flags: <defaults>
</compile_context>

<pallas_src>
import functools

import jax
import jax.numpy as jnp
from jax import lax
from jax.experimental import pallas as pl
from jax.experimental.pallas import tpu as pltpu


def _round_up(x, m):
    return ((x + m - 1) // m) * m


# ---------------------------------------------------------------------------
# Pallas kernel: implicit-GEMM conv for one (image, row-tile) grid step
# ---------------------------------------------------------------------------
def _conv_igemm_kernel(x_ref, w_ref, b_ref, o_ref, acc_ref, *,
                       kh, kw, dilation, w_in, tile_rows, single_tile):
    # x_ref  : (1, IMG_ROWS, Cin_p)  bf16 — whole padded, row-flattened image
    #          (block index ignores the row-tile axis, so it is DMA'd once per image)
    # w_ref  : (KH*KW, Cin_p, Cout_p) bf16
    # b_ref  : (1, Cout_p) f32
    # o_ref  : (1, tile_rows, Cout_p)
    # acc_ref: (tile_rows, Cout_p) f32 scratch accumulator
    if single_tile:
        base = 0  # static offsets when one tile covers the whole image
    else:
        base = pl.multiple_of(pl.program_id(1) * tile_rows, 8)

    acc_ref[...] = jnp.zeros_like(acc_ref)
    # Unrolled (kh, kw) loop: KH*KW accumulated (tile_rows, Cin_p)@(Cin_p, Cout_p)
    # MXU dots — this IS the im2col, fused into the kernel.
    for i in range(kh):
        for j in range(kw):
            off = base + i * dilation * w_in + j * dilation
            lhs = x_ref[0, pl.ds(off, tile_rows), :]          # (tile_rows, Cin_p)
            acc_ref[...] += jnp.dot(lhs, w_ref[i * kw + j],
                                    preferred_element_type=jnp.float32)

    o_ref[0] = (acc_ref[...] + b_ref[...]).astype(o_ref.dtype)


# ---------------------------------------------------------------------------
# Wrapper: ConvModule.forward (nn.Conv2d) semantics
# ---------------------------------------------------------------------------
def conv_module_forward(x_nchw, weight, bias, *, stride=1, padding=0,
                        dilation=1, groups=1):
    """Equivalent of ConvModule.forward (nn.Conv2d) using a Pallas implicit-GEMM kernel.

    x_nchw:  (N, Cin, H, W)   float32
    weight:  (Cout, Cin, KH, KW)
    bias:    (Cout,) or None
    """
    assert groups == 1  # TODO(synk): grouped conv not implemented (module default groups=1)
    N, Cin, H, W = x_nchw.shape
    Cout, _, KH, KW = weight.shape
    out_dtype = x_nchw.dtype

    # --- geometry (stride-1 "virtual" conv; stride handled by subsampling below) ---
    OH1 = H + 2 * padding - dilation * (KH - 1)
    OW1 = W + 2 * padding - dilation * (KW - 1)
    assert OH1 > 0 and OW1 > 0
    # TODO(synk): stride > 1 is computed as stride-1 conv + subsample (correct but
    # does ~stride^2 extra work); a strided fast path would pre-stride the LHS rows.

    # --- padded / aligned layout parameters ---
    cin_p = _round_up(Cin, 8)            # pad contraction dim (sublane side of RHS)
    cout_p = _round_up(Cout, 128)        # lane-dense output stores / MXU N dim
    w_in = _round_up(W + 2 * padding, 8)  # virtual output width == padded input width

    # Row tile: aim for ~512 flattened output rows per grid step (big tiles ->
    # better HBM bandwidth utilization; per-step overhead ~0.35us).
    toh = max(1, min(OH1, 512 // w_in))
    oh_pad = _round_up(OH1, toh)
    n_tiles = oh_pad // toh
    tile_rows = toh * w_in

    # Extra zero rows so the (kh, kw)-shifted contiguous slices never run off the image.
    extra_h = -(-((KW - 1) * dilation) // w_in) if KW > 1 else 0
    h_img = oh_pad + (KH - 1) * dilation + extra_h
    img_rows = h_img * w_in

    # --- input prep: NCHW -> NHWC, small spatial/channel zero-pad, bf16, flatten rows ---
    x_nhwc = jnp.transpose(x_nchw, (0, 2, 3, 1)).astype(jnp.bfloat16)
    x_img = jnp.pad(
        x_nhwc,
        ((0, 0),
         (padding, h_img - H - padding),
         (padding, w_in - W - padding),
         (0, cin_p - Cin)))
    x_flat = x_img.reshape(N, img_rows, cin_p)            # free reshape (contiguous)

    # --- weight / bias prep: (Cout,Cin,KH,KW) -> (KH*KW, Cin_p, Cout_p), bf16 ---
    w_t = jnp.transpose(weight, (2, 3, 1, 0))
    w_t = jnp.pad(w_t, ((0, 0), (0, 0), (0, cin_p - Cin), (0, cout_p - Cout)))
    w_mat = w_t.reshape(KH * KW, cin_p, cout_p).astype(jnp.bfloat16)

    if bias is None:
        bias_row = jnp.zeros((1, cout_p), jnp.float32)
    else:
        bias_row = jnp.pad(bias.astype(jnp.float32),
                           (0, cout_p - Cout)).reshape(1, cout_p)

    kernel = functools.partial(
        _conv_igemm_kernel, kh=KH, kw=KW, dilation=dilation, w_in=w_in,
        tile_rows=tile_rows, single_tile=(n_tiles == 1))

    flops = 2 * N * oh_pad * w_in * KH * KW * cin_p * cout_p
    bytes_accessed = (x_flat.size * 2 + w_mat.size * 2 + bias_row.size * 4
                      + N * oh_pad * w_in * cout_p * jnp.dtype(out_dtype).itemsize)

    # TODO(synk): for very large Cout/Cin add Cout (and K) grid axes with a
    # pl.when(k==0)/pl.when(k==last) accumulator, and consider fp8 operands on v7x.
    out_flat = pl.pallas_call(
        kernel,
        out_shape=jax.ShapeDtypeStruct((N, oh_pad * w_in, cout_p), out_dtype),
        grid_spec=pltpu.PrefetchScalarGridSpec(
            num_scalar_prefetch=0,
            grid=(N, n_tiles),
            in_specs=[
                # Whole padded image; block index ignores the tile axis so it stays
                # VMEM-resident (fetched once) across the row tiles of one image.
                pl.BlockSpec((1, img_rows, cin_p), lambda n, t: (n, 0, 0)),
                pl.BlockSpec((KH * KW, cin_p, cout_p), lambda n, t: (0, 0, 0)),
                pl.BlockSpec((1, cout_p), lambda n, t: (0, 0)),
            ],
            out_specs=pl.BlockSpec((1, tile_rows, cout_p), lambda n, t: (n, t, 0)),
            scratch_shapes=[pltpu.VMEM((tile_rows, cout_p), jnp.float32)],
        ),
        compiler_params=pltpu.CompilerParams(
            # N is megacore-parallel; keep the row-tile axis sequential so the
            # per-image input block is only DMA'd once per image.
            dimension_semantics=("parallel", "arbitrary"),
            # Explicit scoped-VMEM budget (safe on v5e/v6e/v7x); re-derive tile_rows
            # if images grow so the resident image + tiles stay well under this.
            vmem_limit_bytes=32 * 1024 * 1024,
        ),
        cost_estimate=pl.CostEstimate(flops=flops, transcendentals=0,
                                      bytes_accessed=bytes_accessed),
    )(x_flat, w_mat, bias_row)

    # Discard virtual columns / padded rows / padded channels, apply stride, back to NCHW.
    out4 = out_flat.reshape(N, oh_pad, w_in, cout_p)
    out_valid = out4[:, :OH1, :OW1, :Cout]
    if stride > 1:
        out_valid = out_valid[:, ::stride, ::stride, :]
    return jnp.transpose(out_valid, (0, 3, 1, 2))


# ---------------------------------------------------------------------------
# Demo / self-check
# ---------------------------------------------------------------------------
if __name__ == "__main__":
    # ConvModule(in_channels=4, out_channels=8, kernel_size=3, stride=1,
    #            padding=1, dilation=1, groups=1, bias=True)
    N, Cin, H, W = 2, 4, 16, 16
    Cout, KH, KW = 8, 3, 3
    stride, padding, dilation, groups = 1, 1, 1, 1

    key = jax.random.PRNGKey(0)
    kx, kw_, kb = jax.random.split(key, 3)
    x = jax.random.normal(kx, (N, Cin, H, W), jnp.float32)
    fan_in = Cin * KH * KW
    bound = 1.0 / (fan_in ** 0.5)
    weight = jax.random.uniform(kw_, (Cout, Cin, KH, KW), jnp.float32,
                                minval=-bound, maxval=bound)
    bias = jax.random.uniform(kb, (Cout,), jnp.float32,
                              minval=-bound, maxval=bound)

    out = conv_module_forward(x, weight, bias, stride=stride, padding=padding,
                              dilation=dilation, groups=groups)
    out = jax.block_until_ready(out)

    # Reference: XLA conv on the SAME bf16-cast operands with f32 accumulation
    # (matches the kernel's precision; only differs by accumulation order).
    ref = lax.conv_general_dilated(
        x.astype(jnp.bfloat16), weight.astype(jnp.bfloat16),
        window_strides=(stride, stride),
        padding=[(padding, padding), (padding, padding)],
        rhs_dilation=(dilation, dilation),
        dimension_numbers=("NCHW", "OIHW", "NCHW"),
        feature_group_count=groups,
        preferred_element_type=jnp.float32,
    ) + bias.reshape(1, Cout, 1, 1)

    assert out.shape == (N, Cout, H, W)
    assert out.dtype == jnp.float32
    assert jnp.allclose(out, ref, atol=2e-3, rtol=2e-3), \
        float(jnp.max(jnp.abs(out - ref)))
    print("KERNEL_OK")
</pallas_src>

<mosaic_0001>
module attributes {stable_mosaic.version = 11 : i64} {
  func.func @_conv_igemm_kernel(%arg0: i32, %arg1: i32, %arg2: memref<1x456x8xbf16, #tpu.memory_space<vmem>>, %arg3: memref<9x8x128xbf16, #tpu.memory_space<vmem>>, %arg4: memref<1x128xf32, #tpu.memory_space<vmem>>, %arg5: memref<1x384x128xf32, #tpu.memory_space<vmem>>, %arg6: memref<384x128xf32, #tpu.memory_space<vmem>>) attributes {dimension_semantics = [#tpu.dimension_semantics<parallel>, #tpu.dimension_semantics<arbitrary>], iteration_bounds = array<i64: 2, 1>, scalar_prefetch = 0 : i64, scratch_operands = 1 : i64, tpu.core_type = #tpu.core_type<tc>, window_params = [{transform_indices = @transform_0, window_bounds = array<i64: 1, 456, 8>}, {pipeline_mode = #tpu.pipeline_mode<synchronous>, transform_indices = @transform_1, window_bounds = array<i64: 9, 8, 128>}, {pipeline_mode = #tpu.pipeline_mode<synchronous>, transform_indices = @transform_2, window_bounds = array<i64: 1, 128>}, {transform_indices = @transform_3, window_bounds = array<i64: 1, 384, 128>}]} {
    %cst = arith.constant 0.000000e+00 : f32
    %0 = vector.broadcast %cst : f32 to vector<384x128xf32>
    %c0 = arith.constant 0 : index
    %c0_0 = arith.constant 0 : index
    %1 = vector.load %arg6[%c0, %c0_0] : memref<384x128xf32, #tpu.memory_space<vmem>>, vector<384x128xf32>
    tpu.vector_store %arg6[%c0, %c0_0], %0 {strides = array<i32>} : memref<384x128xf32, #tpu.memory_space<vmem>>, vector<384x128xf32>,
    %c0_1 = arith.constant 0 : index
    %c0_2 = arith.constant 0 : index
    %c0_3 = arith.constant 0 : index
    %2 = vector.load %arg2[%c0_1, %c0_2, %c0_3] : memref<1x456x8xbf16, #tpu.memory_space<vmem>>, vector<1x384x8xbf16>
    %3 = vector.shape_cast %2 : vector<1x384x8xbf16> to vector<384x8xbf16>
    %c0_4 = arith.constant 0 : index
    %c0_5 = arith.constant 0 : index
    %4 = vector.load %arg6[%c0_4, %c0_5] : memref<384x128xf32, #tpu.memory_space<vmem>>, vector<384x128xf32>
    %c0_6 = arith.constant 0 : index
    %c0_7 = arith.constant 0 : index
    %c0_8 = arith.constant 0 : index
    %5 = vector.load %arg3[%c0_6, %c0_7, %c0_8] : memref<9x8x128xbf16, #tpu.memory_space<vmem>>, vector<1x8x128xbf16>
    %6 = vector.shape_cast %5 : vector<1x8x128xbf16> to vector<8x128xbf16>
    %cst_9 = arith.constant dense<0.000000e+00> : vector<384x128xf32>
    %7 = tpu.matmul %3, %6, %cst_9 {dimension_numbers = #tpu.dot_dimension_numbers<[1], [0], [0], [1], [0, 0, 1, 1], [], []>} : vector<384x8xbf16>, vector<8x128xbf16>, vector<384x128xf32> -> vector<384x128xf32>
    %8 = arith.addf %4, %7 : vector<384x128xf32>
    %c0_10 = arith.constant 0 : index
    %c0_11 = arith.constant 0 : index
    %9 = vector.load %arg6[%c0_10, %c0_11] : memref<384x128xf32, #tpu.memory_space<vmem>>, vector<384x128xf32>
    tpu.vector_store %arg6[%c0_10, %c0_11], %8 {strides = array<i32>} : memref<384x128xf32, #tpu.memory_space<vmem>>, vector<384x128xf32>,
    %c0_12 = arith.constant 0 : index
    %c1 = arith.constant 1 : index
    %c0_13 = arith.constant 0 : index
    %10 = vector.load %arg2[%c0_12, %c1, %c0_13] : memref<1x456x8xbf16, #tpu.memory_space<vmem>>, vector<1x384x8xbf16>
    %11 = vector.shape_cast %10 : vector<1x384x8xbf16> to vector<384x8xbf16>
    %c0_14 = arith.constant 0 : index
    %c0_15 = arith.constant 0 : index
    %12 = vector.load %arg6[%c0_14, %c0_15] : memref<384x128xf32, #tpu.memory_space<vmem>>, vector<384x128xf32>
    %c1_16 = arith.constant 1 : index
    %c0_17 = arith.constant 0 : index
    %c0_18 = arith.constant 0 : index
    %13 = vector.load %arg3[%c1_16, %c0_17, %c0_18] : memref<9x8x128xbf16, #tpu.memory_space<vmem>>, vector<1x8x128xbf16>
    %14 = vector.shape_cast %13 : vector<1x8x128xbf16> to vector<8x128xbf16>
    %cst_19 = arith.constant dense<0.000000e+00> : vector<384x128xf32>
    %15 = tpu.matmul %11, %14, %cst_19 {dimension_numbers = #tpu.dot_dimension_numbers<[1], [0], [0], [1], [0, 0, 1, 1], [], []>} : vector<384x8xbf16>, vector<8x128xbf16>, vector<384x128xf32> -> vector<384x128xf32>
    %16 = arith.addf %12, %15 : vector<384x128xf32>
    %c0_20 = arith.constant 0 : index
    %c0_21 = arith.constant 0 : index
    %17 = vector.load %arg6[%c0_20, %c0_21] : memref<384x128xf32, #tpu.memory_space<vmem>>, vector<384x128xf32>
    tpu.vector_store %arg6[%c0_20, %c0_21], %16 {strides = array<i32>} : memref<384x128xf32, #tpu.memory_space<vmem>>, vector<384x128xf32>,
    %c0_22 = arith.constant 0 : index
    %c2 = arith.constant 2 : index
    %c0_23 = arith.constant 0 : index
    %18 = vector.load %arg2[%c0_22, %c2, %c0_23] : memref<1x456x8xbf16, #tpu.memory_space<vmem>>, vector<1x384x8xbf16>
    %19 = vector.shape_cast %18 : vector<1x384x8xbf16> to vector<384x8xbf16>
    %c0_24 = arith.constant 0 : index
    %c0_25 = arith.constant 0 : index
    %20 = vector.load %arg6[%c0_24, %c0_25] : memref<384x128xf32, #tpu.memory_space<vmem>>, vector<384x128xf32>
    %c2_26 = arith.constant 2 : index
    %c0_27 = arith.constant 0 : index
    %c0_28 = arith.constant 0 : index
    %21 = vector.load %arg3[%c2_26, %c0_27, %c0_28] : memref<9x8x128xbf16, #tpu.memory_space<vmem>>, vector<1x8x128xbf16>
    %22 = vector.shape_cast %21 : vector<1x8x128xbf16> to vector<8x128xbf16>
    %cst_29 = arith.constant dense<0.000000e+00> : vector<384x128xf32>
    %23 = tpu.matmul %19, %22, %cst_29 {dimension_numbers = #tpu.dot_dimension_numbers<[1], [0], [0], [1], [0, 0, 1, 1], [], []>} : vector<384x8xbf16>, vector<8x128xbf16>, vector<384x128xf32> -> vector<384x128xf32>
    %24 = arith.addf %20, %23 : vector<384x128xf32>
    %c0_30 = arith.constant 0 : index
    %c0_31 = arith.constant 0 : index
    %25 = vector.load %arg6[%c0_30, %c0_31] : memref<384x128xf32, #tpu.memory_space<vmem>>, vector<384x128xf32>
    tpu.vector_store %arg6[%c0_30, %c0_31], %24 {strides = array<i32>} : memref<384x128xf32, #tpu.memory_space<vmem>>, vector<384x128xf32>,
    %c0_32 = arith.constant 0 : index
    %c24 = arith.constant 24 : index
    %c0_33 = arith.constant 0 : index
    %26 = vector.load %arg2[%c0_32, %c24, %c0_33] : memref<1x456x8xbf16, #tpu.memory_space<vmem>>, vector<1x384x8xbf16>
    %27 = vector.shape_cast %26 : vector<1x384x8xbf16> to vector<384x8xbf16>
    %c0_34 = arith.constant 0 : index
    %c0_35 = arith.constant 0 : index
    %28 = vector.load %arg6[%c0_34, %c0_35] : memref<384x128xf32, #tpu.memory_space<vmem>>, vector<384x128xf32>
    %c3 = arith.constant 3 : index
    %c0_36 = arith.constant 0 : index
    %c0_37 = arith.constant 0 : index
    %29 = vector.load %arg3[%c3, %c0_36, %c0_37] : memref<9x8x128xbf16, #tpu.memory_space<vmem>>, vector<1x8x128xbf16>
    %30 = vector.shape_cast %29 : vector<1x8x128xbf16> to vector<8x128xbf16>
    %cst_38 = arith.constant dense<0.000000e+00> : vector<384x128xf32>
    %31 = tpu.matmul %27, %30, %cst_38 {dimension_numbers = #tpu.dot_dimension_numbers<[1], [0], [0], [1], [0, 0, 1, 1], [], []>} : vector<384x8xbf16>, vector<8x128xbf16>, vector<384x128xf32> -> vector<384x128xf32>
    %32 = arith.addf %28, %31 : vector<384x128xf32>
    %c0_39 = arith.constant 0 : index
    %c0_40 = arith.constant 0 : index
    %33 = vector.load %arg6[%c0_39, %c0_40] : memref<384x128xf32, #tpu.memory_space<vmem>>, vector<384x128xf32>
    tpu.vector_store %arg6[%c0_39, %c0_40], %32 {strides = array<i32>} : memref<384x128xf32, #tpu.memory_space<vmem>>, vector<384x128xf32>,
    %c0_41 = arith.constant 0 : index
    %c25 = arith.constant 25 : index
    %c0_42 = arith.constant 0 : index
    %34 = vector.load %arg2[%c0_41, %c25, %c0_42] : memref<1x456x8xbf16, #tpu.memory_space<vmem>>, vector<1x384x8xbf16>
    %35 = vector.shape_cast %34 : vector<1x384x8xbf16> to vector<384x8xbf16>
    %c0_43 = arith.constant 0 : index
    %c0_44 = arith.constant 0 : index
    %36 = vector.load %arg6[%c0_43, %c0_44] : memref<384x128xf32, #tpu.memory_space<vmem>>, vector<384x128xf32>
    %c4 = arith.constant 4 : index
    %c0_45 = arith.constant 0 : index
    %c0_46 = arith.constant 0 : index
    %37 = vector.load %arg3[%c4, %c0_45, %c0_46] : memref<9x8x128xbf16, #tpu.memory_space<vmem>>, vector<1x8x128xbf16>
    %38 = vector.shape_cast %37 : vector<1x8x128xbf16> to vector<8x128xbf16>
    %cst_47 = arith.constant dense<0.000000e+00> : vector<384x128xf32>
    %39 = tpu.matmul %35, %38, %cst_47 {dimension_numbers = #tpu.dot_dimension_numbers<[1], [0], [0], [1], [0, 0, 1, 1], [], []>} : vector<384x8xbf16>, vector<8x128xbf16>, vector<384x128xf32> -> vector<384x128xf32>
    %40 = arith.addf %36, %39 : vector<384x128xf32>
    %c0_48 = arith.constant 0 : index
    %c0_49 = arith.constant 0 : index
    %41 = vector.load %arg6[%c0_48, %c0_49] : memref<384x128xf32, #tpu.memory_space<vmem>>, vector<384x128xf32>
    tpu.vector_store %arg6[%c0_48, %c0_49], %40 {strides = array<i32>} : memref<384x128xf32, #tpu.memory_space<vmem>>, vector<384x128xf32>,
    %c0_50 = arith.constant 0 : index
    %c26 = arith.constant 26 : index
    %c0_51 = arith.constant 0 : index
    %42 = vector.load %arg2[%c0_50, %c26, %c0_51] : memref<1x456x8xbf16, #tpu.memory_space<vmem>>, vector<1x384x8xbf16>
    %43 = vector.shape_cast %42 : vector<1x384x8xbf16> to vector<384x8xbf16>
    %c0_52 = arith.constant 0 : index
    %c0_53 = arith.constant 0 : index
    %44 = vector.load %arg6[%c0_52, %c0_53] : memref<384x128xf32, #tpu.memory_space<vmem>>, vector<384x128xf32>
    %c5 = arith.constant 5 : index
    %c0_54 = arith.constant 0 : index
    %c0_55 = arith.constant 0 : index
    %45 = vector.load %arg3[%c5, %c0_54, %c0_55] : memref<9x8x128xbf16, #tpu.memory_space<vmem>>, vector<1x8x128xbf16>
    %46 = vector.shape_cast %45 : vector<1x8x128xbf16> to vector<8x128xbf16>
    %cst_56 = arith.constant dense<0.000000e+00> : vector<384x128xf32>
    %47 = tpu.matmul %43, %46, %cst_56 {dimension_numbers = #tpu.dot_dimension_numbers<[1], [0], [0], [1], [0, 0, 1, 1], [], []>} : vector<384x8xbf16>, vector<8x128xbf16>, vector<384x128xf32> -> vector<384x128xf32>
    %48 = arith.addf %44, %47 : vector<384x128xf32>
    %c0_57 = arith.constant 0 : index
    %c0_58 = arith.constant 0 : index
    %49 = vector.load %arg6[%c0_57, %c0_58] : memref<384x128xf32, #tpu.memory_space<vmem>>, vector<384x128xf32>
    tpu.vector_store %arg6[%c0_57, %c0_58], %48 {strides = array<i32>} : memref<384x128xf32, #tpu.memory_space<vmem>>, vector<384x128xf32>,
    %c0_59 = arith.constant 0 : index
    %c48 = arith.constant 48 : index
    %c0_60 = arith.constant 0 : index
    %50 = vector.load %arg2[%c0_59, %c48, %c0_60] : memref<1x456x8xbf16, #tpu.memory_space<vmem>>, vector<1x384x8xbf16>
    %51 = vector.shape_cast %50 : vector<1x384x8xbf16> to vector<384x8xbf16>
    %c0_61 = arith.constant 0 : index
    %c0_62 = arith.constant 0 : index
    %52 = vector.load %arg6[%c0_61, %c0_62] : memref<384x128xf32, #tpu.memory_space<vmem>>, vector<384x128xf32>
    %c6 = arith.constant 6 : index
    %c0_63 = arith.constant 0 : index
    %c0_64 = arith.constant 0 : index
    %53 = vector.load %arg3[%c6, %c0_63, %c0_64] : memref<9x8x128xbf16, #tpu.memory_space<vmem>>, vector<1x8x128xbf16>
    %54 = vector.shape_cast %53 : vector<1x8x128xbf16> to vector<8x128xbf16>
    %cst_65 = arith.constant dense<0.000000e+00> : vector<384x128xf32>
    %55 = tpu.matmul %51, %54, %cst_65 {dimension_numbers = #tpu.dot_dimension_numbers<[1], [0], [0], [1], [0, 0, 1, 1], [], []>} : vector<384x8xbf16>, vector<8x128xbf16>, vector<384x128xf32> -> vector<384x128xf32>
    %56 = arith.addf %52, %55 : vector<384x128xf32>
    %c0_66 = arith.constant 0 : index
    %c0_67 = arith.constant 0 : index
    %57 = vector.load %arg6[%c0_66, %c0_67] : memref<384x128xf32, #tpu.memory_space<vmem>>, vector<384x128xf32>
    tpu.vector_store %arg6[%c0_66, %c0_67], %56 {strides = array<i32>} : memref<384x128xf32, #tpu.memory_space<vmem>>, vector<384x128xf32>,
    %c0_68 = arith.constant 0 : index
    %c49 = arith.constant 49 : index
    %c0_69 = arith.constant 0 : index
    %58 = vector.load %arg2[%c0_68, %c49, %c0_69] : memref<1x456x8xbf16, #tpu.memory_space<vmem>>, vector<1x384x8xbf16>
    %59 = vector.shape_cast %58 : vector<1x384x8xbf16> to vector<384x8xbf16>
    %c0_70 = arith.constant 0 : index
    %c0_71 = arith.constant 0 : index
    %60 = vector.load %arg6[%c0_70, %c0_71] : memref<384x128xf32, #tpu.memory_space<vmem>>, vector<384x128xf32>
    %c7 = arith.constant 7 : index
    %c0_72 = arith.constant 0 : index
    %c0_73 = arith.constant 0 : index
    %61 = vector.load %arg3[%c7, %c0_72, %c0_73] : memref<9x8x128xbf16, #tpu.memory_space<vmem>>, vector<1x8x128xbf16>
    %62 = vector.shape_cast %61 : vector<1x8x128xbf16> to vector<8x128xbf16>
    %cst_74 = arith.constant dense<0.000000e+00> : vector<384x128xf32>
    %63 = tpu.matmul %59, %62, %cst_74 {dimension_numbers = #tpu.dot_dimension_numbers<[1], [0], [0], [1], [0, 0, 1, 1], [], []>} : vector<384x8xbf16>, vector<8x128xbf16>, vector<384x128xf32> -> vector<384x128xf32>
    %64 = arith.addf %60, %63 : vector<384x128xf32>
    %c0_75 = arith.constant 0 : index
    %c0_76 = arith.constant 0 : index
    %65 = vector.load %arg6[%c0_75, %c0_76] : memref<384x128xf32, #tpu.memory_space<vmem>>, vector<384x128xf32>
    tpu.vector_store %arg6[%c0_75, %c0_76], %64 {strides = array<i32>} : memref<384x128xf32, #tpu.memory_space<vmem>>, vector<384x128xf32>,
    %c0_77 = arith.constant 0 : index
    %c50 = arith.constant 50 : index
    %c0_78 = arith.constant 0 : index
    %66 = vector.load %arg2[%c0_77, %c50, %c0_78] : memref<1x456x8xbf16, #tpu.memory_space<vmem>>, vector<1x384x8xbf16>
    %67 = vector.shape_cast %66 : vector<1x384x8xbf16> to vector<384x8xbf16>
    %c0_79 = arith.constant 0 : index
    %c0_80 = arith.constant 0 : index
    %68 = vector.load %arg6[%c0_79, %c0_80] : memref<384x128xf32, #tpu.memory_space<vmem>>, vector<384x128xf32>
    %c8 = arith.constant 8 : index
    %c0_81 = arith.constant 0 : index
    %c0_82 = arith.constant 0 : index
    %69 = vector.load %arg3[%c8, %c0_81, %c0_82] : memref<9x8x128xbf16, #tpu.memory_space<vmem>>, vector<1x8x128xbf16>
    %70 = vector.shape_cast %69 : vector<1x8x128xbf16> to vector<8x128xbf16>
    %cst_83 = arith.constant dense<0.000000e+00> : vector<384x128xf32>
    %71 = tpu.matmul %67, %70, %cst_83 {dimension_numbers = #tpu.dot_dimension_numbers<[1], [0], [0], [1], [0, 0, 1, 1], [], []>} : vector<384x8xbf16>, vector<8x128xbf16>, vector<384x128xf32> -> vector<384x128xf32>
    %72 = arith.addf %68, %71 : vector<384x128xf32>
    %c0_84 = arith.constant 0 : index
    %c0_85 = arith.constant 0 : index
    %73 = vector.load %arg6[%c0_84, %c0_85] : memref<384x128xf32, #tpu.memory_space<vmem>>, vector<384x128xf32>
    tpu.vector_store %arg6[%c0_84, %c0_85], %72 {strides = array<i32>} : memref<384x128xf32, #tpu.memory_space<vmem>>, vector<384x128xf32>,
    %c0_86 = arith.constant 0 : index
    %c0_87 = arith.constant 0 : index
    %74 = vector.load %arg6[%c0_86, %c0_87] : memref<384x128xf32, #tpu.memory_space<vmem>>, vector<384x128xf32>
    %c0_88 = arith.constant 0 : index
    %c0_89 = arith.constant 0 : index
    %75 = vector.load %arg4[%c0_88, %c0_89] : memref<1x128xf32, #tpu.memory_space<vmem>>, vector<1x128xf32>
    %76 = vector.broadcast %75 : vector<1x128xf32> to vector<384x128xf32>
    %77 = arith.addf %74, %76 : vector<384x128xf32>
    %c0_90 = arith.constant 0 : index
    %c0_91 = arith.constant 0 : index
    %c0_92 = arith.constant 0 : index
    %78 = vector.load %arg5[%c0_90, %c0_91, %c0_92] : memref<1x384x128xf32, #tpu.memory_space<vmem>>, vector<1x384x128xf32>
    %79 = vector.shape_cast %78 : vector<1x384x128xf32> to vector<384x128xf32>
    %80 = vector.shape_cast %77 : vector<384x128xf32> to vector<1x384x128xf32>
    tpu.vector_store %arg5[%c0_90, %c0_91, %c0_92], %80 {strides = array<i32>} : memref<1x384x128xf32, #tpu.memory_space<vmem>>, vector<1x384x128xf32>,
    return
  }
  func.func @transform_0(%arg0: i32, %arg1: i32) -> (i32, i32, i32) {
    %c0_i32 = arith.constant 0 : i32
    %c0_i32_0 = arith.constant 0 : i32
    %c0_i32_1 = arith.constant 0 : i32
    return %arg0, %c0_i32, %c0_i32_0 : i32, i32, i32
  }
  func.func @transform_1(%arg0: i32, %arg1: i32) -> (i32, i32, i32) {
    %c0_i32 = arith.constant 0 : i32
    %c0_i32_0 = arith.constant 0 : i32
    %c0_i32_1 = arith.constant 0 : i32
    %c0_i32_2 = arith.constant 0 : i32
    return %c0_i32, %c0_i32_0, %c0_i32_1 : i32, i32, i32
  }
  func.func @transform_2(%arg0: i32, %arg1: i32) -> (i32, i32) {
    %c0_i32 = arith.constant 0 : i32
    %c0_i32_0 = arith.constant 0 : i32
    %c0_i32_1 = arith.constant 0 : i32
    return %c0_i32, %c0_i32_0 : i32, i32
  }
  func.func @transform_3(%arg0: i32, %arg1: i32) -> (i32, i32, i32) {
    %c0_i32 = arith.constant 0 : i32
    %c0_i32_0 = arith.constant 0 : i32
    return %arg0, %arg1, %c0_i32 : i32, i32, i32
  }
}

</mosaic_0001>

<llo_original>
// kernel: tpu_custom_call.1
$region0: #{tpu_custom_call.1}
  #allocation0 [shape = 'u32[]', space=smem, size = 0x4, offset = 0x4, fixed_abs, tag = 'smem constant byte address 0x4 - core index']
  #allocation1 [shape = 'u32[144,128]{1,0:T(1,128)}', space=vmem, size = 0x12000, scoped, tag = 'internal scratch']
  #allocation2 [shape = 'f32[384,128]{1,0:T(8,128)}', space=vmem, size = 0x30000, scoped, tag = 'scratch operand']
  %s0 = inlined_call_operand.vmem [shape: bf16[2,456,8], index: 0, kind: input, shape index: {}]
  %s1 = inlined_call_operand.vmem [shape: bf16[9,8,128], index: 1, kind: input, shape index: {}]
  %s2 = inlined_call_operand.vmem [shape: f32[1,128], index: 2, kind: input, shape index: {}]
  %s3 = inlined_call_operand.hbm [shape: f32[2,384,128], index: 3, kind: output, shape index: {}]
  %s4 = sld [smem:[#allocation0]]
  $region45: #{tpu_custom_call.1} parent=0
    _
  %s6 = ssub.s32 1, %s4
  %s7 = scalar_select 0, %s6, %s4
  $region1: #{tpu_custom_call.1} parent=0
    #allocation3 [shape = 'u8[393216]{0}', space=vmem, size = 0x60000, scoped, tag = 'output window, operand 0']
    #allocation4 [shape = 's32[2]{0}', space=sflag, size = 0x8, scoped, tag = 'scoped memory for tpu_custom_call.1']
    %8 = vsyncpa [#allocation4], 0
    %s9 = scalar_lea.sflag [#allocation4], 1
    %10 = vsyncpa %s9, 0
    loop: start=0, step=1, limit=4
    $region2: #{tpu_custom_call.1} parent=1 // loop_pre_header
      _
    $region3: #{tpu_custom_call.1} parent=1 // loop_header
      %s12 = sphi 0, %s16
      %p13 = scmp.ge.s32.totalorder %s12, 4
      %s19 = sphi 0, %s31
      %s20 = sphi 0, %s27
      %s21 = sphi 0, %s19
      %s22 = sphi 0, %s20
      %s23 = sphi 0, %s21
      %s24 = sphi 0, %s22
      %s34 = sphi 0, %s36
      %s37 = sphi 0, %s34
      %s38 = sphi 0, %s37
      %s54 = sphi 0, %s38
      %s58 = sphi 0, %s58
      %s60 = sphi 0, %s58
      %s61 = sphi 0, %s60
      %s75 = sphi 0, %s61
      %s79 = sphi 0, %s79
      %s81 = sphi 0, %s79
      %s82 = sphi 0, %s81
      %s96 = sphi 0, %s82
      %s104 = sphi 0, %s106
      %s107 = sphi 0, %s104
      %s108 = sphi 0, %s107
      %s124 = sphi 0, %s108
    $region4: #{tpu_custom_call.1} parent=1 // loop_header_branch
      %15 = sbr.rel (%p13) target = $region8
    $region5: #{tpu_custom_call.1} parent=1 // loop_body
      %s17 = ssub.s32 %s12, 1
      %s18 = ssub.s32 %s12, 2
      %s25 = sadd.s32 1, %s20
      %p26 = scmp.ge.s32.totalorder %s25, 1
      %s27 = scalar_select %p26, 0, %s25
      %s28 = sadd.s32 1, %s19
      %s29 = scalar_select %p26, %s28, %s19
      %p30 = scmp.ge.s32.totalorder %s29, 2
      %s31 = scalar_select %p30, 0, %s29
      %s32 = ssub.s32 %s19, %s31
      %p33 = scmp.eq.s32.totalorder %s32, 0
      %s35 = sadd.s32 %s34, 1
      %s36 = scalar_select %p33, %s34, %s35
      %p39 = pneg %p33
      %p40 = scmp.eq.s32.totalorder %s12, 1
      %p41 = por %p39, %p40
      %p42 = scmp.ne.s32.totalorder %s34, %s37
      %p43 = scmp.eq.s32.totalorder %s12, 0
      %p44 = por %p42, %p43
      %p45 = scmp.ne.s32.totalorder %s34, %s37
      %p46 = scmp.eq.s32.totalorder %s17, 1
      %p47 = por %p45, %p46
      %p48 = scmp.ne.s32.totalorder %s37, %s38
      %p49 = scmp.eq.s32.totalorder %s17, 0
      %p50 = por %p48, %p49
      %p51 = scmp.ne.s32.totalorder %s37, %s38
      %p52 = scmp.eq.s32.totalorder %s18, 1
      %p53 = por %p51, %p52
      %p55 = scmp.ne.s32.totalorder %s38, %s54
      %p56 = scmp.eq.s32.totalorder %s18, 0
      %p57 = por %p55, %p56
      %s59 = sadd.s32 %s58, 1
      %p62 = scmp.eq.s32.totalorder %s12, 1
      %p63 = scmp.ne.s32.totalorder %s58, %s60
      %p64 = scmp.eq.s32.totalorder %s12, 0
      %p65 = por %p63, %p64
      %p66 = scmp.ne.s32.totalorder %s58, %s60
      %p67 = scmp.eq.s32.totalorder %s17, 1
      %p68 = por %p66, %p67
      %p69 = scmp.ne.s32.totalorder %s60, %s61
      %p70 = scmp.eq.s32.totalorder %s17, 0
      %p71 = por %p69, %p70
      %p72 = scmp.ne.s32.totalorder %s60, %s61
      %p73 = scmp.eq.s32.totalorder %s18, 1
      %p74 = por %p72, %p73
      %p76 = scmp.ne.s32.totalorder %s61, %s75
      %p77 = scmp.eq.s32.totalorder %s18, 0
      %p78 = por %p76, %p77
      %s80 = sadd.s32 %s79, 1
      %p83 = scmp.eq.s32.totalorder %s12, 1
      %p84 = scmp.ne.s32.totalorder %s79, %s81
      %p85 = scmp.eq.s32.totalorder %s12, 0
      %p86 = por %p84, %p85
      %p87 = scmp.ne.s32.totalorder %s79, %s81
      %p88 = scmp.eq.s32.totalorder %s17, 1
      %p89 = por %p87, %p88
      %p90 = scmp.ne.s32.totalorder %s81, %s82
      %p91 = scmp.eq.s32.totalorder %s17, 0
      %p92 = por %p90, %p91
      %p93 = scmp.ne.s32.totalorder %s81, %s82
      %p94 = scmp.eq.s32.totalorder %s18, 1
      %p95 = por %p93, %p94
      %p97 = scmp.ne.s32.totalorder %s82, %s96
      %p98 = scmp.eq.s32.totalorder %s18, 0
      %p99 = por %p97, %p98
      %s100 = ssub.s32 %s19, %s31
      %s101 = ssub.s32 %s20, %s27
      %s102 = sor.u32 %s100, %s101
      %p103 = scmp.eq.s32.totalorder %s102, 0
      %s105 = sadd.s32 %s104, 1
      %s106 = scalar_select %p103, %s104, %s105
      %p109 = pneg %p103
      %p110 = scmp.eq.s32.totalorder %s12, 1
      %p111 = por %p109, %p110
      %p112 = scmp.ne.s32.totalorder %s104, %s107
      %p113 = scmp.eq.s32.totalorder %s12, 0
      %p114 = por %p112, %p113
      %p115 = scmp.ne.s32.totalorder %s104, %s107
      %p116 = scmp.eq.s32.totalorder %s17, 1
      %p117 = por %p115, %p116
      %p118 = scmp.ne.s32.totalorder %s107, %s108
      %p119 = scmp.eq.s32.totalorder %s17, 0
      %p120 = por %p118, %p119
      %p121 = scmp.ne.s32.totalorder %s107, %s108
      %p122 = scmp.eq.s32.totalorder %s18, 1
      %p123 = por %p121, %p122
      %p125 = scmp.ne.s32.totalorder %s108, %s124
      %p126 = scmp.eq.s32.totalorder %s18, 0
      %p127 = por %p125, %p126
      %p128 = scmp.le.s32.totalorder 1, %s12
      %p129 = scmp.lt.s32.totalorder %s12, 3
      %p130 = pnand %p128, %p129
      %p131 = pneg %p130
      // Predicated region
      $region9: #{tpu_custom_call.1} parent=5 // pred_check
        _
      $region10: #{tpu_custom_call.1} parent=5 // pred_check_branch
        %133 = sbr.rel (%p130) target = $region12
      $region11: #{tpu_custom_call.1} parent=5 // pred_region
        %s134 = ssub.s32 %s12, 1
        // Predicated region
        $region13: #{tpu_custom_call.1} parent=11 // pred_check
          %p135 = pneg %p71
        $region14: #{tpu_custom_call.1} parent=11 // pred_check_branch
          %137 = sbr.rel (%p135) target = $region16
        $region15: #{tpu_custom_call.1} parent=11 // pred_region
          _
        $region16: #{tpu_custom_call.1} parent=11 // pred_fallthru
          _
        // Predicated region
        $region17: #{tpu_custom_call.1} parent=11 // pred_check
          %p138 = pneg %p92
        $region18: #{tpu_custom_call.1} parent=11 // pred_check_branch
          %140 = sbr.rel (%p138) target = $region20
        $region19: #{tpu_custom_call.1} parent=11 // pred_region
          _
        $region20: #{tpu_custom_call.1} parent=11 // pred_fallthru
          _
      $region12: #{tpu_custom_call.1} parent=5 // pred_fallthru
        _
      %p141 = scmp.lt.s32.totalorder %s12, 2
      // Predicated region
      $region21: #{tpu_custom_call.1} parent=5 // pred_check
        %p142 = pneg %p141
      $region22: #{tpu_custom_call.1} parent=5 // pred_check_branch
        %144 = sbr.rel (%p142) target = $region24
      $region23: #{tpu_custom_call.1} parent=5 // pred_region
        // Predicated region
        $region25: #{tpu_custom_call.1} parent=23 // pred_check
          %p145 = pneg %p44
        $region26: #{tpu_custom_call.1} parent=23 // pred_check_branch
          %147 = sbr.rel (%p145) target = $region28
        $region27: #{tpu_custom_call.1} parent=23 // pred_region
          %p148 = scmp.lt.s32.totalorder %s19, 1
          %s149 = scalar_select %p148, %s19, 1
          %s150 = smul.addr %s149, 57
          %s151 = smul.addr %s150, 4
          %s152 = scalar_lea.vmem %s0, %s151
        $region28: #{tpu_custom_call.1} parent=23 // pred_fallthru
          _
      $region24: #{tpu_custom_call.1} parent=5 // pred_fallthru
        _
      %p153 = scmp.le.s32.totalorder 1, %s12
      %p154 = scmp.lt.s32.totalorder %s12, 3
      %p155 = pnand %p153, %p154
      %p156 = pneg %p155
      // Predicated region
      $region29: #{tpu_custom_call.1} parent=5 // pred_check
        _
      $region30: #{tpu_custom_call.1} parent=5 // pred_check_branch
        %158 = sbr.rel (%p155) target = $region32
      $region31: #{tpu_custom_call.1} parent=5 // pred_region
        %s159 = ssub.s32 %s12, 1
        %p160 = scmp.lt.s32.totalorder %s21, 1
        %s161 = scalar_select %p160, %s21, 1
        %s162 = smul.addr %s161, 57
        %s163 = smul.addr %s162, 4
        %s164 = scalar_lea.vmem %s0, %s163
        %p165 = pneg %p50
        %p166 = pneg %p47
        %p167 = pneg %p71
        %p168 = pneg %p68
        %p169 = pneg %p92
        %p170 = pneg %p89
        %p171 = pneg %p120
        %p172 = pneg %p117
        %s173 = sand.u32 %s107, 1
        %s174 = scalar_lea.sflag [#allocation4], %s173
        %s175 = sand.u32 %s107, 1
        %s176 = smul.addr %s175, 384
        %s177 = scalar_lea.vmem [#allocation3], %s176
        %p178 = scmp.lt.s32.totalorder %s21, 1
        %s179 = scalar_select %p178, %s21, 1
        %s180 = smul.addr %s179, 57
        %s181 = smul.addr %s180, 4
        %s182 = scalar_lea.vmem %s0, %s181
        %s183 = smul.u32 48, %s22
        %185 = vst [vmem:[#allocation2] sm:$0xff] 0.0
        %186 = vst [vmem:[#allocation2 + $0x8] sm:$0xff] 0.0
        %187 = vst [vmem:[#allocation2 + $0x10] sm:$0xff] 0.0
        %188 = vst [vmem:[#allocation2 + $0x18] sm:$0xff] 0.0
        %189 = vst [vmem:[#allocation2 + $0x20] sm:$0xff] 0.0
        %190 = vst [vmem:[#allocation2 + $0x28] sm:$0xff] 0.0
        %191 = vst [vmem:[#allocation2 + $0x30] sm:$0xff] 0.0
        %192 = vst [vmem:[#allocation2 + $0x38] sm:$0xff] 0.0
        %193 = vst [vmem:[#allocation2 + $0x40] sm:$0xff] 0.0
        %194 = vst [vmem:[#allocation2 + $0x48] sm:$0xff] 0.0
        %195 = vst [vmem:[#allocation2 + $0x50] sm:$0xff] 0.0
        %196 = vst [vmem:[#allocation2 + $0x58] sm:$0xff] 0.0
        %197 = vst [vmem:[#allocation2 + $0x60] sm:$0xff] 0.0
        %198 = vst [vmem:[#allocation2 + $0x68] sm:$0xff] 0.0
        %199 = vst [vmem:[#allocation2 + $0x70] sm:$0xff] 0.0
        %200 = vst [vmem:[#allocation2 + $0x78] sm:$0xff] 0.0
        %201 = vst [vmem:[#allocation2 + $0x80] sm:$0xff] 0.0
        %202 = vst [vmem:[#allocation2 + $0x88] sm:$0xff] 0.0
        %203 = vst [vmem:[#allocation2 + $0x90] sm:$0xff] 0.0
        %204 = vst [vmem:[#allocation2 + $0x98] sm:$0xff] 0.0
        %205 = vst [vmem:[#allocation2 + $0xa0] sm:$0xff] 0.0
        %206 = vst [vmem:[#allocation2 + $0xa8] sm:$0xff] 0.0
        %207 = vst [vmem:[#allocation2 + $0xb0] sm:$0xff] 0.0
        %208 = vst [vmem:[#allocation2 + $0xb8] sm:$0xff] 0.0
        %209 = vst [vmem:[#allocation2 + $0xc0] sm:$0xff] 0.0
        %210 = vst [vmem:[#allocation2 + $0xc8] sm:$0xff] 0.0
        %211 = vst [vmem:[#allocation2 + $0xd0] sm:$0xff] 0.0
        %212 = vst [vmem:[#allocation2 + $0xd8] sm:$0xff] 0.0
        %213 = vst [vmem:[#allocation2 + $0xe0] sm:$0xff] 0.0
        %214 = vst [vmem:[#allocation2 + $0xe8] sm:$0xff] 0.0
        %215 = vst [vmem:[#allocation2 + $0xf0] sm:$0xff] 0.0
        %216 = vst [vmem:[#allocation2 + $0xf8] sm:$0xff] 0.0
        %217 = vst [vmem:[#allocation2 + $0x100] sm:$0xff] 0.0
        %218 = vst [vmem:[#allocation2 + $0x108] sm:$0xff] 0.0
        %219 = vst [vmem:[#allocation2 + $0x110] sm:$0xff] 0.0
        %220 = vst [vmem:[#allocation2 + $0x118] sm:$0xff] 0.0
        %221 = vst [vmem:[#allocation2 + $0x120] sm:$0xff] 0.0
        %222 = vst [vmem:[#allocation2 + $0x128] sm:$0xff] 0.0
        %223 = vst [vmem:[#allocation2 + $0x130] sm:$0xff] 0.0
        %224 = vst [vmem:[#allocation2 + $0x138] sm:$0xff] 0.0
        %225 = vst [vmem:[#allocation2 + $0x140] sm:$0xff] 0.0
        %226 = vst [vmem:[#allocation2 + $0x148] sm:$0xff] 0.0
        %227 = vst [vmem:[#allocation2 + $0x150] sm:$0xff] 0.0
        %228 = vst [vmem:[#allocation2 + $0x158] sm:$0xff] 0.0
        %229 = vst [vmem:[#allocation2 + $0x160] sm:$0xff] 0.0
        %230 = vst [vmem:[#allocation2 + $0x168] sm:$0xff] 0.0
        %231 = vst [vmem:[#allocation2 + $0x170] sm:$0xff] 0.0
        %232 = vst [vmem:[#allocation2 + $0x178] sm:$0xff] 0.0
        %v233 = vld [vmem:[%s182] sm:$0xf]
        %v234 = vld [vmem:[%s182 + $0x4] sm:$0xf]
        %v235 = vld [vmem:[%s182 + $0x8] sm:$0xf]
        %v236 = vld [vmem:[%s182 + $0xc] sm:$0xf]
        %v237 = vld [vmem:[%s182 + $0x10] sm:$0xf]
        %v238 = vld [vmem:[%s182 + $0x14] sm:$0xf]
        %v239 = vld [vmem:[%s182 + $0x18] sm:$0xf]
        %v240 = vld [vmem:[%s182 + $0x1c] sm:$0xf]
        %v241 = vld [vmem:[%s182 + $0x20] sm:$0xf]
        %v242 = vld [vmem:[%s182 + $0x24] sm:$0xf]
        %v243 = vld [vmem:[%s182 + $0x28] sm:$0xf]
        %v244 = vld [vmem:[%s182 + $0x2c] sm:$0xf]
        %v245 = vld [vmem:[%s182 + $0x30] sm:$0xf]
        %v246 = vld [vmem:[%s182 + $0x34] sm:$0xf]
        %v247 = vld [vmem:[%s182 + $0x38] sm:$0xf]
        %v248 = vld [vmem:[%s182 + $0x3c] sm:$0xf]
        %v249 = vld [vmem:[%s182 + $0x40] sm:$0xf]
        %v250 = vld [vmem:[%s182 + $0x44] sm:$0xf]
        %v251 = vld [vmem:[%s182 + $0x48] sm:$0xf]
        %v252 = vld [vmem:[%s182 + $0x4c] sm:$0xf]
        %v253 = vld [vmem:[%s182 + $0x50] sm:$0xf]
        %v254 = vld [vmem:[%s182 + $0x54] sm:$0xf]
        %v255 = vld [vmem:[%s182 + $0x58] sm:$0xf]
        %v256 = vld [vmem:[%s182 + $0x5c] sm:$0xf]
        %v257 = vld [vmem:[%s182 + $0x60] sm:$0xf]
        %v258 = vld [vmem:[%s182 + $0x64] sm:$0xf]
        %v259 = vld [vmem:[%s182 + $0x68] sm:$0xf]
        %v260 = vld [vmem:[%s182 + $0x6c] sm:$0xf]
        %v261 = vld [vmem:[%s182 + $0x70] sm:$0xf]
        %v262 = vld [vmem:[%s182 + $0x74] sm:$0xf]
        %v263 = vld [vmem:[%s182 + $0x78] sm:$0xf]
        %v264 = vld [vmem:[%s182 + $0x7c] sm:$0xf]
        %v265 = vld [vmem:[%s182 + $0x80] sm:$0xf]
        %v266 = vld [vmem:[%s182 + $0x84] sm:$0xf]
        %v267 = vld [vmem:[%s182 + $0x88] sm:$0xf]
        %v268 = vld [vmem:[%s182 + $0x8c] sm:$0xf]
        %v269 = vld [vmem:[%s182 + $0x90] sm:$0xf]
        %v270 = vld [vmem:[%s182 + $0x94] sm:$0xf]
        %v271 = vld [vmem:[%s182 + $0x98] sm:$0xf]
        %v272 = vld [vmem:[%s182 + $0x9c] sm:$0xf]
        %v273 = vld [vmem:[%s182 + $0xa0] sm:$0xf]
        %v274 = vld [vmem:[%s182 + $0xa4] sm:$0xf]
        %v275 = vld [vmem:[%s182 + $0xa8] sm:$0xf]
        %v276 = vld [vmem:[%s182 + $0xac] sm:$0xf]
        %v277 = vld [vmem:[%s182 + $0xb0] sm:$0xf]
        %v278 = vld [vmem:[%s182 + $0xb4] sm:$0xf]
        %v279 = vld [vmem:[%s182 + $0xb8] sm:$0xf]
        %v280 = vld [vmem:[%s182 + $0xbc] sm:$0xf]
        %v281 = vld [vmem:[#allocation2] sm:$0xff]
        %v282 = vld [vmem:[#allocation2 + $0x8] sm:$0xff]
        %v283 = vld [vmem:[#allocation2 + $0x10] sm:$0xff]
        %v284 = vld [vmem:[#allocation2 + $0x18] sm:$0xff]
        %v285 = vld [vmem:[#allocation2 + $0x20] sm:$0xff]
        %v286 = vld [vmem:[#allocation2 + $0x28] sm:$0xff]
        %v287 = vld [vmem:[#allocation2 + $0x30] sm:$0xff]
        %v288 = vld [vmem:[#allocation2 + $0x38] sm:$0xff]
        %v289 = vld [vmem:[#allocation2 + $0x40] sm:$0xff]
        %v290 = vld [vmem:[#allocation2 + $0x48] sm:$0xff]
        %v291 = vld [vmem:[#allocation2 + $0x50] sm:$0xff]
        %v292 = vld [vmem:[#allocation2 + $0x58] sm:$0xff]
        %v293 = vld [vmem:[#allocation2 + $0x60] sm:$0xff]
        %v294 = vld [vmem:[#allocation2 + $0x68] sm:$0xff]
        %v295 = vld [vmem:[#allocation2 + $0x70] sm:$0xff]
        %v296 = vld [vmem:[#allocation2 + $0x78] sm:$0xff]
        %v297 = vld [vmem:[#allocation2 + $0x80] sm:$0xff]
        %v298 = vld [vmem:[#allocation2 + $0x88] sm:$0xff]
        %v299 = vld [vmem:[#allocation2 + $0x90] sm:$0xff]
        %v300 = vld [vmem:[#allocation2 + $0x98] sm:$0xff]
        %v301 = vld [vmem:[#allocation2 + $0xa0] sm:$0xff]
        %v302 = vld [vmem:[#allocation2 + $0xa8] sm:$0xff]
        %v303 = vld [vmem:[#allocation2 + $0xb0] sm:$0xff]
        %v304 = vld [vmem:[#allocation2 + $0xb8] sm:$0xff]
        %v305 = vld [vmem:[#allocation2 + $0xc0] sm:$0xff]
        %v306 = vld [vmem:[#allocation2 + $0xc8] sm:$0xff]
        %v307 = vld [vmem:[#allocation2 + $0xd0] sm:$0xff]
        %v308 = vld [vmem:[#allocation2 + $0xd8] sm:$0xff]
        %v309 = vld [vmem:[#allocation2 + $0xe0] sm:$0xff]
        %v310 = vld [vmem:[#allocation2 + $0xe8] sm:$0xff]
        %v311 = vld [vmem:[#allocation2 + $0xf0] sm:$0xff]
        %v312 = vld [vmem:[#allocation2 + $0xf8] sm:$0xff]
        %v313 = vld [vmem:[#allocation2 + $0x100] sm:$0xff]
        %v314 = vld [vmem:[#allocation2 + $0x108] sm:$0xff]
        %v315 = vld [vmem:[#allocation2 + $0x110] sm:$0xff]
        %v316 = vld [vmem:[#allocation2 + $0x118] sm:$0xff]
        %v317 = vld [vmem:[#allocation2 + $0x120] sm:$0xff]
        %v318 = vld [vmem:[#allocation2 + $0x128] sm:$0xff]
        %v319 = vld [vmem:[#allocation2 + $0x130] sm:$0xff]
        %v320 = vld [vmem:[#allocation2 + $0x138] sm:$0xff]
        %v321 = vld [vmem:[#allocation2 + $0x140] sm:$0xff]
        %v322 = vld [vmem:[#allocation2 + $0x148] sm:$0xff]
        %v323 = vld [vmem:[#allocation2 + $0x150] sm:$0xff]
        %v324 = vld [vmem:[#allocation2 + $0x158] sm:$0xff]
        %v325 = vld [vmem:[#allocation2 + $0x160] sm:$0xff]
        %v326 = vld [vmem:[#allocation2 + $0x168] sm:$0xff]
        %v327 = vld [vmem:[#allocation2 + $0x170] sm:$0xff]
        %v328 = vld [vmem:[#allocation2 + $0x178] sm:$0xff]
        %v329 = vld [vmem:[%s1] sm:$0xf]
        %v378 = vunpack.c.l.b16 %v233
        %v379 = vunpack.c.l.b16 %v234
        %v380 = vunpack.c.l.b16 %v235
        %v381 = vunpack.c.l.b16 %v236
        %v382 = vunpack.c.l.b16 %v237
        %v383 = vunpack.c.l.b16 %v238
        %v384 = vunpack.c.l.b16 %v239
        %v385 = vunpack.c.l.b16 %v240
        %v386 = vunpack.c.l.b16 %v241
        %v387 = vunpack.c.l.b16 %v242
        %v388 = vunpack.c.l.b16 %v243
        %v389 = vunpack.c.l.b16 %v244
        %v390 = vunpack.c.l.b16 %v245
        %v391 = vunpack.c.l.b16 %v246
        %v392 = vunpack.c.l.b16 %v247
        %v393 = vunpack.c.l.b16 %v248
        %v394 = vunpack.c.l.b16 %v249
        %v395 = vunpack.c.l.b16 %v250
        %v396 = vunpack.c.l.b16 %v251
        %v397 = vunpack.c.l.b16 %v252
        %v398 = vunpack.c.l.b16 %v253
        %v399 = vunpack.c.l.b16 %v254
        %v400 = vunpack.c.l.b16 %v255
        %v401 = vunpack.c.l.b16 %v256
        %v402 = vunpack.c.l.b16 %v257
        %v403 = vunpack.c.l.b16 %v258
        %v404 = vunpack.c.l.b16 %v259
        %v405 = vunpack.c.l.b16 %v260
        %v406 = vunpack.c.l.b16 %v261
        %v407 = vunpack.c.l.b16 %v262
        %v408 = vunpack.c.l.b16 %v263
        %v409 = vunpack.c.l.b16 %v264
        %v410 = vunpack.c.l.b16 %v265
        %v411 = vunpack.c.l.b16 %v266
        %v412 = vunpack.c.l.b16 %v267
        %v413 = vunpack.c.l.b16 %v268
        %v414 = vunpack.c.l.b16 %v269
        %v415 = vunpack.c.l.b16 %v270
        %v416 = vunpack.c.l.b16 %v271
        %v417 = vunpack.c.l.b16 %v272
        %v418 = vunpack.c.l.b16 %v273
        %v419 = vunpack.c.l.b16 %v274
        %v420 = vunpack.c.l.b16 %v275
        %v421 = vunpack.c.l.b16 %v276
        %v422 = vunpack.c.l.b16 %v277
        %v423 = vunpack.c.l.b16 %v278
        %v424 = vunpack.c.l.b16 %v279
        %v425 = vunpack.c.l.b16 %v280
        %v426 = vpack.c.b16 %v379, %v378
        %v427 = vpack.c.b16 %v381, %v380
        %v428 = vpack.c.b16 %v383, %v382
        %v429 = vpack.c.b16 %v385, %v384
        %v430 = vpack.c.b16 %v387, %v386
        %v431 = vpack.c.b16 %v389, %v388
        %v432 = vpack.c.b16 %v391, %v390
        %v433 = vpack.c.b16 %v393, %v392
        %v434 = vpack.c.b16 %v395, %v394
        %v435 = vpack.c.b16 %v397, %v396
        %v436 = vpack.c.b16 %v399, %v398
        %v437 = vpack.c.b16 %v401, %v400
        %v438 = vpack.c.b16 %v403, %v402
        %v439 = vpack.c.b16 %v405, %v404
        %v440 = vpack.c.b16 %v407, %v406
        %v441 = vpack.c.b16 %v409, %v408
        %v442 = vpack.c.b16 %v411, %v410
        %v443 = vpack.c.b16 %v413, %v412
        %v444 = vpack.c.b16 %v415, %v414
        %v445 = vpack.c.b16 %v417, %v416
        %v446 = vpack.c.b16 %v419, %v418
        %v447 = vpack.c.b16 %v421, %v420
        %v448 = vpack.c.b16 %v423, %v422
        %v449 = vpack.c.b16 %v425, %v424
        %vm450 = vcmask 64512
        %v452 = vsel %vm450, %v426, 0
        %v455 = vsel %vm450, %v427, 0
        %v458 = vsel %vm450, %v428, 0
        %v461 = vsel %vm450, %v429, 0
        %v464 = vsel %vm450, %v430, 0
        %v467 = vsel %vm450, %v431, 0
        %v470 = vsel %vm450, %v432, 0
        %v473 = vsel %vm450, %v433, 0
        %v476 = vsel %vm450, %v434, 0
        %v479 = vsel %vm450, %v435, 0
        %v482 = vsel %vm450, %v436, 0
        %v485 = vsel %vm450, %v437, 0
        %v488 = vsel %vm450, %v438, 0
        %v491 = vsel %vm450, %v439, 0
        %v494 = vsel %vm450, %v440, 0
        %v497 = vsel %vm450, %v441, 0
        %v500 = vsel %vm450, %v442, 0
        %v503 = vsel %vm450, %v443, 0
        %v506 = vsel %vm450, %v444, 0
        %v509 = vsel %vm450, %v445, 0
        %v512 = vsel %vm450, %v446, 0
        %v515 = vsel %vm450, %v447, 0
        %v518 = vsel %vm450, %v448, 0
        %v521 = vsel %vm450, %v449, 0
        %vm523 = vcmask 1043456
        %v525 = vsel %vm523, %v329, 0
        %527 = vmatprep.subr.bf16.mxu0 0
        %528 = vmatpush1.bf16.msra.mxu0 %v525
        %529 = vmatprep.subr.bf16.mxu0 0
        %530 = vmatpush1.bf16.msra.mxu0 0
        %531 = vmatprep.subr.bf16.mxu0 0
        %532 = vmatpush1.bf16.msra.mxu0 0
        %533 = vmatprep.subr.bf16.mxu0 0
        %534 = vmatpush1.bf16.msra.mxu0 0
        %535 = vmatprep.subr.bf16.mxu0 0
        %536 = vmatpush1.bf16.msra.mxu0 0
        %537 = vmatprep.subr.bf16.mxu0 0
        %538 = vmatpush1.bf16.msra.mxu0 0
        %539 = vmatprep.subr.bf16.mxu0 0
        %540 = vmatpush1.bf16.msra.mxu0 0
        %541 = vmatprep.subr.bf16.mxu0 0
        %542 = vmatpush1.bf16.msra.mxu0 0
        %543 = vmatprep.subr.bf16.mxu0 0
        %544 = vmatpush1.bf16.msra.mxu0 0
        %545 = vmatprep.subr.bf16.mxu0 0
        %546 = vmatpush1.bf16.msra.mxu0 0
        %547 = vmatprep.subr.bf16.mxu0 0
        %548 = vmatpush1.bf16.msra.mxu0 0
        %549 = vmatprep.subr.bf16.mxu0 0
        %550 = vmatpush1.bf16.msra.mxu0 0
        %551 = vmatprep.subr.bf16.mxu0 0
        %552 = vmatpush1.bf16.msra.mxu0 0
        %553 = vmatprep.subr.bf16.mxu0 0
        %554 = vmatpush1.bf16.msra.mxu0 0
        %555 = vmatprep.subr.bf16.mxu0 0
        %556 = vmatpush1.bf16.msra.mxu0 0
        %557 = vmatprep.subr.bf16.mxu0 0
        %558 = vmatpush1.bf16.msra.mxu0 0
        %559 = vmatprep.mubr.bf16.mxu0 0
        %560 = vmatmul.mubr.bf16.gmra.mrb[0].mxu0 %v452
        %v561 = vpop.f32.mrb[0].mxu0
        %v562 = vadd.f32 0.0, %v561
        %v563 = vpop.f32.mrb[0].mxu0
        %v564 = vpop.f32.mrb[0].mxu0
        %v565 = vadd.f32 0.0, %v564
        %v566 = vpop.f32.mrb[0].mxu0
        %567 = vmatprep.mubr.bf16.mxu0 0
        %568 = vmatmul.mubr.bf16.gmra.mrb[0].mxu0 %v455
        %v569 = vpop.f32.mrb[0].mxu0
        %v570 = vadd.f32 0.0, %v569
        %v571 = vpop.f32.mrb[0].mxu0
        %v572 = vpop.f32.mrb[0].mxu0
        %v573 = vadd.f32 0.0, %v572
        %v574 = vpop.f32.mrb[0].mxu0
        %575 = vmatprep.mubr.bf16.mxu0 0
        %576 = vmatmul.mubr.bf16.gmra.mrb[0].mxu0 %v458
        %v577 = vpop.f32.mrb[0].mxu0
        %v578 = vadd.f32 0.0, %v577
        %v579 = vpop.f32.mrb[0].mxu0
        %v580 = vpop.f32.mrb[0].mxu0
        %v581 = vadd.f32 0.0, %v580
        %v582 = vpop.f32.mrb[0].mxu0
        %583 = vmatprep.mubr.bf16.mxu0 0
        %584 = vmatmul.mubr.bf16.gmra.mrb[0].mxu0 %v461
        %v585 = vpop.f32.mrb[0].mxu0
        %v586 = vadd.f32 0.0, %v585
        %v587 = vpop.f32.mrb[0].mxu0
        %v588 = vpop.f32.mrb[0].mxu0
        %v589 = vadd.f32 0.0, %v588
        %v590 = vpop.f32.mrb[0].mxu0
        %591 = vmatprep.mubr.bf16.mxu0 0
        %592 = vmatmul.mubr.bf16.gmra.mrb[0].mxu0 %v464
        %v593 = vpop.f32.mrb[0].mxu0
        %v594 = vadd.f32 0.0, %v593
        %v595 = vpop.f32.mrb[0].mxu0
        %v596 = vpop.f32.mrb[0].mxu0
        %v597 = vadd.f32 0.0, %v596
        %v598 = vpop.f32.mrb[0].mxu0
        %599 = vmatprep.mubr.bf16.mxu0 0
        %600 = vmatmul.mubr.bf16.gmra.mrb[0].mxu0 %v467
        %v601 = vpop.f32.mrb[0].mxu0
        %v602 = vadd.f32 0.0, %v601
        %v603 = vpop.f32.mrb[0].mxu0
        %v604 = vpop.f32.mrb[0].mxu0
        %v605 = vadd.f32 0.0, %v604
        %v606 = vpop.f32.mrb[0].mxu0
        %607 = vmatprep.mubr.bf16.mxu0 0
        %608 = vmatmul.mubr.bf16.gmra.mrb[0].mxu0 %v470
        %v609 = vpop.f32.mrb[0].mxu0
        %v610 = vadd.f32 0.0, %v609
        %v611 = vpop.f32.mrb[0].mxu0
        %v612 = vpop.f32.mrb[0].mxu0
        %v613 = vadd.f32 0.0, %v612
        %v614 = vpop.f32.mrb[0].mxu0
        %615 = vmatprep.mubr.bf16.mxu0 0
        %616 = vmatmul.mubr.bf16.gmra.mrb[0].mxu0 %v473
        %v617 = vpop.f32.mrb[0].mxu0
        %v618 = vadd.f32 0.0, %v617
        %v619 = vpop.f32.mrb[0].mxu0
        %v620 = vpop.f32.mrb[0].mxu0
        %v621 = vadd.f32 0.0, %v620
        %v622 = vpop.f32.mrb[0].mxu0
        %623 = vmatprep.mubr.bf16.mxu0 0
        %624 = vmatmul.mubr.bf16.gmra.mrb[0].mxu0 %v476
        %v625 = vpop.f32.mrb[0].mxu0
        %v626 = vadd.f32 0.0, %v625
        %v627 = vpop.f32.mrb[0].mxu0
        %v628 = vpop.f32.mrb[0].mxu0
        %v629 = vadd.f32 0.0, %v628
        %v630 = vpop.f32.mrb[0].mxu0
        %631 = vmatprep.mubr.bf16.mxu0 0
        %632 = vmatmul.mubr.bf16.gmra.mrb[0].mxu0 %v479
        %v633 = vpop.f32.mrb[0].mxu0
        %v634 = vadd.f32 0.0, %v633
        %v635 = vpop.f32.mrb[0].mxu0
        %v636 = vpop.f32.mrb[0].mxu0
        %v637 = vadd.f32 0.0, %v636
        %v638 = vpop.f32.mrb[0].mxu0
        %639 = vmatprep.mubr.bf16.mxu0 0
        %640 = vmatmul.mubr.bf16.gmra.mrb[0].mxu0 %v482
        %v641 = vpop.f32.mrb[0].mxu0
        %v642 = vadd.f32 0.0, %v641
        %v643 = vpop.f32.mrb[0].mxu0
        %v644 = vpop.f32.mrb[0].mxu0
        %v645 = vadd.f32 0.0, %v644
        %v646 = vpop.f32.mrb[0].mxu0
        %647 = vmatprep.mubr.bf16.mxu0 0
        %648 = vmatmul.mubr.bf16.gmra.mrb[0].mxu0 %v485
        %v649 = vpop.f32.mrb[0].mxu0
        %v650 = vadd.f32 0.0, %v649
        %v651 = vpop.f32.mrb[0].mxu0
        %v652 = vpop.f32.mrb[0].mxu0
        %v653 = vadd.f32 0.0, %v652
        %v654 = vpop.f32.mrb[0].mxu0
        %655 = vmatprep.mubr.bf16.mxu0 0
        %656 = vmatmul.mubr.bf16.gmra.mrb[0].mxu0 %v488
        %v657 = vpop.f32.mrb[0].mxu0
        %v658 = vadd.f32 0.0, %v657
        %v659 = vpop.f32.mrb[0].mxu0
        %v660 = vpop.f32.mrb[0].mxu0
        %v661 = vadd.f32 0.0, %v660
        %v662 = vpop.f32.mrb[0].mxu0
        %663 = vmatprep.mubr.bf16.mxu0 0
        %664 = vmatmul.mubr.bf16.gmra.mrb[0].mxu0 %v491
        %v665 = vpop.f32.mrb[0].mxu0
        %v666 = vadd.f32 0.0, %v665
        %v667 = vpop.f32.mrb[0].mxu0
        %v668 = vpop.f32.mrb[0].mxu0
        %v669 = vadd.f32 0.0, %v668
        %v670 = vpop.f32.mrb[0].mxu0
        %671 = vmatprep.mubr.bf16.mxu0 0
        %672 = vmatmul.mubr.bf16.gmra.mrb[0].mxu0 %v494
        %v673 = vpop.f32.mrb[0].mxu0
        %v674 = vadd.f32 0.0, %v673
        %v675 = vpop.f32.mrb[0].mxu0
        %v676 = vpop.f32.mrb[0].mxu0
        %v677 = vadd.f32 0.0, %v676
        %v678 = vpop.f32.mrb[0].mxu0
        %679 = vmatprep.mubr.bf16.mxu0 0
        %680 = vmatmul.mubr.bf16.gmra.mrb[0].mxu0 %v497
        %v681 = vpop.f32.mrb[0].mxu0
        %v682 = vadd.f32 0.0, %v681
        %v683 = vpop.f32.mrb[0].mxu0
        %v684 = vpop.f32.mrb[0].mxu0
        %v685 = vadd.f32 0.0, %v684
        %v686 = vpop.f32.mrb[0].mxu0
        %687 = vmatprep.mubr.bf16.mxu0 0
        %688 = vmatmul.mubr.bf16.gmra.mrb[0].mxu0 %v500
        %v689 = vpop.f32.mrb[0].mxu0
        %v690 = vadd.f32 0.0, %v689
        %v691 = vpop.f32.mrb[0].mxu0
        %v692 = vpop.f32.mrb[0].mxu0
        %v693 = vadd.f32 0.0, %v692
        %v694 = vpop.f32.mrb[0].mxu0
        %695 = vmatprep.mubr.bf16.mxu0 0
        %696 = vmatmul.mubr.bf16.gmra.mrb[0].mxu0 %v503
        %v697 = vpop.f32.mrb[0].mxu0
        %v698 = vadd.f32 0.0, %v697
        %v699 = vpop.f32.mrb[0].mxu0
        %v700 = vpop.f32.mrb[0].mxu0
        %v701 = vadd.f32 0.0, %v700
        %v702 = vpop.f32.mrb[0].mxu0
        %703 = vmatprep.mubr.bf16.mxu0 0
        %704 = vmatmul.mubr.bf16.gmra.mrb[0].mxu0 %v506
        %v705 = vpop.f32.mrb[0].mxu0
        %v706 = vadd.f32 0.0, %v705
        %v707 = vpop.f32.mrb[0].mxu0
        %v708 = vpop.f32.mrb[0].mxu0
        %v709 = vadd.f32 0.0, %v708
        %v710 = vpop.f32.mrb[0].mxu0
        %711 = vmatprep.mubr.bf16.mxu0 0
        %712 = vmatmul.mubr.bf16.gmra.mrb[0].mxu0 %v509
        %v713 = vpop.f32.mrb[0].mxu0
        %v714 = vadd.f32 0.0, %v713
        %v715 = vpop.f32.mrb[0].mxu0
        %v716 = vpop.f32.mrb[0].mxu0
        %v717 = vadd.f32 0.0, %v716
        %v718 = vpop.f32.mrb[0].mxu0
        %719 = vmatprep.mubr.bf16.mxu0 0
        %720 = vmatmul.mubr.bf16.gmra.mrb[0].mxu0 %v512
        %v721 = vpop.f32.mrb[0].mxu0
        %v722 = vadd.f32 0.0, %v721
        %v723 = vpop.f32.mrb[0].mxu0
        %v724 = vpop.f32.mrb[0].mxu0
        %v725 = vadd.f32 0.0, %v724
        %v726 = vpop.f32.mrb[0].mxu0
        %727 = vmatprep.mubr.bf16.mxu0 0
        %728 = vmatmul.mubr.bf16.gmra.mrb[0].mxu0 %v515
        %v729 = vpop.f32.mrb[0].mxu0
        %v730 = vadd.f32 0.0, %v729
        %v731 = vpop.f32.mrb[0].mxu0
        %v732 = vpop.f32.mrb[0].mxu0
        %v733 = vadd.f32 0.0, %v732
        %v734 = vpop.f32.mrb[0].mxu0
        %735 = vmatprep.mubr.bf16.mxu0 0
        %736 = vmatmul.mubr.bf16.gmra.mrb[0].mxu0 %v518
        %v737 = vpop.f32.mrb[0].mxu0
        %v738 = vadd.f32 0.0, %v737
        %v739 = vpop.f32.mrb[0].mxu0
        %v740 = vpop.f32.mrb[0].mxu0
        %v741 = vadd.f32 0.0, %v740
        %v742 = vpop.f32.mrb[0].mxu0
        %743 = vmatprep.mubr.bf16.mxu0 0
        %744 = vmatmul.mubr.bf16.gmra.mrb[0].mxu0 %v521
        %v745 = vpop.f32.mrb[0].mxu0
        %v746 = vadd.f32 0.0, %v745
        %v747 = vpop.f32.mrb[0].mxu0
        %v748 = vpop.f32.mrb[0].mxu0
        %v749 = vadd.f32 0.0, %v748
        %v750 = vpop.f32.mrb[0].mxu0
        %751 = vdwg.mxu0
        %v752 = vadd.f32 %v281, %v562
        %v753 = vadd.f32 %v282, %v565
        %v754 = vadd.f32 %v283, %v570
        %v755 = vadd.f32 %v284, %v573
        %v756 = vadd.f32 %v285, %v578
        %v757 = vadd.f32 %v286, %v581
        %v758 = vadd.f32 %v287, %v586
        %v759 = vadd.f32 %v288, %v589
        %v760 = vadd.f32 %v289, %v594
        %v761 = vadd.f32 %v290, %v597
        %v762 = vadd.f32 %v291, %v602
        %v763 = vadd.f32 %v292, %v605
        %v764 = vadd.f32 %v293, %v610
        %v765 = vadd.f32 %v294, %v613
        %v766 = vadd.f32 %v295, %v618
        %v767 = vadd.f32 %v296, %v621
        %v768 = vadd.f32 %v297, %v626
        %v769 = vadd.f32 %v298, %v629
        %v770 = vadd.f32 %v299, %v634
        %v771 = vadd.f32 %v300, %v637
        %v772 = vadd.f32 %v301, %v642
        %v773 = vadd.f32 %v302, %v645
        %v774 = vadd.f32 %v303, %v650
        %v775 = vadd.f32 %v304, %v653
        %v776 = vadd.f32 %v305, %v658
        %v777 = vadd.f32 %v306, %v661
        %v778 = vadd.f32 %v307, %v666
        %v779 = vadd.f32 %v308, %v669
        %v780 = vadd.f32 %v309, %v674
        %v781 = vadd.f32 %v310, %v677
        %v782 = vadd.f32 %v311, %v682
        %v783 = vadd.f32 %v312, %v685
        %v784 = vadd.f32 %v313, %v690
        %v785 = vadd.f32 %v314, %v693
        %v786 = vadd.f32 %v315, %v698
        %v787 = vadd.f32 %v316, %v701
        %v788 = vadd.f32 %v317, %v706
        %v789 = vadd.f32 %v318, %v709
        %v790 = vadd.f32 %v319, %v714
        %v791 = vadd.f32 %v320, %v717
        %v792 = vadd.f32 %v321, %v722
        %v793 = vadd.f32 %v322, %v725
        %v794 = vadd.f32 %v323, %v730
        %v795 = vadd.f32 %v324, %v733
        %v796 = vadd.f32 %v325, %v738
        %v797 = vadd.f32 %v326, %v741
        %v798 = vadd.f32 %v327, %v746
        %v799 = vadd.f32 %v328, %v749
        %800 = vst [vmem:[#allocation2] sm:$0xff] %v752
        %801 = vst [vmem:[#allocation2 + $0x8] sm:$0xff] %v753
        %802 = vst [vmem:[#allocation2 + $0x10] sm:$0xff] %v754
        %803 = vst [vmem:[#allocation2 + $0x18] sm:$0xff] %v755
        %804 = vst [vmem:[#allocation2 + $0x20] sm:$0xff] %v756
        %805 = vst [vmem:[#allocation2 + $0x28] sm:$0xff] %v757
        %806 = vst [vmem:[#allocation2 + $0x30] sm:$0xff] %v758
        %807 = vst [vmem:[#allocation2 + $0x38] sm:$0xff] %v759
        %808 = vst [vmem:[#allocation2 + $0x40] sm:$0xff] %v760
        %809 = vst [vmem:[#allocation2 + $0x48] sm:$0xff] %v761
        %810 = vst [vmem:[#allocation2 + $0x50] sm:$0xff] %v762
        %811 = vst [vmem:[#allocation2 + $0x58] sm:$0xff] %v763
        %812 = vst [vmem:[#allocation2 + $0x60] sm:$0xff] %v764
        %813 = vst [vmem:[#allocation2 + $0x68] sm:$0xff] %v765
        %814 = vst [vmem:[#allocation2 + $0x70] sm:$0xff] %v766
        %815 = vst [vmem:[#allocation2 + $0x78] sm:$0xff] %v767
        %816 = vst [vmem:[#allocation2 + $0x80] sm:$0xff] %v768
        %817 = vst [vmem:[#allocation2 + $0x88] sm:$0xff] %v769
        %818 = vst [vmem:[#allocation2 + $0x90] sm:$0xff] %v770
        %819 = vst [vmem:[#allocation2 + $0x98] sm:$0xff] %v771
        %820 = vst [vmem:[#allocation2 + $0xa0] sm:$0xff] %v772
        %821 = vst [vmem:[#allocation2 + $0xa8] sm:$0xff] %v773
        %822 = vst [vmem:[#allocation2 + $0xb0] sm:$0xff] %v774
        %823 = vst [vmem:[#allocation2 + $0xb8] sm:$0xff] %v775
        %824 = vst [vmem:[#allocation2 + $0xc0] sm:$0xff] %v776
        %825 = vst [vmem:[#allocation2 + $0xc8] sm:$0xff] %v777
        %826 = vst [vmem:[#allocation2 + $0xd0] sm:$0xff] %v778
        %827 = vst [vmem:[#allocation2 + $0xd8] sm:$0xff] %v779
        %828 = vst [vmem:[#allocation2 + $0xe0] sm:$0xff] %v780
        %829 = vst [vmem:[#allocation2 + $0xe8] sm:$0xff] %v781
        %830 = vst [vmem:[#allocation2 + $0xf0] sm:$0xff] %v782
        %831 = vst [vmem:[#allocation2 + $0xf8] sm:$0xff] %v783
        %832 = vst [vmem:[#allocation2 + $0x100] sm:$0xff] %v784
        %833 = vst [vmem:[#allocation2 + $0x108] sm:$0xff] %v785
        %834 = vst [vmem:[#allocation2 + $0x110] sm:$0xff] %v786
        %835 = vst [vmem:[#allocation2 + $0x118] sm:$0xff] %v787
        %836 = vst [vmem:[#allocation2 + $0x120] sm:$0xff] %v788
        %837 = vst [vmem:[#allocation2 + $0x128] sm:$0xff] %v789
        %838 = vst [vmem:[#allocation2 + $0x130] sm:$0xff] %v790
        %839 = vst [vmem:[#allocation2 + $0x138] sm:$0xff] %v791
        %840 = vst [vmem:[#allocation2 + $0x140] sm:$0xff] %v792
        %841 = vst [vmem:[#allocation2 + $0x148] sm:$0xff] %v793
        %842 = vst [vmem:[#allocation2 + $0x150] sm:$0xff] %v794
        %843 = vst [vmem:[#allocation2 + $0x158] sm:$0xff] %v795
        %844 = vst [vmem:[#allocation2 + $0x160] sm:$0xff] %v796
        %845 = vst [vmem:[#allocation2 + $0x168] sm:$0xff] %v797
        %846 = vst [vmem:[#allocation2 + $0x170] sm:$0xff] %v798
        %847 = vst [vmem:[#allocation2 + $0x178] sm:$0xff] %v799
        %v848 = vld [vmem:[%s182] sm:$0xf]
        %v849 = vld [vmem:[%s182 + $0x4] sm:$0xf]
        %v850 = vld [vmem:[%s182 + $0x8] sm:$0xf]
        %v851 = vld [vmem:[%s182 + $0xc] sm:$0xf]
        %v852 = vld [vmem:[%s182 + $0x10] sm:$0xf]
        %v853 = vld [vmem:[%s182 + $0x14] sm:$0xf]
        %v854 = vld [vmem:[%s182 + $0x18] sm:$0xf]
        %v855 = vld [vmem:[%s182 + $0x1c] sm:$0xf]
        %v856 = vld [vmem:[%s182 + $0x20] sm:$0xf]
        %v857 = vld [vmem:[%s182 + $0x24] sm:$0xf]
        %v858 = vld [vmem:[%s182 + $0x28] sm:$0xf]
        %v859 = vld [vmem:[%s182 + $0x2c] sm:$0xf]
        %v860 = vld [vmem:[%s182 + $0x30] sm:$0xf]
        %v861 = vld [vmem:[%s182 + $0x34] sm:$0xf]
        %v862 = vld [vmem:[%s182 + $0x38] sm:$0xf]
        %v863 = vld [vmem:[%s182 + $0x3c] sm:$0xf]
        %v864 = vld [vmem:[%s182 + $0x40] sm:$0xf]
        %v865 = vld [vmem:[%s182 + $0x44] sm:$0xf]
        %v866 = vld [vmem:[%s182 + $0x48] sm:$0xf]
        %v867 = vld [vmem:[%s182 + $0x4c] sm:$0xf]
        %v868 = vld [vmem:[%s182 + $0x50] sm:$0xf]
        %v869 = vld [vmem:[%s182 + $0x54] sm:$0xf]
        %v870 = vld [vmem:[%s182 + $0x58] sm:$0xf]
        %v871 = vld [vmem:[%s182 + $0x5c] sm:$0xf]
        %v872 = vld [vmem:[%s182 + $0x60] sm:$0xf]
        %v873 = vld [vmem:[%s182 + $0x64] sm:$0xf]
        %v874 = vld [vmem:[%s182 + $0x68] sm:$0xf]
        %v875 = vld [vmem:[%s182 + $0x6c] sm:$0xf]
        %v876 = vld [vmem:[%s182 + $0x70] sm:$0xf]
        %v877 = vld [vmem:[%s182 + $0x74] sm:$0xf]
        %v878 = vld [vmem:[%s182 + $0x78] sm:$0xf]
        %v879 = vld [vmem:[%s182 + $0x7c] sm:$0xf]
        %v880 = vld [vmem:[%s182 + $0x80] sm:$0xf]
        %v881 = vld [vmem:[%s182 + $0x84] sm:$0xf]
        %v882 = vld [vmem:[%s182 + $0x88] sm:$0xf]
        %v883 = vld [vmem:[%s182 + $0x8c] sm:$0xf]
        %v884 = vld [vmem:[%s182 + $0x90] sm:$0xf]
        %v885 = vld [vmem:[%s182 + $0x94] sm:$0xf]
        %v886 = vld [vmem:[%s182 + $0x98] sm:$0xf]
        %v887 = vld [vmem:[%s182 + $0x9c] sm:$0xf]
        %v888 = vld [vmem:[%s182 + $0xa0] sm:$0xf]
        %v889 = vld [vmem:[%s182 + $0xa4] sm:$0xf]
        %v890 = vld [vmem:[%s182 + $0xa8] sm:$0xf]
        %v891 = vld [vmem:[%s182 + $0xac] sm:$0xf]
        %v892 = vld [vmem:[%s182 + $0xb0] sm:$0xf]
        %v893 = vld [vmem:[%s182 + $0xb4] sm:$0xf]
        %v894 = vld [vmem:[%s182 + $0xb8] sm:$0xf]
        %v895 = vld [vmem:[%s182 + $0xbc] sm:$0xf]
        %v896 = vld [vmem:[%s182 + $0xc0] sm:$0x1]
        %v897 = vld [vmem:[#allocation2] sm:$0xff]
        %v898 = vld [vmem:[#allocation2 + $0x8] sm:$0xff]
        %v899 = vld [vmem:[#allocation2 + $0x10] sm:$0xff]
        %v900 = vld [vmem:[#allocation2 + $0x18] sm:$0xff]
        %v901 = vld [vmem:[#allocation2 + $0x20] sm:$0xff]
        %v902 = vld [vmem:[#allocation2 + $0x28] sm:$0xff]
        %v903 = vld [vmem:[#allocation2 + $0x30] sm:$0xff]
        %v904 = vld [vmem:[#allocation2 + $0x38] sm:$0xff]
        %v905 = vld [vmem:[#allocation2 + $0x40] sm:$0xff]
        %v906 = vld [vmem:[#allocation2 + $0x48] sm:$0xff]
        %v907 = vld [vmem:[#allocation2 + $0x50] sm:$0xff]
        %v908 = vld [vmem:[#allocation2 + $0x58] sm:$0xff]
        %v909 = vld [vmem:[#allocation2 + $0x60] sm:$0xff]
        %v910 = vld [vmem:[#allocation2 + $0x68] sm:$0xff]
        %v911 = vld [vmem:[#allocation2 + $0x70] sm:$0xff]
        %v912 = vld [vmem:[#allocation2 + $0x78] sm:$0xff]
        %v913 = vld [vmem:[#allocation2 + $0x80] sm:$0xff]
        %v914 = vld [vmem:[#allocation2 + $0x88] sm:$0xff]
        %v915 = vld [vmem:[#allocation2 + $0x90] sm:$0xff]
        %v916 = vld [vmem:[#allocation2 + $0x98] sm:$0xff]
        %v917 = vld [vmem:[#allocation2 + $0xa0] sm:$0xff]
        %v918 = vld [vmem:[#allocation2 + $0xa8] sm:$0xff]
        %v919 = vld [vmem:[#allocation2 + $0xb0] sm:$0xff]
        %v920 = vld [vmem:[#allocation2 + $0xb8] sm:$0xff]
        %v921 = vld [vmem:[#allocation2 + $0xc0] sm:$0xff]
        %v922 = vld [vmem:[#allocation2 + $0xc8] sm:$0xff]
        %v923 = vld [vmem:[#allocation2 + $0xd0] sm:$0xff]
        %v924 = vld [vmem:[#allocation2 + $0xd8] sm:$0xff]
        %v925 = vld [vmem:[#allocation2 + $0xe0] sm:$0xff]
        %v926 = vld [vmem:[#allocation2 + $0xe8] sm:$0xff]
        %v927 = vld [vmem:[#allocation2 + $0xf0] sm:$0xff]
        %v928 = vld [vmem:[#allocation2 + $0xf8] sm:$0xff]
        %v929 = vld [vmem:[#allocation2 + $0x100] sm:$0xff]
        %v930 = vld [vmem:[#allocation2 + $0x108] sm:$0xff]
        %v931 = vld [vmem:[#allocation2 + $0x110] sm:$0xff]
        %v932 = vld [vmem:[#allocation2 + $0x118] sm:$0xff]
        %v933 = vld [vmem:[#allocation2 + $0x120] sm:$0xff]
        %v934 = vld [vmem:[#allocation2 + $0x128] sm:$0xff]
        %v935 = vld [vmem:[#allocation2 + $0x130] sm:$0xff]
        %v936 = vld [vmem:[#allocation2 + $0x138] sm:$0xff]
        %v937 = vld [vmem:[#allocation2 + $0x140] sm:$0xff]
        %v938 = vld [vmem:[#allocation2 + $0x148] sm:$0xff]
        %v939 = vld [vmem:[#allocation2 + $0x150] sm:$0xff]
        %v940 = vld [vmem:[#allocation2 + $0x158] sm:$0xff]
        %v941 = vld [vmem:[#allocation2 + $0x160] sm:$0xff]
        %v942 = vld [vmem:[#allocation2 + $0x168] sm:$0xff]
        %v943 = vld [vmem:[#allocation2 + $0x170] sm:$0xff]
        %v944 = vld [vmem:[#allocation2 + $0x178] sm:$0xff]
        %s945 = scalar_lea.vmem %s1, 4
        %v946 = vld [vmem:[%s945] sm:$0xf]
        %v996 = vunpack.c.l.b16 %v848
        %v997 = vunpack.c.l.b16 %v849
        %v998 = vunpack.c.l.b16 %v850
        %v999 = vunpack.c.l.b16 %v851
        %v1000 = vunpack.c.l.b16 %v852
        %v1001 = vunpack.c.l.b16 %v853
        %v1002 = vunpack.c.l.b16 %v854
        %v1003 = vunpack.c.l.b16 %v855
        %v1004 = vunpack.c.l.b16 %v856
        %v1005 = vunpack.c.l.b16 %v857
        %v1006 = vunpack.c.l.b16 %v858
        %v1007 = vunpack.c.l.b16 %v859
        %v1008 = vunpack.c.l.b16 %v860
        %v1009 = vunpack.c.l.b16 %v861
        %v1010 = vunpack.c.l.b16 %v862
        %v1011 = vunpack.c.l.b16 %v863
        %v1012 = vunpack.c.l.b16 %v864
        %v1013 = vunpack.c.l.b16 %v865
        %v1014 = vunpack.c.l.b16 %v866
        %v1015 = vunpack.c.l.b16 %v867
        %v1016 = vunpack.c.l.b16 %v868
        %v1017 = vunpack.c.l.b16 %v869
        %v1018 = vunpack.c.l.b16 %v870
        %v1019 = vunpack.c.l.b16 %v871
        %v1020 = vunpack.c.l.b16 %v872
        %v1021 = vunpack.c.l.b16 %v873
        %v1022 = vunpack.c.l.b16 %v874
        %v1023 = vunpack.c.l.b16 %v875
        %v1024 = vunpack.c.l.b16 %v876
        %v1025 = vunpack.c.l.b16 %v877
        %v1026 = vunpack.c.l.b16 %v878
        %v1027 = vunpack.c.l.b16 %v879
        %v1028 = vunpack.c.l.b16 %v880
        %v1029 = vunpack.c.l.b16 %v881
        %v1030 = vunpack.c.l.b16 %v882
        %v1031 = vunpack.c.l.b16 %v883
        %v1032 = vunpack.c.l.b16 %v884
        %v1033 = vunpack.c.l.b16 %v885
        %v1034 = vunpack.c.l.b16 %v886
        %v1035 = vunpack.c.l.b16 %v887
        %v1036 = vunpack.c.l.b16 %v888
        %v1037 = vunpack.c.l.b16 %v889
        %v1038 = vunpack.c.l.b16 %v890
        %v1039 = vunpack.c.l.b16 %v891
        %v1040 = vunpack.c.l.b16 %v892
        %v1041 = vunpack.c.l.b16 %v893
        %v1042 = vunpack.c.l.b16 %v894
        %v1043 = vunpack.c.l.b16 %v895
        %v1044 = vunpack.c.l.b16 %v896
        %v1045 = vpack.c.b16 %v997, %v996
        %v1046 = vpack.c.b16 %v999, %v998
        %v1047 = vpack.c.b16 %v1001, %v1000
        %v1048 = vpack.c.b16 %v1003, %v1002
        %v1049 = vpack.c.b16 %v1005, %v1004
        %v1050 = vpack.c.b16 %v1007, %v1006
        %v1051 = vpack.c.b16 %v1009, %v1008
        %v1052 = vpack.c.b16 %v1011, %v1010
        %v1053 = vpack.c.b16 %v1013, %v1012
        %v1054 = vpack.c.b16 %v1015, %v1014
        %v1055 = vpack.c.b16 %v1017, %v1016
        %v1056 = vpack.c.b16 %v1019, %v1018
        %v1057 = vpack.c.b16 %v1021, %v1020
        %v1058 = vpack.c.b16 %v1023, %v1022
        %v1059 = vpack.c.b16 %v1025, %v1024
        %v1060 = vpack.c.b16 %v1027, %v1026
        %v1061 = vpack.c.b16 %v1029, %v1028
        %v1062 = vpack.c.b16 %v1031, %v1030
        %v1063 = vpack.c.b16 %v1033, %v1032
        %v1064 = vpack.c.b16 %v1035, %v1034
        %v1065 = vpack.c.b16 %v1037, %v1036
        %v1066 = vpack.c.b16 %v1039, %v1038
        %v1067 = vpack.c.b16 %v1041, %v1040
        %v1068 = vpack.c.b16 %v1043, %v1042
        %v1069 = vpack.c.b16 %v1044, %v1044
        %vm1070 = vsmask.f32 7424
        %v1072 = vshrl.u32 %v1045, 16
        %v1074 = vshll.u32 %v1045, 16
        %v1076 = vrot.slane %v1074, 1
        %v1077 = vor.u32 %v1072, %v1076
        %v1079 = vshll.u32 %v1046, 16
        %v1081 = vrot.slane %v1079, 1
        %v1082 = vsel %vm1070, %v1077, %v1081
        %v1083 = vshrl.u32 %v1046, 16
        %v1085 = vor.u32 %v1083, %v1081
        %v1087 = vshll.u32 %v1047, 16
        %v1089 = vrot.slane %v1087, 1
        %v1090 = vsel %vm1070, %v1085, %v1089
        %v1091 = vshrl.u32 %v1047, 16
        %v1093 = vor.u32 %v1091, %v1089
        %v1095 = vshll.u32 %v1048, 16
        %v1097 = vrot.slane %v1095, 1
        %v1098 = vsel %vm1070, %v1093, %v1097
        %v1099 = vshrl.u32 %v1048, 16
        %v1101 = vor.u32 %v1099, %v1097
        %v1103 = vshll.u32 %v1049, 16
        %v1105 = vrot.slane %v1103, 1
        %v1106 = vsel %vm1070, %v1101, %v1105
        %v1107 = vshrl.u32 %v1049, 16
        %v1109 = vor.u32 %v1107, %v1105
        %v1111 = vshll.u32 %v1050, 16
        %v1113 = vrot.slane %v1111, 1
        %v1114 = vsel %vm1070, %v1109, %v1113
        %v1115 = vshrl.u32 %v1050, 16
        %v1117 = vor.u32 %v1115, %v1113
        %v1119 = vshll.u32 %v1051, 16
        %v1121 = vrot.slane %v1119, 1
        %v1122 = vsel %vm1070, %v1117, %v1121
        %v1123 = vshrl.u32 %v1051, 16
        %v1125 = vor.u32 %v1123, %v1121
        %v1127 = vshll.u32 %v1052, 16
        %v1129 = vrot.slane %v1127, 1
        %v1130 = vsel %vm1070, %v1125, %v1129
        %v1131 = vshrl.u32 %v1052, 16
        %v1133 = vor.u32 %v1131, %v1129
        %v1135 = vshll.u32 %v1053, 16
        %v1137 = vrot.slane %v1135, 1
        %v1138 = vsel %vm1070, %v1133, %v1137
        %v1139 = vshrl.u32 %v1053, 16
        %v1141 = vor.u32 %v1139, %v1137
        %v1143 = vshll.u32 %v1054, 16
        %v1145 = vrot.slane %v1143, 1
        %v1146 = vsel %vm1070, %v1141, %v1145
        %v1147 = vshrl.u32 %v1054, 16
        %v1149 = vor.u32 %v1147, %v1145
        %v1151 = vshll.u32 %v1055, 16
        %v1153 = vrot.slane %v1151, 1
        %v1154 = vsel %vm1070, %v1149, %v1153
        %v1155 = vshrl.u32 %v1055, 16
        %v1157 = vor.u32 %v1155, %v1153
        %v1159 = vshll.u32 %v1056, 16
        %v1161 = vrot.slane %v1159, 1
        %v1162 = vsel %vm1070, %v1157, %v1161
        %v1163 = vshrl.u32 %v1056, 16
        %v1165 = vor.u32 %v1163, %v1161
        %v1167 = vshll.u32 %v1057, 16
        %v1169 = vrot.slane %v1167, 1
        %v1170 = vsel %vm1070, %v1165, %v1169
        %v1171 = vshrl.u32 %v1057, 16
        %v1173 = vor.u32 %v1171, %v1169
        %v1175 = vshll.u32 %v1058, 16
        %v1177 = vrot.slane %v1175, 1
        %v1178 = vsel %vm1070, %v1173, %v1177
        %v1179 = vshrl.u32 %v1058, 16
        %v1181 = vor.u32 %v1179, %v1177
        %v1183 = vshll.u32 %v1059, 16
        %v1185 = vrot.slane %v1183, 1
        %v1186 = vsel %vm1070, %v1181, %v1185
        %v1187 = vshrl.u32 %v1059, 16
        %v1189 = vor.u32 %v1187, %v1185
        %v1191 = vshll.u32 %v1060, 16
        %v1193 = vrot.slane %v1191, 1
        %v1194 = vsel %vm1070, %v1189, %v1193
        %v1195 = vshrl.u32 %v1060, 16
        %v1197 = vor.u32 %v1195, %v1193
        %v1199 = vshll.u32 %v1061, 16
        %v1201 = vrot.slane %v1199, 1
        %v1202 = vsel %vm1070, %v1197, %v1201
        %v1203 = vshrl.u32 %v1061, 16
        %v1205 = vor.u32 %v1203, %v1201
        %v1207 = vshll.u32 %v1062, 16
        %v1209 = vrot.slane %v1207, 1
        %v1210 = vsel %vm1070, %v1205, %v1209
        %v1211 = vshrl.u32 %v1062, 16
        %v1213 = vor.u32 %v1211, %v1209
        %v1215 = vshll.u32 %v1063, 16
        %v1217 = vrot.slane %v1215, 1
        %v1218 = vsel %vm1070, %v1213, %v1217
        %v1219 = vshrl.u32 %v1063, 16
        %v1221 = vor.u32 %v1219, %v1217
        %v1223 = vshll.u32 %v1064, 16
        %v1225 = vrot.slane %v1223, 1
        %v1226 = vsel %vm1070, %v1221, %v1225
        %v1227 = vshrl.u32 %v1064, 16
        %v1229 = vor.u32 %v1227, %v1225
        %v1231 = vshll.u32 %v1065, 16
        %v1233 = vrot.slane %v1231, 1
        %v1234 = vsel %vm1070, %v1229, %v1233
        %v1235 = vshrl.u32 %v1065, 16
        %v1237 = vor.u32 %v1235, %v1233
        %v1239 = vshll.u32 %v1066, 16
        %v1241 = vrot.slane %v1239, 1
        %v1242 = vsel %vm1070, %v1237, %v1241
        %v1243 = vshrl.u32 %v1066, 16
        %v1245 = vor.u32 %v1243, %v1241
        %v1247 = vshll.u32 %v1067, 16
        %v1249 = vrot.slane %v1247, 1
        %v1250 = vsel %vm1070, %v1245, %v1249
        %v1251 = vshrl.u32 %v1067, 16
        %v1253 = vor.u32 %v1251, %v1249
        %v1255 = vshll.u32 %v1068, 16
        %v1257 = vrot.slane %v1255, 1
        %v1258 = vsel %vm1070, %v1253, %v1257
        %v1259 = vshrl.u32 %v1068, 16
        %v1261 = vor.u32 %v1259, %v1257
        %v1263 = vshll.u32 %v1069, 16
        %v1265 = vrot.slane %v1263, 1
        %v1266 = vsel %vm1070, %v1261, %v1265
        %v1268 = vsel %vm450, %v1082, 0
        %v1271 = vsel %vm450, %v1090, 0
        %v1274 = vsel %vm450, %v1098, 0
        %v1277 = vsel %vm450, %v1106, 0
        %v1280 = vsel %vm450, %v1114, 0
        %v1283 = vsel %vm450, %v1122, 0
        %v1286 = vsel %vm450, %v1130, 0
        %v1289 = vsel %vm450, %v1138, 0
        %v1292 = vsel %vm450, %v1146, 0
        %v1295 = vsel %vm450, %v1154, 0
        %v1298 = vsel %vm450, %v1162, 0
        %v1301 = vsel %vm450, %v1170, 0
        %v1304 = vsel %vm450, %v1178, 0
        %v1307 = vsel %vm450, %v1186, 0
        %v1310 = vsel %vm450, %v1194, 0
        %v1313 = vsel %vm450, %v1202, 0
        %v1316 = vsel %vm450, %v1210, 0
        %v1319 = vsel %vm450, %v1218, 0
        %v1322 = vsel %vm450, %v1226, 0
        %v1325 = vsel %vm450, %v1234, 0
        %v1328 = vsel %vm450, %v1242, 0
        %v1331 = vsel %vm450, %v1250, 0
        %v1334 = vsel %vm450, %v1258, 0
        %v1337 = vsel %vm450, %v1266, 0
        %v1340 = vsel %vm523, %v946, 0
        %1342 = vmatprep.subr.bf16.mxu0 0
        %1343 = vmatpush1.bf16.msra.mxu0 %v1340
        %1344 = vmatprep.subr.bf16.mxu0 0
        %1345 = vmatpush1.bf16.msra.mxu0 0
        %1346 = vmatprep.subr.bf16.mxu0 0
        %1347 = vmatpush1.bf16.msra.mxu0 0
        %1348 = vmatprep.subr.bf16.mxu0 0
        %1349 = vmatpush1.bf16.msra.mxu0 0
        %1350 = vmatprep.subr.bf16.mxu0 0
        %1351 = vmatpush1.bf16.msra.mxu0 0
        %1352 = vmatprep.subr.bf16.mxu0 0
        %1353 = vmatpush1.bf16.msra.mxu0 0
        %1354 = vmatprep.subr.bf16.mxu0 0
        %1355 = vmatpush1.bf16.msra.mxu0 0
        %1356 = vmatprep.subr.bf16.mxu0 0
        %1357 = vmatpush1.bf16.msra.mxu0 0
        %1358 = vmatprep.subr.bf16.mxu0 0
        %1359 = vmatpush1.bf16.msra.mxu0 0
        %1360 = vmatprep.subr.bf16.mxu0 0
        %1361 = vmatpush1.bf16.msra.mxu0 0
        %1362 = vmatprep.subr.bf16.mxu0 0
        %1363 = vmatpush1.bf16.msra.mxu0 0
        %1364 = vmatprep.subr.bf16.mxu0 0
        %1365 = vmatpush1.bf16.msra.mxu0 0
        %1366 = vmatprep.subr.bf16.mxu0 0
        %1367 = vmatpush1.bf16.msra.mxu0 0
        %1368 = vmatprep.subr.bf16.mxu0 0
        %1369 = vmatpush1.bf16.msra.mxu0 0
        %1370 = vmatprep.subr.bf16.mxu0 0
        %1371 = vmatpush1.bf16.msra.mxu0 0
        %1372 = vmatprep.subr.bf16.mxu0 0
        %1373 = vmatpush1.bf16.msra.mxu0 0
        %1374 = vmatprep.mubr.bf16.mxu0 0
        %1375 = vmatmul.mubr.bf16.gmra.mrb[0].mxu0 %v1268
        %v1376 = vpop.f32.mrb[0].mxu0
        %v1377 = vadd.f32 0.0, %v1376
        %v1378 = vpop.f32.mrb[0].mxu0
        %v1379 = vpop.f32.mrb[0].mxu0
        %v1380 = vadd.f32 0.0, %v1379
        %v1381 = vpop.f32.mrb[0].mxu0
        %1382 = vmatprep.mubr.bf16.mxu0 0
        %1383 = vmatmul.mubr.bf16.gmra.mrb[0].mxu0 %v1271
        %v1384 = vpop.f32.mrb[0].mxu0
        %v1385 = vadd.f32 0.0, %v1384
        %v1386 = vpop.f32.mrb[0].mxu0
        %v1387 = vpop.f32.mrb[0].mxu0
        %v1388 = vadd.f32 0.0, %v1387
        %v1389 = vpop.f32.mrb[0].mxu0
        %1390 = vmatprep.mubr.bf16.mxu0 0
        %1391 = vmatmul.mubr.bf16.gmra.mrb[0].mxu0 %v1274
        %v1392 = vpop.f32.mrb[0].mxu0
        %v1393 = vadd.f32 0.0, %v1392
        %v1394 = vpop.f32.mrb[0].mxu0
        %v1395 = vpop.f32.mrb[0].mxu0
        %v1396 = vadd.f32 0.0, %v1395
        %v1397 = vpop.f32.mrb[0].mxu0
        %1398 = vmatprep.mubr.bf16.mxu0 0
        %1399 = vmatmul.mubr.bf16.gmra.mrb[0].mxu0 %v1277
        %v1400 = vpop.f32.mrb[0].mxu0
        %v1401 = vadd.f32 0.0, %v1400
        %v1402 = vpop.f32.mrb[0].mxu0
        %v1403 = vpop.f32.mrb[0].mxu0
        %v1404 = vadd.f32 0.0, %v1403
        %v1405 = vpop.f32.mrb[0].mxu0
        %1406 = vmatprep.mubr.bf16.mxu0 0
        %1407 = vmatmul.mubr.bf16.gmra.mrb[0].mxu0 %v1280
        %v1408 = vpop.f32.mrb[0].mxu0
        %v1409 = vadd.f32 0.0, %v1408
        %v1410 = vpop.f32.mrb[0].mxu0
        %v1411 = vpop.f32.mrb[0].mxu0
        %v1412 = vadd.f32 0.0, %v1411
        %v1413 = vpop.f32.mrb[0].mxu0
        %1414 = vmatprep.mubr.bf16.mxu0 0
        %1415 = vmatmul.mubr.bf16.gmra.mrb[0].mxu0 %v1283
        %v1416 = vpop.f32.mrb[0].mxu0
        %v1417 = vadd.f32 0.0, %v1416
        %v1418 = vpop.f32.mrb[0].mxu0
        %v1419 = vpop.f32.mrb[0].mxu0
        %v1420 = vadd.f32 0.0, %v1419
        %v1421 = vpop.f32.mrb[0].mxu0
        %1422 = vmatprep.mubr.bf16.mxu0 0
        %1423 = vmatmul.mubr.bf16.gmra.mrb[0].mxu0 %v1286
        %v1424 = vpop.f32.mrb[0].mxu0
        %v1425 = vadd.f32 0.0, %v1424
        %v1426 = vpop.f32.mrb[0].mxu0
        %v1427 = vpop.f32.mrb[0].mxu0
        %v1428 = vadd.f32 0.0, %v1427
        %v1429 = vpop.f32.mrb[0].mxu0
        %1430 = vmatprep.mubr.bf16.mxu0 0
        %1431 = vmatmul.mubr.bf16.gmra.mrb[0].mxu0 %v1289
        %v1432 = vpop.f32.mrb[0].mxu0
        %v1433 = vadd.f32 0.0, %v1432
        %v1434 = vpop.f32.mrb[0].mxu0
        %v1435 = vpop.f32.mrb[0].mxu0
        %v1436 = vadd.f32 0.0, %v1435
        %v1437 = vpop.f32.mrb[0].mxu0
        %1438 = vmatprep.mubr.bf16.mxu0 0
        %1439 = vmatmul.mubr.bf16.gmra.mrb[0].mxu0 %v1292
        %v1440 = vpop.f32.mrb[0].mxu0
        %v1441 = vadd.f32 0.0, %v1440
        %v1442 = vpop.f32.mrb[0].mxu0
        %v1443 = vpop.f32.mrb[0].mxu0
        %v1444 = vadd.f32 0.0, %v1443
        %v1445 = vpop.f32.mrb[0].mxu0
        %1446 = vmatprep.mubr.bf16.mxu0 0
        %1447 = vmatmul.mubr.bf16.gmra.mrb[0].mxu0 %v1295
        %v1448 = vpop.f32.mrb[0].mxu0
        %v1449 = vadd.f32 0.0, %v1448
        %v1450 = vpop.f32.mrb[0].mxu0
        %v1451 = vpop.f32.mrb[0].mxu0
        %v1452 = vadd.f32 0.0, %v1451
        %v1453 = vpop.f32.mrb[0].mxu0
        %1454 = vmatprep.mubr.bf16.mxu0 0
        %1455 = vmatmul.mubr.bf16.gmra.mrb[0].mxu0 %v1298
        %v1456 = vpop.f32.mrb[0].mxu0
        %v1457 = vadd.f32 0.0, %v1456
        %v1458 = vpop.f32.mrb[0].mxu0
        %v1459 = vpop.f32.mrb[0].mxu0
        %v1460 = vadd.f32 0.0, %v1459
        %v1461 = vpop.f32.mrb[0].mxu0
        %1462 = vmatprep.mubr.bf16.mxu0 0
        %1463 = vmatmul.mubr.bf16.gmra.mrb[0].mxu0 %v1301
        %v1464 = vpop.f32.mrb[0].mxu0
        %v1465 = vadd.f32 0.0, %v1464
        %v1466 = vpop.f32.mrb[0].mxu0
        %v1467 = vpop.f32.mrb[0].mxu0
        %v1468 = vadd.f32 0.0, %v1467
        %v1469 = vpop.f32.mrb[0].mxu0
        %1470 = vmatprep.mubr.bf16.mxu0 0
        %1471 = vmatmul.mubr.bf16.gmra.mrb[0].mxu0 %v1304
        %v1472 = vpop.f32.mrb[0].mxu0
        %v1473 = vadd.f32 0.0, %v1472
        %v1474 = vpop.f32.mrb[0].mxu0
        %v1475 = vpop.f32.mrb[0].mxu0
        %v1476 = vadd.f32 0.0, %v1475
        %v1477 = vpop.f32.mrb[0].mxu0
        %1478 = vmatprep.mubr.bf16.mxu0 0
        %1479 = vmatmul.mubr.bf16.gmra.mrb[0].mxu0 %v1307
        %v1480 = vpop.f32.mrb[0].mxu0
        %v1481 = vadd.f32 0.0, %v1480
        %v1482 = vpop.f32.mrb[0].mxu0
        %v1483 = vpop.f32.mrb[0].mxu0
        %v1484 = vadd.f32 0.0, %v1483
        %v1485 = vpop.f32.mrb[0].mxu0
        %1486 = vmatprep.mubr.bf16.mxu0 0
        %1487 = vmatmul.mubr.bf16.gmra.mrb[0].mxu0 %v1310
        %v1488 = vpop.f32.mrb[0].mxu0
        %v1489 = vadd.f32 0.0, %v1488
        %v1490 = vpop.f32.mrb[0].mxu0
        %v1491 = vpop.f32.mrb[0].mxu0
        %v1492 = vadd.f32 0.0, %v1491
        %v1493 = vpop.f32.mrb[0].mxu0
        %1494 = vmatprep.mubr.bf16.mxu0 0
        %1495 = vmatmul.mubr.bf16.gmra.mrb[0].mxu0 %v1313
        %v1496 = vpop.f32.mrb[0].mxu0
        %v1497 = vadd.f32 0.0, %v1496
        %v1498 = vpop.f32.mrb[0].mxu0
        %v1499 = vpop.f32.mrb[0].mxu0
        %v1500 = vadd.f32 0.0, %v1499
        %v1501 = vpop.f32.mrb[0].mxu0
        %1502 = vmatprep.mubr.bf16.mxu0 0
        %1503 = vmatmul.mubr.bf16.gmra.mrb[0].mxu0 %v1316
        %v1504 = vpop.f32.mrb[0].mxu0
        %v1505 = vadd.f32 0.0, %v1504
        %v1506 = vpop.f32.mrb[0].mxu0
        %v1507 = vpop.f32.mrb[0].mxu0
        %v1508 = vadd.f32 0.0, %v1507
        %v1509 = vpop.f32.mrb[0].mxu0
        %1510 = vmatprep.mubr.bf16.mxu0 0
        %1511 = vmatmul.mubr.bf16.gmra.mrb[0].mxu0 %v1319
        %v1512 = vpop.f32.mrb[0].mxu0
        %v1513 = vadd.f32 0.0, %v1512
        %v1514 = vpop.f32.mrb[0].mxu0
        %v1515 = vpop.f32.mrb[0].mxu0
        %v1516 = vadd.f32 0.0, %v1515
        %v1517 = vpop.f32.mrb[0].mxu0
        %1518 = vmatprep.mubr.bf16.mxu0 0
        %1519 = vmatmul.mubr.bf16.gmra.mrb[0].mxu0 %v1322
        %v1520 = vpop.f32.mrb[0].mxu0
        %v1521 = vadd.f32 0.0, %v1520
        %v1522 = vpop.f32.mrb[0].mxu0
        %v1523 = vpop.f32.mrb[0].mxu0
        %v1524 = vadd.f32 0.0, %v1523
        %v1525 = vpop.f32.mrb[0].mxu0
        %1526 = vmatprep.mubr.bf16.mxu0 0
        %1527 = vmatmul.mubr.bf16.gmra.mrb[0].mxu0 %v1325
        %v1528 = vpop.f32.mrb[0].mxu0
        %v1529 = vadd.f32 0.0, %v1528
        %v1530 = vpop.f32.mrb[0].mxu0
        %v1531 = vpop.f32.mrb[0].mxu0
        %v1532 = vadd.f32 0.0, %v1531
        %v1533 = vpop.f32.mrb[0].mxu0
        %1534 = vmatprep.mubr.bf16.mxu0 0
        %1535 = vmatmul.mubr.bf16.gmra.mrb[0].mxu0 %v1328
        %v1536 = vpop.f32.mrb[0].mxu0
        %v1537 = vadd.f32 0.0, %v1536
        %v1538 = vpop.f32.mrb[0].mxu0
        %v1539 = vpop.f32.mrb[0].mxu0
        %v1540 = vadd.f32 0.0, %v1539
        %v1541 = vpop.f32.mrb[0].mxu0
        %1542 = vmatprep.mubr.bf16.mxu0 0
        %1543 = vmatmul.mubr.bf16.gmra.mrb[0].mxu0 %v1331
        %v1544 = vpop.f32.mrb[0].mxu0
        %v1545 = vadd.f32 0.0, %v1544
        %v1546 = vpop.f32.mrb[0].mxu0
        %v1547 = vpop.f32.mrb[0].mxu0
        %v1548 = vadd.f32 0.0, %v1547
        %v1549 = vpop.f32.mrb[0].mxu0
        %1550 = vmatprep.mubr.bf16.mxu0 0
        %1551 = vmatmul.mubr.bf16.gmra.mrb[0].mxu0 %v1334
        %v1552 = vpop.f32.mrb[0].mxu0
        %v1553 = vadd.f32 0.0, %v1552
        %v1554 = vpop.f32.mrb[0].mxu0
        %v1555 = vpop.f32.mrb[0].mxu0
        %v1556 = vadd.f32 0.0, %v1555
        %v1557 = vpop.f32.mrb[0].mxu0
        %1558 = vmatprep.mubr.bf16.mxu0 0
        %1559 = vmatmul.mubr.bf16.gmra.mrb[0].mxu0 %v1337
        %v1560 = vpop.f32.mrb[0].mxu0
        %v1561 = vadd.f32 0.0, %v1560
        %v1562 = vpop.f32.mrb[0].mxu0
        %v1563 = vpop.f32.mrb[0].mxu0
        %v1564 = vadd.f32 0.0, %v1563
        %v1565 = vpop.f32.mrb[0].mxu0
        %1566 = vdwg.mxu0
        %v1567 = vadd.f32 %v897, %v1377
        %v1568 = vadd.f32 %v898, %v1380
        %v1569 = vadd.f32 %v899, %v1385
        %v1570 = vadd.f32 %v900, %v1388
        %v1571 = vadd.f32 %v901, %v1393
        %v1572 = vadd.f32 %v902, %v1396
        %v1573 = vadd.f32 %v903, %v1401
        %v1574 = vadd.f32 %v904, %v1404
        %v1575 = vadd.f32 %v905, %v1409
        %v1576 = vadd.f32 %v906, %v1412
        %v1577 = vadd.f32 %v907, %v1417
        %v1578 = vadd.f32 %v908, %v1420
        %v1579 = vadd.f32 %v909, %v1425
        %v1580 = vadd.f32 %v910, %v1428
        %v1581 = vadd.f32 %v911, %v1433
        %v1582 = vadd.f32 %v912, %v1436
        %v1583 = vadd.f32 %v913, %v1441
        %v1584 = vadd.f32 %v914, %v1444
        %v1585 = vadd.f32 %v915, %v1449
        %v1586 = vadd.f32 %v916, %v1452
        %v1587 = vadd.f32 %v917, %v1457
        %v1588 = vadd.f32 %v918, %v1460
        %v1589 = vadd.f32 %v919, %v1465
        %v1590 = vadd.f32 %v920, %v1468
        %v1591 = vadd.f32 %v921, %v1473
        %v1592 = vadd.f32 %v922, %v1476
        %v1593 = vadd.f32 %v923, %v1481
        %v1594 = vadd.f32 %v924, %v1484
        %v1595 = vadd.f32 %v925, %v1489
        %v1596 = vadd.f32 %v926, %v1492
        %v1597 = vadd.f32 %v927, %v1497
        %v1598 = vadd.f32 %v928, %v1500
        %v1599 = vadd.f32 %v929, %v1505
        %v1600 = vadd.f32 %v930, %v1508
        %v1601 = vadd.f32 %v931, %v1513
        %v1602 = vadd.f32 %v932, %v1516
        %v1603 = vadd.f32 %v933, %v1521
        %v1604 = vadd.f32 %v934, %v1524
        %v1605 = vadd.f32 %v935, %v1529
        %v1606 = vadd.f32 %v936, %v1532
        %v1607 = vadd.f32 %v937, %v1537
        %v1608 = vadd.f32 %v938, %v1540
        %v1609 = vadd.f32 %v939, %v1545
        %v1610 = vadd.f32 %v940, %v1548
        %v1611 = vadd.f32 %v941, %v1553
        %v1612 = vadd.f32 %v942, %v1556
        %v1613 = vadd.f32 %v943, %v1561
        %v1614 = vadd.f32 %v944, %v1564
        %1615 = vst [vmem:[#allocation2] sm:$0xff] %v1567
        %1616 = vst [vmem:[#allocation2 + $0x8] sm:$0xff] %v1568
        %1617 = vst [vmem:[#allocation2 + $0x10] sm:$0xff] %v1569
        %1618 = vst [vmem:[#allocation2 + $0x18] sm:$0xff] %v1570
        %1619 = vst [vmem:[#allocation2 + $0x20] sm:$0xff] %v1571
        %1620 = vst [vmem:[#allocation2 + $0x28] sm:$0xff] %v1572
        %1621 = vst [vmem:[#allocation2 + $0x30] sm:$0xff] %v1573
        %1622 = vst [vmem:[#allocation2 + $0x38] sm:$0xff] %v1574
        %1623 = vst [vmem:[#allocation2 + $0x40] sm:$0xff] %v1575
        %1624 = vst [vmem:[#allocation2 + $0x48] sm:$0xff] %v1576
        %1625 = vst [vmem:[#allocation2 + $0x50] sm:$0xff] %v1577
        %1626 = vst [vmem:[#allocation2 + $0x58] sm:$0xff] %v1578
        %1627 = vst [vmem:[#allocation2 + $0x60] sm:$0xff] %v1579
        %1628 = vst [vmem:[#allocation2 + $0x68] sm:$0xff] %v1580
        %1629 = vst [vmem:[#allocation2 + $0x70] sm:$0xff] %v1581
        %1630 = vst [vmem:[#allocation2 + $0x78] sm:$0xff] %v1582
        %1631 = vst [vmem:[#allocation2 + $0x80] sm:$0xff] %v1583
        %1632 = vst [vmem:[#allocation2 + $0x88] sm:$0xff] %v1584
        %1633 = vst [vmem:[#allocation2 + $0x90] sm:$0xff] %v1585
        %1634 = vst [vmem:[#allocation2 + $0x98] sm:$0xff] %v1586
        %1635 = vst [vmem:[#allocation2 + $0xa0] sm:$0xff] %v1587
        %1636 = vst [vmem:[#allocation2 + $0xa8] sm:$0xff] %v1588
        %1637 = vst [vmem:[#allocation2 + $0xb0] sm:$0xff] %v1589
        %1638 = vst [vmem:[#allocation2 + $0xb8] sm:$0xff] %v1590
        %1639 = vst [vmem:[#allocation2 + $0xc0] sm:$0xff] %v1591
        %1640 = vst [vmem:[#allocation2 + $0xc8] sm:$0xff] %v1592
        %1641 = vst [vmem:[#allocation2 + $0xd0] sm:$0xff] %v1593
        %1642 = vst [vmem:[#allocation2 + $0xd8] sm:$0xff] %v1594
        %1643 = vst [vmem:[#allocation2 + $0xe0] sm:$0xff] %v1595
        %1644 = vst [vmem:[#allocation2 + $0xe8] sm:$0xff] %v1596
        %1645 = vst [vmem:[#allocation2 + $0xf0] sm:$0xff] %v1597
        %1646 = vst [vmem:[#allocation2 + $0xf8] sm:$0xff] %v1598
        %1647 = vst [vmem:[#allocation2 + $0x100] sm:$0xff] %v1599
        %1648 = vst [vmem:[#allocation2 + $0x108] sm:$0xff] %v1600
        %1649 = vst [vmem:[#allocation2 + $0x110] sm:$0xff] %v1601
        %1650 = vst [vmem:[#allocation2 + $0x118] sm:$0xff] %v1602
        %1651 = vst [vmem:[#allocation2 + $0x120] sm:$0xff] %v1603
        %1652 = vst [vmem:[#allocation2 + $0x128] sm:$0xff] %v1604
        %1653 = vst [vmem:[#allocation2 + $0x130] sm:$0xff] %v1605
        %1654 = vst [vmem:[#allocation2 + $0x138] sm:$0xff] %v1606
        %1655 = vst [vmem:[#allocation2 + $0x140] sm:$0xff] %v1607
        %1656 = vst [vmem:[#allocation2 + $0x148] sm:$0xff] %v1608
        %1657 = vst [vmem:[#allocation2 + $0x150] sm:$0xff] %v1609
        %1658 = vst [vmem:[#allocation2 + $0x158] sm:$0xff] %v1610
        %1659 = vst [vmem:[#allocation2 + $0x160] sm:$0xff] %v1611
        %1660 = vst [vmem:[#allocation2 + $0x168] sm:$0xff] %v1612
        %1661 = vst [vmem:[#allocation2 + $0x170] sm:$0xff] %v1613
        %1662 = vst [vmem:[#allocation2 + $0x178] sm:$0xff] %v1614
        %v1663 = vld [vmem:[%s182] sm:$0xe]
        %v1664 = vld [vmem:[%s182 + $0x4] sm:$0xf]
        %v1665 = vld [vmem:[%s182 + $0x8] sm:$0xf]
        %v1666 = vld [vmem:[%s182 + $0xc] sm:$0xf]
        %v1667 = vld [vmem:[%s182 + $0x10] sm:$0xf]
        %v1668 = vld [vmem:[%s182 + $0x14] sm:$0xf]
        %v1669 = vld [vmem:[%s182 + $0x18] sm:$0xf]
        %v1670 = vld [vmem:[%s182 + $0x1c] sm:$0xf]
        %v1671 = vld [vmem:[%s182 + $0x20] sm:$0xf]
        %v1672 = vld [vmem:[%s182 + $0x24] sm:$0xf]
        %v1673 = vld [vmem:[%s182 + $0x28] sm:$0xf]
        %v1674 = vld [vmem:[%s182 + $0x2c] sm:$0xf]
        %v1675 = vld [vmem:[%s182 + $0x30] sm:$0xf]
        %v1676 = vld [vmem:[%s182 + $0x34] sm:$0xf]
        %v1677 = vld [vmem:[%s182 + $0x38] sm:$0xf]
        %v1678 = vld [vmem:[%s182 + $0x3c] sm:$0xf]
        %v1679 = vld [vmem:[%s182 + $0x40] sm:$0xf]
        %v1680 = vld [vmem:[%s182 + $0x44] sm:$0xf]
        %v1681 = vld [vmem:[%s182 + $0x48] sm:$0xf]
        %v1682 = vld [vmem:[%s182 + $0x4c] sm:$0xf]
        %v1683 = vld [vmem:[%s182 + $0x50] sm:$0xf]
        %v1684 = vld [vmem:[%s182 + $0x54] sm:$0xf]
        %v1685 = vld [vmem:[%s182 + $0x58] sm:$0xf]
        %v1686 = vld [vmem:[%s182 + $0x5c] sm:$0xf]
        %v1687 = vld [vmem:[%s182 + $0x60] sm:$0xf]
        %v1688 = vld [vmem:[%s182 + $0x64] sm:$0xf]
        %v1689 = vld [vmem:[%s182 + $0x68] sm:$0xf]
        %v1690 = vld [vmem:[%s182 + $0x6c] sm:$0xf]
        %v1691 = vld [vmem:[%s182 + $0x70] sm:$0xf]
        %v1692 = vld [vmem:[%s182 + $0x74] sm:$0xf]
        %v1693 = vld [vmem:[%s182 + $0x78] sm:$0xf]
        %v1694 = vld [vmem:[%s182 + $0x7c] sm:$0xf]
        %v1695 = vld [vmem:[%s182 + $0x80] sm:$0xf]
        %v1696 = vld [vmem:[%s182 + $0x84] sm:$0xf]
        %v1697 = vld [vmem:[%s182 + $0x88] sm:$0xf]
        %v1698 = vld [vmem:[%s182 + $0x8c] sm:$0xf]
        %v1699 = vld [vmem:[%s182 + $0x90] sm:$0xf]
        %v1700 = vld [vmem:[%s182 + $0x94] sm:$0xf]
        %v1701 = vld [vmem:[%s182 + $0x98] sm:$0xf]
        %v1702 = vld [vmem:[%s182 + $0x9c] sm:$0xf]
        %v1703 = vld [vmem:[%s182 + $0xa0] sm:$0xf]
        %v1704 = vld [vmem:[%s182 + $0xa4] sm:$0xf]
        %v1705 = vld [vmem:[%s182 + $0xa8] sm:$0xf]
        %v1706 = vld [vmem:[%s182 + $0xac] sm:$0xf]
        %v1707 = vld [vmem:[%s182 + $0xb0] sm:$0xf]
        %v1708 = vld [vmem:[%s182 + $0xb4] sm:$0xf]
        %v1709 = vld [vmem:[%s182 + $0xb8] sm:$0xf]
        %v1710 = vld [vmem:[%s182 + $0xbc] sm:$0xf]
        %v1711 = vld [vmem:[%s182 + $0xc0] sm:$0x1]
        %v1712 = vld [vmem:[#allocation2] sm:$0xff]
        %v1713 = vld [vmem:[#allocation2 + $0x8] sm:$0xff]
        %v1714 = vld [vmem:[#allocation2 + $0x10] sm:$0xff]
        %v1715 = vld [vmem:[#allocation2 + $0x18] sm:$0xff]
        %v1716 = vld [vmem:[#allocation2 + $0x20] sm:$0xff]
        %v1717 = vld [vmem:[#allocation2 + $0x28] sm:$0xff]
        %v1718 = vld [vmem:[#allocation2 + $0x30] sm:$0xff]
        %v1719 = vld [vmem:[#allocation2 + $0x38] sm:$0xff]
        %v1720 = vld [vmem:[#allocation2 + $0x40] sm:$0xff]
        %v1721 = vld [vmem:[#allocation2 + $0x48] sm:$0xff]
        %v1722 = vld [vmem:[#allocation2 + $0x50] sm:$0xff]
        %v1723 = vld [vmem:[#allocation2 + $0x58] sm:$0xff]
        %v1724 = vld [vmem:[#allocation2 + $0x60] sm:$0xff]
        %v1725 = vld [vmem:[#allocation2 + $0x68] sm:$0xff]
        %v1726 = vld [vmem:[#allocation2 + $0x70] sm:$0xff]
        %v1727 = vld [vmem:[#allocation2 + $0x78] sm:$0xff]
        %v1728 = vld [vmem:[#allocation2 + $0x80] sm:$0xff]
        %v1729 = vld [vmem:[#allocation2 + $0x88] sm:$0xff]
        %v1730 = vld [vmem:[#allocation2 + $0x90] sm:$0xff]
        %v1731 = vld [vmem:[#allocation2 + $0x98] sm:$0xff]
        %v1732 = vld [vmem:[#allocation2 + $0xa0] sm:$0xff]
        %v1733 = vld [vmem:[#allocation2 + $0xa8] sm:$0xff]
        %v1734 = vld [vmem:[#allocation2 + $0xb0] sm:$0xff]
        %v1735 = vld [vmem:[#allocation2 + $0xb8] sm:$0xff]
        %v1736 = vld [vmem:[#allocation2 + $0xc0] sm:$0xff]
        %v1737 = vld [vmem:[#allocation2 + $0xc8] sm:$0xff]
        %v1738 = vld [vmem:[#allocation2 + $0xd0] sm:$0xff]
        %v1739 = vld [vmem:[#allocation2 + $0xd8] sm:$0xff]
        %v1740 = vld [vmem:[#allocation2 + $0xe0] sm:$0xff]
        %v1741 = vld [vmem:[#allocation2 + $0xe8] sm:$0xff]
        %v1742 = vld [vmem:[#allocation2 + $0xf0] sm:$0xff]
        %v1743 = vld [vmem:[#allocation2 + $0xf8] sm:$0xff]
        %v1744 = vld [vmem:[#allocation2 + $0x100] sm:$0xff]
        %v1745 = vld [vmem:[#allocation2 + $0x108] sm:$0xff]
        %v1746 = vld [vmem:[#allocation2 + $0x110] sm:$0xff]
        %v1747 = vld [vmem:[#allocation2 + $0x118] sm:$0xff]
        %v1748 = vld [vmem:[#allocation2 + $0x120] sm:$0xff]
        %v1749 = vld [vmem:[#allocation2 + $0x128] sm:$0xff]
        %v1750 = vld [vmem:[#allocation2 + $0x130] sm:$0xff]
        %v1751 = vld [vmem:[#allocation2 + $0x138] sm:$0xff]
        %v1752 = vld [vmem:[#allocation2 + $0x140] sm:$0xff]
        %v1753 = vld [vmem:[#allocation2 + $0x148] sm:$0xff]
        %v1754 = vld [vmem:[#allocation2 + $0x150] sm:$0xff]
        %v1755 = vld [vmem:[#allocation2 + $0x158] sm:$0xff]
        %v1756 = vld [vmem:[#allocation2 + $0x160] sm:$0xff]
        %v1757 = vld [vmem:[#allocation2 + $0x168] sm:$0xff]
        %v1758 = vld [vmem:[#allocation2 + $0x170] sm:$0xff]
        %v1759 = vld [vmem:[#allocation2 + $0x178] sm:$0xff]
        %s1760 = scalar_lea.vmem %s1, 8
        %v1761 = vld [vmem:[%s1760] sm:$0xf]
        %v1811 = vunpack.c.l.b16 %v1663
        %v1812 = vunpack.c.l.b16 %v1664
        %v1813 = vunpack.c.l.b16 %v1665
        %v1814 = vunpack.c.l.b16 %v1666
        %v1815 = vunpack.c.l.b16 %v1667
        %v1816 = vunpack.c.l.b16 %v1668
        %v1817 = vunpack.c.l.b16 %v1669
        %v1818 = vunpack.c.l.b16 %v1670
        %v1819 = vunpack.c.l.b16 %v1671
        %v1820 = vunpack.c.l.b16 %v1672
        %v1821 = vunpack.c.l.b16 %v1673
        %v1822 = vunpack.c.l.b16 %v1674
        %v1823 = vunpack.c.l.b16 %v1675
        %v1824 = vunpack.c.l.b16 %v1676
        %v1825 = vunpack.c.l.b16 %v1677
        %v1826 = vunpack.c.l.b16 %v1678
        %v1827 = vunpack.c.l.b16 %v1679
        %v1828 = vunpack.c.l.b16 %v1680
        %v1829 = vunpack.c.l.b16 %v1681
        %v1830 = vunpack.c.l.b16 %v1682
        %v1831 = vunpack.c.l.b16 %v1683
        %v1832 = vunpack.c.l.b16 %v1684
        %v1833 = vunpack.c.l.b16 %v1685
        %v1834 = vunpack.c.l.b16 %v1686
        %v1835 = vunpack.c.l.b16 %v1687
        %v1836 = vunpack.c.l.b16 %v1688
        %v1837 = vunpack.c.l.b16 %v1689
        %v1838 = vunpack.c.l.b16 %v1690
        %v1839 = vunpack.c.l.b16 %v1691
        %v1840 = vunpack.c.l.b16 %v1692
        %v1841 = vunpack.c.l.b16 %v1693
        %v1842 = vunpack.c.l.b16 %v1694
        %v1843 = vunpack.c.l.b16 %v1695
        %v1844 = vunpack.c.l.b16 %v1696
        %v1845 = vunpack.c.l.b16 %v1697
        %v1846 = vunpack.c.l.b16 %v1698
        %v1847 = vunpack.c.l.b16 %v1699
        %v1848 = vunpack.c.l.b16 %v1700
        %v1849 = vunpack.c.l.b16 %v1701
        %v1850 = vunpack.c.l.b16 %v1702
        %v1851 = vunpack.c.l.b16 %v1703
        %v1852 = vunpack.c.l.b16 %v1704
        %v1853 = vunpack.c.l.b16 %v1705
        %v1854 = vunpack.c.l.b16 %v1706
        %v1855 = vunpack.c.l.b16 %v1707
        %v1856 = vunpack.c.l.b16 %v1708
        %v1857 = vunpack.c.l.b16 %v1709
        %v1858 = vunpack.c.l.b16 %v1710
        %v1859 = vunpack.c.l.b16 %v1711
        %v1860 = vpack.c.b16 %v1812, %v1811
        %v1861 = vpack.c.b16 %v1814, %v1813
        %v1862 = vpack.c.b16 %v1816, %v1815
        %v1863 = vpack.c.b16 %v1818, %v1817
        %v1864 = vpack.c.b16 %v1820, %v1819
        %v1865 = vpack.c.b16 %v1822, %v1821
        %v1866 = vpack.c.b16 %v1824, %v1823
        %v1867 = vpack.c.b16 %v1826, %v1825
        %v1868 = vpack.c.b16 %v1828, %v1827
        %v1869 = vpack.c.b16 %v1830, %v1829
        %v1870 = vpack.c.b16 %v1832, %v1831
        %v1871 = vpack.c.b16 %v1834, %v1833
        %v1872 = vpack.c.b16 %v1836, %v1835
        %v1873 = vpack.c.b16 %v1838, %v1837
        %v1874 = vpack.c.b16 %v1840, %v1839
        %v1875 = vpack.c.b16 %v1842, %v1841
        %v1876 = vpack.c.b16 %v1844, %v1843
        %v1877 = vpack.c.b16 %v1846, %v1845
        %v1878 = vpack.c.b16 %v1848, %v1847
        %v1879 = vpack.c.b16 %v1850, %v1849
        %v1880 = vpack.c.b16 %v1852, %v1851
        %v1881 = vpack.c.b16 %v1854, %v1853
        %v1882 = vpack.c.b16 %v1856, %v1855
        %v1883 = vpack.c.b16 %v1858, %v1857
        %v1884 = vpack.c.b16 %v1859, %v1859
        %vm1885 = vcmask 1046528
        %v1886 = vrot.slane %v1860, 1
        %v1887 = vrot.slane %v1861, 1
        %v1888 = vsel %vm1885, %v1886, %v1887
        %v1889 = vrot.slane %v1862, 1
        %v1890 = vsel %vm1885, %v1887, %v1889
        %v1891 = vrot.slane %v1863, 1
        %v1892 = vsel %vm1885, %v1889, %v1891
        %v1893 = vrot.slane %v1864, 1
        %v1894 = vsel %vm1885, %v1891, %v1893
        %v1895 = vrot.slane %v1865, 1
        %v1896 = vsel %vm1885, %v1893, %v1895
        %v1897 = vrot.slane %v1866, 1
        %v1898 = vsel %vm1885, %v1895, %v1897
        %v1899 = vrot.slane %v1867, 1
        %v1900 = vsel %vm1885, %v1897, %v1899
        %v1901 = vrot.slane %v1868, 1
        %v1902 = vsel %vm1885, %v1899, %v1901
        %v1903 = vrot.slane %v1869, 1
        %v1904 = vsel %vm1885, %v1901, %v1903
        %v1905 = vrot.slane %v1870, 1
        %v1906 = vsel %vm1885, %v1903, %v1905
        %v1907 = vrot.slane %v1871, 1
        %v1908 = vsel %vm1885, %v1905, %v1907
        %v1909 = vrot.slane %v1872, 1
        %v1910 = vsel %vm1885, %v1907, %v1909
        %v1911 = vrot.slane %v1873, 1
        %v1912 = vsel %vm1885, %v1909, %v1911
        %v1913 = vrot.slane %v1874, 1
        %v1914 = vsel %vm1885, %v1911, %v1913
        %v1915 = vrot.slane %v1875, 1
        %v1916 = vsel %vm1885, %v1913, %v1915
        %v1917 = vrot.slane %v1876, 1
        %v1918 = vsel %vm1885, %v1915, %v1917
        %v1919 = vrot.slane %v1877, 1
        %v1920 = vsel %vm1885, %v1917, %v1919
        %v1921 = vrot.slane %v1878, 1
        %v1922 = vsel %vm1885, %v1919, %v1921
        %v1923 = vrot.slane %v1879, 1
        %v1924 = vsel %vm1885, %v1921, %v1923
        %v1925 = vrot.slane %v1880, 1
        %v1926 = vsel %vm1885, %v1923, %v1925
        %v1927 = vrot.slane %v1881, 1
        %v1928 = vsel %vm1885, %v1925, %v1927
        %v1929 = vrot.slane %v1882, 1
        %v1930 = vsel %vm1885, %v1927, %v1929
        %v1931 = vrot.slane %v1883, 1
        %v1932 = vsel %vm1885, %v1929, %v1931
        %v1933 = vrot.slane %v1884, 1
        %v1934 = vsel %vm1885, %v1931, %v1933
        %v1936 = vsel %vm450, %v1888, 0
        %v1939 = vsel %vm450, %v1890, 0
        %v1942 = vsel %vm450, %v1892, 0
        %v1945 = vsel %vm450, %v1894, 0
        %v1948 = vsel %vm450, %v1896, 0
        %v1951 = vsel %vm450, %v1898, 0
        %v1954 = vsel %vm450, %v1900, 0
        %v1957 = vsel %vm450, %v1902, 0
        %v1960 = vsel %vm450, %v1904, 0
        %v1963 = vsel %vm450, %v1906, 0
        %v1966 = vsel %vm450, %v1908, 0
        %v1969 = vsel %vm450, %v1910, 0
        %v1972 = vsel %vm450, %v1912, 0
        %v1975 = vsel %vm450, %v1914, 0
        %v1978 = vsel %vm450, %v1916, 0
        %v1981 = vsel %vm450, %v1918, 0
        %v1984 = vsel %vm450, %v1920, 0
        %v1987 = vsel %vm450, %v1922, 0
        %v1990 = vsel %vm450, %v1924, 0
        %v1993 = vsel %vm450, %v1926, 0
        %v1996 = vsel %vm450, %v1928, 0
        %v1999 = vsel %vm450, %v1930, 0
        %v2002 = vsel %vm450, %v1932, 0
        %v2005 = vsel %vm450, %v1934, 0
        %v2008 = vsel %vm523, %v1761, 0
        %2010 = vmatprep.subr.bf16.mxu0 0
        %2011 = vmatpush1.bf16.msra.mxu0 %v2008
        %2012 = vmatprep.subr.bf16.mxu0 0
        %2013 = vmatpush1.bf16.msra.mxu0 0
        %2014 = vmatprep.subr.bf16.mxu0 0
        %2015 = vmatpush1.bf16.msra.mxu0 0
        %2016 = vmatprep.subr.bf16.mxu0 0
        %2017 = vmatpush1.bf16.msra.mxu0 0
        %2018 = vmatprep.subr.bf16.mxu0 0
        %2019 = vmatpush1.bf16.msra.mxu0 0
        %2020 = vmatprep.subr.bf16.mxu0 0
        %2021 = vmatpush1.bf16.msra.mxu0 0
        %2022 = vmatprep.subr.bf16.mxu0 0
        %2023 = vmatpush1.bf16.msra.mxu0 0
        %2024 = vmatprep.subr.bf16.mxu0 0
        %2025 = vmatpush1.bf16.msra.mxu0 0
        %2026 = vmatprep.subr.bf16.mxu0 0
        %2027 = vmatpush1.bf16.msra.mxu0 0
        %2028 = vmatprep.subr.bf16.mxu0 0
        %2029 = vmatpush1.bf16.msra.mxu0 0
        %2030 = vmatprep.subr.bf16.mxu0 0
        %2031 = vmatpush1.bf16.msra.mxu0 0
        %2032 = vmatprep.subr.bf16.mxu0 0
        %2033 = vmatpush1.bf16.msra.mxu0 0
        %2034 = vmatprep.subr.bf16.mxu0 0
        %2035 = vmatpush1.bf16.msra.mxu0 0
        %2036 = vmatprep.subr.bf16.mxu0 0
        %2037 = vmatpush1.bf16.msra.mxu0 0
        %2038 = vmatprep.subr.bf16.mxu0 0
        %2039 = vmatpush1.bf16.msra.mxu0 0
        %2040 = vmatprep.subr.bf16.mxu0 0
        %2041 = vmatpush1.bf16.msra.mxu0 0
        %2042 = vmatprep.mubr.bf16.mxu0 0
        %2043 = vmatmul.mubr.bf16.gmra.mrb[0].mxu0 %v1936
        %v2044 = vpop.f32.mrb[0].mxu0
        %v2045 = vadd.f32 0.0, %v2044
        %v2046 = vpop.f32.mrb[0].mxu0
        %v2047 = vpop.f32.mrb[0].mxu0
        %v2048 = vadd.f32 0.0, %v2047
        %v2049 = vpop.f32.mrb[0].mxu0
        %2050 = vmatprep.mubr.bf16.mxu0 0
        %2051 = vmatmul.mubr.bf16.gmra.mrb[0].mxu0 %v1939
        %v2052 = vpop.f32.mrb[0].mxu0
        %v2053 = vadd.f32 0.0, %v2052
        %v2054 = vpop.f32.mrb[0].mxu0
        %v2055 = vpop.f32.mrb[0].mxu0
        %v2056 = vadd.f32 0.0, %v2055
        %v2057 = vpop.f32.mrb[0].mxu0
        %2058 = vmatprep.mubr.bf16.mxu0 0
        %2059 = vmatmul.mubr.bf16.gmra.mrb[0].mxu0 %v1942
        %v2060 = vpop.f32.mrb[0].mxu0
        %v2061 = vadd.f32 0.0, %v2060
        %v2062 = vpop.f32.mrb[0].mxu0
        %v2063 = vpop.f32.mrb[0].mxu0
        %v2064 = vadd.f32 0.0, %v2063
        %v2065 = vpop.f32.mrb[0].mxu0
        %2066 = vmatprep.mubr.bf16.mxu0 0
        %2067 = vmatmul.mubr.bf16.gmra.mrb[0].mxu0 %v1945
        %v2068 = vpop.f32.mrb[0].mxu0
        %v2069 = vadd.f32 0.0, %v2068
        %v2070 = vpop.f32.mrb[0].mxu0
        %v2071 = vpop.f32.mrb[0].mxu0
        %v2072 = vadd.f32 0.0, %v2071
        %v2073 = vpop.f32.mrb[0].mxu0
        %2074 = vmatprep.mubr.bf16.mxu0 0
        %2075 = vmatmul.mubr.bf16.gmra.mrb[0].mxu0 %v1948
        %v2076 = vpop.f32.mrb[0].mxu0
        %v2077 = vadd.f32 0.0, %v2076
        %v2078 = vpop.f32.mrb[0].mxu0
        %v2079 = vpop.f32.mrb[0].mxu0
        %v2080 = vadd.f32 0.0, %v2079
        %v2081 = vpop.f32.mrb[0].mxu0
        %2082 = vmatprep.mubr.bf16.mxu0 0
        %2083 = vmatmul.mubr.bf16.gmra.mrb[0].mxu0 %v1951
        %v2084 = vpop.f32.mrb[0].mxu0
        %v2085 = vadd.f32 0.0, %v2084
        %v2086 = vpop.f32.mrb[0].mxu0
        %v2087 = vpop.f32.mrb[0].mxu0
        %v2088 = vadd.f32 0.0, %v2087
        %v2089 = vpop.f32.mrb[0].mxu0
        %2090 = vmatprep.mubr.bf16.mxu0 0
        %2091 = vmatmul.mubr.bf16.gmra.mrb[0].mxu0 %v1954
        %v2092 = vpop.f32.mrb[0].mxu0
        %v2093 = vadd.f32 0.0, %v2092
        %v2094 = vpop.f32.mrb[0].mxu0
        %v2095 = vpop.f32.mrb[0].mxu0
        %v2096 = vadd.f32 0.0, %v2095
        %v2097 = vpop.f32.mrb[0].mxu0
        %2098 = vmatprep.mubr.bf16.mxu0 0
        %2099 = vmatmul.mubr.bf16.gmra.mrb[0].mxu0 %v1957
        %v2100 = vpop.f32.mrb[0].mxu0
        %v2101 = vadd.f32 0.0, %v2100
        %v2102 = vpop.f32.mrb[0].mxu0
        %v2103 = vpop.f32.mrb[0].mxu0
        %v2104 = vadd.f32 0.0, %v2103
        %v2105 = vpop.f32.mrb[0].mxu0
        %2106 = vmatprep.mubr.bf16.mxu0 0
        %2107 = vmatmul.mubr.bf16.gmra.mrb[0].mxu0 %v1960
        %v2108 = vpop.f32.mrb[0].mxu0
        %v2109 = vadd.f32 0.0, %v2108
        %v2110 = vpop.f32.mrb[0].mxu0
        %v2111 = vpop.f32.mrb[0].mxu0
        %v2112 = vadd.f32 0.0, %v2111
        %v2113 = vpop.f32.mrb[0].mxu0
        %2114 = vmatprep.mubr.bf16.mxu0 0
        %2115 = vmatmul.mubr.bf16.gmra.mrb[0].mxu0 %v1963
        %v2116 = vpop.f32.mrb[0].mxu0
        %v2117 = vadd.f32 0.0, %v2116
        %v2118 = vpop.f32.mrb[0].mxu0
        %v2119 = vpop.f32.mrb[0].mxu0
        %v2120 = vadd.f32 0.0, %v2119
        %v2121 = vpop.f32.mrb[0].mxu0
        %2122 = vmatprep.mubr.bf16.mxu0 0
        %2123 = vmatmul.mubr.bf16.gmra.mrb[0].mxu0 %v1966
        %v2124 = vpop.f32.mrb[0].mxu0
        %v2125 = vadd.f32 0.0, %v2124
        %v2126 = vpop.f32.mrb[0].mxu0
        %v2127 = vpop.f32.mrb[0].mxu0
        %v2128 = vadd.f32 0.0, %v2127
        %v2129 = vpop.f32.mrb[0].mxu0
        %2130 = vmatprep.mubr.bf16.mxu0 0
        %2131 = vmatmul.mubr.bf16.gmra.mrb[0].mxu0 %v1969
        %v2132 = vpop.f32.mrb[0].mxu0
        %v2133 = vadd.f32 0.0, %v2132
        %v2134 = vpop.f32.mrb[0].mxu0
        %v2135 = vpop.f32.mrb[0].mxu0
        %v2136 = vadd.f32 0.0, %v2135
        %v2137 = vpop.f32.mrb[0].mxu0
        %2138 = vmatprep.mubr.bf16.mxu0 0
        %2139 = vmatmul.mubr.bf16.gmra.mrb[0].mxu0 %v1972
        %v2140 = vpop.f32.mrb[0].mxu0
        %v2141 = vadd.f32 0.0, %v2140
        %v2142 = vpop.f32.mrb[0].mxu0
        %v2143 = vpop.f32.mrb[0].mxu0
        %v2144 = vadd.f32 0.0, %v2143
        %v2145 = vpop.f32.mrb[0].mxu0
        %2146 = vmatprep.mubr.bf16.mxu0 0
        %2147 = vmatmul.mubr.bf16.gmra.mrb[0].mxu0 %v1975
        %v2148 = vpop.f32.mrb[0].mxu0
        %v2149 = vadd.f32 0.0, %v2148
        %v2150 = vpop.f32.mrb[0].mxu0
        %v2151 = vpop.f32.mrb[0].mxu0
        %v2152 = vadd.f32 0.0, %v2151
        %v2153 = vpop.f32.mrb[0].mxu0
        %2154 = vmatprep.mubr.bf16.mxu0 0
        %2155 = vmatmul.mubr.bf16.gmra.mrb[0].mxu0 %v1978
        %v2156 = vpop.f32.mrb[0].mxu0
        %v2157 = vadd.f32 0.0, %v2156
        %v2158 = vpop.f32.mrb[0].mxu0
        %v2159 = vpop.f32.mrb[0].mxu0
        %v2160 = vadd.f32 0.0, %v2159
        %v2161 = vpop.f32.mrb[0].mxu0
        %2162 = vmatprep.mubr.bf16.mxu0 0
        %2163 = vmatmul.mubr.bf16.gmra.mrb[0].mxu0 %v1981
        %v2164 = vpop.f32.mrb[0].mxu0
        %v2165 = vadd.f32 0.0, %v2164
        %v2166 = vpop.f32.mrb[0].mxu0
        %v2167 = vpop.f32.mrb[0].mxu0
        %v2168 = vadd.f32 0.0, %v2167
        %v2169 = vpop.f32.mrb[0].mxu0
        %2170 = vmatprep.mubr.bf16.mxu0 0
        %2171 = vmatmul.mubr.bf16.gmra.mrb[0].mxu0 %v1984
        %v2172 = vpop.f32.mrb[0].mxu0
        %v2173 = vadd.f32 0.0, %v2172
        %v2174 = vpop.f32.mrb[0].mxu0
        %v2175 = vpop.f32.mrb[0].mxu0
        %v2176 = vadd.f32 0.0, %v2175
        %v2177 = vpop.f32.mrb[0].mxu0
        %2178 = vmatprep.mubr.bf16.mxu0 0
        %2179 = vmatmul.mubr.bf16.gmra.mrb[0].mxu0 %v1987
        %v2180 = vpop.f32.mrb[0].mxu0
        %v2181 = vadd.f32 0.0, %v2180
        %v2182 = vpop.f32.mrb[0].mxu0
        %v2183 = vpop.f32.mrb[0].mxu0
        %v2184 = vadd.f32 0.0, %v2183
        %v2185 = vpop.f32.mrb[0].mxu0
        %2186 = vmatprep.mubr.bf16.mxu0 0
        %2187 = vmatmul.mubr.bf16.gmra.mrb[0].mxu0 %v1990
        %v2188 = vpop.f32.mrb[0].mxu0
        %v2189 = vadd.f32 0.0, %v2188
        %v2190 = vpop.f32.mrb[0].mxu0
        %v2191 = vpop.f32.mrb[0].mxu0
        %v2192 = vadd.f32 0.0, %v2191
        %v2193 = vpop.f32.mrb[0].mxu0
        %2194 = vmatprep.mubr.bf16.mxu0 0
        %2195 = vmatmul.mubr.bf16.gmra.mrb[0].mxu0 %v1993
        %v2196 = vpop.f32.mrb[0].mxu0
        %v2197 = vadd.f32 0.0, %v2196
        %v2198 = vpop.f32.mrb[0].mxu0
        %v2199 = vpop.f32.mrb[0].mxu0
        %v2200 = vadd.f32 0.0, %v2199
        %v2201 = vpop.f32.mrb[0].mxu0
        %2202 = vmatprep.mubr.bf16.mxu0 0
        %2203 = vmatmul.mubr.bf16.gmra.mrb[0].mxu0 %v1996
        %v2204 = vpop.f32.mrb[0].mxu0
        %v2205 = vadd.f32 0.0, %v2204
        %v2206 = vpop.f32.mrb[0].mxu0
        %v2207 = vpop.f32.mrb[0].mxu0
        %v2208 = vadd.f32 0.0, %v2207
        %v2209 = vpop.f32.mrb[0].mxu0
        %2210 = vmatprep.mubr.bf16.mxu0 0
        %2211 = vmatmul.mubr.bf16.gmra.mrb[0].mxu0 %v1999
        %v2212 = vpop.f32.mrb[0].mxu0
        %v2213 = vadd.f32 0.0, %v2212
        %v2214 = vpop.f32.mrb[0].mxu0
        %v2215 = vpop.f32.mrb[0].mxu0
        %v2216 = vadd.f32 0.0, %v2215
        %v2217 = vpop.f32.mrb[0].mxu0
        %2218 = vmatprep.mubr.bf16.mxu0 0
        %2219 = vmatmul.mubr.bf16.gmra.mrb[0].mxu0 %v2002
        %v2220 = vpop.f32.mrb[0].mxu0
        %v2221 = vadd.f32 0.0, %v2220
        %v2222 = vpop.f32.mrb[0].mxu0
        %v2223 = vpop.f32.mrb[0].mxu0
        %v2224 = vadd.f32 0.0, %v2223
        %v2225 = vpop.f32.mrb[0].mxu0
        %2226 = vmatprep.mubr.bf16.mxu0 0
        %2227 = vmatmul.mubr.bf16.gmra.mrb[0].mxu0 %v2005
        %v2228 = vpop.f32.mrb[0].mxu0
        %v2229 = vadd.f32 0.0, %v2228
        %v2230 = vpop.f32.mrb[0].mxu0
        %v2231 = vpop.f32.mrb[0].mxu0
        %v2232 = vadd.f32 0.0, %v2231
        %v2233 = vpop.f32.mrb[0].mxu0
        %2234 = vdwg.mxu0
        %v2235 = vadd.f32 %v1712, %v2045
        %v2236 = vadd.f32 %v1713, %v2048
        %v2237 = vadd.f32 %v1714, %v2053
        %v2238 = vadd.f32 %v1715, %v2056
        %v2239 = vadd.f32 %v1716, %v2061
        %v2240 = vadd.f32 %v1717, %v2064
        %v2241 = vadd.f32 %v1718, %v2069
        %v2242 = vadd.f32 %v1719, %v2072
        %v2243 = vadd.f32 %v1720, %v2077
        %v2244 = vadd.f32 %v1721, %v2080
        %v2245 = vadd.f32 %v1722, %v2085
        %v2246 = vadd.f32 %v1723, %v2088
        %v2247 = vadd.f32 %v1724, %v2093
        %v2248 = vadd.f32 %v1725, %v2096
        %v2249 = vadd.f32 %v1726, %v2101
        %v2250 = vadd.f32 %v1727, %v2104
        %v2251 = vadd.f32 %v1728, %v2109
        %v2252 = vadd.f32 %v1729, %v2112
        %v2253 = vadd.f32 %v1730, %v2117
        %v2254 = vadd.f32 %v1731, %v2120
        %v2255 = vadd.f32 %v1732, %v2125
        %v2256 = vadd.f32 %v1733, %v2128
        %v2257 = vadd.f32 %v1734, %v2133
        %v2258 = vadd.f32 %v1735, %v2136
        %v2259 = vadd.f32 %v1736, %v2141
        %v2260 = vadd.f32 %v1737, %v2144
        %v2261 = vadd.f32 %v1738, %v2149
        %v2262 = vadd.f32 %v1739, %v2152
        %v2263 = vadd.f32 %v1740, %v2157
        %v2264 = vadd.f32 %v1741, %v2160
        %v2265 = vadd.f32 %v1742, %v2165
        %v2266 = vadd.f32 %v1743, %v2168
        %v2267 = vadd.f32 %v1744, %v2173
        %v2268 = vadd.f32 %v1745, %v2176
        %v2269 = vadd.f32 %v1746, %v2181
        %v2270 = vadd.f32 %v1747, %v2184
        %v2271 = vadd.f32 %v1748, %v2189
        %v2272 = vadd.f32 %v1749, %v2192
        %v2273 = vadd.f32 %v1750, %v2197
        %v2274 = vadd.f32 %v1751, %v2200
        %v2275 = vadd.f32 %v1752, %v2205
        %v2276 = vadd.f32 %v1753, %v2208
        %v2277 = vadd.f32 %v1754, %v2213
        %v2278 = vadd.f32 %v1755, %v2216
        %v2279 = vadd.f32 %v1756, %v2221
        %v2280 = vadd.f32 %v1757, %v2224
        %v2281 = vadd.f32 %v1758, %v2229
        %v2282 = vadd.f32 %v1759, %v2232
        %2283 = vst [vmem:[#allocation2] sm:$0xff] %v2235
        %2284 = vst [vmem:[#allocation2 + $0x8] sm:$0xff] %v2236
        %2285 = vst [vmem:[#allocation2 + $0x10] sm:$0xff] %v2237
        %2286 = vst [vmem:[#allocation2 + $0x18] sm:$0xff] %v2238
        %2287 = vst [vmem:[#allocation2 + $0x20] sm:$0xff] %v2239
        %2288 = vst [vmem:[#allocation2 + $0x28] sm:$0xff] %v2240
        %2289 = vst [vmem:[#allocation2 + $0x30] sm:$0xff] %v2241
        %2290 = vst [vmem:[#allocation2 + $0x38] sm:$0xff] %v2242
        %2291 = vst [vmem:[#allocation2 + $0x40] sm:$0xff] %v2243
        %2292 = vst [vmem:[#allocation2 + $0x48] sm:$0xff] %v2244
        %2293 = vst [vmem:[#allocation2 + $0x50] sm:$0xff] %v2245
        %2294 = vst [vmem:[#allocation2 + $0x58] sm:$0xff] %v2246
        %2295 = vst [vmem:[#allocation2 + $0x60] sm:$0xff] %v2247
        %2296 = vst [vmem:[#allocation2 + $0x68] sm:$0xff] %v2248
        %2297 = vst [vmem:[#allocation2 + $0x70] sm:$0xff] %v2249
        %2298 = vst [vmem:[#allocation2 + $0x78] sm:$0xff] %v2250
        %2299 = vst [vmem:[#allocation2 + $0x80] sm:$0xff] %v2251
        %2300 = vst [vmem:[#allocation2 + $0x88] sm:$0xff] %v2252
        %2301 = vst [vmem:[#allocation2 + $0x90] sm:$0xff] %v2253
        %2302 = vst [vmem:[#allocation2 + $0x98] sm:$0xff] %v2254
        %2303 = vst [vmem:[#allocation2 + $0xa0] sm:$0xff] %v2255
        %2304 = vst [vmem:[#allocation2 + $0xa8] sm:$0xff] %v2256
        %2305 = vst [vmem:[#allocation2 + $0xb0] sm:$0xff] %v2257
        %2306 = vst [vmem:[#allocation2 + $0xb8] sm:$0xff] %v2258
        %2307 = vst [vmem:[#allocation2 + $0xc0] sm:$0xff] %v2259
        %2308 = vst [vmem:[#allocation2 + $0xc8] sm:$0xff] %v2260
        %2309 = vst [vmem:[#allocation2 + $0xd0] sm:$0xff] %v2261
        %2310 = vst [vmem:[#allocation2 + $0xd8] sm:$0xff] %v2262
        %2311 = vst [vmem:[#allocation2 + $0xe0] sm:$0xff] %v2263
        %2312 = vst [vmem:[#allocation2 + $0xe8] sm:$0xff] %v2264
        %2313 = vst [vmem:[#allocation2 + $0xf0] sm:$0xff] %v2265
        %2314 = vst [vmem:[#allocation2 + $0xf8] sm:$0xff] %v2266
        %2315 = vst [vmem:[#allocation2 + $0x100] sm:$0xff] %v2267
        %2316 = vst [vmem:[#allocation2 + $0x108] sm:$0xff] %v2268
        %2317 = vst [vmem:[#allocation2 + $0x110] sm:$0xff] %v2269
        %2318 = vst [vmem:[#allocation2 + $0x118] sm:$0xff] %v2270
        %2319 = vst [vmem:[#allocation2 + $0x120] sm:$0xff] %v2271
        %2320 = vst [vmem:[#allocation2 + $0x128] sm:$0xff] %v2272
        %2321 = vst [vmem:[#allocation2 + $0x130] sm:$0xff] %v2273
        %2322 = vst [vmem:[#allocation2 + $0x138] sm:$0xff] %v2274
        %2323 = vst [vmem:[#allocation2 + $0x140] sm:$0xff] %v2275
        %2324 = vst [vmem:[#allocation2 + $0x148] sm:$0xff] %v2276
        %2325 = vst [vmem:[#allocation2 + $0x150] sm:$0xff] %v2277
        %2326 = vst [vmem:[#allocation2 + $0x158] sm:$0xff] %v2278
        %2327 = vst [vmem:[#allocation2 + $0x160] sm:$0xff] %v2279
        %2328 = vst [vmem:[#allocation2 + $0x168] sm:$0xff] %v2280
        %2329 = vst [vmem:[#allocation2 + $0x170] sm:$0xff] %v2281
        %2330 = vst [vmem:[#allocation2 + $0x178] sm:$0xff] %v2282
        %v2331 = vld [vmem:[%s182 + $0xc] sm:$0xf]
        %v2332 = vld [vmem:[%s182 + $0x10] sm:$0xf]
        %v2333 = vld [vmem:[%s182 + $0x14] sm:$0xf]
        %v2334 = vld [vmem:[%s182 + $0x18] sm:$0xf]
        %v2335 = vld [vmem:[%s182 + $0x1c] sm:$0xf]
        %v2336 = vld [vmem:[%s182 + $0x20] sm:$0xf]
        %v2337 = vld [vmem:[%s182 + $0x24] sm:$0xf]
        %v2338 = vld [vmem:[%s182 + $0x28] sm:$0xf]
        %v2339 = vld [vmem:[%s182 + $0x2c] sm:$0xf]
        %v2340 = vld [vmem:[%s182 + $0x30] sm:$0xf]
        %v2341 = vld [vmem:[%s182 + $0x34] sm:$0xf]
        %v2342 = vld [vmem:[%s182 + $0x38] sm:$0xf]
        %v2343 = vld [vmem:[%s182 + $0x3c] sm:$0xf]
        %v2344 = vld [vmem:[%s182 + $0x40] sm:$0xf]
        %v2345 = vld [vmem:[%s182 + $0x44] sm:$0xf]
        %v2346 = vld [vmem:[%s182 + $0x48] sm:$0xf]
        %v2347 = vld [vmem:[%s182 + $0x4c] sm:$0xf]
        %v2348 = vld [vmem:[%s182 + $0x50] sm:$0xf]
        %v2349 = vld [vmem:[%s182 + $0x54] sm:$0xf]
        %v2350 = vld [vmem:[%s182 + $0x58] sm:$0xf]
        %v2351 = vld [vmem:[%s182 + $0x5c] sm:$0xf]
        %v2352 = vld [vmem:[%s182 + $0x60] sm:$0xf]
        %v2353 = vld [vmem:[%s182 + $0x64] sm:$0xf]
        %v2354 = vld [vmem:[%s182 + $0x68] sm:$0xf]
        %v2355 = vld [vmem:[%s182 + $0x6c] sm:$0xf]
        %v2356 = vld [vmem:[%s182 + $0x70] sm:$0xf]
        %v2357 = vld [vmem:[%s182 + $0x74] sm:$0xf]
        %v2358 = vld [vmem:[%s182 + $0x78] sm:$0xf]
        %v2359 = vld [vmem:[%s182 + $0x7c] sm:$0xf]
        %v2360 = vld [vmem:[%s182 + $0x80] sm:$0xf]
        %v2361 = vld [vmem:[%s182 + $0x84] sm:$0xf]
        %v2362 = vld [vmem:[%s182 + $0x88] sm:$0xf]
        %v2363 = vld [vmem:[%s182 + $0x8c] sm:$0xf]
        %v2364 = vld [vmem:[%s182 + $0x90] sm:$0xf]
        %v2365 = vld [vmem:[%s182 + $0x94] sm:$0xf]
        %v2366 = vld [vmem:[%s182 + $0x98] sm:$0xf]
        %v2367 = vld [vmem:[%s182 + $0x9c] sm:$0xf]
        %v2368 = vld [vmem:[%s182 + $0xa0] sm:$0xf]
        %v2369 = vld [vmem:[%s182 + $0xa4] sm:$0xf]
        %v2370 = vld [vmem:[%s182 + $0xa8] sm:$0xf]
        %v2371 = vld [vmem:[%s182 + $0xac] sm:$0xf]
        %v2372 = vld [vmem:[%s182 + $0xb0] sm:$0xf]
        %v2373 = vld [vmem:[%s182 + $0xb4] sm:$0xf]
        %v2374 = vld [vmem:[%s182 + $0xb8] sm:$0xf]
        %v2375 = vld [vmem:[%s182 + $0xbc] sm:$0xf]
        %v2376 = vld [vmem:[%s182 + $0xc0] sm:$0xf]
        %v2377 = vld [vmem:[%s182 + $0xc4] sm:$0xf]
        %v2378 = vld [vmem:[%s182 + $0xc8] sm:$0xf]
        %v2379 = vld [vmem:[#allocation2] sm:$0xff]
        %v2380 = vld [vmem:[#allocation2 + $0x8] sm:$0xff]
        %v2381 = vld [vmem:[#allocation2 + $0x10] sm:$0xff]
        %v2382 = vld [vmem:[#allocation2 + $0x18] sm:$0xff]
        %v2383 = vld [vmem:[#allocation2 + $0x20] sm:$0xff]
        %v2384 = vld [vmem:[#allocation2 + $0x28] sm:$0xff]
        %v2385 = vld [vmem:[#allocation2 + $0x30] sm:$0xff]
        %v2386 = vld [vmem:[#allocation2 + $0x38] sm:$0xff]
        %v2387 = vld [vmem:[#allocation2 + $0x40] sm:$0xff]
        %v2388 = vld [vmem:[#allocation2 + $0x48] sm:$0xff]
        %v2389 = vld [vmem:[#allocation2 + $0x50] sm:$0xff]
        %v2390 = vld [vmem:[#allocation2 + $0x58] sm:$0xff]
        %v2391 = vld [vmem:[#allocation2 + $0x60] sm:$0xff]
        %v2392 = vld [vmem:[#allocation2 + $0x68] sm:$0xff]
        %v2393 = vld [vmem:[#allocation2 + $0x70] sm:$0xff]
        %v2394 = vld [vmem:[#allocation2 + $0x78] sm:$0xff]
        %v2395 = vld [vmem:[#allocation2 + $0x80] sm:$0xff]
        %v2396 = vld [vmem:[#allocation2 + $0x88] sm:$0xff]
        %v2397 = vld [vmem:[#allocation2 + $0x90] sm:$0xff]
        %v2398 = vld [vmem:[#allocation2 + $0x98] sm:$0xff]
        %v2399 = vld [vmem:[#allocation2 + $0xa0] sm:$0xff]
        %v2400 = vld [vmem:[#allocation2 + $0xa8] sm:$0xff]
        %v2401 = vld [vmem:[#allocation2 + $0xb0] sm:$0xff]
        %v2402 = vld [vmem:[#allocation2 + $0xb8] sm:$0xff]
        %v2403 = vld [vmem:[#allocation2 + $0xc0] sm:$0xff]
        %v2404 = vld [vmem:[#allocation2 + $0xc8] sm:$0xff]
        %v2405 = vld [vmem:[#allocation2 + $0xd0] sm:$0xff]
        %v2406 = vld [vmem:[#allocation2 + $0xd8] sm:$0xff]
        %v2407 = vld [vmem:[#allocation2 + $0xe0] sm:$0xff]
        %v2408 = vld [vmem:[#allocation2 + $0xe8] sm:$0xff]
        %v2409 = vld [vmem:[#allocation2 + $0xf0] sm:$0xff]
        %v2410 = vld [vmem:[#allocation2 + $0xf8] sm:$0xff]
        %v2411 = vld [vmem:[#allocation2 + $0x100] sm:$0xff]
        %v2412 = vld [vmem:[#allocation2 + $0x108] sm:$0xff]
        %v2413 = vld [vmem:[#allocation2 + $0x110] sm:$0xff]
        %v2414 = vld [vmem:[#allocation2 + $0x118] sm:$0xff]
        %v2415 = vld [vmem:[#allocation2 + $0x120] sm:$0xff]
        %v2416 = vld [vmem:[#allocation2 + $0x128] sm:$0xff]
        %v2417 = vld [vmem:[#allocation2 + $0x130] sm:$0xff]
        %v2418 = vld [vmem:[#allocation2 + $0x138] sm:$0xff]
        %v2419 = vld [vmem:[#allocation2 + $0x140] sm:$0xff]
        %v2420 = vld [vmem:[#allocation2 + $0x148] sm:$0xff]
        %v2421 = vld [vmem:[#allocation2 + $0x150] sm:$0xff]
        %v2422 = vld [vmem:[#allocation2 + $0x158] sm:$0xff]
        %v2423 = vld [vmem:[#allocation2 + $0x160] sm:$0xff]
        %v2424 = vld [vmem:[#allocation2 + $0x168] sm:$0xff]
        %v2425 = vld [vmem:[#allocation2 + $0x170] sm:$0xff]
        %v2426 = vld [vmem:[#allocation2 + $0x178] sm:$0xff]
        %s2427 = scalar_lea.vmem %s1, 12
        %v2428 = vld [vmem:[%s2427] sm:$0xf]
        %v2477 = vunpack.c.l.b16 %v2331
        %v2478 = vunpack.c.l.b16 %v2332
        %v2479 = vunpack.c.l.b16 %v2333
        %v2480 = vunpack.c.l.b16 %v2334
        %v2481 = vunpack.c.l.b16 %v2335
        %v2482 = vunpack.c.l.b16 %v2336
        %v2483 = vunpack.c.l.b16 %v2337
        %v2484 = vunpack.c.l.b16 %v2338
        %v2485 = vunpack.c.l.b16 %v2339
        %v2486 = vunpack.c.l.b16 %v2340
        %v2487 = vunpack.c.l.b16 %v2341
        %v2488 = vunpack.c.l.b16 %v2342
        %v2489 = vunpack.c.l.b16 %v2343
        %v2490 = vunpack.c.l.b16 %v2344
        %v2491 = vunpack.c.l.b16 %v2345
        %v2492 = vunpack.c.l.b16 %v2346
        %v2493 = vunpack.c.l.b16 %v2347
        %v2494 = vunpack.c.l.b16 %v2348
        %v2495 = vunpack.c.l.b16 %v2349
        %v2496 = vunpack.c.l.b16 %v2350
        %v2497 = vunpack.c.l.b16 %v2351
        %v2498 = vunpack.c.l.b16 %v2352
        %v2499 = vunpack.c.l.b16 %v2353
        %v2500 = vunpack.c.l.b16 %v2354
        %v2501 = vunpack.c.l.b16 %v2355
        %v2502 = vunpack.c.l.b16 %v2356
        %v2503 = vunpack.c.l.b16 %v2357
        %v2504 = vunpack.c.l.b16 %v2358
        %v2505 = vunpack.c.l.b16 %v2359
        %v2506 = vunpack.c.l.b16 %v2360
        %v2507 = vunpack.c.l.b16 %v2361
        %v2508 = vunpack.c.l.b16 %v2362
        %v2509 = vunpack.c.l.b16 %v2363
        %v2510 = vunpack.c.l.b16 %v2364
        %v2511 = vunpack.c.l.b16 %v2365
        %v2512 = vunpack.c.l.b16 %v2366
        %v2513 = vunpack.c.l.b16 %v2367
        %v2514 = vunpack.c.l.b16 %v2368
        %v2515 = vunpack.c.l.b16 %v2369
        %v2516 = vunpack.c.l.b16 %v2370
        %v2517 = vunpack.c.l.b16 %v2371
        %v2518 = vunpack.c.l.b16 %v2372
        %v2519 = vunpack.c.l.b16 %v2373
        %v2520 = vunpack.c.l.b16 %v2374
        %v2521 = vunpack.c.l.b16 %v2375
        %v2522 = vunpack.c.l.b16 %v2376
        %v2523 = vunpack.c.l.b16 %v2377
        %v2524 = vunpack.c.l.b16 %v2378
        %v2525 = vpack.c.b16 %v2478, %v2477
        %v2526 = vpack.c.b16 %v2480, %v2479
        %v2527 = vpack.c.b16 %v2482, %v2481
        %v2528 = vpack.c.b16 %v2484, %v2483
        %v2529 = vpack.c.b16 %v2486, %v2485
        %v2530 = vpack.c.b16 %v2488, %v2487
        %v2531 = vpack.c.b16 %v2490, %v2489
        %v2532 = vpack.c.b16 %v2492, %v2491
        %v2533 = vpack.c.b16 %v2494, %v2493
        %v2534 = vpack.c.b16 %v2496, %v2495
        %v2535 = vpack.c.b16 %v2498, %v2497
        %v2536 = vpack.c.b16 %v2500, %v2499
        %v2537 = vpack.c.b16 %v2502, %v2501
        %v2538 = vpack.c.b16 %v2504, %v2503
        %v2539 = vpack.c.b16 %v2506, %v2505
        %v2540 = vpack.c.b16 %v2508, %v2507
        %v2541 = vpack.c.b16 %v2510, %v2509
        %v2542 = vpack.c.b16 %v2512, %v2511
        %v2543 = vpack.c.b16 %v2514, %v2513
        %v2544 = vpack.c.b16 %v2516, %v2515
        %v2545 = vpack.c.b16 %v2518, %v2517
        %v2546 = vpack.c.b16 %v2520, %v2519
        %v2547 = vpack.c.b16 %v2522, %v2521
        %v2548 = vpack.c.b16 %v2524, %v2523
        %v2550 = vsel %vm450, %v2525, 0
        %v2553 = vsel %vm450, %v2526, 0
        %v2556 = vsel %vm450, %v2527, 0
        %v2559 = vsel %vm450, %v2528, 0
        %v2562 = vsel %vm450, %v2529, 0
        %v2565 = vsel %vm450, %v2530, 0
        %v2568 = vsel %vm450, %v2531, 0
        %v2571 = vsel %vm450, %v2532, 0
        %v2574 = vsel %vm450, %v2533, 0
        %v2577 = vsel %vm450, %v2534, 0
        %v2580 = vsel %vm450, %v2535, 0
        %v2583 = vsel %vm450, %v2536, 0
        %v2586 = vsel %vm450, %v2537, 0
        %v2589 = vsel %vm450, %v2538, 0
        %v2592 = vsel %vm450, %v2539, 0
        %v2595 = vsel %vm450, %v2540, 0
        %v2598 = vsel %vm450, %v2541, 0
        %v2601 = vsel %vm450, %v2542, 0
        %v2604 = vsel %vm450, %v2543, 0
        %v2607 = vsel %vm450, %v2544, 0
        %v2610 = vsel %vm450, %v2545, 0
        %v2613 = vsel %vm450, %v2546, 0
        %v2616 = vsel %vm450, %v2547, 0
        %v2619 = vsel %vm450, %v2548, 0
        %v2622 = vsel %vm523, %v2428, 0
        %2624 = vmatprep.subr.bf16.mxu0 0
        %2625 = vmatpush1.bf16.msra.mxu0 %v2622
        %2626 = vmatprep.subr.bf16.mxu0 0
        %2627 = vmatpush1.bf16.msra.mxu0 0
        %2628 = vmatprep.subr.bf16.mxu0 0
        %2629 = vmatpush1.bf16.msra.mxu0 0
        %2630 = vmatprep.subr.bf16.mxu0 0
        %2631 = vmatpush1.bf16.msra.mxu0 0
        %2632 = vmatprep.subr.bf16.mxu0 0
        %2633 = vmatpush1.bf16.msra.mxu0 0
        %2634 = vmatprep.subr.bf16.mxu0 0
        %2635 = vmatpush1.bf16.msra.mxu0 0
        %2636 = vmatprep.subr.bf16.mxu0 0
        %2637 = vmatpush1.bf16.msra.mxu0 0
        %2638 = vmatprep.subr.bf16.mxu0 0
        %2639 = vmatpush1.bf16.msra.mxu0 0
        %2640 = vmatprep.subr.bf16.mxu0 0
        %2641 = vmatpush1.bf16.msra.mxu0 0
        %2642 = vmatprep.subr.bf16.mxu0 0
        %2643 = vmatpush1.bf16.msra.mxu0 0
        %2644 = vmatprep.subr.bf16.mxu0 0
        %2645 = vmatpush1.bf16.msra.mxu0 0
        %2646 = vmatprep.subr.bf16.mxu0 0
        %2647 = vmatpush1.bf16.msra.mxu0 0
        %2648 = vmatprep.subr.bf16.mxu0 0
        %2649 = vmatpush1.bf16.msra.mxu0 0
        %2650 = vmatprep.subr.bf16.mxu0 0
        %2651 = vmatpush1.bf16.msra.mxu0 0
        %2652 = vmatprep.subr.bf16.mxu0 0
        %2653 = vmatpush1.bf16.msra.mxu0 0
        %2654 = vmatprep.subr.bf16.mxu0 0
        %2655 = vmatpush1.bf16.msra.mxu0 0
        %2656 = vmatprep.mubr.bf16.mxu0 0
        %2657 = vmatmul.mubr.bf16.gmra.mrb[0].mxu0 %v2550
        %v2658 = vpop.f32.mrb[0].mxu0
        %v2659 = vadd.f32 0.0, %v2658
        %v2660 = vpop.f32.mrb[0].mxu0
        %v2661 = vpop.f32.mrb[0].mxu0
        %v2662 = vadd.f32 0.0, %v2661
        %v2663 = vpop.f32.mrb[0].mxu0
        %2664 = vmatprep.mubr.bf16.mxu0 0
        %2665 = vmatmul.mubr.bf16.gmra.mrb[0].mxu0 %v2553
        %v2666 = vpop.f32.mrb[0].mxu0
        %v2667 = vadd.f32 0.0, %v2666
        %v2668 = vpop.f32.mrb[0].mxu0
        %v2669 = vpop.f32.mrb[0].mxu0
        %v2670 = vadd.f32 0.0, %v2669
        %v2671 = vpop.f32.mrb[0].mxu0
        %2672 = vmatprep.mubr.bf16.mxu0 0
        %2673 = vmatmul.mubr.bf16.gmra.mrb[0].mxu0 %v2556
        %v2674 = vpop.f32.mrb[0].mxu0
        %v2675 = vadd.f32 0.0, %v2674
        %v2676 = vpop.f32.mrb[0].mxu0
        %v2677 = vpop.f32.mrb[0].mxu0
        %v2678 = vadd.f32 0.0, %v2677
        %v2679 = vpop.f32.mrb[0].mxu0
        %2680 = vmatprep.mubr.bf16.mxu0 0
        %2681 = vmatmul.mubr.bf16.gmra.mrb[0].mxu0 %v2559
        %v2682 = vpop.f32.mrb[0].mxu0
        %v2683 = vadd.f32 0.0, %v2682
        %v2684 = vpop.f32.mrb[0].mxu0
        %v2685 = vpop.f32.mrb[0].mxu0
        %v2686 = vadd.f32 0.0, %v2685
        %v2687 = vpop.f32.mrb[0].mxu0
        %2688 = vmatprep.mubr.bf16.mxu0 0
        %2689 = vmatmul.mubr.bf16.gmra.mrb[0].mxu0 %v2562
        %v2690 = vpop.f32.mrb[0].mxu0
        %v2691 = vadd.f32 0.0, %v2690
        %v2692 = vpop.f32.mrb[0].mxu0
        %v2693 = vpop.f32.mrb[0].mxu0
        %v2694 = vadd.f32 0.0, %v2693
        %v2695 = vpop.f32.mrb[0].mxu0
        %2696 = vmatprep.mubr.bf16.mxu0 0
        %2697 = vmatmul.mubr.bf16.gmra.mrb[0].mxu0 %v2565
        %v2698 = vpop.f32.mrb[0].mxu0
        %v2699 = vadd.f32 0.0, %v2698
        %v2700 = vpop.f32.mrb[0].mxu0
        %v2701 = vpop.f32.mrb[0].mxu0
        %v2702 = vadd.f32 0.0, %v2701
        %v2703 = vpop.f32.mrb[0].mxu0
        %2704 = vmatprep.mubr.bf16.mxu0 0
        %2705 = vmatmul.mubr.bf16.gmra.mrb[0].mxu0 %v2568
        %v2706 = vpop.f32.mrb[0].mxu0
        %v2707 = vadd.f32 0.0, %v2706
        %v2708 = vpop.f32.mrb[0].mxu0
        %v2709 = vpop.f32.mrb[0].mxu0
        %v2710 = vadd.f32 0.0, %v2709
        %v2711 = vpop.f32.mrb[0].mxu0
        %2712 = vmatprep.mubr.bf16.mxu0 0
        %2713 = vmatmul.mubr.bf16.gmra.mrb[0].mxu0 %v2571
        %v2714 = vpop.f32.mrb[0].mxu0
        %v2715 = vadd.f32 0.0, %v2714
        %v2716 = vpop.f32.mrb[0].mxu0
        %v2717 = vpop.f32.mrb[0].mxu0
        %v2718 = vadd.f32 0.0, %v2717
        %v2719 = vpop.f32.mrb[0].mxu0
        %2720 = vmatprep.mubr.bf16.mxu0 0
        %2721 = vmatmul.mubr.bf16.gmra.mrb[0].mxu0 %v2574
        %v2722 = vpop.f32.mrb[0].mxu0
        %v2723 = vadd.f32 0.0, %v2722
        %v2724 = vpop.f32.mrb[0].mxu0
        %v2725 = vpop.f32.mrb[0].mxu0
        %v2726 = vadd.f32 0.0, %v2725
        %v2727 = vpop.f32.mrb[0].mxu0
        %2728 = vmatprep.mubr.bf16.mxu0 0
        %2729 = vmatmul.mubr.bf16.gmra.mrb[0].mxu0 %v2577
        %v2730 = vpop.f32.mrb[0].mxu0
        %v2731 = vadd.f32 0.0, %v2730
        %v2732 = vpop.f32.mrb[0].mxu0
        %v2733 = vpop.f32.mrb[0].mxu0
        %v2734 = vadd.f32 0.0, %v2733
        %v2735 = vpop.f32.mrb[0].mxu0
        %2736 = vmatprep.mubr.bf16.mxu0 0
        %2737 = vmatmul.mubr.bf16.gmra.mrb[0].mxu0 %v2580
        %v2738 = vpop.f32.mrb[0].mxu0
        %v2739 = vadd.f32 0.0, %v2738
        %v2740 = vpop.f32.mrb[0].mxu0
        %v2741 = vpop.f32.mrb[0].mxu0
        %v2742 = vadd.f32 0.0, %v2741
        %v2743 = vpop.f32.mrb[0].mxu0
        %2744 = vmatprep.mubr.bf16.mxu0 0
        %2745 = vmatmul.mubr.bf16.gmra.mrb[0].mxu0 %v2583
        %v2746 = vpop.f32.mrb[0].mxu0
        %v2747 = vadd.f32 0.0, %v2746
        %v2748 = vpop.f32.mrb[0].mxu0
        %v2749 = vpop.f32.mrb[0].mxu0
        %v2750 = vadd.f32 0.0, %v2749
        %v2751 = vpop.f32.mrb[0].mxu0
        %2752 = vmatprep.mubr.bf16.mxu0 0
        %2753 = vmatmul.mubr.bf16.gmra.mrb[0].mxu0 %v2586
        %v2754 = vpop.f32.mrb[0].mxu0
        %v2755 = vadd.f32 0.0, %v2754
        %v2756 = vpop.f32.mrb[0].mxu0
        %v2757 = vpop.f32.mrb[0].mxu0
        %v2758 = vadd.f32 0.0, %v2757
        %v2759 = vpop.f32.mrb[0].mxu0
        %2760 = vmatprep.mubr.bf16.mxu0 0
        %2761 = vmatmul.mubr.bf16.gmra.mrb[0].mxu0 %v2589
        %v2762 = vpop.f32.mrb[0].mxu0
        %v2763 = vadd.f32 0.0, %v2762
        %v2764 = vpop.f32.mrb[0].mxu0
        %v2765 = vpop.f32.mrb[0].mxu0
        %v2766 = vadd.f32 0.0, %v2765
        %v2767 = vpop.f32.mrb[0].mxu0
        %2768 = vmatprep.mubr.bf16.mxu0 0
        %2769 = vmatmul.mubr.bf16.gmra.mrb[0].mxu0 %v2592
        %v2770 = vpop.f32.mrb[0].mxu0
        %v2771 = vadd.f32 0.0, %v2770
        %v2772 = vpop.f32.mrb[0].mxu0
        %v2773 = vpop.f32.mrb[0].mxu0
        %v2774 = vadd.f32 0.0, %v2773
        %v2775 = vpop.f32.mrb[0].mxu0
        %2776 = vmatprep.mubr.bf16.mxu0 0
        %2777 = vmatmul.mubr.bf16.gmra.mrb[0].mxu0 %v2595
        %v2778 = vpop.f32.mrb[0].mxu0
        %v2779 = vadd.f32 0.0, %v2778
        %v2780 = vpop.f32.mrb[0].mxu0
        %v2781 = vpop.f32.mrb[0].mxu0
        %v2782 = vadd.f32 0.0, %v2781
        %v2783 = vpop.f32.mrb[0].mxu0
        %2784 = vmatprep.mubr.bf16.mxu0 0
        %2785 = vmatmul.mubr.bf16.gmra.mrb[0].mxu0 %v2598
        %v2786 = vpop.f32.mrb[0].mxu0
        %v2787 = vadd.f32 0.0, %v2786
        %v2788 = vpop.f32.mrb[0].mxu0
        %v2789 = vpop.f32.mrb[0].mxu0
        %v2790 = vadd.f32 0.0, %v2789
        %v2791 = vpop.f32.mrb[0].mxu0
        %2792 = vmatprep.mubr.bf16.mxu0 0
        %2793 = vmatmul.mubr.bf16.gmra.mrb[0].mxu0 %v2601
        %v2794 = vpop.f32.mrb[0].mxu0
        %v2795 = vadd.f32 0.0, %v2794
        %v2796 = vpop.f32.mrb[0].mxu0
        %v2797 = vpop.f32.mrb[0].mxu0
        %v2798 = vadd.f32 0.0, %v2797
        %v2799 = vpop.f32.mrb[0].mxu0
        %2800 = vmatprep.mubr.bf16.mxu0 0
        %2801 = vmatmul.mubr.bf16.gmra.mrb[0].mxu0 %v2604
        %v2802 = vpop.f32.mrb[0].mxu0
        %v2803 = vadd.f32 0.0, %v2802
        %v2804 = vpop.f32.mrb[0].mxu0
        %v2805 = vpop.f32.mrb[0].mxu0
        %v2806 = vadd.f32 0.0, %v2805
        %v2807 = vpop.f32.mrb[0].mxu0
        %2808 = vmatprep.mubr.bf16.mxu0 0
        %2809 = vmatmul.mubr.bf16.gmra.mrb[0].mxu0 %v2607
        %v2810 = vpop.f32.mrb[0].mxu0
        %v2811 = vadd.f32 0.0, %v2810
        %v2812 = vpop.f32.mrb[0].mxu0
        %v2813 = vpop.f32.mrb[0].mxu0
        %v2814 = vadd.f32 0.0, %v2813
        %v2815 = vpop.f32.mrb[0].mxu0
        %2816 = vmatprep.mubr.bf16.mxu0 0
        %2817 = vmatmul.mubr.bf16.gmra.mrb[0].mxu0 %v2610
        %v2818 = vpop.f32.mrb[0].mxu0
        %v2819 = vadd.f32 0.0, %v2818
        %v2820 = vpop.f32.mrb[0].mxu0
        %v2821 = vpop.f32.mrb[0].mxu0
        %v2822 = vadd.f32 0.0, %v2821
        %v2823 = vpop.f32.mrb[0].mxu0
        %2824 = vmatprep.mubr.bf16.mxu0 0
        %2825 = vmatmul.mubr.bf16.gmra.mrb[0].mxu0 %v2613
        %v2826 = vpop.f32.mrb[0].mxu0
        %v2827 = vadd.f32 0.0, %v2826
        %v2828 = vpop.f32.mrb[0].mxu0
        %v2829 = vpop.f32.mrb[0].mxu0
        %v2830 = vadd.f32 0.0, %v2829
        %v2831 = vpop.f32.mrb[0].mxu0
        %2832 = vmatprep.mubr.bf16.mxu0 0
        %2833 = vmatmul.mubr.bf16.gmra.mrb[0].mxu0 %v2616
        %v2834 = vpop.f32.mrb[0].mxu0
        %v2835 = vadd.f32 0.0, %v2834
        %v2836 = vpop.f32.mrb[0].mxu0
        %v2837 = vpop.f32.mrb[0].mxu0
        %v2838 = vadd.f32 0.0, %v2837
        %v2839 = vpop.f32.mrb[0].mxu0
        %2840 = vmatprep.mubr.bf16.mxu0 0
        %2841 = vmatmul.mubr.bf16.gmra.mrb[0].mxu0 %v2619
        %v2842 = vpop.f32.mrb[0].mxu0
        %v2843 = vadd.f32 0.0, %v2842
        %v2844 = vpop.f32.mrb[0].mxu0
        %v2845 = vpop.f32.mrb[0].mxu0
        %v2846 = vadd.f32 0.0, %v2845
        %v2847 = vpop.f32.mrb[0].mxu0
        %2848 = vdwg.mxu0
        %v2849 = vadd.f32 %v2379, %v2659
        %v2850 = vadd.f32 %v2380, %v2662
        %v2851 = vadd.f32 %v2381, %v2667
        %v2852 = vadd.f32 %v2382, %v2670
        %v2853 = vadd.f32 %v2383, %v2675
        %v2854 = vadd.f32 %v2384, %v2678
        %v2855 = vadd.f32 %v2385, %v2683
        %v2856 = vadd.f32 %v2386, %v2686
        %v2857 = vadd.f32 %v2387, %v2691
        %v2858 = vadd.f32 %v2388, %v2694
        %v2859 = vadd.f32 %v2389, %v2699
        %v2860 = vadd.f32 %v2390, %v2702
        %v2861 = vadd.f32 %v2391, %v2707
        %v2862 = vadd.f32 %v2392, %v2710
        %v2863 = vadd.f32 %v2393, %v2715
        %v2864 = vadd.f32 %v2394, %v2718
        %v2865 = vadd.f32 %v2395, %v2723
        %v2866 = vadd.f32 %v2396, %v2726
        %v2867 = vadd.f32 %v2397, %v2731
        %v2868 = vadd.f32 %v2398, %v2734
        %v2869 = vadd.f32 %v2399, %v2739
        %v2870 = vadd.f32 %v2400, %v2742
        %v2871 = vadd.f32 %v2401, %v2747
        %v2872 = vadd.f32 %v2402, %v2750
        %v2873 = vadd.f32 %v2403, %v2755
        %v2874 = vadd.f32 %v2404, %v2758
        %v2875 = vadd.f32 %v2405, %v2763
        %v2876 = vadd.f32 %v2406, %v2766
        %v2877 = vadd.f32 %v2407, %v2771
        %v2878 = vadd.f32 %v2408, %v2774
        %v2879 = vadd.f32 %v2409, %v2779
        %v2880 = vadd.f32 %v2410, %v2782
        %v2881 = vadd.f32 %v2411, %v2787
        %v2882 = vadd.f32 %v2412, %v2790
        %v2883 = vadd.f32 %v2413, %v2795
        %v2884 = vadd.f32 %v2414, %v2798
        %v2885 = vadd.f32 %v2415, %v2803
        %v2886 = vadd.f32 %v2416, %v2806
        %v2887 = vadd.f32 %v2417, %v2811
        %v2888 = vadd.f32 %v2418, %v2814
        %v2889 = vadd.f32 %v2419, %v2819
        %v2890 = vadd.f32 %v2420, %v2822
        %v2891 = vadd.f32 %v2421, %v2827
        %v2892 = vadd.f32 %v2422, %v2830
        %v2893 = vadd.f32 %v2423, %v2835
        %v2894 = vadd.f32 %v2424, %v2838
        %v2895 = vadd.f32 %v2425, %v2843
        %v2896 = vadd.f32 %v2426, %v2846
        %2897 = vst [vmem:[#allocation2] sm:$0xff] %v2849
        %2898 = vst [vmem:[#allocation2 + $0x8] sm:$0xff] %v2850
        %2899 = vst [vmem:[#allocation2 + $0x10] sm:$0xff] %v2851
        %2900 = vst [vmem:[#allocation2 + $0x18] sm:$0xff] %v2852
        %2901 = vst [vmem:[#allocation2 + $0x20] sm:$0xff] %v2853
        %2902 = vst [vmem:[#allocation2 + $0x28] sm:$0xff] %v2854
        %2903 = vst [vmem:[#allocation2 + $0x30] sm:$0xff] %v2855
        %2904 = vst [vmem:[#allocation2 + $0x38] sm:$0xff] %v2856
        %2905 = vst [vmem:[#allocation2 + $0x40] sm:$0xff] %v2857
        %2906 = vst [vmem:[#allocation2 + $0x48] sm:$0xff] %v2858
        %2907 = vst [vmem:[#allocation2 + $0x50] sm:$0xff] %v2859
        %2908 = vst [vmem:[#allocation2 + $0x58] sm:$0xff] %v2860
        %2909 = vst [vmem:[#allocation2 + $0x60] sm:$0xff] %v2861
        %2910 = vst [vmem:[#allocation2 + $0x68] sm:$0xff] %v2862
        %2911 = vst [vmem:[#allocation2 + $0x70] sm:$0xff] %v2863
        %2912 = vst [vmem:[#allocation2 + $0x78] sm:$0xff] %v2864
        %2913 = vst [vmem:[#allocation2 + $0x80] sm:$0xff] %v2865
        %2914 = vst [vmem:[#allocation2 + $0x88] sm:$0xff] %v2866
        %2915 = vst [vmem:[#allocation2 + $0x90] sm:$0xff] %v2867
        %2916 = vst [vmem:[#allocation2 + $0x98] sm:$0xff] %v2868
        %2917 = vst [vmem:[#allocation2 + $0xa0] sm:$0xff] %v2869
        %2918 = vst [vmem:[#allocation2 + $0xa8] sm:$0xff] %v2870
        %2919 = vst [vmem:[#allocation2 + $0xb0] sm:$0xff] %v2871
        %2920 = vst [vmem:[#allocation2 + $0xb8] sm:$0xff] %v2872
        %2921 = vst [vmem:[#allocation2 + $0xc0] sm:$0xff] %v2873
        %2922 = vst [vmem:[#allocation2 + $0xc8] sm:$0xff] %v2874
        %2923 = vst [vmem:[#allocation2 + $0xd0] sm:$0xff] %v2875
        %2924 = vst [vmem:[#allocation2 + $0xd8] sm:$0xff] %v2876
        %2925 = vst [vmem:[#allocation2 + $0xe0] sm:$0xff] %v2877
        %2926 = vst [vmem:[#allocation2 + $0xe8] sm:$0xff] %v2878
        %2927 = vst [vmem:[#allocation2 + $0xf0] sm:$0xff] %v2879
        %2928 = vst [vmem:[#allocation2 + $0xf8] sm:$0xff] %v2880
        %2929 = vst [vmem:[#allocation2 + $0x100] sm:$0xff] %v2881
        %2930 = vst [vmem:[#allocation2 + $0x108] sm:$0xff] %v2882
        %2931 = vst [vmem:[#allocation2 + $0x110] sm:$0xff] %v2883
        %2932 = vst [vmem:[#allocation2 + $0x118] sm:$0xff] %v2884
        %2933 = vst [vmem:[#allocation2 + $0x120] sm:$0xff] %v2885
        %2934 = vst [vmem:[#allocation2 + $0x128] sm:$0xff] %v2886
        %2935 = vst [vmem:[#allocation2 + $0x130] sm:$0xff] %v2887
        %2936 = vst [vmem:[#allocation2 + $0x138] sm:$0xff] %v2888
        %2937 = vst [vmem:[#allocation2 + $0x140] sm:$0xff] %v2889
        %2938 = vst [vmem:[#allocation2 + $0x148] sm:$0xff] %v2890
        %2939 = vst [vmem:[#allocation2 + $0x150] sm:$0xff] %v2891
        %2940 = vst [vmem:[#allocation2 + $0x158] sm:$0xff] %v2892
        %2941 = vst [vmem:[#allocation2 + $0x160] sm:$0xff] %v2893
        %2942 = vst [vmem:[#allocation2 + $0x168] sm:$0xff] %v2894
        %2943 = vst [vmem:[#allocation2 + $0x170] sm:$0xff] %v2895
        %2944 = vst [vmem:[#allocation2 + $0x178] sm:$0xff] %v2896
        %v2945 = vld [vmem:[%s182 + $0xc] sm:$0xf]
        %v2946 = vld [vmem:[%s182 + $0x10] sm:$0xf]
        %v2947 = vld [vmem:[%s182 + $0x14] sm:$0xf]
        %v2948 = vld [vmem:[%s182 + $0x18] sm:$0xf]
        %v2949 = vld [vmem:[%s182 + $0x1c] sm:$0xf]
        %v2950 = vld [vmem:[%s182 + $0x20] sm:$0xf]
        %v2951 = vld [vmem:[%s182 + $0x24] sm:$0xf]
        %v2952 = vld [vmem:[%s182 + $0x28] sm:$0xf]
        %v2953 = vld [vmem:[%s182 + $0x2c] sm:$0xf]
        %v2954 = vld [vmem:[%s182 + $0x30] sm:$0xf]
        %v2955 = vld [vmem:[%s182 + $0x34] sm:$0xf]
        %v2956 = vld [vmem:[%s182 + $0x38] sm:$0xf]
        %v2957 = vld [vmem:[%s182 + $0x3c] sm:$0xf]
        %v2958 = vld [vmem:[%s182 + $0x40] sm:$0xf]
        %v2959 = vld [vmem:[%s182 + $0x44] sm:$0xf]
        %v2960 = vld [vmem:[%s182 + $0x48] sm:$0xf]
        %v2961 = vld [vmem:[%s182 + $0x4c] sm:$0xf]
        %v2962 = vld [vmem:[%s182 + $0x50] sm:$0xf]
        %v2963 = vld [vmem:[%s182 + $0x54] sm:$0xf]
        %v2964 = vld [vmem:[%s182 + $0x58] sm:$0xf]
        %v2965 = vld [vmem:[%s182 + $0x5c] sm:$0xf]
        %v2966 = vld [vmem:[%s182 + $0x60] sm:$0xf]
        %v2967 = vld [vmem:[%s182 + $0x64] sm:$0xf]
        %v2968 = vld [vmem:[%s182 + $0x68] sm:$0xf]
        %v2969 = vld [vmem:[%s182 + $0x6c] sm:$0xf]
        %v2970 = vld [vmem:[%s182 + $0x70] sm:$0xf]
        %v2971 = vld [vmem:[%s182 + $0x74] sm:$0xf]
        %v2972 = vld [vmem:[%s182 + $0x78] sm:$0xf]
        %v2973 = vld [vmem:[%s182 + $0x7c] sm:$0xf]
        %v2974 = vld [vmem:[%s182 + $0x80] sm:$0xf]
        %v2975 = vld [vmem:[%s182 + $0x84] sm:$0xf]
        %v2976 = vld [vmem:[%s182 + $0x88] sm:$0xf]
        %v2977 = vld [vmem:[%s182 + $0x8c] sm:$0xf]
        %v2978 = vld [vmem:[%s182 + $0x90] sm:$0xf]
        %v2979 = vld [vmem:[%s182 + $0x94] sm:$0xf]
        %v2980 = vld [vmem:[%s182 + $0x98] sm:$0xf]
        %v2981 = vld [vmem:[%s182 + $0x9c] sm:$0xf]
        %v2982 = vld [vmem:[%s182 + $0xa0] sm:$0xf]
        %v2983 = vld [vmem:[%s182 + $0xa4] sm:$0xf]
        %v2984 = vld [vmem:[%s182 + $0xa8] sm:$0xf]
        %v2985 = vld [vmem:[%s182 + $0xac] sm:$0xf]
        %v2986 = vld [vmem:[%s182 + $0xb0] sm:$0xf]
        %v2987 = vld [vmem:[%s182 + $0xb4] sm:$0xf]
        %v2988 = vld [vmem:[%s182 + $0xb8] sm:$0xf]
        %v2989 = vld [vmem:[%s182 + $0xbc] sm:$0xf]
        %v2990 = vld [vmem:[%s182 + $0xc0] sm:$0xf]
        %v2991 = vld [vmem:[%s182 + $0xc4] sm:$0xf]
        %v2992 = vld [vmem:[%s182 + $0xc8] sm:$0xf]
        %v2993 = vld [vmem:[%s182 + $0xcc] sm:$0x1]
        %v2994 = vld [vmem:[#allocation2] sm:$0xff]
        %v2995 = vld [vmem:[#allocation2 + $0x8] sm:$0xff]
        %v2996 = vld [vmem:[#allocation2 + $0x10] sm:$0xff]
        %v2997 = vld [vmem:[#allocation2 + $0x18] sm:$0xff]
        %v2998 = vld [vmem:[#allocation2 + $0x20] sm:$0xff]
        %v2999 = vld [vmem:[#allocation2 + $0x28] sm:$0xff]
        %v3000 = vld [vmem:[#allocation2 + $0x30] sm:$0xff]
        %v3001 = vld [vmem:[#allocation2 + $0x38] sm:$0xff]
        %v3002 = vld [vmem:[#allocation2 + $0x40] sm:$0xff]
        %v3003 = vld [vmem:[#allocation2 + $0x48] sm:$0xff]
        %v3004 = vld [vmem:[#allocation2 + $0x50] sm:$0xff]
        %v3005 = vld [vmem:[#allocation2 + $0x58] sm:$0xff]
        %v3006 = vld [vmem:[#allocation2 + $0x60] sm:$0xff]
        %v3007 = vld [vmem:[#allocation2 + $0x68] sm:$0xff]
        %v3008 = vld [vmem:[#allocation2 + $0x70] sm:$0xff]
        %v3009 = vld [vmem:[#allocation2 + $0x78] sm:$0xff]
        %v3010 = vld [vmem:[#allocation2 + $0x80] sm:$0xff]
        %v3011 = vld [vmem:[#allocation2 + $0x88] sm:$0xff]
        %v3012 = vld [vmem:[#allocation2 + $0x90] sm:$0xff]
        %v3013 = vld [vmem:[#allocation2 + $0x98] sm:$0xff]
        %v3014 = vld [vmem:[#allocation2 + $0xa0] sm:$0xff]
        %v3015 = vld [vmem:[#allocation2 + $0xa8] sm:$0xff]
        %v3016 = vld [vmem:[#allocation2 + $0xb0] sm:$0xff]
        %v3017 = vld [vmem:[#allocation2 + $0xb8] sm:$0xff]
        %v3018 = vld [vmem:[#allocation2 + $0xc0] sm:$0xff]
        %v3019 = vld [vmem:[#allocation2 + $0xc8] sm:$0xff]
        %v3020 = vld [vmem:[#allocation2 + $0xd0] sm:$0xff]
        %v3021 = vld [vmem:[#allocation2 + $0xd8] sm:$0xff]
        %v3022 = vld [vmem:[#allocation2 + $0xe0] sm:$0xff]
        %v3023 = vld [vmem:[#allocation2 + $0xe8] sm:$0xff]
        %v3024 = vld [vmem:[#allocation2 + $0xf0] sm:$0xff]
        %v3025 = vld [vmem:[#allocation2 + $0xf8] sm:$0xff]
        %v3026 = vld [vmem:[#allocation2 + $0x100] sm:$0xff]
        %v3027 = vld [vmem:[#allocation2 + $0x108] sm:$0xff]
        %v3028 = vld [vmem:[#allocation2 + $0x110] sm:$0xff]
        %v3029 = vld [vmem:[#allocation2 + $0x118] sm:$0xff]
        %v3030 = vld [vmem:[#allocation2 + $0x120] sm:$0xff]
        %v3031 = vld [vmem:[#allocation2 + $0x128] sm:$0xff]
        %v3032 = vld [vmem:[#allocation2 + $0x130] sm:$0xff]
        %v3033 = vld [vmem:[#allocation2 + $0x138] sm:$0xff]
        %v3034 = vld [vmem:[#allocation2 + $0x140] sm:$0xff]
        %v3035 = vld [vmem:[#allocation2 + $0x148] sm:$0xff]
        %v3036 = vld [vmem:[#allocation2 + $0x150] sm:$0xff]
        %v3037 = vld [vmem:[#allocation2 + $0x158] sm:$0xff]
        %v3038 = vld [vmem:[#allocation2 + $0x160] sm:$0xff]
        %v3039 = vld [vmem:[#allocation2 + $0x168] sm:$0xff]
        %v3040 = vld [vmem:[#allocation2 + $0x170] sm:$0xff]
        %v3041 = vld [vmem:[#allocation2 + $0x178] sm:$0xff]
        %s3042 = scalar_lea.vmem %s1, 16
        %v3043 = vld [vmem:[%s3042] sm:$0xf]
        %v3093 = vunpack.c.l.b16 %v2945
        %v3094 = vunpack.c.l.b16 %v2946
        %v3095 = vunpack.c.l.b16 %v2947
        %v3096 = vunpack.c.l.b16 %v2948
        %v3097 = vunpack.c.l.b16 %v2949
        %v3098 = vunpack.c.l.b16 %v2950
        %v3099 = vunpack.c.l.b16 %v2951
        %v3100 = vunpack.c.l.b16 %v2952
        %v3101 = vunpack.c.l.b16 %v2953
        %v3102 = vunpack.c.l.b16 %v2954
        %v3103 = vunpack.c.l.b16 %v2955
        %v3104 = vunpack.c.l.b16 %v2956
        %v3105 = vunpack.c.l.b16 %v2957
        %v3106 = vunpack.c.l.b16 %v2958
        %v3107 = vunpack.c.l.b16 %v2959
        %v3108 = vunpack.c.l.b16 %v2960
        %v3109 = vunpack.c.l.b16 %v2961
        %v3110 = vunpack.c.l.b16 %v2962
        %v3111 = vunpack.c.l.b16 %v2963
        %v3112 = vunpack.c.l.b16 %v2964
        %v3113 = vunpack.c.l.b16 %v2965
        %v3114 = vunpack.c.l.b16 %v2966
        %v3115 = vunpack.c.l.b16 %v2967
        %v3116 = vunpack.c.l.b16 %v2968
        %v3117 = vunpack.c.l.b16 %v2969
        %v3118 = vunpack.c.l.b16 %v2970
        %v3119 = vunpack.c.l.b16 %v2971
        %v3120 = vunpack.c.l.b16 %v2972
        %v3121 = vunpack.c.l.b16 %v2973
        %v3122 = vunpack.c.l.b16 %v2974
        %v3123 = vunpack.c.l.b16 %v2975
        %v3124 = vunpack.c.l.b16 %v2976
        %v3125 = vunpack.c.l.b16 %v2977
        %v3126 = vunpack.c.l.b16 %v2978
        %v3127 = vunpack.c.l.b16 %v2979
        %v3128 = vunpack.c.l.b16 %v2980
        %v3129 = vunpack.c.l.b16 %v2981
        %v3130 = vunpack.c.l.b16 %v2982
        %v3131 = vunpack.c.l.b16 %v2983
        %v3132 = vunpack.c.l.b16 %v2984
        %v3133 = vunpack.c.l.b16 %v2985
        %v3134 = vunpack.c.l.b16 %v2986
        %v3135 = vunpack.c.l.b16 %v2987
        %v3136 = vunpack.c.l.b16 %v2988
        %v3137 = vunpack.c.l.b16 %v2989
        %v3138 = vunpack.c.l.b16 %v2990
        %v3139 = vunpack.c.l.b16 %v2991
        %v3140 = vunpack.c.l.b16 %v2992
        %v3141 = vunpack.c.l.b16 %v2993
        %v3142 = vpack.c.b16 %v3094, %v3093
        %v3143 = vpack.c.b16 %v3096, %v3095
        %v3144 = vpack.c.b16 %v3098, %v3097
        %v3145 = vpack.c.b16 %v3100, %v3099
        %v3146 = vpack.c.b16 %v3102, %v3101
        %v3147 = vpack.c.b16 %v3104, %v3103
        %v3148 = vpack.c.b16 %v3106, %v3105
        %v3149 = vpack.c.b16 %v3108, %v3107
        %v3150 = vpack.c.b16 %v3110, %v3109
        %v3151 = vpack.c.b16 %v3112, %v3111
        %v3152 = vpack.c.b16 %v3114, %v3113
        %v3153 = vpack.c.b16 %v3116, %v3115
        %v3154 = vpack.c.b16 %v3118, %v3117
        %v3155 = vpack.c.b16 %v3120, %v3119
        %v3156 = vpack.c.b16 %v3122, %v3121
        %v3157 = vpack.c.b16 %v3124, %v3123
        %v3158 = vpack.c.b16 %v3126, %v3125
        %v3159 = vpack.c.b16 %v3128, %v3127
        %v3160 = vpack.c.b16 %v3130, %v3129
        %v3161 = vpack.c.b16 %v3132, %v3131
        %v3162 = vpack.c.b16 %v3134, %v3133
        %v3163 = vpack.c.b16 %v3136, %v3135
        %v3164 = vpack.c.b16 %v3138, %v3137
        %v3165 = vpack.c.b16 %v3140, %v3139
        %v3166 = vpack.c.b16 %v3141, %v3141
        %v3168 = vshrl.u32 %v3142, 16
        %v3170 = vshll.u32 %v3142, 16
        %v3172 = vrot.slane %v3170, 1
        %v3173 = vor.u32 %v3168, %v3172
        %v3175 = vshll.u32 %v3143, 16
        %v3177 = vrot.slane %v3175, 1
        %v3178 = vsel %vm1070, %v3173, %v3177
        %v3179 = vshrl.u32 %v3143, 16
        %v3181 = vor.u32 %v3179, %v3177
        %v3183 = vshll.u32 %v3144, 16
        %v3185 = vrot.slane %v3183, 1
        %v3186 = vsel %vm1070, %v3181, %v3185
        %v3187 = vshrl.u32 %v3144, 16
        %v3189 = vor.u32 %v3187, %v3185
        %v3191 = vshll.u32 %v3145, 16
        %v3193 = vrot.slane %v3191, 1
        %v3194 = vsel %vm1070, %v3189, %v3193
        %v3195 = vshrl.u32 %v3145, 16
        %v3197 = vor.u32 %v3195, %v3193
        %v3199 = vshll.u32 %v3146, 16
        %v3201 = vrot.slane %v3199, 1
        %v3202 = vsel %vm1070, %v3197, %v3201
        %v3203 = vshrl.u32 %v3146, 16
        %v3205 = vor.u32 %v3203, %v3201
        %v3207 = vshll.u32 %v3147, 16
        %v3209 = vrot.slane %v3207, 1
        %v3210 = vsel %vm1070, %v3205, %v3209
        %v3211 = vshrl.u32 %v3147, 16
        %v3213 = vor.u32 %v3211, %v3209
        %v3215 = vshll.u32 %v3148, 16
        %v3217 = vrot.slane %v3215, 1
        %v3218 = vsel %vm1070, %v3213, %v3217
        %v3219 = vshrl.u32 %v3148, 16
        %v3221 = vor.u32 %v3219, %v3217
        %v3223 = vshll.u32 %v3149, 16
        %v3225 = vrot.slane %v3223, 1
        %v3226 = vsel %vm1070, %v3221, %v3225
        %v3227 = vshrl.u32 %v3149, 16
        %v3229 = vor.u32 %v3227, %v3225
        %v3231 = vshll.u32 %v3150, 16
        %v3233 = vrot.slane %v3231, 1
        %v3234 = vsel %vm1070, %v3229, %v3233
        %v3235 = vshrl.u32 %v3150, 16
        %v3237 = vor.u32 %v3235, %v3233
        %v3239 = vshll.u32 %v3151, 16
        %v3241 = vrot.slane %v3239, 1
        %v3242 = vsel %vm1070, %v3237, %v3241
        %v3243 = vshrl.u32 %v3151, 16
        %v3245 = vor.u32 %v3243, %v3241
        %v3247 = vshll.u32 %v3152, 16
        %v3249 = vrot.slane %v3247, 1
        %v3250 = vsel %vm1070, %v3245, %v3249
        %v3251 = vshrl.u32 %v3152, 16
        %v3253 = vor.u32 %v3251, %v3249
        %v3255 = vshll.u32 %v3153, 16
        %v3257 = vrot.slane %v3255, 1
        %v3258 = vsel %vm1070, %v3253, %v3257
        %v3259 = vshrl.u32 %v3153, 16
        %v3261 = vor.u32 %v3259, %v3257
        %v3263 = vshll.u32 %v3154, 16
        %v3265 = vrot.slane %v3263, 1
        %v3266 = vsel %vm1070, %v3261, %v3265
        %v3267 = vshrl.u32 %v3154, 16
        %v3269 = vor.u32 %v3267, %v3265
        %v3271 = vshll.u32 %v3155, 16
        %v3273 = vrot.slane %v3271, 1
        %v3274 = vsel %vm1070, %v3269, %v3273
        %v3275 = vshrl.u32 %v3155, 16
        %v3277 = vor.u32 %v3275, %v3273
        %v3279 = vshll.u32 %v3156, 16
        %v3281 = vrot.slane %v3279, 1
        %v3282 = vsel %vm1070, %v3277, %v3281
        %v3283 = vshrl.u32 %v3156, 16
        %v3285 = vor.u32 %v3283, %v3281
        %v3287 = vshll.u32 %v3157, 16
        %v3289 = vrot.slane %v3287, 1
        %v3290 = vsel %vm1070, %v3285, %v3289
        %v3291 = vshrl.u32 %v3157, 16
        %v3293 = vor.u32 %v3291, %v3289
        %v3295 = vshll.u32 %v3158, 16
        %v3297 = vrot.slane %v3295, 1
        %v3298 = vsel %vm1070, %v3293, %v3297
        %v3299 = vshrl.u32 %v3158, 16
        %v3301 = vor.u32 %v3299, %v3297
        %v3303 = vshll.u32 %v3159, 16
        %v3305 = vrot.slane %v3303, 1
        %v3306 = vsel %vm1070, %v3301, %v3305
        %v3307 = vshrl.u32 %v3159, 16
        %v3309 = vor.u32 %v3307, %v3305
        %v3311 = vshll.u32 %v3160, 16
        %v3313 = vrot.slane %v3311, 1
        %v3314 = vsel %vm1070, %v3309, %v3313
        %v3315 = vshrl.u32 %v3160, 16
        %v3317 = vor.u32 %v3315, %v3313
        %v3319 = vshll.u32 %v3161, 16
        %v3321 = vrot.slane %v3319, 1
        %v3322 = vsel %vm1070, %v3317, %v3321
        %v3323 = vshrl.u32 %v3161, 16
        %v3325 = vor.u32 %v3323, %v3321
        %v3327 = vshll.u32 %v3162, 16
        %v3329 = vrot.slane %v3327, 1
        %v3330 = vsel %vm1070, %v3325, %v3329
        %v3331 = vshrl.u32 %v3162, 16
        %v3333 = vor.u32 %v3331, %v3329
        %v3335 = vshll.u32 %v3163, 16
        %v3337 = vrot.slane %v3335, 1
        %v3338 = vsel %vm1070, %v3333, %v3337
        %v3339 = vshrl.u32 %v3163, 16
        %v3341 = vor.u32 %v3339, %v3337
        %v3343 = vshll.u32 %v3164, 16
        %v3345 = vrot.slane %v3343, 1
        %v3346 = vsel %vm1070, %v3341, %v3345
        %v3347 = vshrl.u32 %v3164, 16
        %v3349 = vor.u32 %v3347, %v3345
        %v3351 = vshll.u32 %v3165, 16
        %v3353 = vrot.slane %v3351, 1
        %v3354 = vsel %vm1070, %v3349, %v3353
        %v3355 = vshrl.u32 %v3165, 16
        %v3357 = vor.u32 %v3355, %v3353
        %v3359 = vshll.u32 %v3166, 16
        %v3361 = vrot.slane %v3359, 1
        %v3362 = vsel %vm1070, %v3357, %v3361
        %v3364 = vsel %vm450, %v3178, 0
        %v3367 = vsel %vm450, %v3186, 0
        %v3370 = vsel %vm450, %v3194, 0
        %v3373 = vsel %vm450, %v3202, 0
        %v3376 = vsel %vm450, %v3210, 0
        %v3379 = vsel %vm450, %v3218, 0
        %v3382 = vsel %vm450, %v3226, 0
        %v3385 = vsel %vm450, %v3234, 0
        %v3388 = vsel %vm450, %v3242, 0
        %v3391 = vsel %vm450, %v3250, 0
        %v3394 = vsel %vm450, %v3258, 0
        %v3397 = vsel %vm450, %v3266, 0
        %v3400 = vsel %vm450, %v3274, 0
        %v3403 = vsel %vm450, %v3282, 0
        %v3406 = vsel %vm450, %v3290, 0
        %v3409 = vsel %vm450, %v3298, 0
        %v3412 = vsel %vm450, %v3306, 0
        %v3415 = vsel %vm450, %v3314, 0
        %v3418 = vsel %vm450, %v3322, 0
        %v3421 = vsel %vm450, %v3330, 0
        %v3424 = vsel %vm450, %v3338, 0
        %v3427 = vsel %vm450, %v3346, 0
        %v3430 = vsel %vm450, %v3354, 0
        %v3433 = vsel %vm450, %v3362, 0
        %v3436 = vsel %vm523, %v3043, 0
        %3438 = vmatprep.subr.bf16.mxu0 0
        %3439 = vmatpush1.bf16.msra.mxu0 %v3436
        %3440 = vmatprep.subr.bf16.mxu0 0
        %3441 = vmatpush1.bf16.msra.mxu0 0
        %3442 = vmatprep.subr.bf16.mxu0 0
        %3443 = vmatpush1.bf16.msra.mxu0 0
        %3444 = vmatprep.subr.bf16.mxu0 0
        %3445 = vmatpush1.bf16.msra.mxu0 0
        %3446 = vmatprep.subr.bf16.mxu0 0
        %3447 = vmatpush1.bf16.msra.mxu0 0
        %3448 = vmatprep.subr.bf16.mxu0 0
        %3449 = vmatpush1.bf16.msra.mxu0 0
        %3450 = vmatprep.subr.bf16.mxu0 0
        %3451 = vmatpush1.bf16.msra.mxu0 0
        %3452 = vmatprep.subr.bf16.mxu0 0
        %3453 = vmatpush1.bf16.msra.mxu0 0
        %3454 = vmatprep.subr.bf16.mxu0 0
        %3455 = vmatpush1.bf16.msra.mxu0 0
        %3456 = vmatprep.subr.bf16.mxu0 0
        %3457 = vmatpush1.bf16.msra.mxu0 0
        %3458 = vmatprep.subr.bf16.mxu0 0
        %3459 = vmatpush1.bf16.msra.mxu0 0
        %3460 = vmatprep.subr.bf16.mxu0 0
        %3461 = vmatpush1.bf16.msra.mxu0 0
        %3462 = vmatprep.subr.bf16.mxu0 0
        %3463 = vmatpush1.bf16.msra.mxu0 0
        %3464 = vmatprep.subr.bf16.mxu0 0
        %3465 = vmatpush1.bf16.msra.mxu0 0
        %3466 = vmatprep.subr.bf16.mxu0 0
        %3467 = vmatpush1.bf16.msra.mxu0 0
        %3468 = vmatprep.subr.bf16.mxu0 0
        %3469 = vmatpush1.bf16.msra.mxu0 0
        %3470 = vmatprep.mubr.bf16.mxu0 0
        %3471 = vmatmul.mubr.bf16.gmra.mrb[0].mxu0 %v3364
        %v3472 = vpop.f32.mrb[0].mxu0
        %v3473 = vadd.f32 0.0, %v3472
        %v3474 = vpop.f32.mrb[0].mxu0
        %v3475 = vpop.f32.mrb[0].mxu0
        %v3476 = vadd.f32 0.0, %v3475
        %v3477 = vpop.f32.mrb[0].mxu0
        %3478 = vmatprep.mubr.bf16.mxu0 0
        %3479 = vmatmul.mubr.bf16.gmra.mrb[0].mxu0 %v3367
        %v3480 = vpop.f32.mrb[0].mxu0
        %v3481 = vadd.f32 0.0, %v3480
        %v3482 = vpop.f32.mrb[0].mxu0
        %v3483 = vpop.f32.mrb[0].mxu0
        %v3484 = vadd.f32 0.0, %v3483
        %v3485 = vpop.f32.mrb[0].mxu0
        %3486 = vmatprep.mubr.bf16.mxu0 0
        %3487 = vmatmul.mubr.bf16.gmra.mrb[0].mxu0 %v3370
        %v3488 = vpop.f32.mrb[0].mxu0
        %v3489 = vadd.f32 0.0, %v3488
        %v3490 = vpop.f32.mrb[0].mxu0
        %v3491 = vpop.f32.mrb[0].mxu0
        %v3492 = vadd.f32 0.0, %v3491
        %v3493 = vpop.f32.mrb[0].mxu0
        %3494 = vmatprep.mubr.bf16.mxu0 0
        %3495 = vmatmul.mubr.bf16.gmra.mrb[0].mxu0 %v3373
        %v3496 = vpop.f32.mrb[0].mxu0
        %v3497 = vadd.f32 0.0, %v3496
        %v3498 = vpop.f32.mrb[0].mxu0
        %v3499 = vpop.f32.mrb[0].mxu0
        %v3500 = vadd.f32 0.0, %v3499
        %v3501 = vpop.f32.mrb[0].mxu0
        %3502 = vmatprep.mubr.bf16.mxu0 0
        %3503 = vmatmul.mubr.bf16.gmra.mrb[0].mxu0 %v3376
        %v3504 = vpop.f32.mrb[0].mxu0
        %v3505 = vadd.f32 0.0, %v3504
        %v3506 = vpop.f32.mrb[0].mxu0
        %v3507 = vpop.f32.mrb[0].mxu0
        %v3508 = vadd.f32 0.0, %v3507
        %v3509 = vpop.f32.mrb[0].mxu0
        %3510 = vmatprep.mubr.bf16.mxu0 0
        %3511 = vmatmul.mubr.bf16.gmra.mrb[0].mxu0 %v3379
        %v3512 = vpop.f32.mrb[0].mxu0
        %v3513 = vadd.f32 0.0, %v3512
        %v3514 = vpop.f32.mrb[0].mxu0
        %v3515 = vpop.f32.mrb[0].mxu0
        %v3516 = vadd.f32 0.0, %v3515
        %v3517 = vpop.f32.mrb[0].mxu0
        %3518 = vmatprep.mubr.bf16.mxu0 0
        %3519 = vmatmul.mubr.bf16.gmra.mrb[0].mxu0 %v3382
        %v3520 = vpop.f32.mrb[0].mxu0
        %v3521 = vadd.f32 0.0, %v3520
        %v3522 = vpop.f32.mrb[0].mxu0
        %v3523 = vpop.f32.mrb[0].mxu0
        %v3524 = vadd.f32 0.0, %v3523
        %v3525 = vpop.f32.mrb[0].mxu0
        %3526 = vmatprep.mubr.bf16.mxu0 0
        %3527 = vmatmul.mubr.bf16.gmra.mrb[0].mxu0 %v3385
        %v3528 = vpop.f32.mrb[0].mxu0
        %v3529 = vadd.f32 0.0, %v3528
        %v3530 = vpop.f32.mrb[0].mxu0
        %v3531 = vpop.f32.mrb[0].mxu0
        %v3532 = vadd.f32 0.0, %v3531
        %v3533 = vpop.f32.mrb[0].mxu0
        %3534 = vmatprep.mubr.bf16.mxu0 0
        %3535 = vmatmul.mubr.bf16.gmra.mrb[0].mxu0 %v3388
        %v3536 = vpop.f32.mrb[0].mxu0
        %v3537 = vadd.f32 0.0, %v3536
        %v3538 = vpop.f32.mrb[0].mxu0
        %v3539 = vpop.f32.mrb[0].mxu0
        %v3540 = vadd.f32 0.0, %v3539
        %v3541 = vpop.f32.mrb[0].mxu0
        %3542 = vmatprep.mubr.bf16.mxu0 0
        %3543 = vmatmul.mubr.bf16.gmra.mrb[0].mxu0 %v3391
        %v3544 = vpop.f32.mrb[0].mxu0
        %v3545 = vadd.f32 0.0, %v3544
        %v3546 = vpop.f32.mrb[0].mxu0
        %v3547 = vpop.f32.mrb[0].mxu0
        %v3548 = vadd.f32 0.0, %v3547
        %v3549 = vpop.f32.mrb[0].mxu0
        %3550 = vmatprep.mubr.bf16.mxu0 0
        %3551 = vmatmul.mubr.bf16.gmra.mrb[0].mxu0 %v3394
        %v3552 = vpop.f32.mrb[0].mxu0
        %v3553 = vadd.f32 0.0, %v3552
        %v3554 = vpop.f32.mrb[0].mxu0
        %v3555 = vpop.f32.mrb[0].mxu0
        %v3556 = vadd.f32 0.0, %v3555
        %v3557 = vpop.f32.mrb[0].mxu0
        %3558 = vmatprep.mubr.bf16.mxu0 0
        %3559 = vmatmul.mubr.bf16.gmra.mrb[0].mxu0 %v3397
        %v3560 = vpop.f32.mrb[0].mxu0
        %v3561 = vadd.f32 0.0, %v3560
        %v3562 = vpop.f32.mrb[0].mxu0
        %v3563 = vpop.f32.mrb[0].mxu0
        %v3564 = vadd.f32 0.0, %v3563
        %v3565 = vpop.f32.mrb[0].mxu0
        %3566 = vmatprep.mubr.bf16.mxu0 0
        %3567 = vmatmul.mubr.bf16.gmra.mrb[0].mxu0 %v3400
        %v3568 = vpop.f32.mrb[0].mxu0
        %v3569 = vadd.f32 0.0, %v3568
        %v3570 = vpop.f32.mrb[0].mxu0
        %v3571 = vpop.f32.mrb[0].mxu0
        %v3572 = vadd.f32 0.0, %v3571
        %v3573 = vpop.f32.mrb[0].mxu0
        %3574 = vmatprep.mubr.bf16.mxu0 0
        %3575 = vmatmul.mubr.bf16.gmra.mrb[0].mxu0 %v3403
        %v3576 = vpop.f32.mrb[0].mxu0
        %v3577 = vadd.f32 0.0, %v3576
        %v3578 = vpop.f32.mrb[0].mxu0
        %v3579 = vpop.f32.mrb[0].mxu0
        %v3580 = vadd.f32 0.0, %v3579
        %v3581 = vpop.f32.mrb[0].mxu0
        %3582 = vmatprep.mubr.bf16.mxu0 0
        %3583 = vmatmul.mubr.bf16.gmra.mrb[0].mxu0 %v3406
        %v3584 = vpop.f32.mrb[0].mxu0
        %v3585 = vadd.f32 0.0, %v3584
        %v3586 = vpop.f32.mrb[0].mxu0
        %v3587 = vpop.f32.mrb[0].mxu0
        %v3588 = vadd.f32 0.0, %v3587
        %v3589 = vpop.f32.mrb[0].mxu0
        %3590 = vmatprep.mubr.bf16.mxu0 0
        %3591 = vmatmul.mubr.bf16.gmra.mrb[0].mxu0 %v3409
        %v3592 = vpop.f32.mrb[0].mxu0
        %v3593 = vadd.f32 0.0, %v3592
        %v3594 = vpop.f32.mrb[0].mxu0
        %v3595 = vpop.f32.mrb[0].mxu0
        %v3596 = vadd.f32 0.0, %v3595
        %v3597 = vpop.f32.mrb[0].mxu0
        %3598 = vmatprep.mubr.bf16.mxu0 0
        %3599 = vmatmul.mubr.bf16.gmra.mrb[0].mxu0 %v3412
        %v3600 = vpop.f32.mrb[0].mxu0
        %v3601 = vadd.f32 0.0, %v3600
        %v3602 = vpop.f32.mrb[0].mxu0
        %v3603 = vpop.f32.mrb[0].mxu0
        %v3604 = vadd.f32 0.0, %v3603
        %v3605 = vpop.f32.mrb[0].mxu0
        %3606 = vmatprep.mubr.bf16.mxu0 0
        %3607 = vmatmul.mubr.bf16.gmra.mrb[0].mxu0 %v3415
        %v3608 = vpop.f32.mrb[0].mxu0
        %v3609 = vadd.f32 0.0, %v3608
        %v3610 = vpop.f32.mrb[0].mxu0
        %v3611 = vpop.f32.mrb[0].mxu0
        %v3612 = vadd.f32 0.0, %v3611
        %v3613 = vpop.f32.mrb[0].mxu0
        %3614 = vmatprep.mubr.bf16.mxu0 0
        %3615 = vmatmul.mubr.bf16.gmra.mrb[0].mxu0 %v3418
        %v3616 = vpop.f32.mrb[0].mxu0
        %v3617 = vadd.f32 0.0, %v3616
        %v3618 = vpop.f32.mrb[0].mxu0
        %v3619 = vpop.f32.mrb[0].mxu0
        %v3620 = vadd.f32 0.0, %v3619
        %v3621 = vpop.f32.mrb[0].mxu0
        %3622 = vmatprep.mubr.bf16.mxu0 0
        %3623 = vmatmul.mubr.bf16.gmra.mrb[0].mxu0 %v3421
        %v3624 = vpop.f32.mrb[0].mxu0
        %v3625 = vadd.f32 0.0, %v3624
        %v3626 = vpop.f32.mrb[0].mxu0
        %v3627 = vpop.f32.mrb[0].mxu0
        %v3628 = vadd.f32 0.0, %v3627
        %v3629 = vpop.f32.mrb[0].mxu0
        %3630 = vmatprep.mubr.bf16.mxu0 0
        %3631 = vmatmul.mubr.bf16.gmra.mrb[0].mxu0 %v3424
        %v3632 = vpop.f32.mrb[0].mxu0
        %v3633 = vadd.f32 0.0, %v3632
        %v3634 = vpop.f32.mrb[0].mxu0
        %v3635 = vpop.f32.mrb[0].mxu0
        %v3636 = vadd.f32 0.0, %v3635
        %v3637 = vpop.f32.mrb[0].mxu0
        %3638 = vmatprep.mubr.bf16.mxu0 0
        %3639 = vmatmul.mubr.bf16.gmra.mrb[0].mxu0 %v3427
        %v3640 = vpop.f32.mrb[0].mxu0
        %v3641 = vadd.f32 0.0, %v3640
        %v3642 = vpop.f32.mrb[0].mxu0
        %v3643 = vpop.f32.mrb[0].mxu0
        %v3644 = vadd.f32 0.0, %v3643
        %v3645 = vpop.f32.mrb[0].mxu0
        %3646 = vmatprep.mubr.bf16.mxu0 0
        %3647 = vmatmul.mubr.bf16.gmra.mrb[0].mxu0 %v3430
        %v3648 = vpop.f32.mrb[0].mxu0
        %v3649 = vadd.f32 0.0, %v3648
        %v3650 = vpop.f32.mrb[0].mxu0
        %v3651 = vpop.f32.mrb[0].mxu0
        %v3652 = vadd.f32 0.0, %v3651
        %v3653 = vpop.f32.mrb[0].mxu0
        %3654 = vmatprep.mubr.bf16.mxu0 0
        %3655 = vmatmul.mubr.bf16.gmra.mrb[0].mxu0 %v3433
        %v3656 = vpop.f32.mrb[0].mxu0
        %v3657 = vadd.f32 0.0, %v3656
        %v3658 = vpop.f32.mrb[0].mxu0
        %v3659 = vpop.f32.mrb[0].mxu0
        %v3660 = vadd.f32 0.0, %v3659
        %v3661 = vpop.f32.mrb[0].mxu0
        %3662 = vdwg.mxu0
        %v3663 = vadd.f32 %v2994, %v3473
        %v3664 = vadd.f32 %v2995, %v3476
        %v3665 = vadd.f32 %v2996, %v3481
        %v3666 = vadd.f32 %v2997, %v3484
        %v3667 = vadd.f32 %v2998, %v3489
        %v3668 = vadd.f32 %v2999, %v3492
        %v3669 = vadd.f32 %v3000, %v3497
        %v3670 = vadd.f32 %v3001, %v3500
        %v3671 = vadd.f32 %v3002, %v3505
        %v3672 = vadd.f32 %v3003, %v3508
        %v3673 = vadd.f32 %v3004, %v3513
        %v3674 = vadd.f32 %v3005, %v3516
        %v3675 = vadd.f32 %v3006, %v3521
        %v3676 = vadd.f32 %v3007, %v3524
        %v3677 = vadd.f32 %v3008, %v3529
        %v3678 = vadd.f32 %v3009, %v3532
        %v3679 = vadd.f32 %v3010, %v3537
        %v3680 = vadd.f32 %v3011, %v3540
        %v3681 = vadd.f32 %v3012, %v3545
        %v3682 = vadd.f32 %v3013, %v3548
        %v3683 = vadd.f32 %v3014, %v3553
        %v3684 = vadd.f32 %v3015, %v3556
        %v3685 = vadd.f32 %v3016, %v3561
        %v3686 = vadd.f32 %v3017, %v3564
        %v3687 = vadd.f32 %v3018, %v3569
        %v3688 = vadd.f32 %v3019, %v3572
        %v3689 = vadd.f32 %v3020, %v3577
        %v3690 = vadd.f32 %v3021, %v3580
        %v3691 = vadd.f32 %v3022, %v3585
        %v3692 = vadd.f32 %v3023, %v3588
        %v3693 = vadd.f32 %v3024, %v3593
        %v3694 = vadd.f32 %v3025, %v3596
        %v3695 = vadd.f32 %v3026, %v3601
        %v3696 = vadd.f32 %v3027, %v3604
        %v3697 = vadd.f32 %v3028, %v3609
        %v3698 = vadd.f32 %v3029, %v3612
        %v3699 = vadd.f32 %v3030, %v3617
        %v3700 = vadd.f32 %v3031, %v3620
        %v3701 = vadd.f32 %v3032, %v3625
        %v3702 = vadd.f32 %v3033, %v3628
        %v3703 = vadd.f32 %v3034, %v3633
        %v3704 = vadd.f32 %v3035, %v3636
        %v3705 = vadd.f32 %v3036, %v3641
        %v3706 = vadd.f32 %v3037, %v3644
        %v3707 = vadd.f32 %v3038, %v3649
        %v3708 = vadd.f32 %v3039, %v3652
        %v3709 = vadd.f32 %v3040, %v3657
        %v3710 = vadd.f32 %v3041, %v3660
        %3711 = vst [vmem:[#allocation2] sm:$0xff] %v3663
        %3712 = vst [vmem:[#allocation2 + $0x8] sm:$0xff] %v3664
        %3713 = vst [vmem:[#allocation2 + $0x10] sm:$0xff] %v3665
        %3714 = vst [vmem:[#allocation2 + $0x18] sm:$0xff] %v3666
        %3715 = vst [vmem:[#allocation2 + $0x20] sm:$0xff] %v3667
        %3716 = vst [vmem:[#allocation2 + $0x28] sm:$0xff] %v3668
        %3717 = vst [vmem:[#allocation2 + $0x30] sm:$0xff] %v3669
        %3718 = vst [vmem:[#allocation2 + $0x38] sm:$0xff] %v3670
        %3719 = vst [vmem:[#allocation2 + $0x40] sm:$0xff] %v3671
        %3720 = vst [vmem:[#allocation2 + $0x48] sm:$0xff] %v3672
        %3721 = vst [vmem:[#allocation2 + $0x50] sm:$0xff] %v3673
        %3722 = vst [vmem:[#allocation2 + $0x58] sm:$0xff] %v3674
        %3723 = vst [vmem:[#allocation2 + $0x60] sm:$0xff] %v3675
        %3724 = vst [vmem:[#allocation2 + $0x68] sm:$0xff] %v3676
        %3725 = vst [vmem:[#allocation2 + $0x70] sm:$0xff] %v3677
        %3726 = vst [vmem:[#allocation2 + $0x78] sm:$0xff] %v3678
        %3727 = vst [vmem:[#allocation2 + $0x80] sm:$0xff] %v3679
        %3728 = vst [vmem:[#allocation2 + $0x88] sm:$0xff] %v3680
        %3729 = vst [vmem:[#allocation2 + $0x90] sm:$0xff] %v3681
        %3730 = vst [vmem:[#allocation2 + $0x98] sm:$0xff] %v3682
        %3731 = vst [vmem:[#allocation2 + $0xa0] sm:$0xff] %v3683
        %3732 = vst [vmem:[#allocation2 + $0xa8] sm:$0xff] %v3684
        %3733 = vst [vmem:[#allocation2 + $0xb0] sm:$0xff] %v3685
        %3734 = vst [vmem:[#allocation2 + $0xb8] sm:$0xff] %v3686
        %3735 = vst [vmem:[#allocation2 + $0xc0] sm:$0xff] %v3687
        %3736 = vst [vmem:[#allocation2 + $0xc8] sm:$0xff] %v3688
        %3737 = vst [vmem:[#allocation2 + $0xd0] sm:$0xff] %v3689
        %3738 = vst [vmem:[#allocation2 + $0xd8] sm:$0xff] %v3690
        %3739 = vst [vmem:[#allocation2 + $0xe0] sm:$0xff] %v3691
        %3740 = vst [vmem:[#allocation2 + $0xe8] sm:$0xff] %v3692
        %3741 = vst [vmem:[#allocation2 + $0xf0] sm:$0xff] %v3693
        %3742 = vst [vmem:[#allocation2 + $0xf8] sm:$0xff] %v3694
        %3743 = vst [vmem:[#allocation2 + $0x100] sm:$0xff] %v3695
        %3744 = vst [vmem:[#allocation2 + $0x108] sm:$0xff] %v3696
        %3745 = vst [vmem:[#allocation2 + $0x110] sm:$0xff] %v3697
        %3746 = vst [vmem:[#allocation2 + $0x118] sm:$0xff] %v3698
        %3747 = vst [vmem:[#allocation2 + $0x120] sm:$0xff] %v3699
        %3748 = vst [vmem:[#allocation2 + $0x128] sm:$0xff] %v3700
        %3749 = vst [vmem:[#allocation2 + $0x130] sm:$0xff] %v3701
        %3750 = vst [vmem:[#allocation2 + $0x138] sm:$0xff] %v3702
        %3751 = vst [vmem:[#allocation2 + $0x140] sm:$0xff] %v3703
        %3752 = vst [vmem:[#allocation2 + $0x148] sm:$0xff] %v3704
        %3753 = vst [vmem:[#allocation2 + $0x150] sm:$0xff] %v3705
        %3754 = vst [vmem:[#allocation2 + $0x158] sm:$0xff] %v3706
        %3755 = vst [vmem:[#allocation2 + $0x160] sm:$0xff] %v3707
        %3756 = vst [vmem:[#allocation2 + $0x168] sm:$0xff] %v3708
        %3757 = vst [vmem:[#allocation2 + $0x170] sm:$0xff] %v3709
        %3758 = vst [vmem:[#allocation2 + $0x178] sm:$0xff] %v3710
        %v3759 = vld [vmem:[%s182 + $0xc] sm:$0xe]
        %v3760 = vld [vmem:[%s182 + $0x10] sm:$0xf]
        %v3761 = vld [vmem:[%s182 + $0x14] sm:$0xf]
        %v3762 = vld [vmem:[%s182 + $0x18] sm:$0xf]
        %v3763 = vld [vmem:[%s182 + $0x1c] sm:$0xf]
        %v3764 = vld [vmem:[%s182 + $0x20] sm:$0xf]
        %v3765 = vld [vmem:[%s182 + $0x24] sm:$0xf]
        %v3766 = vld [vmem:[%s182 + $0x28] sm:$0xf]
        %v3767 = vld [vmem:[%s182 + $0x2c] sm:$0xf]
        %v3768 = vld [vmem:[%s182 + $0x30] sm:$0xf]
        %v3769 = vld [vmem:[%s182 + $0x34] sm:$0xf]
        %v3770 = vld [vmem:[%s182 + $0x38] sm:$0xf]
        %v3771 = vld [vmem:[%s182 + $0x3c] sm:$0xf]
        %v3772 = vld [vmem:[%s182 + $0x40] sm:$0xf]
        %v3773 = vld [vmem:[%s182 + $0x44] sm:$0xf]
        %v3774 = vld [vmem:[%s182 + $0x48] sm:$0xf]
        %v3775 = vld [vmem:[%s182 + $0x4c] sm:$0xf]
        %v3776 = vld [vmem:[%s182 + $0x50] sm:$0xf]
        %v3777 = vld [vmem:[%s182 + $0x54] sm:$0xf]
        %v3778 = vld [vmem:[%s182 + $0x58] sm:$0xf]
        %v3779 = vld [vmem:[%s182 + $0x5c] sm:$0xf]
        %v3780 = vld [vmem:[%s182 + $0x60] sm:$0xf]
        %v3781 = vld [vmem:[%s182 + $0x64] sm:$0xf]
        %v3782 = vld [vmem:[%s182 + $0x68] sm:$0xf]
        %v3783 = vld [vmem:[%s182 + $0x6c] sm:$0xf]
        %v3784 = vld [vmem:[%s182 + $0x70] sm:$0xf]
        %v3785 = vld [vmem:[%s182 + $0x74] sm:$0xf]
        %v3786 = vld [vmem:[%s182 + $0x78] sm:$0xf]
        %v3787 = vld [vmem:[%s182 + $0x7c] sm:$0xf]
        %v3788 = vld [vmem:[%s182 + $0x80] sm:$0xf]
        %v3789 = vld [vmem:[%s182 + $0x84] sm:$0xf]
        %v3790 = vld [vmem:[%s182 + $0x88] sm:$0xf]
        %v3791 = vld [vmem:[%s182 + $0x8c] sm:$0xf]
        %v3792 = vld [vmem:[%s182 + $0x90] sm:$0xf]
        %v3793 = vld [vmem:[%s182 + $0x94] sm:$0xf]
        %v3794 = vld [vmem:[%s182 + $0x98] sm:$0xf]
        %v3795 = vld [vmem:[%s182 + $0x9c] sm:$0xf]
        %v3796 = vld [vmem:[%s182 + $0xa0] sm:$0xf]
        %v3797 = vld [vmem:[%s182 + $0xa4] sm:$0xf]
        %v3798 = vld [vmem:[%s182 + $0xa8] sm:$0xf]
        %v3799 = vld [vmem:[%s182 + $0xac] sm:$0xf]
        %v3800 = vld [vmem:[%s182 + $0xb0] sm:$0xf]
        %v3801 = vld [vmem:[%s182 + $0xb4] sm:$0xf]
        %v3802 = vld [vmem:[%s182 + $0xb8] sm:$0xf]
        %v3803 = vld [vmem:[%s182 + $0xbc] sm:$0xf]
        %v3804 = vld [vmem:[%s182 + $0xc0] sm:$0xf]
        %v3805 = vld [vmem:[%s182 + $0xc4] sm:$0xf]
        %v3806 = vld [vmem:[%s182 + $0xc8] sm:$0xf]
        %v3807 = vld [vmem:[%s182 + $0xcc] sm:$0x1]
        %v3808 = vld [vmem:[#allocation2] sm:$0xff]
        %v3809 = vld [vmem:[#allocation2 + $0x8] sm:$0xff]
        %v3810 = vld [vmem:[#allocation2 + $0x10] sm:$0xff]
        %v3811 = vld [vmem:[#allocation2 + $0x18] sm:$0xff]
        %v3812 = vld [vmem:[#allocation2 + $0x20] sm:$0xff]
        %v3813 = vld [vmem:[#allocation2 + $0x28] sm:$0xff]
        %v3814 = vld [vmem:[#allocation2 + $0x30] sm:$0xff]
        %v3815 = vld [vmem:[#allocation2 + $0x38] sm:$0xff]
        %v3816 = vld [vmem:[#allocation2 + $0x40] sm:$0xff]
        %v3817 = vld [vmem:[#allocation2 + $0x48] sm:$0xff]
        %v3818 = vld [vmem:[#allocation2 + $0x50] sm:$0xff]
        %v3819 = vld [vmem:[#allocation2 + $0x58] sm:$0xff]
        %v3820 = vld [vmem:[#allocation2 + $0x60] sm:$0xff]
        %v3821 = vld [vmem:[#allocation2 + $0x68] sm:$0xff]
        %v3822 = vld [vmem:[#allocation2 + $0x70] sm:$0xff]
        %v3823 = vld [vmem:[#allocation2 + $0x78] sm:$0xff]
        %v3824 = vld [vmem:[#allocation2 + $0x80] sm:$0xff]
        %v3825 = vld [vmem:[#allocation2 + $0x88] sm:$0xff]
        %v3826 = vld [vmem:[#allocation2 + $0x90] sm:$0xff]
        %v3827 = vld [vmem:[#allocation2 + $0x98] sm:$0xff]
        %v3828 = vld [vmem:[#allocation2 + $0xa0] sm:$0xff]
        %v3829 = vld [vmem:[#allocation2 + $0xa8] sm:$0xff]
        %v3830 = vld [vmem:[#allocation2 + $0xb0] sm:$0xff]
        %v3831 = vld [vmem:[#allocation2 + $0xb8] sm:$0xff]
        %v3832 = vld [vmem:[#allocation2 + $0xc0] sm:$0xff]
        %v3833 = vld [vmem:[#allocation2 + $0xc8] sm:$0xff]
        %v3834 = vld [vmem:[#allocation2 + $0xd0] sm:$0xff]
        %v3835 = vld [vmem:[#allocation2 + $0xd8] sm:$0xff]
        %v3836 = vld [vmem:[#allocation2 + $0xe0] sm:$0xff]
        %v3837 = vld [vmem:[#allocation2 + $0xe8] sm:$0xff]
        %v3838 = vld [vmem:[#allocation2 + $0xf0] sm:$0xff]
        %v3839 = vld [vmem:[#allocation2 + $0xf8] sm:$0xff]
        %v3840 = vld [vmem:[#allocation2 + $0x100] sm:$0xff]
        %v3841 = vld [vmem:[#allocation2 + $0x108] sm:$0xff]
        %v3842 = vld [vmem:[#allocation2 + $0x110] sm:$0xff]
        %v3843 = vld [vmem:[#allocation2 + $0x118] sm:$0xff]
        %v3844 = vld [vmem:[#allocation2 + $0x120] sm:$0xff]
        %v3845 = vld [vmem:[#allocation2 + $0x128] sm:$0xff]
        %v3846 = vld [vmem:[#allocation2 + $0x130] sm:$0xff]
        %v3847 = vld [vmem:[#allocation2 + $0x138] sm:$0xff]
        %v3848 = vld [vmem:[#allocation2 + $0x140] sm:$0xff]
        %v3849 = vld [vmem:[#allocation2 + $0x148] sm:$0xff]
        %v3850 = vld [vmem:[#allocation2 + $0x150] sm:$0xff]
        %v3851 = vld [vmem:[#allocation2 + $0x158] sm:$0xff]
        %v3852 = vld [vmem:[#allocation2 + $0x160] sm:$0xff]
        %v3853 = vld [vmem:[#allocation2 + $0x168] sm:$0xff]
        %v3854 = vld [vmem:[#allocation2 + $0x170] sm:$0xff]
        %v3855 = vld [vmem:[#allocation2 + $0x178] sm:$0xff]
        %s3856 = scalar_lea.vmem %s1, 20
        %v3857 = vld [vmem:[%s3856] sm:$0xf]
        %v3907 = vunpack.c.l.b16 %v3759
        %v3908 = vunpack.c.l.b16 %v3760
        %v3909 = vunpack.c.l.b16 %v3761
        %v3910 = vunpack.c.l.b16 %v3762
        %v3911 = vunpack.c.l.b16 %v3763
        %v3912 = vunpack.c.l.b16 %v3764
        %v3913 = vunpack.c.l.b16 %v3765
        %v3914 = vunpack.c.l.b16 %v3766
        %v3915 = vunpack.c.l.b16 %v3767
        %v3916 = vunpack.c.l.b16 %v3768
        %v3917 = vunpack.c.l.b16 %v3769
        %v3918 = vunpack.c.l.b16 %v3770
        %v3919 = vunpack.c.l.b16 %v3771
        %v3920 = vunpack.c.l.b16 %v3772
        %v3921 = vunpack.c.l.b16 %v3773
        %v3922 = vunpack.c.l.b16 %v3774
        %v3923 = vunpack.c.l.b16 %v3775
        %v3924 = vunpack.c.l.b16 %v3776
        %v3925 = vunpack.c.l.b16 %v3777
        %v3926 = vunpack.c.l.b16 %v3778
        %v3927 = vunpack.c.l.b16 %v3779
        %v3928 = vunpack.c.l.b16 %v3780
        %v3929 = vunpack.c.l.b16 %v3781
        %v3930 = vunpack.c.l.b16 %v3782
        %v3931 = vunpack.c.l.b16 %v3783
        %v3932 = vunpack.c.l.b16 %v3784
        %v3933 = vunpack.c.l.b16 %v3785
        %v3934 = vunpack.c.l.b16 %v3786
        %v3935 = vunpack.c.l.b16 %v3787
        %v3936 = vunpack.c.l.b16 %v3788
        %v3937 = vunpack.c.l.b16 %v3789
        %v3938 = vunpack.c.l.b16 %v3790
        %v3939 = vunpack.c.l.b16 %v3791
        %v3940 = vunpack.c.l.b16 %v3792
        %v3941 = vunpack.c.l.b16 %v3793
        %v3942 = vunpack.c.l.b16 %v3794
        %v3943 = vunpack.c.l.b16 %v3795
        %v3944 = vunpack.c.l.b16 %v3796
        %v3945 = vunpack.c.l.b16 %v3797
        %v3946 = vunpack.c.l.b16 %v3798
        %v3947 = vunpack.c.l.b16 %v3799
        %v3948 = vunpack.c.l.b16 %v3800
        %v3949 = vunpack.c.l.b16 %v3801
        %v3950 = vunpack.c.l.b16 %v3802
        %v3951 = vunpack.c.l.b16 %v3803
        %v3952 = vunpack.c.l.b16 %v3804
        %v3953 = vunpack.c.l.b16 %v3805
        %v3954 = vunpack.c.l.b16 %v3806
        %v3955 = vunpack.c.l.b16 %v3807
        %v3956 = vpack.c.b16 %v3908, %v3907
        %v3957 = vpack.c.b16 %v3910, %v3909
        %v3958 = vpack.c.b16 %v3912, %v3911
        %v3959 = vpack.c.b16 %v3914, %v3913
        %v3960 = vpack.c.b16 %v3916, %v3915
        %v3961 = vpack.c.b16 %v3918, %v3917
        %v3962 = vpack.c.b16 %v3920, %v3919
        %v3963 = vpack.c.b16 %v3922, %v3921
        %v3964 = vpack.c.b16 %v3924, %v3923
        %v3965 = vpack.c.b16 %v3926, %v3925
        %v3966 = vpack.c.b16 %v3928, %v3927
        %v3967 = vpack.c.b16 %v3930, %v3929
        %v3968 = vpack.c.b16 %v3932, %v3931
        %v3969 = vpack.c.b16 %v3934, %v3933
        %v3970 = vpack.c.b16 %v3936, %v3935
        %v3971 = vpack.c.b16 %v3938, %v3937
        %v3972 = vpack.c.b16 %v3940, %v3939
        %v3973 = vpack.c.b16 %v3942, %v3941
        %v3974 = vpack.c.b16 %v3944, %v3943
        %v3975 = vpack.c.b16 %v3946, %v3945
        %v3976 = vpack.c.b16 %v3948, %v3947
        %v3977 = vpack.c.b16 %v3950, %v3949
        %v3978 = vpack.c.b16 %v3952, %v3951
        %v3979 = vpack.c.b16 %v3954, %v3953
        %v3980 = vpack.c.b16 %v3955, %v3955
        %v3981 = vrot.slane %v3956, 1
        %v3982 = vrot.slane %v3957, 1
        %v3983 = vsel %vm1885, %v3981, %v3982
        %v3984 = vrot.slane %v3958, 1
        %v3985 = vsel %vm1885, %v3982, %v3984
        %v3986 = vrot.slane %v3959, 1
        %v3987 = vsel %vm1885, %v3984, %v3986
        %v3988 = vrot.slane %v3960, 1
        %v3989 = vsel %vm1885, %v3986, %v3988
        %v3990 = vrot.slane %v3961, 1
        %v3991 = vsel %vm1885, %v3988, %v3990
        %v3992 = vrot.slane %v3962, 1
        %v3993 = vsel %vm1885, %v3990, %v3992
        %v3994 = vrot.slane %v3963, 1
        %v3995 = vsel %vm1885, %v3992, %v3994
        %v3996 = vrot.slane %v3964, 1
        %v3997 = vsel %vm1885, %v3994, %v3996
        %v3998 = vrot.slane %v3965, 1
        %v3999 = vsel %vm1885, %v3996, %v3998
        %v4000 = vrot.slane %v3966, 1
        %v4001 = vsel %vm1885, %v3998, %v4000
        %v4002 = vrot.slane %v3967, 1
        %v4003 = vsel %vm1885, %v4000, %v4002
        %v4004 = vrot.slane %v3968, 1
        %v4005 = vsel %vm1885, %v4002, %v4004
        %v4006 = vrot.slane %v3969, 1
        %v4007 = vsel %vm1885, %v4004, %v4006
        %v4008 = vrot.slane %v3970, 1
        %v4009 = vsel %vm1885, %v4006, %v4008
        %v4010 = vrot.slane %v3971, 1
        %v4011 = vsel %vm1885, %v4008, %v4010
        %v4012 = vrot.slane %v3972, 1
        %v4013 = vsel %vm1885, %v4010, %v4012
        %v4014 = vrot.slane %v3973, 1
        %v4015 = vsel %vm1885, %v4012, %v4014
        %v4016 = vrot.slane %v3974, 1
        %v4017 = vsel %vm1885, %v4014, %v4016
        %v4018 = vrot.slane %v3975, 1
        %v4019 = vsel %vm1885, %v4016, %v4018
        %v4020 = vrot.slane %v3976, 1
        %v4021 = vsel %vm1885, %v4018, %v4020
        %v4022 = vrot.slane %v3977, 1
        %v4023 = vsel %vm1885, %v4020, %v4022
        %v4024 = vrot.slane %v3978, 1
        %v4025 = vsel %vm1885, %v4022, %v4024
        %v4026 = vrot.slane %v3979, 1
        %v4027 = vsel %vm1885, %v4024, %v4026
        %v4028 = vrot.slane %v3980, 1
        %v4029 = vsel %vm1885, %v4026, %v4028
        %v4031 = vsel %vm450, %v3983, 0
        %v4034 = vsel %vm450, %v3985, 0
        %v4037 = vsel %vm450, %v3987, 0
        %v4040 = vsel %vm450, %v3989, 0
        %v4043 = vsel %vm450, %v3991, 0
        %v4046 = vsel %vm450, %v3993, 0
        %v4049 = vsel %vm450, %v3995, 0
        %v4052 = vsel %vm450, %v3997, 0
        %v4055 = vsel %vm450, %v3999, 0
        %v4058 = vsel %vm450, %v4001, 0
        %v4061 = vsel %vm450, %v4003, 0
        %v4064 = vsel %vm450, %v4005, 0
        %v4067 = vsel %vm450, %v4007, 0
        %v4070 = vsel %vm450, %v4009, 0
        %v4073 = vsel %vm450, %v4011, 0
        %v4076 = vsel %vm450, %v4013, 0
        %v4079 = vsel %vm450, %v4015, 0
        %v4082 = vsel %vm450, %v4017, 0
        %v4085 = vsel %vm450, %v4019, 0
        %v4088 = vsel %vm450, %v4021, 0
        %v4091 = vsel %vm450, %v4023, 0
        %v4094 = vsel %vm450, %v4025, 0
        %v4097 = vsel %vm450, %v4027, 0
        %v4100 = vsel %vm450, %v4029, 0
        %v4103 = vsel %vm523, %v3857, 0
        %4105 = vmatprep.subr.bf16.mxu0 0
        %4106 = vmatpush1.bf16.msra.mxu0 %v4103
        %4107 = vmatprep.subr.bf16.mxu0 0
        %4108 = vmatpush1.bf16.msra.mxu0 0
        %4109 = vmatprep.subr.bf16.mxu0 0
        %4110 = vmatpush1.bf16.msra.mxu0 0
        %4111 = vmatprep.subr.bf16.mxu0 0
        %4112 = vmatpush1.bf16.msra.mxu0 0
        %4113 = vmatprep.subr.bf16.mxu0 0
        %4114 = vmatpush1.bf16.msra.mxu0 0
        %4115 = vmatprep.subr.bf16.mxu0 0
        %4116 = vmatpush1.bf16.msra.mxu0 0
        %4117 = vmatprep.subr.bf16.mxu0 0
        %4118 = vmatpush1.bf16.msra.mxu0 0
        %4119 = vmatprep.subr.bf16.mxu0 0
        %4120 = vmatpush1.bf16.msra.mxu0 0
        %4121 = vmatprep.subr.bf16.mxu0 0
        %4122 = vmatpush1.bf16.msra.mxu0 0
        %4123 = vmatprep.subr.bf16.mxu0 0
        %4124 = vmatpush1.bf16.msra.mxu0 0
        %4125 = vmatprep.subr.bf16.mxu0 0
        %4126 = vmatpush1.bf16.msra.mxu0 0
        %4127 = vmatprep.subr.bf16.mxu0 0
        %4128 = vmatpush1.bf16.msra.mxu0 0
        %4129 = vmatprep.subr.bf16.mxu0 0
        %4130 = vmatpush1.bf16.msra.mxu0 0
        %4131 = vmatprep.subr.bf16.mxu0 0
        %4132 = vmatpush1.bf16.msra.mxu0 0
        %4133 = vmatprep.subr.bf16.mxu0 0
        %4134 = vmatpush1.bf16.msra.mxu0 0
        %4135 = vmatprep.subr.bf16.mxu0 0
        %4136 = vmatpush1.bf16.msra.mxu0 0
        %4137 = vmatprep.mubr.bf16.mxu0 0
        %4138 = vmatmul.mubr.bf16.gmra.mrb[0].mxu0 %v4031
        %v4139 = vpop.f32.mrb[0].mxu0
        %v4140 = vadd.f32 0.0, %v4139
        %v4141 = vpop.f32.mrb[0].mxu0
        %v4142 = vpop.f32.mrb[0].mxu0
        %v4143 = vadd.f32 0.0, %v4142
        %v4144 = vpop.f32.mrb[0].mxu0
        %4145 = vmatprep.mubr.bf16.mxu0 0
        %4146 = vmatmul.mubr.bf16.gmra.mrb[0].mxu0 %v4034
        %v4147 = vpop.f32.mrb[0].mxu0
        %v4148 = vadd.f32 0.0, %v4147
        %v4149 = vpop.f32.mrb[0].mxu0
        %v4150 = vpop.f32.mrb[0].mxu0
        %v4151 = vadd.f32 0.0, %v4150
        %v4152 = vpop.f32.mrb[0].mxu0
        %4153 = vmatprep.mubr.bf16.mxu0 0
        %4154 = vmatmul.mubr.bf16.gmra.mrb[0].mxu0 %v4037
        %v4155 = vpop.f32.mrb[0].mxu0
        %v4156 = vadd.f32 0.0, %v4155
        %v4157 = vpop.f32.mrb[0].mxu0
        %v4158 = vpop.f32.mrb[0].mxu0
        %v4159 = vadd.f32 0.0, %v4158
        %v4160 = vpop.f32.mrb[0].mxu0
        %4161 = vmatprep.mubr.bf16.mxu0 0
        %4162 = vmatmul.mubr.bf16.gmra.mrb[0].mxu0 %v4040
        %v4163 = vpop.f32.mrb[0].mxu0
        %v4164 = vadd.f32 0.0, %v4163
        %v4165 = vpop.f32.mrb[0].mxu0
        %v4166 = vpop.f32.mrb[0].mxu0
        %v4167 = vadd.f32 0.0, %v4166
        %v4168 = vpop.f32.mrb[0].mxu0
        %4169 = vmatprep.mubr.bf16.mxu0 0
        %4170 = vmatmul.mubr.bf16.gmra.mrb[0].mxu0 %v4043
        %v4171 = vpop.f32.mrb[0].mxu0
        %v4172 = vadd.f32 0.0, %v4171
        %v4173 = vpop.f32.mrb[0].mxu0
        %v4174 = vpop.f32.mrb[0].mxu0
        %v4175 = vadd.f32 0.0, %v4174
        %v4176 = vpop.f32.mrb[0].mxu0
        %4177 = vmatprep.mubr.bf16.mxu0 0
        %4178 = vmatmul.mubr.bf16.gmra.mrb[0].mxu0 %v4046
        %v4179 = vpop.f32.mrb[0].mxu0
        %v4180 = vadd.f32 0.0, %v4179
        %v4181 = vpop.f32.mrb[0].mxu0
        %v4182 = vpop.f32.mrb[0].mxu0
        %v4183 = vadd.f32 0.0, %v4182
        %v4184 = vpop.f32.mrb[0].mxu0
        %4185 = vmatprep.mubr.bf16.mxu0 0
        %4186 = vmatmul.mubr.bf16.gmra.mrb[0].mxu0 %v4049
        %v4187 = vpop.f32.mrb[0].mxu0
        %v4188 = vadd.f32 0.0, %v4187
        %v4189 = vpop.f32.mrb[0].mxu0
        %v4190 = vpop.f32.mrb[0].mxu0
        %v4191 = vadd.f32 0.0, %v4190
        %v4192 = vpop.f32.mrb[0].mxu0
        %4193 = vmatprep.mubr.bf16.mxu0 0
        %4194 = vmatmul.mubr.bf16.gmra.mrb[0].mxu0 %v4052
        %v4195 = vpop.f32.mrb[0].mxu0
        %v4196 = vadd.f32 0.0, %v4195
        %v4197 = vpop.f32.mrb[0].mxu0
        %v4198 = vpop.f32.mrb[0].mxu0
        %v4199 = vadd.f32 0.0, %v4198
        %v4200 = vpop.f32.mrb[0].mxu0
        %4201 = vmatprep.mubr.bf16.mxu0 0
        %4202 = vmatmul.mubr.bf16.gmra.mrb[0].mxu0 %v4055
        %v4203 = vpop.f32.mrb[0].mxu0
        %v4204 = vadd.f32 0.0, %v4203
        %v4205 = vpop.f32.mrb[0].mxu0
        %v4206 = vpop.f32.mrb[0].mxu0
        %v4207 = vadd.f32 0.0, %v4206
        %v4208 = vpop.f32.mrb[0].mxu0
        %4209 = vmatprep.mubr.bf16.mxu0 0
        %4210 = vmatmul.mubr.bf16.gmra.mrb[0].mxu0 %v4058
        %v4211 = vpop.f32.mrb[0].mxu0
        %v4212 = vadd.f32 0.0, %v4211
        %v4213 = vpop.f32.mrb[0].mxu0
        %v4214 = vpop.f32.mrb[0].mxu0
        %v4215 = vadd.f32 0.0, %v4214
        %v4216 = vpop.f32.mrb[0].mxu0
        %4217 = vmatprep.mubr.bf16.mxu0 0
        %4218 = vmatmul.mubr.bf16.gmra.mrb[0].mxu0 %v4061
        %v4219 = vpop.f32.mrb[0].mxu0
        %v4220 = vadd.f32 0.0, %v4219
        %v4221 = vpop.f32.mrb[0].mxu0
        %v4222 = vpop.f32.mrb[0].mxu0
        %v4223 = vadd.f32 0.0, %v4222
        %v4224 = vpop.f32.mrb[0].mxu0
        %4225 = vmatprep.mubr.bf16.mxu0 0
        %4226 = vmatmul.mubr.bf16.gmra.mrb[0].mxu0 %v4064
        %v4227 = vpop.f32.mrb[0].mxu0
        %v4228 = vadd.f32 0.0, %v4227
        %v4229 = vpop.f32.mrb[0].mxu0
        %v4230 = vpop.f32.mrb[0].mxu0
        %v4231 = vadd.f32 0.0, %v4230
        %v4232 = vpop.f32.mrb[0].mxu0
        %4233 = vmatprep.mubr.bf16.mxu0 0
        %4234 = vmatmul.mubr.bf16.gmra.mrb[0].mxu0 %v4067
        %v4235 = vpop.f32.mrb[0].mxu0
        %v4236 = vadd.f32 0.0, %v4235
        %v4237 = vpop.f32.mrb[0].mxu0
        %v4238 = vpop.f32.mrb[0].mxu0
        %v4239 = vadd.f32 0.0, %v4238
        %v4240 = vpop.f32.mrb[0].mxu0
        %4241 = vmatprep.mubr.bf16.mxu0 0
        %4242 = vmatmul.mubr.bf16.gmra.mrb[0].mxu0 %v4070
        %v4243 = vpop.f32.mrb[0].mxu0
        %v4244 = vadd.f32 0.0, %v4243
        %v4245 = vpop.f32.mrb[0].mxu0
        %v4246 = vpop.f32.mrb[0].mxu0
        %v4247 = vadd.f32 0.0, %v4246
        %v4248 = vpop.f32.mrb[0].mxu0
        %4249 = vmatprep.mubr.bf16.mxu0 0
        %4250 = vmatmul.mubr.bf16.gmra.mrb[0].mxu0 %v4073
        %v4251 = vpop.f32.mrb[0].mxu0
        %v4252 = vadd.f32 0.0, %v4251
        %v4253 = vpop.f32.mrb[0].mxu0
        %v4254 = vpop.f32.mrb[0].mxu0
        %v4255 = vadd.f32 0.0, %v4254
        %v4256 = vpop.f32.mrb[0].mxu0
        %4257 = vmatprep.mubr.bf16.mxu0 0
        %4258 = vmatmul.mubr.bf16.gmra.mrb[0].mxu0 %v4076
        %v4259 = vpop.f32.mrb[0].mxu0
        %v4260 = vadd.f32 0.0, %v4259
        %v4261 = vpop.f32.mrb[0].mxu0
        %v4262 = vpop.f32.mrb[0].mxu0
        %v4263 = vadd.f32 0.0, %v4262
        %v4264 = vpop.f32.mrb[0].mxu0
        %4265 = vmatprep.mubr.bf16.mxu0 0
        %4266 = vmatmul.mubr.bf16.gmra.mrb[0].mxu0 %v4079
        %v4267 = vpop.f32.mrb[0].mxu0
        %v4268 = vadd.f32 0.0, %v4267
        %v4269 = vpop.f32.mrb[0].mxu0
        %v4270 = vpop.f32.mrb[0].mxu0
        %v4271 = vadd.f32 0.0, %v4270
        %v4272 = vpop.f32.mrb[0].mxu0
        %4273 = vmatprep.mubr.bf16.mxu0 0
        %4274 = vmatmul.mubr.bf16.gmra.mrb[0].mxu0 %v4082
        %v4275 = vpop.f32.mrb[0].mxu0
        %v4276 = vadd.f32 0.0, %v4275
        %v4277 = vpop.f32.mrb[0].mxu0
        %v4278 = vpop.f32.mrb[0].mxu0
        %v4279 = vadd.f32 0.0, %v4278
        %v4280 = vpop.f32.mrb[0].mxu0
        %4281 = vmatprep.mubr.bf16.mxu0 0
        %4282 = vmatmul.mubr.bf16.gmra.mrb[0].mxu0 %v4085
        %v4283 = vpop.f32.mrb[0].mxu0
        %v4284 = vadd.f32 0.0, %v4283
        %v4285 = vpop.f32.mrb[0].mxu0
        %v4286 = vpop.f32.mrb[0].mxu0
        %v4287 = vadd.f32 0.0, %v4286
        %v4288 = vpop.f32.mrb[0].mxu0
        %4289 = vmatprep.mubr.bf16.mxu0 0
        %4290 = vmatmul.mubr.bf16.gmra.mrb[0].mxu0 %v4088
        %v4291 = vpop.f32.mrb[0].mxu0
        %v4292 = vadd.f32 0.0, %v4291
        %v4293 = vpop.f32.mrb[0].mxu0
        %v4294 = vpop.f32.mrb[0].mxu0
        %v4295 = vadd.f32 0.0, %v4294
        %v4296 = vpop.f32.mrb[0].mxu0
        %4297 = vmatprep.mubr.bf16.mxu0 0
        %4298 = vmatmul.mubr.bf16.gmra.mrb[0].mxu0 %v4091
        %v4299 = vpop.f32.mrb[0].mxu0
        %v4300 = vadd.f32 0.0, %v4299
        %v4301 = vpop.f32.mrb[0].mxu0
        %v4302 = vpop.f32.mrb[0].mxu0
        %v4303 = vadd.f32 0.0, %v4302
        %v4304 = vpop.f32.mrb[0].mxu0
        %4305 = vmatprep.mubr.bf16.mxu0 0
        %4306 = vmatmul.mubr.bf16.gmra.mrb[0].mxu0 %v4094
        %v4307 = vpop.f32.mrb[0].mxu0
        %v4308 = vadd.f32 0.0, %v4307
        %v4309 = vpop.f32.mrb[0].mxu0
        %v4310 = vpop.f32.mrb[0].mxu0
        %v4311 = vadd.f32 0.0, %v4310
        %v4312 = vpop.f32.mrb[0].mxu0
        %4313 = vmatprep.mubr.bf16.mxu0 0
        %4314 = vmatmul.mubr.bf16.gmra.mrb[0].mxu0 %v4097
        %v4315 = vpop.f32.mrb[0].mxu0
        %v4316 = vadd.f32 0.0, %v4315
        %v4317 = vpop.f32.mrb[0].mxu0
        %v4318 = vpop.f32.mrb[0].mxu0
        %v4319 = vadd.f32 0.0, %v4318
        %v4320 = vpop.f32.mrb[0].mxu0
        %4321 = vmatprep.mubr.bf16.mxu0 0
        %4322 = vmatmul.mubr.bf16.gmra.mrb[0].mxu0 %v4100
        %v4323 = vpop.f32.mrb[0].mxu0
        %v4324 = vadd.f32 0.0, %v4323
        %v4325 = vpop.f32.mrb[0].mxu0
        %v4326 = vpop.f32.mrb[0].mxu0
        %v4327 = vadd.f32 0.0, %v4326
        %v4328 = vpop.f32.mrb[0].mxu0
        %4329 = vdwg.mxu0
        %v4330 = vadd.f32 %v3808, %v4140
        %v4331 = vadd.f32 %v3809, %v4143
        %v4332 = vadd.f32 %v3810, %v4148
        %v4333 = vadd.f32 %v3811, %v4151
        %v4334 = vadd.f32 %v3812, %v4156
        %v4335 = vadd.f32 %v3813, %v4159
        %v4336 = vadd.f32 %v3814, %v4164
        %v4337 = vadd.f32 %v3815, %v4167
        %v4338 = vadd.f32 %v3816, %v4172
        %v4339 = vadd.f32 %v3817, %v4175
        %v4340 = vadd.f32 %v3818, %v4180
        %v4341 = vadd.f32 %v3819, %v4183
        %v4342 = vadd.f32 %v3820, %v4188
        %v4343 = vadd.f32 %v3821, %v4191
        %v4344 = vadd.f32 %v3822, %v4196
        %v4345 = vadd.f32 %v3823, %v4199
        %v4346 = vadd.f32 %v3824, %v4204
        %v4347 = vadd.f32 %v3825, %v4207
        %v4348 = vadd.f32 %v3826, %v4212
        %v4349 = vadd.f32 %v3827, %v4215
        %v4350 = vadd.f32 %v3828, %v4220
        %v4351 = vadd.f32 %v3829, %v4223
        %v4352 = vadd.f32 %v3830, %v4228
        %v4353 = vadd.f32 %v3831, %v4231
        %v4354 = vadd.f32 %v3832, %v4236
        %v4355 = vadd.f32 %v3833, %v4239
        %v4356 = vadd.f32 %v3834, %v4244
        %v4357 = vadd.f32 %v3835, %v4247
        %v4358 = vadd.f32 %v3836, %v4252
        %v4359 = vadd.f32 %v3837, %v4255
        %v4360 = vadd.f32 %v3838, %v4260
        %v4361 = vadd.f32 %v3839, %v4263
        %v4362 = vadd.f32 %v3840, %v4268
        %v4363 = vadd.f32 %v3841, %v4271
        %v4364 = vadd.f32 %v3842, %v4276
        %v4365 = vadd.f32 %v3843, %v4279
        %v4366 = vadd.f32 %v3844, %v4284
        %v4367 = vadd.f32 %v3845, %v4287
        %v4368 = vadd.f32 %v3846, %v4292
        %v4369 = vadd.f32 %v3847, %v4295
        %v4370 = vadd.f32 %v3848, %v4300
        %v4371 = vadd.f32 %v3849, %v4303
        %v4372 = vadd.f32 %v3850, %v4308
        %v4373 = vadd.f32 %v3851, %v4311
        %v4374 = vadd.f32 %v3852, %v4316
        %v4375 = vadd.f32 %v3853, %v4319
        %v4376 = vadd.f32 %v3854, %v4324
        %v4377 = vadd.f32 %v3855, %v4327
        %4378 = vst [vmem:[#allocation2] sm:$0xff] %v4330
        %4379 = vst [vmem:[#allocation2 + $0x8] sm:$0xff] %v4331
        %4380 = vst [vmem:[#allocation2 + $0x10] sm:$0xff] %v4332
        %4381 = vst [vmem:[#allocation2 + $0x18] sm:$0xff] %v4333
        %4382 = vst [vmem:[#allocation2 + $0x20] sm:$0xff] %v4334
        %4383 = vst [vmem:[#allocation2 + $0x28] sm:$0xff] %v4335
        %4384 = vst [vmem:[#allocation2 + $0x30] sm:$0xff] %v4336
        %4385 = vst [vmem:[#allocation2 + $0x38] sm:$0xff] %v4337
        %4386 = vst [vmem:[#allocation2 + $0x40] sm:$0xff] %v4338
        %4387 = vst [vmem:[#allocation2 + $0x48] sm:$0xff] %v4339
        %4388 = vst [vmem:[#allocation2 + $0x50] sm:$0xff] %v4340
        %4389 = vst [vmem:[#allocation2 + $0x58] sm:$0xff] %v4341
        %4390 = vst [vmem:[#allocation2 + $0x60] sm:$0xff] %v4342
        %4391 = vst [vmem:[#allocation2 + $0x68] sm:$0xff] %v4343
        %4392 = vst [vmem:[#allocation2 + $0x70] sm:$0xff] %v4344
        %4393 = vst [vmem:[#allocation2 + $0x78] sm:$0xff] %v4345
        %4394 = vst [vmem:[#allocation2 + $0x80] sm:$0xff] %v4346
        %4395 = vst [vmem:[#allocation2 + $0x88] sm:$0xff] %v4347
        %4396 = vst [vmem:[#allocation2 + $0x90] sm:$0xff] %v4348
        %4397 = vst [vmem:[#allocation2 + $0x98] sm:$0xff] %v4349
        %4398 = vst [vmem:[#allocation2 + $0xa0] sm:$0xff] %v4350
        %4399 = vst [vmem:[#allocation2 + $0xa8] sm:$0xff] %v4351
        %4400 = vst [vmem:[#allocation2 + $0xb0] sm:$0xff] %v4352
        %4401 = vst [vmem:[#allocation2 + $0xb8] sm:$0xff] %v4353
        %4402 = vst [vmem:[#allocation2 + $0xc0] sm:$0xff] %v4354
        %4403 = vst [vmem:[#allocation2 + $0xc8] sm:$0xff] %v4355
        %4404 = vst [vmem:[#allocation2 + $0xd0] sm:$0xff] %v4356
        %4405 = vst [vmem:[#allocation2 + $0xd8] sm:$0xff] %v4357
        %4406 = vst [vmem:[#allocation2 + $0xe0] sm:$0xff] %v4358
        %4407 = vst [vmem:[#allocation2 + $0xe8] sm:$0xff] %v4359
        %4408 = vst [vmem:[#allocation2 + $0xf0] sm:$0xff] %v4360
        %4409 = vst [vmem:[#allocation2 + $0xf8] sm:$0xff] %v4361
        %4410 = vst [vmem:[#allocation2 + $0x100] sm:$0xff] %v4362
        %4411 = vst [vmem:[#allocation2 + $0x108] sm:$0xff] %v4363
        %4412 = vst [vmem:[#allocation2 + $0x110] sm:$0xff] %v4364
        %4413 = vst [vmem:[#allocation2 + $0x118] sm:$0xff] %v4365
        %4414 = vst [vmem:[#allocation2 + $0x120] sm:$0xff] %v4366
        %4415 = vst [vmem:[#allocation2 + $0x128] sm:$0xff] %v4367
        %4416 = vst [vmem:[#allocation2 + $0x130] sm:$0xff] %v4368
        %4417 = vst [vmem:[#allocation2 + $0x138] sm:$0xff] %v4369
        %4418 = vst [vmem:[#allocation2 + $0x140] sm:$0xff] %v4370
        %4419 = vst [vmem:[#allocation2 + $0x148] sm:$0xff] %v4371
        %4420 = vst [vmem:[#allocation2 + $0x150] sm:$0xff] %v4372
        %4421 = vst [vmem:[#allocation2 + $0x158] sm:$0xff] %v4373
        %4422 = vst [vmem:[#allocation2 + $0x160] sm:$0xff] %v4374
        %4423 = vst [vmem:[#allocation2 + $0x168] sm:$0xff] %v4375
        %4424 = vst [vmem:[#allocation2 + $0x170] sm:$0xff] %v4376
        %4425 = vst [vmem:[#allocation2 + $0x178] sm:$0xff] %v4377
        %v4426 = vld [vmem:[%s182 + $0x18] sm:$0xf]
        %v4427 = vld [vmem:[%s182 + $0x1c] sm:$0xf]
        %v4428 = vld [vmem:[%s182 + $0x20] sm:$0xf]
        %v4429 = vld [vmem:[%s182 + $0x24] sm:$0xf]
        %v4430 = vld [vmem:[%s182 + $0x28] sm:$0xf]
        %v4431 = vld [vmem:[%s182 + $0x2c] sm:$0xf]
        %v4432 = vld [vmem:[%s182 + $0x30] sm:$0xf]
        %v4433 = vld [vmem:[%s182 + $0x34] sm:$0xf]
        %v4434 = vld [vmem:[%s182 + $0x38] sm:$0xf]
        %v4435 = vld [vmem:[%s182 + $0x3c] sm:$0xf]
        %v4436 = vld [vmem:[%s182 + $0x40] sm:$0xf]
        %v4437 = vld [vmem:[%s182 + $0x44] sm:$0xf]
        %v4438 = vld [vmem:[%s182 + $0x48] sm:$0xf]
        %v4439 = vld [vmem:[%s182 + $0x4c] sm:$0xf]
        %v4440 = vld [vmem:[%s182 + $0x50] sm:$0xf]
        %v4441 = vld [vmem:[%s182 + $0x54] sm:$0xf]
        %v4442 = vld [vmem:[%s182 + $0x58] sm:$0xf]
        %v4443 = vld [vmem:[%s182 + $0x5c] sm:$0xf]
        %v4444 = vld [vmem:[%s182 + $0x60] sm:$0xf]
        %v4445 = vld [vmem:[%s182 + $0x64] sm:$0xf]
        %v4446 = vld [vmem:[%s182 + $0x68] sm:$0xf]
        %v4447 = vld [vmem:[%s182 + $0x6c] sm:$0xf]
        %v4448 = vld [vmem:[%s182 + $0x70] sm:$0xf]
        %v4449 = vld [vmem:[%s182 + $0x74] sm:$0xf]
        %v4450 = vld [vmem:[%s182 + $0x78] sm:$0xf]
        %v4451 = vld [vmem:[%s182 + $0x7c] sm:$0xf]
        %v4452 = vld [vmem:[%s182 + $0x80] sm:$0xf]
        %v4453 = vld [vmem:[%s182 + $0x84] sm:$0xf]
        %v4454 = vld [vmem:[%s182 + $0x88] sm:$0xf]
        %v4455 = vld [vmem:[%s182 + $0x8c] sm:$0xf]
        %v4456 = vld [vmem:[%s182 + $0x90] sm:$0xf]
        %v4457 = vld [vmem:[%s182 + $0x94] sm:$0xf]
        %v4458 = vld [vmem:[%s182 + $0x98] sm:$0xf]
        %v4459 = vld [vmem:[%s182 + $0x9c] sm:$0xf]
        %v4460 = vld [vmem:[%s182 + $0xa0] sm:$0xf]
        %v4461 = vld [vmem:[%s182 + $0xa4] sm:$0xf]
        %v4462 = vld [vmem:[%s182 + $0xa8] sm:$0xf]
        %v4463 = vld [vmem:[%s182 + $0xac] sm:$0xf]
        %v4464 = vld [vmem:[%s182 + $0xb0] sm:$0xf]
        %v4465 = vld [vmem:[%s182 + $0xb4] sm:$0xf]
        %v4466 = vld [vmem:[%s182 + $0xb8] sm:$0xf]
        %v4467 = vld [vmem:[%s182 + $0xbc] sm:$0xf]
        %v4468 = vld [vmem:[%s182 + $0xc0] sm:$0xf]
        %v4469 = vld [vmem:[%s182 + $0xc4] sm:$0xf]
        %v4470 = vld [vmem:[%s182 + $0xc8] sm:$0xf]
        %v4471 = vld [vmem:[%s182 + $0xcc] sm:$0xf]
        %v4472 = vld [vmem:[%s182 + $0xd0] sm:$0xf]
        %v4473 = vld [vmem:[%s182 + $0xd4] sm:$0xf]
        %v4474 = vld [vmem:[#allocation2] sm:$0xff]
        %v4475 = vld [vmem:[#allocation2 + $0x8] sm:$0xff]
        %v4476 = vld [vmem:[#allocation2 + $0x10] sm:$0xff]
        %v4477 = vld [vmem:[#allocation2 + $0x18] sm:$0xff]
        %v4478 = vld [vmem:[#allocation2 + $0x20] sm:$0xff]
        %v4479 = vld [vmem:[#allocation2 + $0x28] sm:$0xff]
        %v4480 = vld [vmem:[#allocation2 + $0x30] sm:$0xff]
        %v4481 = vld [vmem:[#allocation2 + $0x38] sm:$0xff]
        %v4482 = vld [vmem:[#allocation2 + $0x40] sm:$0xff]
        %v4483 = vld [vmem:[#allocation2 + $0x48] sm:$0xff]
        %v4484 = vld [vmem:[#allocation2 + $0x50] sm:$0xff]
        %v4485 = vld [vmem:[#allocation2 + $0x58] sm:$0xff]
        %v4486 = vld [vmem:[#allocation2 + $0x60] sm:$0xff]
        %v4487 = vld [vmem:[#allocation2 + $0x68] sm:$0xff]
        %v4488 = vld [vmem:[#allocation2 + $0x70] sm:$0xff]
        %v4489 = vld [vmem:[#allocation2 + $0x78] sm:$0xff]
        %v4490 = vld [vmem:[#allocation2 + $0x80] sm:$0xff]
        %v4491 = vld [vmem:[#allocation2 + $0x88] sm:$0xff]
        %v4492 = vld [vmem:[#allocation2 + $0x90] sm:$0xff]
        %v4493 = vld [vmem:[#allocation2 + $0x98] sm:$0xff]
        %v4494 = vld [vmem:[#allocation2 + $0xa0] sm:$0xff]
        %v4495 = vld [vmem:[#allocation2 + $0xa8] sm:$0xff]
        %v4496 = vld [vmem:[#allocation2 + $0xb0] sm:$0xff]
        %v4497 = vld [vmem:[#allocation2 + $0xb8] sm:$0xff]
        %v4498 = vld [vmem:[#allocation2 + $0xc0] sm:$0xff]
        %v4499 = vld [vmem:[#allocation2 + $0xc8] sm:$0xff]
        %v4500 = vld [vmem:[#allocation2 + $0xd0] sm:$0xff]
        %v4501 = vld [vmem:[#allocation2 + $0xd8] sm:$0xff]
        %v4502 = vld [vmem:[#allocation2 + $0xe0] sm:$0xff]
        %v4503 = vld [vmem:[#allocation2 + $0xe8] sm:$0xff]
        %v4504 = vld [vmem:[#allocation2 + $0xf0] sm:$0xff]
        %v4505 = vld [vmem:[#allocation2 + $0xf8] sm:$0xff]
        %v4506 = vld [vmem:[#allocation2 + $0x100] sm:$0xff]
        %v4507 = vld [vmem:[#allocation2 + $0x108] sm:$0xff]
        %v4508 = vld [vmem:[#allocation2 + $0x110] sm:$0xff]
        %v4509 = vld [vmem:[#allocation2 + $0x118] sm:$0xff]
        %v4510 = vld [vmem:[#allocation2 + $0x120] sm:$0xff]
        %v4511 = vld [vmem:[#allocation2 + $0x128] sm:$0xff]
        %v4512 = vld [vmem:[#allocation2 + $0x130] sm:$0xff]
        %v4513 = vld [vmem:[#allocation2 + $0x138] sm:$0xff]
        %v4514 = vld [vmem:[#allocation2 + $0x140] sm:$0xff]
        %v4515 = vld [vmem:[#allocation2 + $0x148] sm:$0xff]
        %v4516 = vld [vmem:[#allocation2 + $0x150] sm:$0xff]
        %v4517 = vld [vmem:[#allocation2 + $0x158] sm:$0xff]
        %v4518 = vld [vmem:[#allocation2 + $0x160] sm:$0xff]
        %v4519 = vld [vmem:[#allocation2 + $0x168] sm:$0xff]
        %v4520 = vld [vmem:[#allocation2 + $0x170] sm:$0xff]
        %v4521 = vld [vmem:[#allocation2 + $0x178] sm:$0xff]
        %s4522 = scalar_lea.vmem %s1, 24
        %v4523 = vld [vmem:[%s4522] sm:$0xf]
        %v4572 = vunpack.c.l.b16 %v4426
        %v4573 = vunpack.c.l.b16 %v4427
        %v4574 = vunpack.c.l.b16 %v4428
        %v4575 = vunpack.c.l.b16 %v4429
        %v4576 = vunpack.c.l.b16 %v4430
        %v4577 = vunpack.c.l.b16 %v4431
        %v4578 = vunpack.c.l.b16 %v4432
        %v4579 = vunpack.c.l.b16 %v4433
        %v4580 = vunpack.c.l.b16 %v4434
        %v4581 = vunpack.c.l.b16 %v4435
        %v4582 = vunpack.c.l.b16 %v4436
        %v4583 = vunpack.c.l.b16 %v4437
        %v4584 = vunpack.c.l.b16 %v4438
        %v4585 = vunpack.c.l.b16 %v4439
        %v4586 = vunpack.c.l.b16 %v4440
        %v4587 = vunpack.c.l.b16 %v4441
        %v4588 = vunpack.c.l.b16 %v4442
        %v4589 = vunpack.c.l.b16 %v4443
        %v4590 = vunpack.c.l.b16 %v4444
        %v4591 = vunpack.c.l.b16 %v4445
        %v4592 = vunpack.c.l.b16 %v4446
        %v4593 = vunpack.c.l.b16 %v4447
        %v4594 = vunpack.c.l.b16 %v4448
        %v4595 = vunpack.c.l.b16 %v4449
        %v4596 = vunpack.c.l.b16 %v4450
        %v4597 = vunpack.c.l.b16 %v4451
        %v4598 = vunpack.c.l.b16 %v4452
        %v4599 = vunpack.c.l.b16 %v4453
        %v4600 = vunpack.c.l.b16 %v4454
        %v4601 = vunpack.c.l.b16 %v4455
        %v4602 = vunpack.c.l.b16 %v4456
        %v4603 = vunpack.c.l.b16 %v4457
        %v4604 = vunpack.c.l.b16 %v4458
        %v4605 = vunpack.c.l.b16 %v4459
        %v4606 = vunpack.c.l.b16 %v4460
        %v4607 = vunpack.c.l.b16 %v4461
        %v4608 = vunpack.c.l.b16 %v4462
        %v4609 = vunpack.c.l.b16 %v4463
        %v4610 = vunpack.c.l.b16 %v4464
        %v4611 = vunpack.c.l.b16 %v4465
        %v4612 = vunpack.c.l.b16 %v4466
        %v4613 = vunpack.c.l.b16 %v4467
        %v4614 = vunpack.c.l.b16 %v4468
        %v4615 = vunpack.c.l.b16 %v4469
        %v4616 = vunpack.c.l.b16 %v4470
        %v4617 = vunpack.c.l.b16 %v4471
        %v4618 = vunpack.c.l.b16 %v4472
        %v4619 = vunpack.c.l.b16 %v4473
        %v4620 = vpack.c.b16 %v4573, %v4572
        %v4621 = vpack.c.b16 %v4575, %v4574
        %v4622 = vpack.c.b16 %v4577, %v4576
        %v4623 = vpack.c.b16 %v4579, %v4578
        %v4624 = vpack.c.b16 %v4581, %v4580
        %v4625 = vpack.c.b16 %v4583, %v4582
        %v4626 = vpack.c.b16 %v4585, %v4584
        %v4627 = vpack.c.b16 %v4587, %v4586
        %v4628 = vpack.c.b16 %v4589, %v4588
        %v4629 = vpack.c.b16 %v4591, %v4590
        %v4630 = vpack.c.b16 %v4593, %v4592
        %v4631 = vpack.c.b16 %v4595, %v4594
        %v4632 = vpack.c.b16 %v4597, %v4596
        %v4633 = vpack.c.b16 %v4599, %v4598
        %v4634 = vpack.c.b16 %v4601, %v4600
        %v4635 = vpack.c.b16 %v4603, %v4602
        %v4636 = vpack.c.b16 %v4605, %v4604
        %v4637 = vpack.c.b16 %v4607, %v4606
        %v4638 = vpack.c.b16 %v4609, %v4608
        %v4639 = vpack.c.b16 %v4611, %v4610
        %v4640 = vpack.c.b16 %v4613, %v4612
        %v4641 = vpack.c.b16 %v4615, %v4614
        %v4642 = vpack.c.b16 %v4617, %v4616
        %v4643 = vpack.c.b16 %v4619, %v4618
        %v4645 = vsel %vm450, %v4620, 0
        %v4648 = vsel %vm450, %v4621, 0
        %v4651 = vsel %vm450, %v4622, 0
        %v4654 = vsel %vm450, %v4623, 0
        %v4657 = vsel %vm450, %v4624, 0
        %v4660 = vsel %vm450, %v4625, 0
        %v4663 = vsel %vm450, %v4626, 0
        %v4666 = vsel %vm450, %v4627, 0
        %v4669 = vsel %vm450, %v4628, 0
        %v4672 = vsel %vm450, %v4629, 0
        %v4675 = vsel %vm450, %v4630, 0
        %v4678 = vsel %vm450, %v4631, 0
        %v4681 = vsel %vm450, %v4632, 0
        %v4684 = vsel %vm450, %v4633, 0
        %v4687 = vsel %vm450, %v4634, 0
        %v4690 = vsel %vm450, %v4635, 0
        %v4693 = vsel %vm450, %v4636, 0
        %v4696 = vsel %vm450, %v4637, 0
        %v4699 = vsel %vm450, %v4638, 0
        %v4702 = vsel %vm450, %v4639, 0
        %v4705 = vsel %vm450, %v4640, 0
        %v4708 = vsel %vm450, %v4641, 0
        %v4711 = vsel %vm450, %v4642, 0
        %v4714 = vsel %vm450, %v4643, 0
        %v4717 = vsel %vm523, %v4523, 0
        %4719 = vmatprep.subr.bf16.mxu0 0
        %4720 = vmatpush1.bf16.msra.mxu0 %v4717
        %4721 = vmatprep.subr.bf16.mxu0 0
        %4722 = vmatpush1.bf16.msra.mxu0 0
        %4723 = vmatprep.subr.bf16.mxu0 0
        %4724 = vmatpush1.bf16.msra.mxu0 0
        %4725 = vmatprep.subr.bf16.mxu0 0
        %4726 = vmatpush1.bf16.msra.mxu0 0
        %4727 = vmatprep.subr.bf16.mxu0 0
        %4728 = vmatpush1.bf16.msra.mxu0 0
        %4729 = vmatprep.subr.bf16.mxu0 0
        %4730 = vmatpush1.bf16.msra.mxu0 0
        %4731 = vmatprep.subr.bf16.mxu0 0
        %4732 = vmatpush1.bf16.msra.mxu0 0
        %4733 = vmatprep.subr.bf16.mxu0 0
        %4734 = vmatpush1.bf16.msra.mxu0 0
        %4735 = vmatprep.subr.bf16.mxu0 0
        %4736 = vmatpush1.bf16.msra.mxu0 0
        %4737 = vmatprep.subr.bf16.mxu0 0
        %4738 = vmatpush1.bf16.msra.mxu0 0
        %4739 = vmatprep.subr.bf16.mxu0 0
        %4740 = vmatpush1.bf16.msra.mxu0 0
        %4741 = vmatprep.subr.bf16.mxu0 0
        %4742 = vmatpush1.bf16.msra.mxu0 0
        %4743 = vmatprep.subr.bf16.mxu0 0
        %4744 = vmatpush1.bf16.msra.mxu0 0
        %4745 = vmatprep.subr.bf16.mxu0 0
        %4746 = vmatpush1.bf16.msra.mxu0 0
        %4747 = vmatprep.subr.bf16.mxu0 0
        %4748 = vmatpush1.bf16.msra.mxu0 0
        %4749 = vmatprep.subr.bf16.mxu0 0
        %4750 = vmatpush1.bf16.msra.mxu0 0
        %4751 = vmatprep.mubr.bf16.mxu0 0
        %4752 = vmatmul.mubr.bf16.gmra.mrb[0].mxu0 %v4645
        %v4753 = vpop.f32.mrb[0].mxu0
        %v4754 = vadd.f32 0.0, %v4753
        %v4755 = vpop.f32.mrb[0].mxu0
        %v4756 = vpop.f32.mrb[0].mxu0
        %v4757 = vadd.f32 0.0, %v4756
        %v4758 = vpop.f32.mrb[0].mxu0
        %4759 = vmatprep.mubr.bf16.mxu0 0
        %4760 = vmatmul.mubr.bf16.gmra.mrb[0].mxu0 %v4648
        %v4761 = vpop.f32.mrb[0].mxu0
        %v4762 = vadd.f32 0.0, %v4761
        %v4763 = vpop.f32.mrb[0].mxu0
        %v4764 = vpop.f32.mrb[0].mxu0
        %v4765 = vadd.f32 0.0, %v4764
        %v4766 = vpop.f32.mrb[0].mxu0
        %4767 = vmatprep.mubr.bf16.mxu0 0
        %4768 = vmatmul.mubr.bf16.gmra.mrb[0].mxu0 %v4651
        %v4769 = vpop.f32.mrb[0].mxu0
        %v4770 = vadd.f32 0.0, %v4769
        %v4771 = vpop.f32.mrb[0].mxu0
        %v4772 = vpop.f32.mrb[0].mxu0
        %v4773 = vadd.f32 0.0, %v4772
        %v4774 = vpop.f32.mrb[0].mxu0
        %4775 = vmatprep.mubr.bf16.mxu0 0
        %4776 = vmatmul.mubr.bf16.gmra.mrb[0].mxu0 %v4654
        %v4777 = vpop.f32.mrb[0].mxu0
        %v4778 = vadd.f32 0.0, %v4777
        %v4779 = vpop.f32.mrb[0].mxu0
        %v4780 = vpop.f32.mrb[0].mxu0
        %v4781 = vadd.f32 0.0, %v4780
        %v4782 = vpop.f32.mrb[0].mxu0
        %4783 = vmatprep.mubr.bf16.mxu0 0
        %4784 = vmatmul.mubr.bf16.gmra.mrb[0].mxu0 %v4657
        %v4785 = vpop.f32.mrb[0].mxu0
        %v4786 = vadd.f32 0.0, %v4785
        %v4787 = vpop.f32.mrb[0].mxu0
        %v4788 = vpop.f32.mrb[0].mxu0
        %v4789 = vadd.f32 0.0, %v4788
        %v4790 = vpop.f32.mrb[0].mxu0
        %4791 = vmatprep.mubr.bf16.mxu0 0
        %4792 = vmatmul.mubr.bf16.gmra.mrb[0].mxu0 %v4660
        %v4793 = vpop.f32.mrb[0].mxu0
        %v4794 = vadd.f32 0.0, %v4793
        %v4795 = vpop.f32.mrb[0].mxu0
        %v4796 = vpop.f32.mrb[0].mxu0
        %v4797 = vadd.f32 0.0, %v4796
        %v4798 = vpop.f32.mrb[0].mxu0
        %4799 = vmatprep.mubr.bf16.mxu0 0
        %4800 = vmatmul.mubr.bf16.gmra.mrb[0].mxu0 %v4663
        %v4801 = vpop.f32.mrb[0].mxu0
        %v4802 = vadd.f32 0.0, %v4801
        %v4803 = vpop.f32.mrb[0].mxu0
        %v4804 = vpop.f32.mrb[0].mxu0
        %v4805 = vadd.f32 0.0, %v4804
        %v4806 = vpop.f32.mrb[0].mxu0
        %4807 = vmatprep.mubr.bf16.mxu0 0
        %4808 = vmatmul.mubr.bf16.gmra.mrb[0].mxu0 %v4666
        %v4809 = vpop.f32.mrb[0].mxu0
        %v4810 = vadd.f32 0.0, %v4809
        %v4811 = vpop.f32.mrb[0].mxu0
        %v4812 = vpop.f32.mrb[0].mxu0
        %v4813 = vadd.f32 0.0, %v4812
        %v4814 = vpop.f32.mrb[0].mxu0
        %4815 = vmatprep.mubr.bf16.mxu0 0
        %4816 = vmatmul.mubr.bf16.gmra.mrb[0].mxu0 %v4669
        %v4817 = vpop.f32.mrb[0].mxu0
        %v4818 = vadd.f32 0.0, %v4817
        %v4819 = vpop.f32.mrb[0].mxu0
        %v4820 = vpop.f32.mrb[0].mxu0
        %v4821 = vadd.f32 0.0, %v4820
        %v4822 = vpop.f32.mrb[0].mxu0
        %4823 = vmatprep.mubr.bf16.mxu0 0
        %4824 = vmatmul.mubr.bf16.gmra.mrb[0].mxu0 %v4672
        %v4825 = vpop.f32.mrb[0].mxu0
        %v4826 = vadd.f32 0.0, %v4825
        %v4827 = vpop.f32.mrb[0].mxu0
        %v4828 = vpop.f32.mrb[0].mxu0
        %v4829 = vadd.f32 0.0, %v4828
        %v4830 = vpop.f32.mrb[0].mxu0
        %4831 = vmatprep.mubr.bf16.mxu0 0
        %4832 = vmatmul.mubr.bf16.gmra.mrb[0].mxu0 %v4675
        %v4833 = vpop.f32.mrb[0].mxu0
        %v4834 = vadd.f32 0.0, %v4833
        %v4835 = vpop.f32.mrb[0].mxu0
        %v4836 = vpop.f32.mrb[0].mxu0
        %v4837 = vadd.f32 0.0, %v4836
        %v4838 = vpop.f32.mrb[0].mxu0
        %4839 = vmatprep.mubr.bf16.mxu0 0
        %4840 = vmatmul.mubr.bf16.gmra.mrb[0].mxu0 %v4678
        %v4841 = vpop.f32.mrb[0].mxu0
        %v4842 = vadd.f32 0.0, %v4841
        %v4843 = vpop.f32.mrb[0].mxu0
        %v4844 = vpop.f32.mrb[0].mxu0
        %v4845 = vadd.f32 0.0, %v4844
        %v4846 = vpop.f32.mrb[0].mxu0
        %4847 = vmatprep.mubr.bf16.mxu0 0
        %4848 = vmatmul.mubr.bf16.gmra.mrb[0].mxu0 %v4681
        %v4849 = vpop.f32.mrb[0].mxu0
        %v4850 = vadd.f32 0.0, %v4849
        %v4851 = vpop.f32.mrb[0].mxu0
        %v4852 = vpop.f32.mrb[0].mxu0
        %v4853 = vadd.f32 0.0, %v4852
        %v4854 = vpop.f32.mrb[0].mxu0
        %4855 = vmatprep.mubr.bf16.mxu0 0
        %4856 = vmatmul.mubr.bf16.gmra.mrb[0].mxu0 %v4684
        %v4857 = vpop.f32.mrb[0].mxu0
        %v4858 = vadd.f32 0.0, %v4857
        %v4859 = vpop.f32.mrb[0].mxu0
        %v4860 = vpop.f32.mrb[0].mxu0
        %v4861 = vadd.f32 0.0, %v4860
        %v4862 = vpop.f32.mrb[0].mxu0
        %4863 = vmatprep.mubr.bf16.mxu0 0
        %4864 = vmatmul.mubr.bf16.gmra.mrb[0].mxu0 %v4687
        %v4865 = vpop.f32.mrb[0].mxu0
        %v4866 = vadd.f32 0.0, %v4865
        %v4867 = vpop.f32.mrb[0].mxu0
        %v4868 = vpop.f32.mrb[0].mxu0
        %v4869 = vadd.f32 0.0, %v4868
        %v4870 = vpop.f32.mrb[0].mxu0
        %4871 = vmatprep.mubr.bf16.mxu0 0
        %4872 = vmatmul.mubr.bf16.gmra.mrb[0].mxu0 %v4690
        %v4873 = vpop.f32.mrb[0].mxu0
        %v4874 = vadd.f32 0.0, %v4873
        %v4875 = vpop.f32.mrb[0].mxu0
        %v4876 = vpop.f32.mrb[0].mxu0
        %v4877 = vadd.f32 0.0, %v4876
        %v4878 = vpop.f32.mrb[0].mxu0
        %4879 = vmatprep.mubr.bf16.mxu0 0
        %4880 = vmatmul.mubr.bf16.gmra.mrb[0].mxu0 %v4693
        %v4881 = vpop.f32.mrb[0].mxu0
        %v4882 = vadd.f32 0.0, %v4881
        %v4883 = vpop.f32.mrb[0].mxu0
        %v4884 = vpop.f32.mrb[0].mxu0
        %v4885 = vadd.f32 0.0, %v4884
        %v4886 = vpop.f32.mrb[0].mxu0
        %4887 = vmatprep.mubr.bf16.mxu0 0
        %4888 = vmatmul.mubr.bf16.gmra.mrb[0].mxu0 %v4696
        %v4889 = vpop.f32.mrb[0].mxu0
        %v4890 = vadd.f32 0.0, %v4889
        %v4891 = vpop.f32.mrb[0].mxu0
        %v4892 = vpop.f32.mrb[0].mxu0
        %v4893 = vadd.f32 0.0, %v4892
        %v4894 = vpop.f32.mrb[0].mxu0
        %4895 = vmatprep.mubr.bf16.mxu0 0
        %4896 = vmatmul.mubr.bf16.gmra.mrb[0].mxu0 %v4699
        %v4897 = vpop.f32.mrb[0].mxu0
        %v4898 = vadd.f32 0.0, %v4897
        %v4899 = vpop.f32.mrb[0].mxu0
        %v4900 = vpop.f32.mrb[0].mxu0
        %v4901 = vadd.f32 0.0, %v4900
        %v4902 = vpop.f32.mrb[0].mxu0
        %4903 = vmatprep.mubr.bf16.mxu0 0
        %4904 = vmatmul.mubr.bf16.gmra.mrb[0].mxu0 %v4702
        %v4905 = vpop.f32.mrb[0].mxu0
        %v4906 = vadd.f32 0.0, %v4905
        %v4907 = vpop.f32.mrb[0].mxu0
        %v4908 = vpop.f32.mrb[0].mxu0
        %v4909 = vadd.f32 0.0, %v4908
        %v4910 = vpop.f32.mrb[0].mxu0
        %4911 = vmatprep.mubr.bf16.mxu0 0
        %4912 = vmatmul.mubr.bf16.gmra.mrb[0].mxu0 %v4705
        %v4913 = vpop.f32.mrb[0].mxu0
        %v4914 = vadd.f32 0.0, %v4913
        %v4915 = vpop.f32.mrb[0].mxu0
        %v4916 = vpop.f32.mrb[0].mxu0
        %v4917 = vadd.f32 0.0, %v4916
        %v4918 = vpop.f32.mrb[0].mxu0
        %4919 = vmatprep.mubr.bf16.mxu0 0
        %4920 = vmatmul.mubr.bf16.gmra.mrb[0].mxu0 %v4708
        %v4921 = vpop.f32.mrb[0].mxu0
        %v4922 = vadd.f32 0.0, %v4921
        %v4923 = vpop.f32.mrb[0].mxu0
        %v4924 = vpop.f32.mrb[0].mxu0
        %v4925 = vadd.f32 0.0, %v4924
        %v4926 = vpop.f32.mrb[0].mxu0
        %4927 = vmatprep.mubr.bf16.mxu0 0
        %4928 = vmatmul.mubr.bf16.gmra.mrb[0].mxu0 %v4711
        %v4929 = vpop.f32.mrb[0].mxu0
        %v4930 = vadd.f32 0.0, %v4929
        %v4931 = vpop.f32.mrb[0].mxu0
        %v4932 = vpop.f32.mrb[0].mxu0
        %v4933 = vadd.f32 0.0, %v4932
        %v4934 = vpop.f32.mrb[0].mxu0
        %4935 = vmatprep.mubr.bf16.mxu0 0
        %4936 = vmatmul.mubr.bf16.gmra.mrb[0].mxu0 %v4714
        %v4937 = vpop.f32.mrb[0].mxu0
        %v4938 = vadd.f32 0.0, %v4937
        %v4939 = vpop.f32.mrb[0].mxu0
        %v4940 = vpop.f32.mrb[0].mxu0
        %v4941 = vadd.f32 0.0, %v4940
        %v4942 = vpop.f32.mrb[0].mxu0
        %4943 = vdwg.mxu0
        %v4944 = vadd.f32 %v4474, %v4754
        %v4945 = vadd.f32 %v4475, %v4757
        %v4946 = vadd.f32 %v4476, %v4762
        %v4947 = vadd.f32 %v4477, %v4765
        %v4948 = vadd.f32 %v4478, %v4770
        %v4949 = vadd.f32 %v4479, %v4773
        %v4950 = vadd.f32 %v4480, %v4778
        %v4951 = vadd.f32 %v4481, %v4781
        %v4952 = vadd.f32 %v4482, %v4786
        %v4953 = vadd.f32 %v4483, %v4789
        %v4954 = vadd.f32 %v4484, %v4794
        %v4955 = vadd.f32 %v4485, %v4797
        %v4956 = vadd.f32 %v4486, %v4802
        %v4957 = vadd.f32 %v4487, %v4805
        %v4958 = vadd.f32 %v4488, %v4810
        %v4959 = vadd.f32 %v4489, %v4813
        %v4960 = vadd.f32 %v4490, %v4818
        %v4961 = vadd.f32 %v4491, %v4821
        %v4962 = vadd.f32 %v4492, %v4826
        %v4963 = vadd.f32 %v4493, %v4829
        %v4964 = vadd.f32 %v4494, %v4834
        %v4965 = vadd.f32 %v4495, %v4837
        %v4966 = vadd.f32 %v4496, %v4842
        %v4967 = vadd.f32 %v4497, %v4845
        %v4968 = vadd.f32 %v4498, %v4850
        %v4969 = vadd.f32 %v4499, %v4853
        %v4970 = vadd.f32 %v4500, %v4858
        %v4971 = vadd.f32 %v4501, %v4861
        %v4972 = vadd.f32 %v4502, %v4866
        %v4973 = vadd.f32 %v4503, %v4869
        %v4974 = vadd.f32 %v4504, %v4874
        %v4975 = vadd.f32 %v4505, %v4877
        %v4976 = vadd.f32 %v4506, %v4882
        %v4977 = vadd.f32 %v4507, %v4885
        %v4978 = vadd.f32 %v4508, %v4890
        %v4979 = vadd.f32 %v4509, %v4893
        %v4980 = vadd.f32 %v4510, %v4898
        %v4981 = vadd.f32 %v4511, %v4901
        %v4982 = vadd.f32 %v4512, %v4906
        %v4983 = vadd.f32 %v4513, %v4909
        %v4984 = vadd.f32 %v4514, %v4914
        %v4985 = vadd.f32 %v4515, %v4917
        %v4986 = vadd.f32 %v4516, %v4922
        %v4987 = vadd.f32 %v4517, %v4925
        %v4988 = vadd.f32 %v4518, %v4930
        %v4989 = vadd.f32 %v4519, %v4933
        %v4990 = vadd.f32 %v4520, %v4938
        %v4991 = vadd.f32 %v4521, %v4941
        %4992 = vst [vmem:[#allocation2] sm:$0xff] %v4944
        %4993 = vst [vmem:[#allocation2 + $0x8] sm:$0xff] %v4945
        %4994 = vst [vmem:[#allocation2 + $0x10] sm:$0xff] %v4946
        %4995 = vst [vmem:[#allocation2 + $0x18] sm:$0xff] %v4947
        %4996 = vst [vmem:[#allocation2 + $0x20] sm:$0xff] %v4948
        %4997 = vst [vmem:[#allocation2 + $0x28] sm:$0xff] %v4949
        %4998 = vst [vmem:[#allocation2 + $0x30] sm:$0xff] %v4950
        %4999 = vst [vmem:[#allocation2 + $0x38] sm:$0xff] %v4951
        %5000 = vst [vmem:[#allocation2 + $0x40] sm:$0xff] %v4952
        %5001 = vst [vmem:[#allocation2 + $0x48] sm:$0xff] %v4953
        %5002 = vst [vmem:[#allocation2 + $0x50] sm:$0xff] %v4954
        %5003 = vst [vmem:[#allocation2 + $0x58] sm:$0xff] %v4955
        %5004 = vst [vmem:[#allocation2 + $0x60] sm:$0xff] %v4956
        %5005 = vst [vmem:[#allocation2 + $0x68] sm:$0xff] %v4957
        %5006 = vst [vmem:[#allocation2 + $0x70] sm:$0xff] %v4958
        %5007 = vst [vmem:[#allocation2 + $0x78] sm:$0xff] %v4959
        %5008 = vst [vmem:[#allocation2 + $0x80] sm:$0xff] %v4960
        %5009 = vst [vmem:[#allocation2 + $0x88] sm:$0xff] %v4961
        %5010 = vst [vmem:[#allocation2 + $0x90] sm:$0xff] %v4962
        %5011 = vst [vmem:[#allocation2 + $0x98] sm:$0xff] %v4963
        %5012 = vst [vmem:[#allocation2 + $0xa0] sm:$0xff] %v4964
        %5013 = vst [vmem:[#allocation2 + $0xa8] sm:$0xff] %v4965
        %5014 = vst [vmem:[#allocation2 + $0xb0] sm:$0xff] %v4966
        %5015 = vst [vmem:[#allocation2 + $0xb8] sm:$0xff] %v4967
        %5016 = vst [vmem:[#allocation2 + $0xc0] sm:$0xff] %v4968
        %5017 = vst [vmem:[#allocation2 + $0xc8] sm:$0xff] %v4969
        %5018 = vst [vmem:[#allocation2 + $0xd0] sm:$0xff] %v4970
        %5019 = vst [vmem:[#allocation2 + $0xd8] sm:$0xff] %v4971
        %5020 = vst [vmem:[#allocation2 + $0xe0] sm:$0xff] %v4972
        %5021 = vst [vmem:[#allocation2 + $0xe8] sm:$0xff] %v4973
        %5022 = vst [vmem:[#allocation2 + $0xf0] sm:$0xff] %v4974
        %5023 = vst [vmem:[#allocation2 + $0xf8] sm:$0xff] %v4975
        %5024 = vst [vmem:[#allocation2 + $0x100] sm:$0xff] %v4976
        %5025 = vst [vmem:[#allocation2 + $0x108] sm:$0xff] %v4977
        %5026 = vst [vmem:[#allocation2 + $0x110] sm:$0xff] %v4978
        %5027 = vst [vmem:[#allocation2 + $0x118] sm:$0xff] %v4979
        %5028 = vst [vmem:[#allocation2 + $0x120] sm:$0xff] %v4980
        %5029 = vst [vmem:[#allocation2 + $0x128] sm:$0xff] %v4981
        %5030 = vst [vmem:[#allocation2 + $0x130] sm:$0xff] %v4982
        %5031 = vst [vmem:[#allocation2 + $0x138] sm:$0xff] %v4983
        %5032 = vst [vmem:[#allocation2 + $0x140] sm:$0xff] %v4984
        %5033 = vst [vmem:[#allocation2 + $0x148] sm:$0xff] %v4985
        %5034 = vst [vmem:[#allocation2 + $0x150] sm:$0xff] %v4986
        %5035 = vst [vmem:[#allocation2 + $0x158] sm:$0xff] %v4987
        %5036 = vst [vmem:[#allocation2 + $0x160] sm:$0xff] %v4988
        %5037 = vst [vmem:[#allocation2 + $0x168] sm:$0xff] %v4989
        %5038 = vst [vmem:[#allocation2 + $0x170] sm:$0xff] %v4990
        %5039 = vst [vmem:[#allocation2 + $0x178] sm:$0xff] %v4991
        %v5040 = vld [vmem:[%s182 + $0x18] sm:$0xf]
        %v5041 = vld [vmem:[%s182 + $0x1c] sm:$0xf]
        %v5042 = vld [vmem:[%s182 + $0x20] sm:$0xf]
        %v5043 = vld [vmem:[%s182 + $0x24] sm:$0xf]
        %v5044 = vld [vmem:[%s182 + $0x28] sm:$0xf]
        %v5045 = vld [vmem:[%s182 + $0x2c] sm:$0xf]
        %v5046 = vld [vmem:[%s182 + $0x30] sm:$0xf]
        %v5047 = vld [vmem:[%s182 + $0x34] sm:$0xf]
        %v5048 = vld [vmem:[%s182 + $0x38] sm:$0xf]
        %v5049 = vld [vmem:[%s182 + $0x3c] sm:$0xf]
        %v5050 = vld [vmem:[%s182 + $0x40] sm:$0xf]
        %v5051 = vld [vmem:[%s182 + $0x44] sm:$0xf]
        %v5052 = vld [vmem:[%s182 + $0x48] sm:$0xf]
        %v5053 = vld [vmem:[%s182 + $0x4c] sm:$0xf]
        %v5054 = vld [vmem:[%s182 + $0x50] sm:$0xf]
        %v5055 = vld [vmem:[%s182 + $0x54] sm:$0xf]
        %v5056 = vld [vmem:[%s182 + $0x58] sm:$0xf]
        %v5057 = vld [vmem:[%s182 + $0x5c] sm:$0xf]
        %v5058 = vld [vmem:[%s182 + $0x60] sm:$0xf]
        %v5059 = vld [vmem:[%s182 + $0x64] sm:$0xf]
        %v5060 = vld [vmem:[%s182 + $0x68] sm:$0xf]
        %v5061 = vld [vmem:[%s182 + $0x6c] sm:$0xf]
        %v5062 = vld [vmem:[%s182 + $0x70] sm:$0xf]
        %v5063 = vld [vmem:[%s182 + $0x74] sm:$0xf]
        %v5064 = vld [vmem:[%s182 + $0x78] sm:$0xf]
        %v5065 = vld [vmem:[%s182 + $0x7c] sm:$0xf]
        %v5066 = vld [vmem:[%s182 + $0x80] sm:$0xf]
        %v5067 = vld [vmem:[%s182 + $0x84] sm:$0xf]
        %v5068 = vld [vmem:[%s182 + $0x88] sm:$0xf]
        %v5069 = vld [vmem:[%s182 + $0x8c] sm:$0xf]
        %v5070 = vld [vmem:[%s182 + $0x90] sm:$0xf]
        %v5071 = vld [vmem:[%s182 + $0x94] sm:$0xf]
        %v5072 = vld [vmem:[%s182 + $0x98] sm:$0xf]
        %v5073 = vld [vmem:[%s182 + $0x9c] sm:$0xf]
        %v5074 = vld [vmem:[%s182 + $0xa0] sm:$0xf]
        %v5075 = vld [vmem:[%s182 + $0xa4] sm:$0xf]
        %v5076 = vld [vmem:[%s182 + $0xa8] sm:$0xf]
        %v5077 = vld [vmem:[%s182 + $0xac] sm:$0xf]
        %v5078 = vld [vmem:[%s182 + $0xb0] sm:$0xf]
        %v5079 = vld [vmem:[%s182 + $0xb4] sm:$0xf]
        %v5080 = vld [vmem:[%s182 + $0xb8] sm:$0xf]
        %v5081 = vld [vmem:[%s182 + $0xbc] sm:$0xf]
        %v5082 = vld [vmem:[%s182 + $0xc0] sm:$0xf]
        %v5083 = vld [vmem:[%s182 + $0xc4] sm:$0xf]
        %v5084 = vld [vmem:[%s182 + $0xc8] sm:$0xf]
        %v5085 = vld [vmem:[%s182 + $0xcc] sm:$0xf]
        %v5086 = vld [vmem:[%s182 + $0xd0] sm:$0xf]
        %v5087 = vld [vmem:[%s182 + $0xd4] sm:$0xf]
        %v5088 = vld [vmem:[%s182 + $0xd8] sm:$0x1]
        %v5089 = vld [vmem:[#allocation2] sm:$0xff]
        %v5090 = vld [vmem:[#allocation2 + $0x8] sm:$0xff]
        %v5091 = vld [vmem:[#allocation2 + $0x10] sm:$0xff]
        %v5092 = vld [vmem:[#allocation2 + $0x18] sm:$0xff]
        %v5093 = vld [vmem:[#allocation2 + $0x20] sm:$0xff]
        %v5094 = vld [vmem:[#allocation2 + $0x28] sm:$0xff]
        %v5095 = vld [vmem:[#allocation2 + $0x30] sm:$0xff]
        %v5096 = vld [vmem:[#allocation2 + $0x38] sm:$0xff]
        %v5097 = vld [vmem:[#allocation2 + $0x40] sm:$0xff]
        %v5098 = vld [vmem:[#allocation2 + $0x48] sm:$0xff]
        %v5099 = vld [vmem:[#allocation2 + $0x50] sm:$0xff]
        %v5100 = vld [vmem:[#allocation2 + $0x58] sm:$0xff]
        %v5101 = vld [vmem:[#allocation2 + $0x60] sm:$0xff]
        %v5102 = vld [vmem:[#allocation2 + $0x68] sm:$0xff]
        %v5103 = vld [vmem:[#allocation2 + $0x70] sm:$0xff]
        %v5104 = vld [vmem:[#allocation2 + $0x78] sm:$0xff]
        %v5105 = vld [vmem:[#allocation2 + $0x80] sm:$0xff]
        %v5106 = vld [vmem:[#allocation2 + $0x88] sm:$0xff]
        %v5107 = vld [vmem:[#allocation2 + $0x90] sm:$0xff]
        %v5108 = vld [vmem:[#allocation2 + $0x98] sm:$0xff]
        %v5109 = vld [vmem:[#allocation2 + $0xa0] sm:$0xff]
        %v5110 = vld [vmem:[#allocation2 + $0xa8] sm:$0xff]
        %v5111 = vld [vmem:[#allocation2 + $0xb0] sm:$0xff]
        %v5112 = vld [vmem:[#allocation2 + $0xb8] sm:$0xff]
        %v5113 = vld [vmem:[#allocation2 + $0xc0] sm:$0xff]
        %v5114 = vld [vmem:[#allocation2 + $0xc8] sm:$0xff]
        %v5115 = vld [vmem:[#allocation2 + $0xd0] sm:$0xff]
        %v5116 = vld [vmem:[#allocation2 + $0xd8] sm:$0xff]
        %v5117 = vld [vmem:[#allocation2 + $0xe0] sm:$0xff]
        %v5118 = vld [vmem:[#allocation2 + $0xe8] sm:$0xff]
        %v5119 = vld [vmem:[#allocation2 + $0xf0] sm:$0xff]
        %v5120 = vld [vmem:[#allocation2 + $0xf8] sm:$0xff]
        %v5121 = vld [vmem:[#allocation2 + $0x100] sm:$0xff]
        %v5122 = vld [vmem:[#allocation2 + $0x108] sm:$0xff]
        %v5123 = vld [vmem:[#allocation2 + $0x110] sm:$0xff]
        %v5124 = vld [vmem:[#allocation2 + $0x118] sm:$0xff]
        %v5125 = vld [vmem:[#allocation2 + $0x120] sm:$0xff]
        %v5126 = vld [vmem:[#allocation2 + $0x128] sm:$0xff]
        %v5127 = vld [vmem:[#allocation2 + $0x130] sm:$0xff]
        %v5128 = vld [vmem:[#allocation2 + $0x138] sm:$0xff]
        %v5129 = vld [vmem:[#allocation2 + $0x140] sm:$0xff]
        %v5130 = vld [vmem:[#allocation2 + $0x148] sm:$0xff]
        %v5131 = vld [vmem:[#allocation2 + $0x150] sm:$0xff]
        %v5132 = vld [vmem:[#allocation2 + $0x158] sm:$0xff]
        %v5133 = vld [vmem:[#allocation2 + $0x160] sm:$0xff]
        %v5134 = vld [vmem:[#allocation2 + $0x168] sm:$0xff]
        %v5135 = vld [vmem:[#allocation2 + $0x170] sm:$0xff]
        %v5136 = vld [vmem:[#allocation2 + $0x178] sm:$0xff]
        %s5137 = scalar_lea.vmem %s1, 28
        %v5138 = vld [vmem:[%s5137] sm:$0xf]
        %v5188 = vunpack.c.l.b16 %v5040
        %v5189 = vunpack.c.l.b16 %v5041
        %v5190 = vunpack.c.l.b16 %v5042
        %v5191 = vunpack.c.l.b16 %v5043
        %v5192 = vunpack.c.l.b16 %v5044
        %v5193 = vunpack.c.l.b16 %v5045
        %v5194 = vunpack.c.l.b16 %v5046
        %v5195 = vunpack.c.l.b16 %v5047
        %v5196 = vunpack.c.l.b16 %v5048
        %v5197 = vunpack.c.l.b16 %v5049
        %v5198 = vunpack.c.l.b16 %v5050
        %v5199 = vunpack.c.l.b16 %v5051
        %v5200 = vunpack.c.l.b16 %v5052
        %v5201 = vunpack.c.l.b16 %v5053
        %v5202 = vunpack.c.l.b16 %v5054
        %v5203 = vunpack.c.l.b16 %v5055
        %v5204 = vunpack.c.l.b16 %v5056
        %v5205 = vunpack.c.l.b16 %v5057
        %v5206 = vunpack.c.l.b16 %v5058
        %v5207 = vunpack.c.l.b16 %v5059
        %v5208 = vunpack.c.l.b16 %v5060
        %v5209 = vunpack.c.l.b16 %v5061
        %v5210 = vunpack.c.l.b16 %v5062
        %v5211 = vunpack.c.l.b16 %v5063
        %v5212 = vunpack.c.l.b16 %v5064
        %v5213 = vunpack.c.l.b16 %v5065
        %v5214 = vunpack.c.l.b16 %v5066
        %v5215 = vunpack.c.l.b16 %v5067
        %v5216 = vunpack.c.l.b16 %v5068
        %v5217 = vunpack.c.l.b16 %v5069
        %v5218 = vunpack.c.l.b16 %v5070
        %v5219 = vunpack.c.l.b16 %v5071
        %v5220 = vunpack.c.l.b16 %v5072
        %v5221 = vunpack.c.l.b16 %v5073
        %v5222 = vunpack.c.l.b16 %v5074
        %v5223 = vunpack.c.l.b16 %v5075
        %v5224 = vunpack.c.l.b16 %v5076
        %v5225 = vunpack.c.l.b16 %v5077
        %v5226 = vunpack.c.l.b16 %v5078
        %v5227 = vunpack.c.l.b16 %v5079
        %v5228 = vunpack.c.l.b16 %v5080
        %v5229 = vunpack.c.l.b16 %v5081
        %v5230 = vunpack.c.l.b16 %v5082
        %v5231 = vunpack.c.l.b16 %v5083
        %v5232 = vunpack.c.l.b16 %v5084
        %v5233 = vunpack.c.l.b16 %v5085
        %v5234 = vunpack.c.l.b16 %v5086
        %v5235 = vunpack.c.l.b16 %v5087
        %v5236 = vunpack.c.l.b16 %v5088
        %v5237 = vpack.c.b16 %v5189, %v5188
        %v5238 = vpack.c.b16 %v5191, %v5190
        %v5239 = vpack.c.b16 %v5193, %v5192
        %v5240 = vpack.c.b16 %v5195, %v5194
        %v5241 = vpack.c.b16 %v5197, %v5196
        %v5242 = vpack.c.b16 %v5199, %v5198
        %v5243 = vpack.c.b16 %v5201, %v5200
        %v5244 = vpack.c.b16 %v5203, %v5202
        %v5245 = vpack.c.b16 %v5205, %v5204
        %v5246 = vpack.c.b16 %v5207, %v5206
        %v5247 = vpack.c.b16 %v5209, %v5208
        %v5248 = vpack.c.b16 %v5211, %v5210
        %v5249 = vpack.c.b16 %v5213, %v5212
        %v5250 = vpack.c.b16 %v5215, %v5214
        %v5251 = vpack.c.b16 %v5217, %v5216
        %v5252 = vpack.c.b16 %v5219, %v5218
        %v5253 = vpack.c.b16 %v5221, %v5220
        %v5254 = vpack.c.b16 %v5223, %v5222
        %v5255 = vpack.c.b16 %v5225, %v5224
        %v5256 = vpack.c.b16 %v5227, %v5226
        %v5257 = vpack.c.b16 %v5229, %v5228
        %v5258 = vpack.c.b16 %v5231, %v5230
        %v5259 = vpack.c.b16 %v5233, %v5232
        %v5260 = vpack.c.b16 %v5235, %v5234
        %v5261 = vpack.c.b16 %v5236, %v5236
        %v5263 = vshrl.u32 %v5237, 16
        %v5265 = vshll.u32 %v5237, 16
        %v5267 = vrot.slane %v5265, 1
        %v5268 = vor.u32 %v5263, %v5267
        %v5270 = vshll.u32 %v5238, 16
        %v5272 = vrot.slane %v5270, 1
        %v5273 = vsel %vm1070, %v5268, %v5272
        %v5274 = vshrl.u32 %v5238, 16
        %v5276 = vor.u32 %v5274, %v5272
        %v5278 = vshll.u32 %v5239, 16
        %v5280 = vrot.slane %v5278, 1
        %v5281 = vsel %vm1070, %v5276, %v5280
        %v5282 = vshrl.u32 %v5239, 16
        %v5284 = vor.u32 %v5282, %v5280
        %v5286 = vshll.u32 %v5240, 16
        %v5288 = vrot.slane %v5286, 1
        %v5289 = vsel %vm1070, %v5284, %v5288
        %v5290 = vshrl.u32 %v5240, 16
        %v5292 = vor.u32 %v5290, %v5288
        %v5294 = vshll.u32 %v5241, 16
        %v5296 = vrot.slane %v5294, 1
        %v5297 = vsel %vm1070, %v5292, %v5296
        %v5298 = vshrl.u32 %v5241, 16
        %v5300 = vor.u32 %v5298, %v5296
        %v5302 = vshll.u32 %v5242, 16
        %v5304 = vrot.slane %v5302, 1
        %v5305 = vsel %vm1070, %v5300, %v5304
        %v5306 = vshrl.u32 %v5242, 16
        %v5308 = vor.u32 %v5306, %v5304
        %v5310 = vshll.u32 %v5243, 16
        %v5312 = vrot.slane %v5310, 1
        %v5313 = vsel %vm1070, %v5308, %v5312
        %v5314 = vshrl.u32 %v5243, 16
        %v5316 = vor.u32 %v5314, %v5312
        %v5318 = vshll.u32 %v5244, 16
        %v5320 = vrot.slane %v5318, 1
        %v5321 = vsel %vm1070, %v5316, %v5320
        %v5322 = vshrl.u32 %v5244, 16
        %v5324 = vor.u32 %v5322, %v5320
        %v5326 = vshll.u32 %v5245, 16
        %v5328 = vrot.slane %v5326, 1
        %v5329 = vsel %vm1070, %v5324, %v5328
        %v5330 = vshrl.u32 %v5245, 16
        %v5332 = vor.u32 %v5330, %v5328
        %v5334 = vshll.u32 %v5246, 16
        %v5336 = vrot.slane %v5334, 1
        %v5337 = vsel %vm1070, %v5332, %v5336
        %v5338 = vshrl.u32 %v5246, 16
        %v5340 = vor.u32 %v5338, %v5336
        %v5342 = vshll.u32 %v5247, 16
        %v5344 = vrot.slane %v5342, 1
        %v5345 = vsel %vm1070, %v5340, %v5344
        %v5346 = vshrl.u32 %v5247, 16
        %v5348 = vor.u32 %v5346, %v5344
        %v5350 = vshll.u32 %v5248, 16
        %v5352 = vrot.slane %v5350, 1
        %v5353 = vsel %vm1070, %v5348, %v5352
        %v5354 = vshrl.u32 %v5248, 16
        %v5356 = vor.u32 %v5354, %v5352
        %v5358 = vshll.u32 %v5249, 16
        %v5360 = vrot.slane %v5358, 1
        %v5361 = vsel %vm1070, %v5356, %v5360
        %v5362 = vshrl.u32 %v5249, 16
        %v5364 = vor.u32 %v5362, %v5360
        %v5366 = vshll.u32 %v5250, 16
        %v5368 = vrot.slane %v5366, 1
        %v5369 = vsel %vm1070, %v5364, %v5368
        %v5370 = vshrl.u32 %v5250, 16
        %v5372 = vor.u32 %v5370, %v5368
        %v5374 = vshll.u32 %v5251, 16
        %v5376 = vrot.slane %v5374, 1
        %v5377 = vsel %vm1070, %v5372, %v5376
        %v5378 = vshrl.u32 %v5251, 16
        %v5380 = vor.u32 %v5378, %v5376
        %v5382 = vshll.u32 %v5252, 16
        %v5384 = vrot.slane %v5382, 1
        %v5385 = vsel %vm1070, %v5380, %v5384
        %v5386 = vshrl.u32 %v5252, 16
        %v5388 = vor.u32 %v5386, %v5384
        %v5390 = vshll.u32 %v5253, 16
        %v5392 = vrot.slane %v5390, 1
        %v5393 = vsel %vm1070, %v5388, %v5392
        %v5394 = vshrl.u32 %v5253, 16
        %v5396 = vor.u32 %v5394, %v5392
        %v5398 = vshll.u32 %v5254, 16
        %v5400 = vrot.slane %v5398, 1
        %v5401 = vsel %vm1070, %v5396, %v5400
        %v5402 = vshrl.u32 %v5254, 16
        %v5404 = vor.u32 %v5402, %v5400
        %v5406 = vshll.u32 %v5255, 16
        %v5408 = vrot.slane %v5406, 1
        %v5409 = vsel %vm1070, %v5404, %v5408
        %v5410 = vshrl.u32 %v5255, 16
        %v5412 = vor.u32 %v5410, %v5408
        %v5414 = vshll.u32 %v5256, 16
        %v5416 = vrot.slane %v5414, 1
        %v5417 = vsel %vm1070, %v5412, %v5416
        %v5418 = vshrl.u32 %v5256, 16
        %v5420 = vor.u32 %v5418, %v5416
        %v5422 = vshll.u32 %v5257, 16
        %v5424 = vrot.slane %v5422, 1
        %v5425 = vsel %vm1070, %v5420, %v5424
        %v5426 = vshrl.u32 %v5257, 16
        %v5428 = vor.u32 %v5426, %v5424
        %v5430 = vshll.u32 %v5258, 16
        %v5432 = vrot.slane %v5430, 1
        %v5433 = vsel %vm1070, %v5428, %v5432
        %v5434 = vshrl.u32 %v5258, 16
        %v5436 = vor.u32 %v5434, %v5432
        %v5438 = vshll.u32 %v5259, 16
        %v5440 = vrot.slane %v5438, 1
        %v5441 = vsel %vm1070, %v5436, %v5440
        %v5442 = vshrl.u32 %v5259, 16
        %v5444 = vor.u32 %v5442, %v5440
        %v5446 = vshll.u32 %v5260, 16
        %v5448 = vrot.slane %v5446, 1
        %v5449 = vsel %vm1070, %v5444, %v5448
        %v5450 = vshrl.u32 %v5260, 16
        %v5452 = vor.u32 %v5450, %v5448
        %v5454 = vshll.u32 %v5261, 16
        %v5456 = vrot.slane %v5454, 1
        %v5457 = vsel %vm1070, %v5452, %v5456
        %v5459 = vsel %vm450, %v5273, 0
        %v5462 = vsel %vm450, %v5281, 0
        %v5465 = vsel %vm450, %v5289, 0
        %v5468 = vsel %vm450, %v5297, 0
        %v5471 = vsel %vm450, %v5305, 0
        %v5474 = vsel %vm450, %v5313, 0
        %v5477 = vsel %vm450, %v5321, 0
        %v5480 = vsel %vm450, %v5329, 0
        %v5483 = vsel %vm450, %v5337, 0
        %v5486 = vsel %vm450, %v5345, 0
        %v5489 = vsel %vm450, %v5353, 0
        %v5492 = vsel %vm450, %v5361, 0
        %v5495 = vsel %vm450, %v5369, 0
        %v5498 = vsel %vm450, %v5377, 0
        %v5501 = vsel %vm450, %v5385, 0
        %v5504 = vsel %vm450, %v5393, 0
        %v5507 = vsel %vm450, %v5401, 0
        %v5510 = vsel %vm450, %v5409, 0
        %v5513 = vsel %vm450, %v5417, 0
        %v5516 = vsel %vm450, %v5425, 0
        %v5519 = vsel %vm450, %v5433, 0
        %v5522 = vsel %vm450, %v5441, 0
        %v5525 = vsel %vm450, %v5449, 0
        %v5528 = vsel %vm450, %v5457, 0
        %v5531 = vsel %vm523, %v5138, 0
        %5533 = vmatprep.subr.bf16.mxu0 0
        %5534 = vmatpush1.bf16.msra.mxu0 %v5531
        %5535 = vmatprep.subr.bf16.mxu0 0
        %5536 = vmatpush1.bf16.msra.mxu0 0
        %5537 = vmatprep.subr.bf16.mxu0 0
        %5538 = vmatpush1.bf16.msra.mxu0 0
        %5539 = vmatprep.subr.bf16.mxu0 0
        %5540 = vmatpush1.bf16.msra.mxu0 0
        %5541 = vmatprep.subr.bf16.mxu0 0
        %5542 = vmatpush1.bf16.msra.mxu0 0
        %5543 = vmatprep.subr.bf16.mxu0 0
        %5544 = vmatpush1.bf16.msra.mxu0 0
        %5545 = vmatprep.subr.bf16.mxu0 0
        %5546 = vmatpush1.bf16.msra.mxu0 0
        %5547 = vmatprep.subr.bf16.mxu0 0
        %5548 = vmatpush1.bf16.msra.mxu0 0
        %5549 = vmatprep.subr.bf16.mxu0 0
        %5550 = vmatpush1.bf16.msra.mxu0 0
        %5551 = vmatprep.subr.bf16.mxu0 0
        %5552 = vmatpush1.bf16.msra.mxu0 0
        %5553 = vmatprep.subr.bf16.mxu0 0
        %5554 = vmatpush1.bf16.msra.mxu0 0
        %5555 = vmatprep.subr.bf16.mxu0 0
        %5556 = vmatpush1.bf16.msra.mxu0 0
        %5557 = vmatprep.subr.bf16.mxu0 0
        %5558 = vmatpush1.bf16.msra.mxu0 0
        %5559 = vmatprep.subr.bf16.mxu0 0
        %5560 = vmatpush1.bf16.msra.mxu0 0
        %5561 = vmatprep.subr.bf16.mxu0 0
        %5562 = vmatpush1.bf16.msra.mxu0 0
        %5563 = vmatprep.subr.bf16.mxu0 0
        %5564 = vmatpush1.bf16.msra.mxu0 0
        %5565 = vmatprep.mubr.bf16.mxu0 0
        %5566 = vmatmul.mubr.bf16.gmra.mrb[0].mxu0 %v5459
        %v5567 = vpop.f32.mrb[0].mxu0
        %v5568 = vadd.f32 0.0, %v5567
        %v5569 = vpop.f32.mrb[0].mxu0
        %v5570 = vpop.f32.mrb[0].mxu0
        %v5571 = vadd.f32 0.0, %v5570
        %v5572 = vpop.f32.mrb[0].mxu0
        %5573 = vmatprep.mubr.bf16.mxu0 0
        %5574 = vmatmul.mubr.bf16.gmra.mrb[0].mxu0 %v5462
        %v5575 = vpop.f32.mrb[0].mxu0
        %v5576 = vadd.f32 0.0, %v5575
        %v5577 = vpop.f32.mrb[0].mxu0
        %v5578 = vpop.f32.mrb[0].mxu0
        %v5579 = vadd.f32 0.0, %v5578
        %v5580 = vpop.f32.mrb[0].mxu0
        %5581 = vmatprep.mubr.bf16.mxu0 0
        %5582 = vmatmul.mubr.bf16.gmra.mrb[0].mxu0 %v5465
        %v5583 = vpop.f32.mrb[0].mxu0
        %v5584 = vadd.f32 0.0, %v5583
        %v5585 = vpop.f32.mrb[0].mxu0
        %v5586 = vpop.f32.mrb[0].mxu0
        %v5587 = vadd.f32 0.0, %v5586
        %v5588 = vpop.f32.mrb[0].mxu0
        %5589 = vmatprep.mubr.bf16.mxu0 0
        %5590 = vmatmul.mubr.bf16.gmra.mrb[0].mxu0 %v5468
        %v5591 = vpop.f32.mrb[0].mxu0
        %v5592 = vadd.f32 0.0, %v5591
        %v5593 = vpop.f32.mrb[0].mxu0
        %v5594 = vpop.f32.mrb[0].mxu0
        %v5595 = vadd.f32 0.0, %v5594
        %v5596 = vpop.f32.mrb[0].mxu0
        %5597 = vmatprep.mubr.bf16.mxu0 0
        %5598 = vmatmul.mubr.bf16.gmra.mrb[0].mxu0 %v5471
        %v5599 = vpop.f32.mrb[0].mxu0
        %v5600 = vadd.f32 0.0, %v5599
        %v5601 = vpop.f32.mrb[0].mxu0
        %v5602 = vpop.f32.mrb[0].mxu0
        %v5603 = vadd.f32 0.0, %v5602
        %v5604 = vpop.f32.mrb[0].mxu0
        %5605 = vmatprep.mubr.bf16.mxu0 0
        %5606 = vmatmul.mubr.bf16.gmra.mrb[0].mxu0 %v5474
        %v5607 = vpop.f32.mrb[0].mxu0
        %v5608 = vadd.f32 0.0, %v5607
        %v5609 = vpop.f32.mrb[0].mxu0
        %v5610 = vpop.f32.mrb[0].mxu0
        %v5611 = vadd.f32 0.0, %v5610
        %v5612 = vpop.f32.mrb[0].mxu0
        %5613 = vmatprep.mubr.bf16.mxu0 0
        %5614 = vmatmul.mubr.bf16.gmra.mrb[0].mxu0 %v5477
        %v5615 = vpop.f32.mrb[0].mxu0
        %v5616 = vadd.f32 0.0, %v5615
        %v5617 = vpop.f32.mrb[0].mxu0
        %v5618 = vpop.f32.mrb[0].mxu0
        %v5619 = vadd.f32 0.0, %v5618
        %v5620 = vpop.f32.mrb[0].mxu0
        %5621 = vmatprep.mubr.bf16.mxu0 0
        %5622 = vmatmul.mubr.bf16.gmra.mrb[0].mxu0 %v5480
        %v5623 = vpop.f32.mrb[0].mxu0
        %v5624 = vadd.f32 0.0, %v5623
        %v5625 = vpop.f32.mrb[0].mxu0
        %v5626 = vpop.f32.mrb[0].mxu0
        %v5627 = vadd.f32 0.0, %v5626
        %v5628 = vpop.f32.mrb[0].mxu0
        %5629 = vmatprep.mubr.bf16.mxu0 0
        %5630 = vmatmul.mubr.bf16.gmra.mrb[0].mxu0 %v5483
        %v5631 = vpop.f32.mrb[0].mxu0
        %v5632 = vadd.f32 0.0, %v5631
        %v5633 = vpop.f32.mrb[0].mxu0
        %v5634 = vpop.f32.mrb[0].mxu0
        %v5635 = vadd.f32 0.0, %v5634
        %v5636 = vpop.f32.mrb[0].mxu0
        %5637 = vmatprep.mubr.bf16.mxu0 0
        %5638 = vmatmul.mubr.bf16.gmra.mrb[0].mxu0 %v5486
        %v5639 = vpop.f32.mrb[0].mxu0
        %v5640 = vadd.f32 0.0, %v5639
        %v5641 = vpop.f32.mrb[0].mxu0
        %v5642 = vpop.f32.mrb[0].mxu0
        %v5643 = vadd.f32 0.0, %v5642
        %v5644 = vpop.f32.mrb[0].mxu0
        %5645 = vmatprep.mubr.bf16.mxu0 0
        %5646 = vmatmul.mubr.bf16.gmra.mrb[0].mxu0 %v5489
        %v5647 = vpop.f32.mrb[0].mxu0
        %v5648 = vadd.f32 0.0, %v5647
        %v5649 = vpop.f32.mrb[0].mxu0
        %v5650 = vpop.f32.mrb[0].mxu0
        %v5651 = vadd.f32 0.0, %v5650
        %v5652 = vpop.f32.mrb[0].mxu0
        %5653 = vmatprep.mubr.bf16.mxu0 0
        %5654 = vmatmul.mubr.bf16.gmra.mrb[0].mxu0 %v5492
        %v5655 = vpop.f32.mrb[0].mxu0
        %v5656 = vadd.f32 0.0, %v5655
        %v5657 = vpop.f32.mrb[0].mxu0
        %v5658 = vpop.f32.mrb[0].mxu0
        %v5659 = vadd.f32 0.0, %v5658
        %v5660 = vpop.f32.mrb[0].mxu0
        %5661 = vmatprep.mubr.bf16.mxu0 0
        %5662 = vmatmul.mubr.bf16.gmra.mrb[0].mxu0 %v5495
        %v5663 = vpop.f32.mrb[0].mxu0
        %v5664 = vadd.f32 0.0, %v5663
        %v5665 = vpop.f32.mrb[0].mxu0
        %v5666 = vpop.f32.mrb[0].mxu0
        %v5667 = vadd.f32 0.0, %v5666
        %v5668 = vpop.f32.mrb[0].mxu0
        %5669 = vmatprep.mubr.bf16.mxu0 0
        %5670 = vmatmul.mubr.bf16.gmra.mrb[0].mxu0 %v5498
        %v5671 = vpop.f32.mrb[0].mxu0
        %v5672 = vadd.f32 0.0, %v5671
        %v5673 = vpop.f32.mrb[0].mxu0
        %v5674 = vpop.f32.mrb[0].mxu0
        %v5675 = vadd.f32 0.0, %v5674
        %v5676 = vpop.f32.mrb[0].mxu0
        %5677 = vmatprep.mubr.bf16.mxu0 0
        %5678 = vmatmul.mubr.bf16.gmra.mrb[0].mxu0 %v5501
        %v5679 = vpop.f32.mrb[0].mxu0
        %v5680 = vadd.f32 0.0, %v5679
        %v5681 = vpop.f32.mrb[0].mxu0
        %v5682 = vpop.f32.mrb[0].mxu0
        %v5683 = vadd.f32 0.0, %v5682
        %v5684 = vpop.f32.mrb[0].mxu0
        %5685 = vmatprep.mubr.bf16.mxu0 0
        %5686 = vmatmul.mubr.bf16.gmra.mrb[0].mxu0 %v5504
        %v5687 = vpop.f32.mrb[0].mxu0
        %v5688 = vadd.f32 0.0, %v5687
        %v5689 = vpop.f32.mrb[0].mxu0
        %v5690 = vpop.f32.mrb[0].mxu0
        %v5691 = vadd.f32 0.0, %v5690
        %v5692 = vpop.f32.mrb[0].mxu0
        %5693 = vmatprep.mubr.bf16.mxu0 0
        %5694 = vmatmul.mubr.bf16.gmra.mrb[0].mxu0 %v5507
        %v5695 = vpop.f32.mrb[0].mxu0
        %v5696 = vadd.f32 0.0, %v5695
        %v5697 = vpop.f32.mrb[0].mxu0
        %v5698 = vpop.f32.mrb[0].mxu0
        %v5699 = vadd.f32 0.0, %v5698
        %v5700 = vpop.f32.mrb[0].mxu0
        %5701 = vmatprep.mubr.bf16.mxu0 0
        %5702 = vmatmul.mubr.bf16.gmra.mrb[0].mxu0 %v5510
        %v5703 = vpop.f32.mrb[0].mxu0
        %v5704 = vadd.f32 0.0, %v5703
        %v5705 = vpop.f32.mrb[0].mxu0
        %v5706 = vpop.f32.mrb[0].mxu0
        %v5707 = vadd.f32 0.0, %v5706
        %v5708 = vpop.f32.mrb[0].mxu0
        %5709 = vmatprep.mubr.bf16.mxu0 0
        %5710 = vmatmul.mubr.bf16.gmra.mrb[0].mxu0 %v5513
        %v5711 = vpop.f32.mrb[0].mxu0
        %v5712 = vadd.f32 0.0, %v5711
        %v5713 = vpop.f32.mrb[0].mxu0
        %v5714 = vpop.f32.mrb[0].mxu0
        %v5715 = vadd.f32 0.0, %v5714
        %v5716 = vpop.f32.mrb[0].mxu0
        %5717 = vmatprep.mubr.bf16.mxu0 0
        %5718 = vmatmul.mubr.bf16.gmra.mrb[0].mxu0 %v5516
        %v5719 = vpop.f32.mrb[0].mxu0
        %v5720 = vadd.f32 0.0, %v5719
        %v5721 = vpop.f32.mrb[0].mxu0
        %v5722 = vpop.f32.mrb[0].mxu0
        %v5723 = vadd.f32 0.0, %v5722
        %v5724 = vpop.f32.mrb[0].mxu0
        %5725 = vmatprep.mubr.bf16.mxu0 0
        %5726 = vmatmul.mubr.bf16.gmra.mrb[0].mxu0 %v5519
        %v5727 = vpop.f32.mrb[0].mxu0
        %v5728 = vadd.f32 0.0, %v5727
        %v5729 = vpop.f32.mrb[0].mxu0
        %v5730 = vpop.f32.mrb[0].mxu0
        %v5731 = vadd.f32 0.0, %v5730
        %v5732 = vpop.f32.mrb[0].mxu0
        %5733 = vmatprep.mubr.bf16.mxu0 0
        %5734 = vmatmul.mubr.bf16.gmra.mrb[0].mxu0 %v5522
        %v5735 = vpop.f32.mrb[0].mxu0
        %v5736 = vadd.f32 0.0, %v5735
        %v5737 = vpop.f32.mrb[0].mxu0
        %v5738 = vpop.f32.mrb[0].mxu0
        %v5739 = vadd.f32 0.0, %v5738
        %v5740 = vpop.f32.mrb[0].mxu0
        %5741 = vmatprep.mubr.bf16.mxu0 0
        %5742 = vmatmul.mubr.bf16.gmra.mrb[0].mxu0 %v5525
        %v5743 = vpop.f32.mrb[0].mxu0
        %v5744 = vadd.f32 0.0, %v5743
        %v5745 = vpop.f32.mrb[0].mxu0
        %v5746 = vpop.f32.mrb[0].mxu0
        %v5747 = vadd.f32 0.0, %v5746
        %v5748 = vpop.f32.mrb[0].mxu0
        %5749 = vmatprep.mubr.bf16.mxu0 0
        %5750 = vmatmul.mubr.bf16.gmra.mrb[0].mxu0 %v5528
        %v5751 = vpop.f32.mrb[0].mxu0
        %v5752 = vadd.f32 0.0, %v5751
        %v5753 = vpop.f32.mrb[0].mxu0
        %v5754 = vpop.f32.mrb[0].mxu0
        %v5755 = vadd.f32 0.0, %v5754
        %v5756 = vpop.f32.mrb[0].mxu0
        %5757 = vdwg.mxu0
        %v5758 = vadd.f32 %v5089, %v5568
        %v5759 = vadd.f32 %v5090, %v5571
        %v5760 = vadd.f32 %v5091, %v5576
        %v5761 = vadd.f32 %v5092, %v5579
        %v5762 = vadd.f32 %v5093, %v5584
        %v5763 = vadd.f32 %v5094, %v5587
        %v5764 = vadd.f32 %v5095, %v5592
        %v5765 = vadd.f32 %v5096, %v5595
        %v5766 = vadd.f32 %v5097, %v5600
        %v5767 = vadd.f32 %v5098, %v5603
        %v5768 = vadd.f32 %v5099, %v5608
        %v5769 = vadd.f32 %v5100, %v5611
        %v5770 = vadd.f32 %v5101, %v5616
        %v5771 = vadd.f32 %v5102, %v5619
        %v5772 = vadd.f32 %v5103, %v5624
        %v5773 = vadd.f32 %v5104, %v5627
        %v5774 = vadd.f32 %v5105, %v5632
        %v5775 = vadd.f32 %v5106, %v5635
        %v5776 = vadd.f32 %v5107, %v5640
        %v5777 = vadd.f32 %v5108, %v5643
        %v5778 = vadd.f32 %v5109, %v5648
        %v5779 = vadd.f32 %v5110, %v5651
        %v5780 = vadd.f32 %v5111, %v5656
        %v5781 = vadd.f32 %v5112, %v5659
        %v5782 = vadd.f32 %v5113, %v5664
        %v5783 = vadd.f32 %v5114, %v5667
        %v5784 = vadd.f32 %v5115, %v5672
        %v5785 = vadd.f32 %v5116, %v5675
        %v5786 = vadd.f32 %v5117, %v5680
        %v5787 = vadd.f32 %v5118, %v5683
        %v5788 = vadd.f32 %v5119, %v5688
        %v5789 = vadd.f32 %v5120, %v5691
        %v5790 = vadd.f32 %v5121, %v5696
        %v5791 = vadd.f32 %v5122, %v5699
        %v5792 = vadd.f32 %v5123, %v5704
        %v5793 = vadd.f32 %v5124, %v5707
        %v5794 = vadd.f32 %v5125, %v5712
        %v5795 = vadd.f32 %v5126, %v5715
        %v5796 = vadd.f32 %v5127, %v5720
        %v5797 = vadd.f32 %v5128, %v5723
        %v5798 = vadd.f32 %v5129, %v5728
        %v5799 = vadd.f32 %v5130, %v5731
        %v5800 = vadd.f32 %v5131, %v5736
        %v5801 = vadd.f32 %v5132, %v5739
        %v5802 = vadd.f32 %v5133, %v5744
        %v5803 = vadd.f32 %v5134, %v5747
        %v5804 = vadd.f32 %v5135, %v5752
        %v5805 = vadd.f32 %v5136, %v5755
        %5806 = vst [vmem:[#allocation2] sm:$0xff] %v5758
        %5807 = vst [vmem:[#allocation2 + $0x8] sm:$0xff] %v5759
        %5808 = vst [vmem:[#allocation2 + $0x10] sm:$0xff] %v5760
        %5809 = vst [vmem:[#allocation2 + $0x18] sm:$0xff] %v5761
        %5810 = vst [vmem:[#allocation2 + $0x20] sm:$0xff] %v5762
        %5811 = vst [vmem:[#allocation2 + $0x28] sm:$0xff] %v5763
        %5812 = vst [vmem:[#allocation2 + $0x30] sm:$0xff] %v5764
        %5813 = vst [vmem:[#allocation2 + $0x38] sm:$0xff] %v5765
        %5814 = vst [vmem:[#allocation2 + $0x40] sm:$0xff] %v5766
        %5815 = vst [vmem:[#allocation2 + $0x48] sm:$0xff] %v5767
        %5816 = vst [vmem:[#allocation2 + $0x50] sm:$0xff] %v5768
        %5817 = vst [vmem:[#allocation2 + $0x58] sm:$0xff] %v5769
        %5818 = vst [vmem:[#allocation2 + $0x60] sm:$0xff] %v5770
        %5819 = vst [vmem:[#allocation2 + $0x68] sm:$0xff] %v5771
        %5820 = vst [vmem:[#allocation2 + $0x70] sm:$0xff] %v5772
        %5821 = vst [vmem:[#allocation2 + $0x78] sm:$0xff] %v5773
        %5822 = vst [vmem:[#allocation2 + $0x80] sm:$0xff] %v5774
        %5823 = vst [vmem:[#allocation2 + $0x88] sm:$0xff] %v5775
        %5824 = vst [vmem:[#allocation2 + $0x90] sm:$0xff] %v5776
        %5825 = vst [vmem:[#allocation2 + $0x98] sm:$0xff] %v5777
        %5826 = vst [vmem:[#allocation2 + $0xa0] sm:$0xff] %v5778
        %5827 = vst [vmem:[#allocation2 + $0xa8] sm:$0xff] %v5779
        %5828 = vst [vmem:[#allocation2 + $0xb0] sm:$0xff] %v5780
        %5829 = vst [vmem:[#allocation2 + $0xb8] sm:$0xff] %v5781
        %5830 = vst [vmem:[#allocation2 + $0xc0] sm:$0xff] %v5782
        %5831 = vst [vmem:[#allocation2 + $0xc8] sm:$0xff] %v5783
        %5832 = vst [vmem:[#allocation2 + $0xd0] sm:$0xff] %v5784
        %5833 = vst [vmem:[#allocation2 + $0xd8] sm:$0xff] %v5785
        %5834 = vst [vmem:[#allocation2 + $0xe0] sm:$0xff] %v5786
        %5835 = vst [vmem:[#allocation2 + $0xe8] sm:$0xff] %v5787
        %5836 = vst [vmem:[#allocation2 + $0xf0] sm:$0xff] %v5788
        %5837 = vst [vmem:[#allocation2 + $0xf8] sm:$0xff] %v5789
        %5838 = vst [vmem:[#allocation2 + $0x100] sm:$0xff] %v5790
        %5839 = vst [vmem:[#allocation2 + $0x108] sm:$0xff] %v5791
        %5840 = vst [vmem:[#allocation2 + $0x110] sm:$0xff] %v5792
        %5841 = vst [vmem:[#allocation2 + $0x118] sm:$0xff] %v5793
        %5842 = vst [vmem:[#allocation2 + $0x120] sm:$0xff] %v5794
        %5843 = vst [vmem:[#allocation2 + $0x128] sm:$0xff] %v5795
        %5844 = vst [vmem:[#allocation2 + $0x130] sm:$0xff] %v5796
        %5845 = vst [vmem:[#allocation2 + $0x138] sm:$0xff] %v5797
        %5846 = vst [vmem:[#allocation2 + $0x140] sm:$0xff] %v5798
        %5847 = vst [vmem:[#allocation2 + $0x148] sm:$0xff] %v5799
        %5848 = vst [vmem:[#allocation2 + $0x150] sm:$0xff] %v5800
        %5849 = vst [vmem:[#allocation2 + $0x158] sm:$0xff] %v5801
        %5850 = vst [vmem:[#allocation2 + $0x160] sm:$0xff] %v5802
        %5851 = vst [vmem:[#allocation2 + $0x168] sm:$0xff] %v5803
        %5852 = vst [vmem:[#allocation2 + $0x170] sm:$0xff] %v5804
        %5853 = vst [vmem:[#allocation2 + $0x178] sm:$0xff] %v5805
        %v5854 = vld [vmem:[%s182 + $0x18] sm:$0xe]
        %v5855 = vld [vmem:[%s182 + $0x1c] sm:$0xf]
        %v5856 = vld [vmem:[%s182 + $0x20] sm:$0xf]
        %v5857 = vld [vmem:[%s182 + $0x24] sm:$0xf]
        %v5858 = vld [vmem:[%s182 + $0x28] sm:$0xf]
        %v5859 = vld [vmem:[%s182 + $0x2c] sm:$0xf]
        %v5860 = vld [vmem:[%s182 + $0x30] sm:$0xf]
        %v5861 = vld [vmem:[%s182 + $0x34] sm:$0xf]
        %v5862 = vld [vmem:[%s182 + $0x38] sm:$0xf]
        %v5863 = vld [vmem:[%s182 + $0x3c] sm:$0xf]
        %v5864 = vld [vmem:[%s182 + $0x40] sm:$0xf]
        %v5865 = vld [vmem:[%s182 + $0x44] sm:$0xf]
        %v5866 = vld [vmem:[%s182 + $0x48] sm:$0xf]
        %v5867 = vld [vmem:[%s182 + $0x4c] sm:$0xf]
        %v5868 = vld [vmem:[%s182 + $0x50] sm:$0xf]
        %v5869 = vld [vmem:[%s182 + $0x54] sm:$0xf]
        %v5870 = vld [vmem:[%s182 + $0x58] sm:$0xf]
        %v5871 = vld [vmem:[%s182 + $0x5c] sm:$0xf]
        %v5872 = vld [vmem:[%s182 + $0x60] sm:$0xf]
        %v5873 = vld [vmem:[%s182 + $0x64] sm:$0xf]
        %v5874 = vld [vmem:[%s182 + $0x68] sm:$0xf]
        %v5875 = vld [vmem:[%s182 + $0x6c] sm:$0xf]
        %v5876 = vld [vmem:[%s182 + $0x70] sm:$0xf]
        %v5877 = vld [vmem:[%s182 + $0x74] sm:$0xf]
        %v5878 = vld [vmem:[%s182 + $0x78] sm:$0xf]
        %v5879 = vld [vmem:[%s182 + $0x7c] sm:$0xf]
        %v5880 = vld [vmem:[%s182 + $0x80] sm:$0xf]
        %v5881 = vld [vmem:[%s182 + $0x84] sm:$0xf]
        %v5882 = vld [vmem:[%s182 + $0x88] sm:$0xf]
        %v5883 = vld [vmem:[%s182 + $0x8c] sm:$0xf]
        %v5884 = vld [vmem:[%s182 + $0x90] sm:$0xf]
        %v5885 = vld [vmem:[%s182 + $0x94] sm:$0xf]
        %v5886 = vld [vmem:[%s182 + $0x98] sm:$0xf]
        %v5887 = vld [vmem:[%s182 + $0x9c] sm:$0xf]
        %v5888 = vld [vmem:[%s182 + $0xa0] sm:$0xf]
        %v5889 = vld [vmem:[%s182 + $0xa4] sm:$0xf]
        %v5890 = vld [vmem:[%s182 + $0xa8] sm:$0xf]
        %v5891 = vld [vmem:[%s182 + $0xac] sm:$0xf]
        %v5892 = vld [vmem:[%s182 + $0xb0] sm:$0xf]
        %v5893 = vld [vmem:[%s182 + $0xb4] sm:$0xf]
        %v5894 = vld [vmem:[%s182 + $0xb8] sm:$0xf]
        %v5895 = vld [vmem:[%s182 + $0xbc] sm:$0xf]
        %v5896 = vld [vmem:[%s182 + $0xc0] sm:$0xf]
        %v5897 = vld [vmem:[%s182 + $0xc4] sm:$0xf]
        %v5898 = vld [vmem:[%s182 + $0xc8] sm:$0xf]
        %v5899 = vld [vmem:[%s182 + $0xcc] sm:$0xf]
        %v5900 = vld [vmem:[%s182 + $0xd0] sm:$0xf]
        %v5901 = vld [vmem:[%s182 + $0xd4] sm:$0xf]
        %v5902 = vld [vmem:[%s182 + $0xd8] sm:$0x1]
        %v5903 = vld [vmem:[#allocation2] sm:$0xff]
        %v5904 = vld [vmem:[#allocation2 + $0x8] sm:$0xff]
        %v5905 = vld [vmem:[#allocation2 + $0x10] sm:$0xff]
        %v5906 = vld [vmem:[#allocation2 + $0x18] sm:$0xff]
        %v5907 = vld [vmem:[#allocation2 + $0x20] sm:$0xff]
        %v5908 = vld [vmem:[#allocation2 + $0x28] sm:$0xff]
        %v5909 = vld [vmem:[#allocation2 + $0x30] sm:$0xff]
        %v5910 = vld [vmem:[#allocation2 + $0x38] sm:$0xff]
        %v5911 = vld [vmem:[#allocation2 + $0x40] sm:$0xff]
        %v5912 = vld [vmem:[#allocation2 + $0x48] sm:$0xff]
        %v5913 = vld [vmem:[#allocation2 + $0x50] sm:$0xff]
        %v5914 = vld [vmem:[#allocation2 + $0x58] sm:$0xff]
        %v5915 = vld [vmem:[#allocation2 + $0x60] sm:$0xff]
        %v5916 = vld [vmem:[#allocation2 + $0x68] sm:$0xff]
        %v5917 = vld [vmem:[#allocation2 + $0x70] sm:$0xff]
        %v5918 = vld [vmem:[#allocation2 + $0x78] sm:$0xff]
        %v5919 = vld [vmem:[#allocation2 + $0x80] sm:$0xff]
        %v5920 = vld [vmem:[#allocation2 + $0x88] sm:$0xff]
        %v5921 = vld [vmem:[#allocation2 + $0x90] sm:$0xff]
        %v5922 = vld [vmem:[#allocation2 + $0x98] sm:$0xff]
        %v5923 = vld [vmem:[#allocation2 + $0xa0] sm:$0xff]
        %v5924 = vld [vmem:[#allocation2 + $0xa8] sm:$0xff]
        %v5925 = vld [vmem:[#allocation2 + $0xb0] sm:$0xff]
        %v5926 = vld [vmem:[#allocation2 + $0xb8] sm:$0xff]
        %v5927 = vld [vmem:[#allocation2 + $0xc0] sm:$0xff]
        %v5928 = vld [vmem:[#allocation2 + $0xc8] sm:$0xff]
        %v5929 = vld [vmem:[#allocation2 + $0xd0] sm:$0xff]
        %v5930 = vld [vmem:[#allocation2 + $0xd8] sm:$0xff]
        %v5931 = vld [vmem:[#allocation2 + $0xe0] sm:$0xff]
        %v5932 = vld [vmem:[#allocation2 + $0xe8] sm:$0xff]
        %v5933 = vld [vmem:[#allocation2 + $0xf0] sm:$0xff]
        %v5934 = vld [vmem:[#allocation2 + $0xf8] sm:$0xff]
        %v5935 = vld [vmem:[#allocation2 + $0x100] sm:$0xff]
        %v5936 = vld [vmem:[#allocation2 + $0x108] sm:$0xff]
        %v5937 = vld [vmem:[#allocation2 + $0x110] sm:$0xff]
        %v5938 = vld [vmem:[#allocation2 + $0x118] sm:$0xff]
        %v5939 = vld [vmem:[#allocation2 + $0x120] sm:$0xff]
        %v5940 = vld [vmem:[#allocation2 + $0x128] sm:$0xff]
        %v5941 = vld [vmem:[#allocation2 + $0x130] sm:$0xff]
        %v5942 = vld [vmem:[#allocation2 + $0x138] sm:$0xff]
        %v5943 = vld [vmem:[#allocation2 + $0x140] sm:$0xff]
        %v5944 = vld [vmem:[#allocation2 + $0x148] sm:$0xff]
        %v5945 = vld [vmem:[#allocation2 + $0x150] sm:$0xff]
        %v5946 = vld [vmem:[#allocation2 + $0x158] sm:$0xff]
        %v5947 = vld [vmem:[#allocation2 + $0x160] sm:$0xff]
        %v5948 = vld [vmem:[#allocation2 + $0x168] sm:$0xff]
        %v5949 = vld [vmem:[#allocation2 + $0x170] sm:$0xff]
        %v5950 = vld [vmem:[#allocation2 + $0x178] sm:$0xff]
        %s5951 = scalar_lea.vmem %s1, 32
        %v5952 = vld [vmem:[%s5951] sm:$0xf]
        %v6002 = vunpack.c.l.b16 %v5854
        %v6003 = vunpack.c.l.b16 %v5855
        %v6004 = vunpack.c.l.b16 %v5856
        %v6005 = vunpack.c.l.b16 %v5857
        %v6006 = vunpack.c.l.b16 %v5858
        %v6007 = vunpack.c.l.b16 %v5859
        %v6008 = vunpack.c.l.b16 %v5860
        %v6009 = vunpack.c.l.b16 %v5861
        %v6010 = vunpack.c.l.b16 %v5862
        %v6011 = vunpack.c.l.b16 %v5863
        %v6012 = vunpack.c.l.b16 %v5864
        %v6013 = vunpack.c.l.b16 %v5865
        %v6014 = vunpack.c.l.b16 %v5866
        %v6015 = vunpack.c.l.b16 %v5867
        %v6016 = vunpack.c.l.b16 %v5868
        %v6017 = vunpack.c.l.b16 %v5869
        %v6018 = vunpack.c.l.b16 %v5870
        %v6019 = vunpack.c.l.b16 %v5871
        %v6020 = vunpack.c.l.b16 %v5872
        %v6021 = vunpack.c.l.b16 %v5873
        %v6022 = vunpack.c.l.b16 %v5874
        %v6023 = vunpack.c.l.b16 %v5875
        %v6024 = vunpack.c.l.b16 %v5876
        %v6025 = vunpack.c.l.b16 %v5877
        %v6026 = vunpack.c.l.b16 %v5878
        %v6027 = vunpack.c.l.b16 %v5879
        %v6028 = vunpack.c.l.b16 %v5880
        %v6029 = vunpack.c.l.b16 %v5881
        %v6030 = vunpack.c.l.b16 %v5882
        %v6031 = vunpack.c.l.b16 %v5883
        %v6032 = vunpack.c.l.b16 %v5884
        %v6033 = vunpack.c.l.b16 %v5885
        %v6034 = vunpack.c.l.b16 %v5886
        %v6035 = vunpack.c.l.b16 %v5887
        %v6036 = vunpack.c.l.b16 %v5888
        %v6037 = vunpack.c.l.b16 %v5889
        %v6038 = vunpack.c.l.b16 %v5890
        %v6039 = vunpack.c.l.b16 %v5891
        %v6040 = vunpack.c.l.b16 %v5892
        %v6041 = vunpack.c.l.b16 %v5893
        %v6042 = vunpack.c.l.b16 %v5894
        %v6043 = vunpack.c.l.b16 %v5895
        %v6044 = vunpack.c.l.b16 %v5896
        %v6045 = vunpack.c.l.b16 %v5897
        %v6046 = vunpack.c.l.b16 %v5898
        %v6047 = vunpack.c.l.b16 %v5899
        %v6048 = vunpack.c.l.b16 %v5900
        %v6049 = vunpack.c.l.b16 %v5901
        %v6050 = vunpack.c.l.b16 %v5902
        %v6051 = vpack.c.b16 %v6003, %v6002
        %v6052 = vpack.c.b16 %v6005, %v6004
        %v6053 = vpack.c.b16 %v6007, %v6006
        %v6054 = vpack.c.b16 %v6009, %v6008
        %v6055 = vpack.c.b16 %v6011, %v6010
        %v6056 = vpack.c.b16 %v6013, %v6012
        %v6057 = vpack.c.b16 %v6015, %v6014
        %v6058 = vpack.c.b16 %v6017, %v6016
        %v6059 = vpack.c.b16 %v6019, %v6018
        %v6060 = vpack.c.b16 %v6021, %v6020
        %v6061 = vpack.c.b16 %v6023, %v6022
        %v6062 = vpack.c.b16 %v6025, %v6024
        %v6063 = vpack.c.b16 %v6027, %v6026
        %v6064 = vpack.c.b16 %v6029, %v6028
        %v6065 = vpack.c.b16 %v6031, %v6030
        %v6066 = vpack.c.b16 %v6033, %v6032
        %v6067 = vpack.c.b16 %v6035, %v6034
        %v6068 = vpack.c.b16 %v6037, %v6036
        %v6069 = vpack.c.b16 %v6039, %v6038
        %v6070 = vpack.c.b16 %v6041, %v6040
        %v6071 = vpack.c.b16 %v6043, %v6042
        %v6072 = vpack.c.b16 %v6045, %v6044
        %v6073 = vpack.c.b16 %v6047, %v6046
        %v6074 = vpack.c.b16 %v6049, %v6048
        %v6075 = vpack.c.b16 %v6050, %v6050
        %v6076 = vrot.slane %v6051, 1
        %v6077 = vrot.slane %v6052, 1
        %v6078 = vsel %vm1885, %v6076, %v6077
        %v6079 = vrot.slane %v6053, 1
        %v6080 = vsel %vm1885, %v6077, %v6079
        %v6081 = vrot.slane %v6054, 1
        %v6082 = vsel %vm1885, %v6079, %v6081
        %v6083 = vrot.slane %v6055, 1
        %v6084 = vsel %vm1885, %v6081, %v6083
        %v6085 = vrot.slane %v6056, 1
        %v6086 = vsel %vm1885, %v6083, %v6085
        %v6087 = vrot.slane %v6057, 1
        %v6088 = vsel %vm1885, %v6085, %v6087
        %v6089 = vrot.slane %v6058, 1
        %v6090 = vsel %vm1885, %v6087, %v6089
        %v6091 = vrot.slane %v6059, 1
        %v6092 = vsel %vm1885, %v6089, %v6091
        %v6093 = vrot.slane %v6060, 1
        %v6094 = vsel %vm1885, %v6091, %v6093
        %v6095 = vrot.slane %v6061, 1
        %v6096 = vsel %vm1885, %v6093, %v6095
        %v6097 = vrot.slane %v6062, 1
        %v6098 = vsel %vm1885, %v6095, %v6097
        %v6099 = vrot.slane %v6063, 1
        %v6100 = vsel %vm1885, %v6097, %v6099
        %v6101 = vrot.slane %v6064, 1
        %v6102 = vsel %vm1885, %v6099, %v6101
        %v6103 = vrot.slane %v6065, 1
        %v6104 = vsel %vm1885, %v6101, %v6103
        %v6105 = vrot.slane %v6066, 1
        %v6106 = vsel %vm1885, %v6103, %v6105
        %v6107 = vrot.slane %v6067, 1
        %v6108 = vsel %vm1885, %v6105, %v6107
        %v6109 = vrot.slane %v6068, 1
        %v6110 = vsel %vm1885, %v6107, %v6109
        %v6111 = vrot.slane %v6069, 1
        %v6112 = vsel %vm1885, %v6109, %v6111
        %v6113 = vrot.slane %v6070, 1
        %v6114 = vsel %vm1885, %v6111, %v6113
        %v6115 = vrot.slane %v6071, 1
        %v6116 = vsel %vm1885, %v6113, %v6115
        %v6117 = vrot.slane %v6072, 1
        %v6118 = vsel %vm1885, %v6115, %v6117
        %v6119 = vrot.slane %v6073, 1
        %v6120 = vsel %vm1885, %v6117, %v6119
        %v6121 = vrot.slane %v6074, 1
        %v6122 = vsel %vm1885, %v6119, %v6121
        %v6123 = vrot.slane %v6075, 1
        %v6124 = vsel %vm1885, %v6121, %v6123
        %v6126 = vsel %vm450, %v6078, 0
        %v6129 = vsel %vm450, %v6080, 0
        %v6132 = vsel %vm450, %v6082, 0
        %v6135 = vsel %vm450, %v6084, 0
        %v6138 = vsel %vm450, %v6086, 0
        %v6141 = vsel %vm450, %v6088, 0
        %v6144 = vsel %vm450, %v6090, 0
        %v6147 = vsel %vm450, %v6092, 0
        %v6150 = vsel %vm450, %v6094, 0
        %v6153 = vsel %vm450, %v6096, 0
        %v6156 = vsel %vm450, %v6098, 0
        %v6159 = vsel %vm450, %v6100, 0
        %v6162 = vsel %vm450, %v6102, 0
        %v6165 = vsel %vm450, %v6104, 0
        %v6168 = vsel %vm450, %v6106, 0
        %v6171 = vsel %vm450, %v6108, 0
        %v6174 = vsel %vm450, %v6110, 0
        %v6177 = vsel %vm450, %v6112, 0
        %v6180 = vsel %vm450, %v6114, 0
        %v6183 = vsel %vm450, %v6116, 0
        %v6186 = vsel %vm450, %v6118, 0
        %v6189 = vsel %vm450, %v6120, 0
        %v6192 = vsel %vm450, %v6122, 0
        %v6195 = vsel %vm450, %v6124, 0
        %v6198 = vsel %vm523, %v5952, 0
        %6200 = vmatprep.subr.bf16.mxu0 0
        %6201 = vmatpush1.bf16.msra.mxu0 %v6198
        %6202 = vmatprep.subr.bf16.mxu0 0
        %6203 = vmatpush1.bf16.msra.mxu0 0
        %6204 = vmatprep.subr.bf16.mxu0 0
        %6205 = vmatpush1.bf16.msra.mxu0 0
        %6206 = vmatprep.subr.bf16.mxu0 0
        %6207 = vmatpush1.bf16.msra.mxu0 0
        %6208 = vmatprep.subr.bf16.mxu0 0
        %6209 = vmatpush1.bf16.msra.mxu0 0
        %6210 = vmatprep.subr.bf16.mxu0 0
        %6211 = vmatpush1.bf16.msra.mxu0 0
        %6212 = vmatprep.subr.bf16.mxu0 0
        %6213 = vmatpush1.bf16.msra.mxu0 0
        %6214 = vmatprep.subr.bf16.mxu0 0
        %6215 = vmatpush1.bf16.msra.mxu0 0
        %6216 = vmatprep.subr.bf16.mxu0 0
        %6217 = vmatpush1.bf16.msra.mxu0 0
        %6218 = vmatprep.subr.bf16.mxu0 0
        %6219 = vmatpush1.bf16.msra.mxu0 0
        %6220 = vmatprep.subr.bf16.mxu0 0
        %6221 = vmatpush1.bf16.msra.mxu0 0
        %6222 = vmatprep.subr.bf16.mxu0 0
        %6223 = vmatpush1.bf16.msra.mxu0 0
        %6224 = vmatprep.subr.bf16.mxu0 0
        %6225 = vmatpush1.bf16.msra.mxu0 0
        %6226 = vmatprep.subr.bf16.mxu0 0
        %6227 = vmatpush1.bf16.msra.mxu0 0
        %6228 = vmatprep.subr.bf16.mxu0 0
        %6229 = vmatpush1.bf16.msra.mxu0 0
        %6230 = vmatprep.subr.bf16.mxu0 0
        %6231 = vmatpush1.bf16.msra.mxu0 0
        %6232 = vmatprep.mubr.bf16.mxu0 0
        %6233 = vmatmul.mubr.bf16.gmra.mrb[0].mxu0 %v6126
        %v6234 = vpop.f32.mrb[0].mxu0
        %v6235 = vadd.f32 0.0, %v6234
        %v6236 = vpop.f32.mrb[0].mxu0
        %v6237 = vpop.f32.mrb[0].mxu0
        %v6238 = vadd.f32 0.0, %v6237
        %v6239 = vpop.f32.mrb[0].mxu0
        %6240 = vmatprep.mubr.bf16.mxu0 0
        %6241 = vmatmul.mubr.bf16.gmra.mrb[0].mxu0 %v6129
        %v6242 = vpop.f32.mrb[0].mxu0
        %v6243 = vadd.f32 0.0, %v6242
        %v6244 = vpop.f32.mrb[0].mxu0
        %v6245 = vpop.f32.mrb[0].mxu0
        %v6246 = vadd.f32 0.0, %v6245
        %v6247 = vpop.f32.mrb[0].mxu0
        %6248 = vmatprep.mubr.bf16.mxu0 0
        %6249 = vmatmul.mubr.bf16.gmra.mrb[0].mxu0 %v6132
        %v6250 = vpop.f32.mrb[0].mxu0
        %v6251 = vadd.f32 0.0, %v6250
        %v6252 = vpop.f32.mrb[0].mxu0
        %v6253 = vpop.f32.mrb[0].mxu0
        %v6254 = vadd.f32 0.0, %v6253
        %v6255 = vpop.f32.mrb[0].mxu0
        %6256 = vmatprep.mubr.bf16.mxu0 0
        %6257 = vmatmul.mubr.bf16.gmra.mrb[0].mxu0 %v6135
        %v6258 = vpop.f32.mrb[0].mxu0
        %v6259 = vadd.f32 0.0, %v6258
        %v6260 = vpop.f32.mrb[0].mxu0
        %v6261 = vpop.f32.mrb[0].mxu0
        %v6262 = vadd.f32 0.0, %v6261
        %v6263 = vpop.f32.mrb[0].mxu0
        %6264 = vmatprep.mubr.bf16.mxu0 0
        %6265 = vmatmul.mubr.bf16.gmra.mrb[0].mxu0 %v6138
        %v6266 = vpop.f32.mrb[0].mxu0
        %v6267 = vadd.f32 0.0, %v6266
        %v6268 = vpop.f32.mrb[0].mxu0
        %v6269 = vpop.f32.mrb[0].mxu0
        %v6270 = vadd.f32 0.0, %v6269
        %v6271 = vpop.f32.mrb[0].mxu0
        %6272 = vmatprep.mubr.bf16.mxu0 0
        %6273 = vmatmul.mubr.bf16.gmra.mrb[0].mxu0 %v6141
        %v6274 = vpop.f32.mrb[0].mxu0
        %v6275 = vadd.f32 0.0, %v6274
        %v6276 = vpop.f32.mrb[0].mxu0
        %v6277 = vpop.f32.mrb[0].mxu0
        %v6278 = vadd.f32 0.0, %v6277
        %v6279 = vpop.f32.mrb[0].mxu0
        %6280 = vmatprep.mubr.bf16.mxu0 0
        %6281 = vmatmul.mubr.bf16.gmra.mrb[0].mxu0 %v6144
        %v6282 = vpop.f32.mrb[0].mxu0
        %v6283 = vadd.f32 0.0, %v6282
        %v6284 = vpop.f32.mrb[0].mxu0
        %v6285 = vpop.f32.mrb[0].mxu0
        %v6286 = vadd.f32 0.0, %v6285
        %v6287 = vpop.f32.mrb[0].mxu0
        %6288 = vmatprep.mubr.bf16.mxu0 0
        %6289 = vmatmul.mubr.bf16.gmra.mrb[0].mxu0 %v6147
        %v6290 = vpop.f32.mrb[0].mxu0
        %v6291 = vadd.f32 0.0, %v6290
        %v6292 = vpop.f32.mrb[0].mxu0
        %v6293 = vpop.f32.mrb[0].mxu0
        %v6294 = vadd.f32 0.0, %v6293
        %v6295 = vpop.f32.mrb[0].mxu0
        %6296 = vmatprep.mubr.bf16.mxu0 0
        %6297 = vmatmul.mubr.bf16.gmra.mrb[0].mxu0 %v6150
        %v6298 = vpop.f32.mrb[0].mxu0
        %v6299 = vadd.f32 0.0, %v6298
        %v6300 = vpop.f32.mrb[0].mxu0
        %v6301 = vpop.f32.mrb[0].mxu0
        %v6302 = vadd.f32 0.0, %v6301
        %v6303 = vpop.f32.mrb[0].mxu0
        %6304 = vmatprep.mubr.bf16.mxu0 0
        %6305 = vmatmul.mubr.bf16.gmra.mrb[0].mxu0 %v6153
        %v6306 = vpop.f32.mrb[0].mxu0
        %v6307 = vadd.f32 0.0, %v6306
        %v6308 = vpop.f32.mrb[0].mxu0
        %v6309 = vpop.f32.mrb[0].mxu0
        %v6310 = vadd.f32 0.0, %v6309
        %v6311 = vpop.f32.mrb[0].mxu0
        %6312 = vmatprep.mubr.bf16.mxu0 0
        %6313 = vmatmul.mubr.bf16.gmra.mrb[0].mxu0 %v6156
        %v6314 = vpop.f32.mrb[0].mxu0
        %v6315 = vadd.f32 0.0, %v6314
        %v6316 = vpop.f32.mrb[0].mxu0
        %v6317 = vpop.f32.mrb[0].mxu0
        %v6318 = vadd.f32 0.0, %v6317
        %v6319 = vpop.f32.mrb[0].mxu0
        %6320 = vmatprep.mubr.bf16.mxu0 0
        %6321 = vmatmul.mubr.bf16.gmra.mrb[0].mxu0 %v6159
        %v6322 = vpop.f32.mrb[0].mxu0
        %v6323 = vadd.f32 0.0, %v6322
        %v6324 = vpop.f32.mrb[0].mxu0
        %v6325 = vpop.f32.mrb[0].mxu0
        %v6326 = vadd.f32 0.0, %v6325
        %v6327 = vpop.f32.mrb[0].mxu0
        %6328 = vmatprep.mubr.bf16.mxu0 0
        %6329 = vmatmul.mubr.bf16.gmra.mrb[0].mxu0 %v6162
        %v6330 = vpop.f32.mrb[0].mxu0
        %v6331 = vadd.f32 0.0, %v6330
        %v6332 = vpop.f32.mrb[0].mxu0
        %v6333 = vpop.f32.mrb[0].mxu0
        %v6334 = vadd.f32 0.0, %v6333
        %v6335 = vpop.f32.mrb[0].mxu0
        %6336 = vmatprep.mubr.bf16.mxu0 0
        %6337 = vmatmul.mubr.bf16.gmra.mrb[0].mxu0 %v6165
        %v6338 = vpop.f32.mrb[0].mxu0
        %v6339 = vadd.f32 0.0, %v6338
        %v6340 = vpop.f32.mrb[0].mxu0
        %v6341 = vpop.f32.mrb[0].mxu0
        %v6342 = vadd.f32 0.0, %v6341
        %v6343 = vpop.f32.mrb[0].mxu0
        %6344 = vmatprep.mubr.bf16.mxu0 0
        %6345 = vmatmul.mubr.bf16.gmra.mrb[0].mxu0 %v6168
        %v6346 = vpop.f32.mrb[0].mxu0
        %v6347 = vadd.f32 0.0, %v6346
        %v6348 = vpop.f32.mrb[0].mxu0
        %v6349 = vpop.f32.mrb[0].mxu0
        %v6350 = vadd.f32 0.0, %v6349
        %v6351 = vpop.f32.mrb[0].mxu0
        %6352 = vmatprep.mubr.bf16.mxu0 0
        %6353 = vmatmul.mubr.bf16.gmra.mrb[0].mxu0 %v6171
        %v6354 = vpop.f32.mrb[0].mxu0
        %v6355 = vadd.f32 0.0, %v6354
        %v6356 = vpop.f32.mrb[0].mxu0
        %v6357 = vpop.f32.mrb[0].mxu0
        %v6358 = vadd.f32 0.0, %v6357
        %v6359 = vpop.f32.mrb[0].mxu0
        %6360 = vmatprep.mubr.bf16.mxu0 0
        %6361 = vmatmul.mubr.bf16.gmra.mrb[0].mxu0 %v6174
        %v6362 = vpop.f32.mrb[0].mxu0
        %v6363 = vadd.f32 0.0, %v6362
        %v6364 = vpop.f32.mrb[0].mxu0
        %v6365 = vpop.f32.mrb[0].mxu0
        %v6366 = vadd.f32 0.0, %v6365
        %v6367 = vpop.f32.mrb[0].mxu0
        %6368 = vmatprep.mubr.bf16.mxu0 0
        %6369 = vmatmul.mubr.bf16.gmra.mrb[0].mxu0 %v6177
        %v6370 = vpop.f32.mrb[0].mxu0
        %v6371 = vadd.f32 0.0, %v6370
        %v6372 = vpop.f32.mrb[0].mxu0
        %v6373 = vpop.f32.mrb[0].mxu0
        %v6374 = vadd.f32 0.0, %v6373
        %v6375 = vpop.f32.mrb[0].mxu0
        %6376 = vmatprep.mubr.bf16.mxu0 0
        %6377 = vmatmul.mubr.bf16.gmra.mrb[0].mxu0 %v6180
        %v6378 = vpop.f32.mrb[0].mxu0
        %v6379 = vadd.f32 0.0, %v6378
        %v6380 = vpop.f32.mrb[0].mxu0
        %v6381 = vpop.f32.mrb[0].mxu0
        %v6382 = vadd.f32 0.0, %v6381
        %v6383 = vpop.f32.mrb[0].mxu0
        %6384 = vmatprep.mubr.bf16.mxu0 0
        %6385 = vmatmul.mubr.bf16.gmra.mrb[0].mxu0 %v6183
        %v6386 = vpop.f32.mrb[0].mxu0
        %v6387 = vadd.f32 0.0, %v6386
        %v6388 = vpop.f32.mrb[0].mxu0
        %v6389 = vpop.f32.mrb[0].mxu0
        %v6390 = vadd.f32 0.0, %v6389
        %v6391 = vpop.f32.mrb[0].mxu0
        %6392 = vmatprep.mubr.bf16.mxu0 0
        %6393 = vmatmul.mubr.bf16.gmra.mrb[0].mxu0 %v6186
        %v6394 = vpop.f32.mrb[0].mxu0
        %v6395 = vadd.f32 0.0, %v6394
        %v6396 = vpop.f32.mrb[0].mxu0
        %v6397 = vpop.f32.mrb[0].mxu0
        %v6398 = vadd.f32 0.0, %v6397
        %v6399 = vpop.f32.mrb[0].mxu0
        %6400 = vmatprep.mubr.bf16.mxu0 0
        %6401 = vmatmul.mubr.bf16.gmra.mrb[0].mxu0 %v6189
        %v6402 = vpop.f32.mrb[0].mxu0
        %v6403 = vadd.f32 0.0, %v6402
        %v6404 = vpop.f32.mrb[0].mxu0
        %v6405 = vpop.f32.mrb[0].mxu0
        %v6406 = vadd.f32 0.0, %v6405
        %v6407 = vpop.f32.mrb[0].mxu0
        %6408 = vmatprep.mubr.bf16.mxu0 0
        %6409 = vmatmul.mubr.bf16.gmra.mrb[0].mxu0 %v6192
        %v6410 = vpop.f32.mrb[0].mxu0
        %v6411 = vadd.f32 0.0, %v6410
        %v6412 = vpop.f32.mrb[0].mxu0
        %v6413 = vpop.f32.mrb[0].mxu0
        %v6414 = vadd.f32 0.0, %v6413
        %v6415 = vpop.f32.mrb[0].mxu0
        %6416 = vmatprep.mubr.bf16.mxu0 0
        %6417 = vmatmul.mubr.bf16.gmra.mrb[0].mxu0 %v6195
        %v6418 = vpop.f32.mrb[0].mxu0
        %v6419 = vadd.f32 0.0, %v6418
        %v6420 = vpop.f32.mrb[0].mxu0
        %v6421 = vpop.f32.mrb[0].mxu0
        %v6422 = vadd.f32 0.0, %v6421
        %v6423 = vpop.f32.mrb[0].mxu0
        %6424 = vdwg.mxu0
        %v6425 = vadd.f32 %v5903, %v6235
        %v6426 = vadd.f32 %v5904, %v6238
        %v6427 = vadd.f32 %v5905, %v6243
        %v6428 = vadd.f32 %v5906, %v6246
        %v6429 = vadd.f32 %v5907, %v6251
        %v6430 = vadd.f32 %v5908, %v6254
        %v6431 = vadd.f32 %v5909, %v6259
        %v6432 = vadd.f32 %v5910, %v6262
        %v6433 = vadd.f32 %v5911, %v6267
        %v6434 = vadd.f32 %v5912, %v6270
        %v6435 = vadd.f32 %v5913, %v6275
        %v6436 = vadd.f32 %v5914, %v6278
        %v6437 = vadd.f32 %v5915, %v6283
        %v6438 = vadd.f32 %v5916, %v6286
        %v6439 = vadd.f32 %v5917, %v6291
        %v6440 = vadd.f32 %v5918, %v6294
        %v6441 = vadd.f32 %v5919, %v6299
        %v6442 = vadd.f32 %v5920, %v6302
        %v6443 = vadd.f32 %v5921, %v6307
        %v6444 = vadd.f32 %v5922, %v6310
        %v6445 = vadd.f32 %v5923, %v6315
        %v6446 = vadd.f32 %v5924, %v6318
        %v6447 = vadd.f32 %v5925, %v6323
        %v6448 = vadd.f32 %v5926, %v6326
        %v6449 = vadd.f32 %v5927, %v6331
        %v6450 = vadd.f32 %v5928, %v6334
        %v6451 = vadd.f32 %v5929, %v6339
        %v6452 = vadd.f32 %v5930, %v6342
        %v6453 = vadd.f32 %v5931, %v6347
        %v6454 = vadd.f32 %v5932, %v6350
        %v6455 = vadd.f32 %v5933, %v6355
        %v6456 = vadd.f32 %v5934, %v6358
        %v6457 = vadd.f32 %v5935, %v6363
        %v6458 = vadd.f32 %v5936, %v6366
        %v6459 = vadd.f32 %v5937, %v6371
        %v6460 = vadd.f32 %v5938, %v6374
        %v6461 = vadd.f32 %v5939, %v6379
        %v6462 = vadd.f32 %v5940, %v6382
        %v6463 = vadd.f32 %v5941, %v6387
        %v6464 = vadd.f32 %v5942, %v6390
        %v6465 = vadd.f32 %v5943, %v6395
        %v6466 = vadd.f32 %v5944, %v6398
        %v6467 = vadd.f32 %v5945, %v6403
        %v6468 = vadd.f32 %v5946, %v6406
        %v6469 = vadd.f32 %v5947, %v6411
        %v6470 = vadd.f32 %v5948, %v6414
        %v6471 = vadd.f32 %v5949, %v6419
        %v6472 = vadd.f32 %v5950, %v6422
        %6473 = vst [vmem:[#allocation2] sm:$0xff] %v6425
        %6474 = vst [vmem:[#allocation2 + $0x8] sm:$0xff] %v6426
        %6475 = vst [vmem:[#allocation2 + $0x10] sm:$0xff] %v6427
        %6476 = vst [vmem:[#allocation2 + $0x18] sm:$0xff] %v6428
        %6477 = vst [vmem:[#allocation2 + $0x20] sm:$0xff] %v6429
        %6478 = vst [vmem:[#allocation2 + $0x28] sm:$0xff] %v6430
        %6479 = vst [vmem:[#allocation2 + $0x30] sm:$0xff] %v6431
        %6480 = vst [vmem:[#allocation2 + $0x38] sm:$0xff] %v6432
        %6481 = vst [vmem:[#allocation2 + $0x40] sm:$0xff] %v6433
        %6482 = vst [vmem:[#allocation2 + $0x48] sm:$0xff] %v6434
        %6483 = vst [vmem:[#allocation2 + $0x50] sm:$0xff] %v6435
        %6484 = vst [vmem:[#allocation2 + $0x58] sm:$0xff] %v6436
        %6485 = vst [vmem:[#allocation2 + $0x60] sm:$0xff] %v6437
        %6486 = vst [vmem:[#allocation2 + $0x68] sm:$0xff] %v6438
        %6487 = vst [vmem:[#allocation2 + $0x70] sm:$0xff] %v6439
        %6488 = vst [vmem:[#allocation2 + $0x78] sm:$0xff] %v6440
        %6489 = vst [vmem:[#allocation2 + $0x80] sm:$0xff] %v6441
        %6490 = vst [vmem:[#allocation2 + $0x88] sm:$0xff] %v6442
        %6491 = vst [vmem:[#allocation2 + $0x90] sm:$0xff] %v6443
        %6492 = vst [vmem:[#allocation2 + $0x98] sm:$0xff] %v6444
        %6493 = vst [vmem:[#allocation2 + $0xa0] sm:$0xff] %v6445
        %6494 = vst [vmem:[#allocation2 + $0xa8] sm:$0xff] %v6446
        %6495 = vst [vmem:[#allocation2 + $0xb0] sm:$0xff] %v6447
        %6496 = vst [vmem:[#allocation2 + $0xb8] sm:$0xff] %v6448
        %6497 = vst [vmem:[#allocation2 + $0xc0] sm:$0xff] %v6449
        %6498 = vst [vmem:[#allocation2 + $0xc8] sm:$0xff] %v6450
        %6499 = vst [vmem:[#allocation2 + $0xd0] sm:$0xff] %v6451
        %6500 = vst [vmem:[#allocation2 + $0xd8] sm:$0xff] %v6452
        %6501 = vst [vmem:[#allocation2 + $0xe0] sm:$0xff] %v6453
        %6502 = vst [vmem:[#allocation2 + $0xe8] sm:$0xff] %v6454
        %6503 = vst [vmem:[#allocation2 + $0xf0] sm:$0xff] %v6455
        %6504 = vst [vmem:[#allocation2 + $0xf8] sm:$0xff] %v6456
        %6505 = vst [vmem:[#allocation2 + $0x100] sm:$0xff] %v6457
        %6506 = vst [vmem:[#allocation2 + $0x108] sm:$0xff] %v6458
        %6507 = vst [vmem:[#allocation2 + $0x110] sm:$0xff] %v6459
        %6508 = vst [vmem:[#allocation2 + $0x118] sm:$0xff] %v6460
        %6509 = vst [vmem:[#allocation2 + $0x120] sm:$0xff] %v6461
        %6510 = vst [vmem:[#allocation2 + $0x128] sm:$0xff] %v6462
        %6511 = vst [vmem:[#allocation2 + $0x130] sm:$0xff] %v6463
        %6512 = vst [vmem:[#allocation2 + $0x138] sm:$0xff] %v6464
        %6513 = vst [vmem:[#allocation2 + $0x140] sm:$0xff] %v6465
        %6514 = vst [vmem:[#allocation2 + $0x148] sm:$0xff] %v6466
        %6515 = vst [vmem:[#allocation2 + $0x150] sm:$0xff] %v6467
        %6516 = vst [vmem:[#allocation2 + $0x158] sm:$0xff] %v6468
        %6517 = vst [vmem:[#allocation2 + $0x160] sm:$0xff] %v6469
        %6518 = vst [vmem:[#allocation2 + $0x168] sm:$0xff] %v6470
        %6519 = vst [vmem:[#allocation2 + $0x170] sm:$0xff] %v6471
        %6520 = vst [vmem:[#allocation2 + $0x178] sm:$0xff] %v6472
        %v6521 = vld [vmem:[#allocation2] sm:$0xff]
        %v6522 = vld [vmem:[#allocation2 + $0x8] sm:$0xff]
        %v6523 = vld [vmem:[#allocation2 + $0x10] sm:$0xff]
        %v6524 = vld [vmem:[#allocation2 + $0x18] sm:$0xff]
        %v6525 = vld [vmem:[#allocation2 + $0x20] sm:$0xff]
        %v6526 = vld [vmem:[#allocation2 + $0x28] sm:$0xff]
        %v6527 = vld [vmem:[#allocation2 + $0x30] sm:$0xff]
        %v6528 = vld [vmem:[#allocation2 + $0x38] sm:$0xff]
        %v6529 = vld [vmem:[#allocation2 + $0x40] sm:$0xff]
        %v6530 = vld [vmem:[#allocation2 + $0x48] sm:$0xff]
        %v6531 = vld [vmem:[#allocation2 + $0x50] sm:$0xff]
        %v6532 = vld [vmem:[#allocation2 + $0x58] sm:$0xff]
        %v6533 = vld [vmem:[#allocation2 + $0x60] sm:$0xff]
        %v6534 = vld [vmem:[#allocation2 + $0x68] sm:$0xff]
        %v6535 = vld [vmem:[#allocation2 + $0x70] sm:$0xff]
        %v6536 = vld [vmem:[#allocation2 + $0x78] sm:$0xff]
        %v6537 = vld [vmem:[#allocation2 + $0x80] sm:$0xff]
        %v6538 = vld [vmem:[#allocation2 + $0x88] sm:$0xff]
        %v6539 = vld [vmem:[#allocation2 + $0x90] sm:$0xff]
        %v6540 = vld [vmem:[#allocation2 + $0x98] sm:$0xff]
        %v6541 = vld [vmem:[#allocation2 + $0xa0] sm:$0xff]
        %v6542 = vld [vmem:[#allocation2 + $0xa8] sm:$0xff]
        %v6543 = vld [vmem:[#allocation2 + $0xb0] sm:$0xff]
        %v6544 = vld [vmem:[#allocation2 + $0xb8] sm:$0xff]
        %v6545 = vld [vmem:[#allocation2 + $0xc0] sm:$0xff]
        %v6546 = vld [vmem:[#allocation2 + $0xc8] sm:$0xff]
        %v6547 = vld [vmem:[#allocation2 + $0xd0] sm:$0xff]
        %v6548 = vld [vmem:[#allocation2 + $0xd8] sm:$0xff]
        %v6549 = vld [vmem:[#allocation2 + $0xe0] sm:$0xff]
        %v6550 = vld [vmem:[#allocation2 + $0xe8] sm:$0xff]
        %v6551 = vld [vmem:[#allocation2 + $0xf0] sm:$0xff]
        %v6552 = vld [vmem:[#allocation2 + $0xf8] sm:$0xff]
        %v6553 = vld [vmem:[#allocation2 + $0x100] sm:$0xff]
        %v6554 = vld [vmem:[#allocation2 + $0x108] sm:$0xff]
        %v6555 = vld [vmem:[#allocation2 + $0x110] sm:$0xff]
        %v6556 = vld [vmem:[#allocation2 + $0x118] sm:$0xff]
        %v6557 = vld [vmem:[#allocation2 + $0x120] sm:$0xff]
        %v6558 = vld [vmem:[#allocation2 + $0x128] sm:$0xff]
        %v6559 = vld [vmem:[#allocation2 + $0x130] sm:$0xff]
        %v6560 = vld [vmem:[#allocation2 + $0x138] sm:$0xff]
        %v6561 = vld [vmem:[#allocation2 + $0x140] sm:$0xff]
        %v6562 = vld [vmem:[#allocation2 + $0x148] sm:$0xff]
        %v6563 = vld [vmem:[#allocation2 + $0x150] sm:$0xff]
        %v6564 = vld [vmem:[#allocation2 + $0x158] sm:$0xff]
        %v6565 = vld [vmem:[#allocation2 + $0x160] sm:$0xff]
        %v6566 = vld [vmem:[#allocation2 + $0x168] sm:$0xff]
        %v6567 = vld [vmem:[#allocation2 + $0x170] sm:$0xff]
        %v6568 = vld [vmem:[#allocation2 + $0x178] sm:$0xff]
        %v6569 = vld [vmem:[%s2] sm:$0x1]
        %v6571 = vlaneseq
        %v6572 = vshrl.u32 %v6571, 7
        %v6573 = vsub.s32 0, %v6572
        %v6574 = vrot.slane %v6569, %v6573
        %v6576 = vadd.f32 %v6521, %v6574
        %v6577 = vadd.f32 %v6522, %v6574
        %v6578 = vadd.f32 %v6523, %v6574
        %v6579 = vadd.f32 %v6524, %v6574
        %v6580 = vadd.f32 %v6525, %v6574
        %v6581 = vadd.f32 %v6526, %v6574
        %v6582 = vadd.f32 %v6527, %v6574
        %v6583 = vadd.f32 %v6528, %v6574
        %v6584 = vadd.f32 %v6529, %v6574
        %v6585 = vadd.f32 %v6530, %v6574
        %v6586 = vadd.f32 %v6531, %v6574
        %v6587 = vadd.f32 %v6532, %v6574
        %v6588 = vadd.f32 %v6533, %v6574
        %v6589 = vadd.f32 %v6534, %v6574
        %v6590 = vadd.f32 %v6535, %v6574
        %v6591 = vadd.f32 %v6536, %v6574
        %v6592 = vadd.f32 %v6537, %v6574
        %v6593 = vadd.f32 %v6538, %v6574
        %v6594 = vadd.f32 %v6539, %v6574
        %v6595 = vadd.f32 %v6540, %v6574
        %v6596 = vadd.f32 %v6541, %v6574
        %v6597 = vadd.f32 %v6542, %v6574
        %v6598 = vadd.f32 %v6543, %v6574
        %v6599 = vadd.f32 %v6544, %v6574
        %v6600 = vadd.f32 %v6545, %v6574
        %v6601 = vadd.f32 %v6546, %v6574
        %v6602 = vadd.f32 %v6547, %v6574
        %v6603 = vadd.f32 %v6548, %v6574
        %v6604 = vadd.f32 %v6549, %v6574
        %v6605 = vadd.f32 %v6550, %v6574
        %v6606 = vadd.f32 %v6551, %v6574
        %v6607 = vadd.f32 %v6552, %v6574
        %v6608 = vadd.f32 %v6553, %v6574
        %v6609 = vadd.f32 %v6554, %v6574
        %v6610 = vadd.f32 %v6555, %v6574
        %v6611 = vadd.f32 %v6556, %v6574
        %v6612 = vadd.f32 %v6557, %v6574
        %v6613 = vadd.f32 %v6558, %v6574
        %v6614 = vadd.f32 %v6559, %v6574
        %v6615 = vadd.f32 %v6560, %v6574
        %v6616 = vadd.f32 %v6561, %v6574
        %v6617 = vadd.f32 %v6562, %v6574
        %v6618 = vadd.f32 %v6563, %v6574
        %v6619 = vadd.f32 %v6564, %v6574
        %v6620 = vadd.f32 %v6565, %v6574
        %v6621 = vadd.f32 %v6566, %v6574
        %v6622 = vadd.f32 %v6567, %v6574
        %v6623 = vadd.f32 %v6568, %v6574
        %6624 = vst [vmem:[%s177] sm:$0xff] %v6576
        %6625 = vst [vmem:[%s177 + $0x8] sm:$0xff] %v6577
        %6626 = vst [vmem:[%s177 + $0x10] sm:$0xff] %v6578
        %6627 = vst [vmem:[%s177 + $0x18] sm:$0xff] %v6579
        %6628 = vst [vmem:[%s177 + $0x20] sm:$0xff] %v6580
        %6629 = vst [vmem:[%s177 + $0x28] sm:$0xff] %v6581
        %6630 = vst [vmem:[%s177 + $0x30] sm:$0xff] %v6582
        %6631 = vst [vmem:[%s177 + $0x38] sm:$0xff] %v6583
        %6632 = vst [vmem:[%s177 + $0x40] sm:$0xff] %v6584
        %6633 = vst [vmem:[%s177 + $0x48] sm:$0xff] %v6585
        %6634 = vst [vmem:[%s177 + $0x50] sm:$0xff] %v6586
        %6635 = vst [vmem:[%s177 + $0x58] sm:$0xff] %v6587
        %6636 = vst [vmem:[%s177 + $0x60] sm:$0xff] %v6588
        %6637 = vst [vmem:[%s177 + $0x68] sm:$0xff] %v6589
        %6638 = vst [vmem:[%s177 + $0x70] sm:$0xff] %v6590
        %6639 = vst [vmem:[%s177 + $0x78] sm:$0xff] %v6591
        %6640 = vst [vmem:[%s177 + $0x80] sm:$0xff] %v6592
        %6641 = vst [vmem:[%s177 + $0x88] sm:$0xff] %v6593
        %6642 = vst [vmem:[%s177 + $0x90] sm:$0xff] %v6594
        %6643 = vst [vmem:[%s177 + $0x98] sm:$0xff] %v6595
        %6644 = vst [vmem:[%s177 + $0xa0] sm:$0xff] %v6596
        %6645 = vst [vmem:[%s177 + $0xa8] sm:$0xff] %v6597
        %6646 = vst [vmem:[%s177 + $0xb0] sm:$0xff] %v6598
        %6647 = vst [vmem:[%s177 + $0xb8] sm:$0xff] %v6599
        %6648 = vst [vmem:[%s177 + $0xc0] sm:$0xff] %v6600
        %6649 = vst [vmem:[%s177 + $0xc8] sm:$0xff] %v6601
        %6650 = vst [vmem:[%s177 + $0xd0] sm:$0xff] %v6602
        %6651 = vst [vmem:[%s177 + $0xd8] sm:$0xff] %v6603
        %6652 = vst [vmem:[%s177 + $0xe0] sm:$0xff] %v6604
        %6653 = vst [vmem:[%s177 + $0xe8] sm:$0xff] %v6605
        %6654 = vst [vmem:[%s177 + $0xf0] sm:$0xff] %v6606
        %6655 = vst [vmem:[%s177 + $0xf8] sm:$0xff] %v6607
        %6656 = vst [vmem:[%s177 + $0x100] sm:$0xff] %v6608
        %6657 = vst [vmem:[%s177 + $0x108] sm:$0xff] %v6609
        %6658 = vst [vmem:[%s177 + $0x110] sm:$0xff] %v6610
        %6659 = vst [vmem:[%s177 + $0x118] sm:$0xff] %v6611
        %6660 = vst [vmem:[%s177 + $0x120] sm:$0xff] %v6612
        %6661 = vst [vmem:[%s177 + $0x128] sm:$0xff] %v6613
        %6662 = vst [vmem:[%s177 + $0x130] sm:$0xff] %v6614
        %6663 = vst [vmem:[%s177 + $0x138] sm:$0xff] %v6615
        %6664 = vst [vmem:[%s177 + $0x140] sm:$0xff] %v6616
        %6665 = vst [vmem:[%s177 + $0x148] sm:$0xff] %v6617
        %6666 = vst [vmem:[%s177 + $0x150] sm:$0xff] %v6618
        %6667 = vst [vmem:[%s177 + $0x158] sm:$0xff] %v6619
        %6668 = vst [vmem:[%s177 + $0x160] sm:$0xff] %v6620
        %6669 = vst [vmem:[%s177 + $0x168] sm:$0xff] %v6621
        %6670 = vst [vmem:[%s177 + $0x170] sm:$0xff] %v6622
        %6671 = vst [vmem:[%s177 + $0x178] sm:$0xff] %v6623
        %s6672 = sand.u32 %s107, 1
        %s6673 = scalar_lea.sflag [#allocation4], %s6672
        %s6674 = sand.u32 %s107, 1
        %s6675 = smul.addr %s6674, 384
        %s6676 = scalar_lea.vmem [#allocation3], %s6675
        // Predicated region
        $region33: #{tpu_custom_call.1} parent=31 // pred_check
          %p6677 = pneg %p117
        $region34: #{tpu_custom_call.1} parent=31 // pred_check_branch
          %6679 = sbr.rel (%p6677) target = $region36
        $region35: #{tpu_custom_call.1} parent=31 // pred_region
          %s6680 = smul.u32 48, %s22
          %s6682 = ssub.s32 6144, 6144
          %6683 = vsyncadd %s6673, %s6682
          %s6684 = smul.addr %s21, 48
          %s6685 = sadd.s32 %s6680, %s6684
          %s6686 = smul.addr %s6685, 128
          %s6687 = scalar_lea.hbm %s3, %s6686
          %s6688 = sshll.u32 %s6676, 4
          %s6689 = int_to_ptr.vmem [resolvable:$true] %s6688
          %6694 = dma.vmem_to_hbm [thread:$0]  %s6689, 6144, %s6687, %s6673, 128, 128, 8
        $region36: #{tpu_custom_call.1} parent=31 // pred_fallthru
          _
      $region32: #{tpu_custom_call.1} parent=5 // pred_fallthru
        _
      %p6695 = scmp.le.s32.totalorder 2, %s12
      // Predicated region
      $region37: #{tpu_custom_call.1} parent=5 // pred_check
        %p6696 = pneg %p6695
      $region38: #{tpu_custom_call.1} parent=5 // pred_check_branch
        %6698 = sbr.rel (%p6696) target = $region40
      $region39: #{tpu_custom_call.1} parent=5 // pred_region
        %s6699 = ssub.s32 %s12, 2
        // Predicated region
        $region41: #{tpu_custom_call.1} parent=39 // pred_check
          %p6700 = pneg %p123
        $region42: #{tpu_custom_call.1} parent=39 // pred_check_branch
          %6702 = sbr.rel (%p6700) target = $region44
        $region43: #{tpu_custom_call.1} parent=39 // pred_region
          %s6703 = sand.u32 %s108, 1
          %s6704 = scalar_lea.sflag [#allocation4], %s6703
          %s6705 = sand.u32 %s108, 1
          %s6706 = smul.addr %s6705, 384
          %s6707 = scalar_lea.vmem [#allocation3], %s6706
          %6708 = dma.done %s6704, 6144
        $region44: #{tpu_custom_call.1} parent=39 // pred_fallthru
          _
      $region40: #{tpu_custom_call.1} parent=5 // pred_fallthru
        _
    $region6: #{tpu_custom_call.1} parent=1 // loop_footer
      %s16 = sadd.s32 1, %s12
    $region7: #{tpu_custom_call.1} parent=1 // loop_footer_branch
      %11 = sbr.rel target = $region3
    $region8: #{tpu_custom_call.1} parent=1 // loop_exit
      _
    %6709 = vsyncpa [#allocation4], 1
    %s6710 = scalar_lea.sflag [#allocation4], 1
    %6711 = vsyncpa %s6710, 1

</llo_original>
